<compile_context>
chip_gen: v5e
topology: v5e:2x2
jax: 0.10.0
libtpu: 0.0.40
codegen_flags: <defaults>
</compile_context>

<pallas_src>
import jax
import jax.numpy as jnp
from jax import lax
from jax.experimental import pallas as pl
from jax.experimental.pallas import tpu as pltpu

BN_EPS = 1e-5


# ---------------------------------------------------------------------------
# Kernels
# ---------------------------------------------------------------------------
def _make_conv_kernel(H, W, C, fuse_bn_relu):
    """Per-image 3x3 'SAME' conv. Optionally fuses BN+ReLU of the *previous* layer
    onto the input while staging it into the padded scratch. Emits the raw conv
    output tile and per-image BN partial statistics (sum, sumsq)."""
    Hp, Wp = H + 2, W + 2
    HW = H * W

    def kernel(a_ref, scale_ref, shift_ref, w_ref, y_ref, stats_ref,
               pad_ref, patch_ref):
        # Zero only the 1-pixel halo (every step; the interior is fully overwritten
        # below). Not gated on pl.program_id so it is correct when the "parallel"
        # grid axis is sharded across two TensorCores (each owns its own scratch).
        pad_ref[0:1, :, :] = jnp.zeros((1, Wp, C), jnp.float32)
        pad_ref[H + 1:Hp, :, :] = jnp.zeros((1, Wp, C), jnp.float32)
        pad_ref[:, 0:1, :] = jnp.zeros((Hp, 1, C), jnp.float32)
        pad_ref[:, W + 1:Wp, :] = jnp.zeros((Hp, 1, C), jnp.float32)

        a = a_ref[...]                                            # (H, W, C) f32
        if fuse_bn_relu:
            # scale/shift precomputed in the wrapper from the previous layer's
            # global batch statistics: a = relu(bn(prev_conv_out)).
            a = jnp.maximum(a * scale_ref[...] + shift_ref[...], 0.0)
        pad_ref[1:H + 1, 1:W + 1, :] = a

        # im2col: 9 shifted windows into a reused bf16 (HW, 9C) buffer, then one
        # fused MXU matmul with K = 9C.
        # TODO(synk): lane-dense tap stores (2 taps per 128-lane store for C=64).
        for kh in range(3):
            for kw in range(3):
                t = kh * 3 + kw
                patch_ref[:, t * C:(t + 1) * C] = (
                    pad_ref[kh:kh + H, kw:kw + W, :]
                    .reshape(HW, C).astype(jnp.bfloat16))

        # bf16 x bf16 -> f32 accumulation: MXU-native on v5e/v6e/v7x.
        y = jnp.dot(patch_ref[...], w_ref[...],
                    preferred_element_type=jnp.float32)           # (HW, C) f32

        # Per-image BN partial statistics; combined across the batch in the wrapper.
        s1 = jnp.sum(y, axis=0, keepdims=True)                    # (1, C)
        s2 = jnp.sum(y * y, axis=0, keepdims=True)                # (1, C)
        stats_ref[0:1, :] = s1
        stats_ref[1:2, :] = s2

        y_ref[...] = y.reshape(H, W, C)

    return kernel


def _final_kernel(y_ref, x_ref, scale_ref, shift_ref, o_ref):
    """Final BatchNorm (precomputed scale/shift) + residual add + ReLU, per image."""
    o_ref[...] = jnp.maximum(
        y_ref[...] * scale_ref[...] + shift_ref[...] + x_ref[...], 0.0)


# ---------------------------------------------------------------------------
# Wrapper plumbing
# ---------------------------------------------------------------------------
def _vmem_limit_bytes(H, W, C):
    """Generation-aware scoped-VMEM limit sized from the per-grid-step working set."""
    def tile2d(rows, cols, itemsize):
        return (-(-rows // 8) * 8) * (-(-cols // 128) * 128) * itemsize

    Hp, Wp = H + 2, W + 2
    blk_act = H * tile2d(W, C, 4)
    per_step = 2 * (2 * blk_act                          # double-buffered in/out act
                    + tile2d(2, C, 4)                    # per-image stats block
                    + 2 * tile2d(1, C, 4)                # scale / shift
                    + tile2d(9 * C, C, 2))               # bf16 fused weights
    scratch = Hp * tile2d(Wp, C, 4) + tile2d(H * W, 9 * C, 2)
    live = 3 * tile2d(H * W, C, 4)                       # y, y*y, staged interior
    want = per_step + scratch + live
    try:
        cap = pltpu.get_tpu_info().vmem_capacity_bytes
    except Exception:                                    # fall back if query fails
        cap = 64 * 2**20
    return int(min(max(want, 32 * 2**20), int(0.85 * cap)))


def _conv_layer(a_nhwc, scale, shift, w_bf16, *, fuse_bn_relu, vmem_limit):
    N, H, W, C = a_nhwc.shape
    kernel = _make_conv_kernel(H, W, C, fuse_bn_relu)
    y, stats = pl.pallas_call(
        kernel,
        grid=(N,),
        in_specs=[
            pl.BlockSpec((None, H, W, C), lambda b: (b, 0, 0, 0)),   # activation
            pl.BlockSpec((1, 1, C), lambda b: (0, 0, 0)),            # prev BN scale
            pl.BlockSpec((1, 1, C), lambda b: (0, 0, 0)),            # prev BN shift
            pl.BlockSpec((9 * C, C), lambda b: (0, 0)),              # fused weights
        ],
        out_specs=(
            pl.BlockSpec((None, H, W, C), lambda b: (b, 0, 0, 0)),   # raw conv out
            pl.BlockSpec((None, 2, C), lambda b: (b, 0, 0)),         # per-image stats
        ),
        out_shape=(
            jax.ShapeDtypeStruct((N, H, W, C), jnp.float32),
            jax.ShapeDtypeStruct((N, 2, C), jnp.float32),
        ),
        scratch_shapes=[
            pltpu.VMEM((H + 2, W + 2, C), jnp.float32),              # padded act
            pltpu.VMEM((H * W, 9 * C), jnp.bfloat16),                # im2col patches
        ],
        compiler_params=pltpu.CompilerParams(
            dimension_semantics=("parallel",),
            vmem_limit_bytes=vmem_limit),
    )(a_nhwc, scale, shift, w_bf16)
    return y, stats


def _bn_scale_shift(stats, gamma, beta, count):
    """Combine per-image (sum, sumsq) partials into BN scale/shift (tiny (C,) math)."""
    s1 = jnp.sum(stats[:, 0, :], axis=0)
    s2 = jnp.sum(stats[:, 1, :], axis=0)
    mean = s1 / count
    var = jnp.maximum(s2 / count - mean * mean, 0.0)
    scale = gamma * lax.rsqrt(var + BN_EPS)
    shift = beta - mean * scale
    C = gamma.shape[0]
    return scale.reshape(1, 1, C), shift.reshape(1, 1, C)


@jax.jit
def resnet_block(x_nchw, params):
    """x_nchw: (N, C, H, W) float32. params: HWIO conv weights + BN params."""
    N, C, H, W = x_nchw.shape
    # NOTE: NCHW<->NHWC transposes kept only because the external interface is
    # PyTorch NCHW; fold away if the surrounding network stays NHWC.
    x = jnp.transpose(x_nchw, (0, 2, 3, 1)).astype(jnp.float32)      # -> NHWC
    count = float(N * H * W)
    vlim = _vmem_limit_bytes(H, W, C)

    def rw(w):   # HWIO (3,3,C,C) -> fused im2col weight (9C, C), bf16 for the MXU
        return w.reshape(9 * C, C).astype(jnp.bfloat16)

    ones = jnp.ones((1, 1, C), jnp.float32)
    zeros = jnp.zeros((1, 1, C), jnp.float32)

    # Conv biases params['b*'] are intentionally not applied inside the kernels:
    # training-mode BatchNorm subtracts the batch mean immediately after the conv,
    # so a per-channel bias cancels exactly.
    y1, st1 = _conv_layer(x, ones, zeros, rw(params["w1"]),
                          fuse_bn_relu=False, vmem_limit=vlim)
    sc1, sh1 = _bn_scale_shift(st1, params["g1"], params["be1"], count)

    y2, st2 = _conv_layer(y1, sc1, sh1, rw(params["w2"]),
                          fuse_bn_relu=True, vmem_limit=vlim)
    sc2, sh2 = _bn_scale_shift(st2, params["g2"], params["be2"], count)

    y3, st3 = _conv_layer(y2, sc2, sh2, rw(params["w3"]),
                          fuse_bn_relu=True, vmem_limit=vlim)
    sc3, sh3 = _bn_scale_shift(st3, params["g3"], params["be3"], count)

    out = pl.pallas_call(
        _final_kernel,
        grid=(N,),
        in_specs=[
            pl.BlockSpec((None, H, W, C), lambda b: (b, 0, 0, 0)),   # y3
            pl.BlockSpec((None, H, W, C), lambda b: (b, 0, 0, 0)),   # residual x
            pl.BlockSpec((1, 1, C), lambda b: (0, 0, 0)),            # BN3 scale
            pl.BlockSpec((1, 1, C), lambda b: (0, 0, 0)),            # BN3 shift
        ],
        out_specs=pl.BlockSpec((None, H, W, C), lambda b: (b, 0, 0, 0)),
        out_shape=jax.ShapeDtypeStruct((N, H, W, C), jnp.float32),
        compiler_params=pltpu.CompilerParams(
            dimension_semantics=("parallel",),
            vmem_limit_bytes=vlim),
    )(y3, x, sc3, sh3)

    return jnp.transpose(out, (0, 3, 1, 2))                          # -> NCHW


# ---------------------------------------------------------------------------
# Pure-JAX reference (NCHW, matches PyTorch forward in training mode).
# mxu_bf16=True models the same MXU input precision the kernel uses
# (bf16 conv inputs, f32 accumulation) so the comparison can be tight.
# ---------------------------------------------------------------------------
def _ref_forward(x, params, *, mxu_bf16=False):
    def conv(h, w_hwio, b):
        w_oihw = jnp.transpose(w_hwio, (3, 2, 0, 1))
        if mxu_bf16:
            h = h.astype(jnp.bfloat16)
            w_oihw = w_oihw.astype(jnp.bfloat16)
        y = lax.conv_general_dilated(
            h, w_oihw, window_strides=(1, 1), padding="SAME",
            dimension_numbers=("NCHW", "OIHW", "NCHW"),
            preferred_element_type=jnp.float32,
            precision=lax.Precision.HIGHEST)
        return y + b[None, :, None, None]

    def bn_relu(y, g, be, add=None):
        mean = jnp.mean(y, axis=(0, 2, 3), keepdims=True)
        var = jnp.mean((y - mean) ** 2, axis=(0, 2, 3), keepdims=True)
        out = (y - mean) * lax.rsqrt(var + BN_EPS)
        out = out * g[None, :, None, None] + be[None, :, None, None]
        if add is not None:
            out = out + add
        return jnp.maximum(out, 0.0)

    h = bn_relu(conv(x, params["w1"], params["b1"]), params["g1"], params["be1"])
    h = bn_relu(conv(h, params["w2"], params["b2"]), params["g2"], params["be2"])
    h = bn_relu(conv(h, params["w3"], params["b3"]), params["g3"], params["be3"], add=x)
    return h


def init_params(key, c):
    ks = jax.random.split(key, 6)
    p = {}
    for i in range(3):
        p[f"w{i+1}"] = 0.1 * jax.random.normal(ks[2 * i], (3, 3, c, c), jnp.float32)
        p[f"b{i+1}"] = 0.1 * jax.random.normal(ks[2 * i + 1], (c,), jnp.float32)
        p[f"g{i+1}"] = jnp.ones((c,), jnp.float32)     # BatchNorm default weight
        p[f"be{i+1}"] = jnp.zeros((c,), jnp.float32)   # BatchNorm default bias
    return p


if __name__ == "__main__":
    key = jax.random.PRNGKey(0)
    k_x, k_p = jax.random.split(key)

    N, C, H, W = 2, 4, 16, 16
    x = jax.random.normal(k_x, (N, C, H, W), jnp.float32)
    params = init_params(k_p, C)

    out = jax.block_until_ready(resnet_block(x, params))
    assert out.shape == (N, C, H, W)

    # Tight check vs. a reference that models the kernel's MXU input precision
    # (bf16 conv inputs, f32 accumulation); loose sanity check vs. pure f32
    # (difference there is the expected bf16-MXU rounding, O(1e-2)).
    ref_bf16 = _ref_forward(x, params, mxu_bf16=True)
    ref_f32 = _ref_forward(x, params, mxu_bf16=False)
    err_bf16 = float(jnp.max(jnp.abs(out - ref_bf16)))
    err_f32 = float(jnp.max(jnp.abs(out - ref_f32)))
    assert err_bf16 < 5e-3, ("mismatch vs bf16-precision reference", err_bf16)
    assert err_f32 < 1e-1, ("mismatch vs f32 reference", err_f32)
    print("KERNEL_OK")
</pallas_src>

<mosaic_0001>
module attributes {stable_mosaic.version = 11 : i64} {
  func.func @_final_kernel(%arg0: i32, %arg1: memref<1x16x16x4xf32, #tpu.memory_space<vmem>>, %arg2: memref<1x16x16x4xf32, #tpu.memory_space<vmem>>, %arg3: memref<1x1x4xf32, #tpu.memory_space<vmem>>, %arg4: memref<1x1x4xf32, #tpu.memory_space<vmem>>, %arg5: memref<1x16x16x4xf32, #tpu.memory_space<vmem>>) attributes {dimension_semantics = [#tpu.dimension_semantics<parallel>], iteration_bounds = array<i64: 2>, scalar_prefetch = 0 : i64, scratch_operands = 0 : i64, tpu.core_type = #tpu.core_type<tc>, window_params = [{transform_indices = @transform_0, window_bounds = array<i64: 1, 16, 16, 4>}, {transform_indices = @transform_1, window_bounds = array<i64: 1, 16, 16, 4>}, {pipeline_mode = #tpu.pipeline_mode<synchronous>, transform_indices = @transform_2, window_bounds = array<i64: 1, 1, 4>}, {pipeline_mode = #tpu.pipeline_mode<synchronous>, transform_indices = @transform_3, window_bounds = array<i64: 1, 1, 4>}, {transform_indices = @transform_4, window_bounds = array<i64: 1, 16, 16, 4>}]} {
    %c0 = arith.constant 0 : index
    %c0_0 = arith.constant 0 : index
    %c0_1 = arith.constant 0 : index
    %c0_2 = arith.constant 0 : index
    %0 = vector.load %arg1[%c0, %c0_0, %c0_1, %c0_2] : memref<1x16x16x4xf32, #tpu.memory_space<vmem>>, vector<1x16x16x4xf32>
    %1 = vector.shape_cast %0 : vector<1x16x16x4xf32> to vector<16x16x4xf32>
    %c0_3 = arith.constant 0 : index
    %c0_4 = arith.constant 0 : index
    %c0_5 = arith.constant 0 : index
    %2 = vector.load %arg3[%c0_3, %c0_4, %c0_5] : memref<1x1x4xf32, #tpu.memory_space<vmem>>, vector<1x1x4xf32>
    %3 = vector.broadcast %2 : vector<1x1x4xf32> to vector<16x16x4xf32>
    %4 = arith.mulf %1, %3 : vector<16x16x4xf32>
    %c0_6 = arith.constant 0 : index
    %c0_7 = arith.constant 0 : index
    %c0_8 = arith.constant 0 : index
    %5 = vector.load %arg4[%c0_6, %c0_7, %c0_8] : memref<1x1x4xf32, #tpu.memory_space<vmem>>, vector<1x1x4xf32>
    %6 = vector.broadcast %5 : vector<1x1x4xf32> to vector<16x16x4xf32>
    %7 = arith.addf %4, %6 : vector<16x16x4xf32>
    %c0_9 = arith.constant 0 : index
    %c0_10 = arith.constant 0 : index
    %c0_11 = arith.constant 0 : index
    %c0_12 = arith.constant 0 : index
    %8 = vector.load %arg2[%c0_9, %c0_10, %c0_11, %c0_12] : memref<1x16x16x4xf32, #tpu.memory_space<vmem>>, vector<1x16x16x4xf32>
    %9 = vector.shape_cast %8 : vector<1x16x16x4xf32> to vector<16x16x4xf32>
    %10 = arith.addf %7, %9 : vector<16x16x4xf32>
    %cst = arith.constant 0.000000e+00 : f32
    %11 = vector.broadcast %cst : f32 to vector<16x16x4xf32>
    %12 = arith.maximumf %10, %11 : vector<16x16x4xf32>
    %c0_13 = arith.constant 0 : index
    %c0_14 = arith.constant 0 : index
    %c0_15 = arith.constant 0 : index
    %c0_16 = arith.constant 0 : index
    %13 = vector.load %arg5[%c0_13, %c0_14, %c0_15, %c0_16] : memref<1x16x16x4xf32, #tpu.memory_space<vmem>>, vector<1x16x16x4xf32>
    %14 = vector.shape_cast %13 : vector<1x16x16x4xf32> to vector<16x16x4xf32>
    %15 = vector.shape_cast %12 : vector<16x16x4xf32> to vector<1x16x16x4xf32>
    tpu.vector_store %arg5[%c0_13, %c0_14, %c0_15, %c0_16], %15 {strides = array<i32>} : memref<1x16x16x4xf32, #tpu.memory_space<vmem>>, vector<1x16x16x4xf32>,
    return
  }
  func.func @transform_0(%arg0: i32) -> (i32, i32, i32, i32) {
    %c0_i32 = arith.constant 0 : i32
    %c0_i32_0 = arith.constant 0 : i32
    %c0_i32_1 = arith.constant 0 : i32
    %c0_i32_2 = arith.constant 0 : i32
    return %arg0, %c0_i32, %c0_i32_0, %c0_i32_1 : i32, i32, i32, i32
  }
  func.func @transform_1(%arg0: i32) -> (i32, i32, i32, i32) {
    %c0_i32 = arith.constant 0 : i32
    %c0_i32_0 = arith.constant 0 : i32
    %c0_i32_1 = arith.constant 0 : i32
    %c0_i32_2 = arith.constant 0 : i32
    return %arg0, %c0_i32, %c0_i32_0, %c0_i32_1 : i32, i32, i32, i32
  }
  func.func @transform_2(%arg0: i32) -> (i32, i32, i32) {
    %c0_i32 = arith.constant 0 : i32
    %c0_i32_0 = arith.constant 0 : i32
    %c0_i32_1 = arith.constant 0 : i32
    %c0_i32_2 = arith.constant 0 : i32
    return %c0_i32, %c0_i32_0, %c0_i32_1 : i32, i32, i32
  }
  func.func @transform_3(%arg0: i32) -> (i32, i32, i32) {
    %c0_i32 = arith.constant 0 : i32
    %c0_i32_0 = arith.constant 0 : i32
    %c0_i32_1 = arith.constant 0 : i32
    %c0_i32_2 = arith.constant 0 : i32
    return %c0_i32, %c0_i32_0, %c0_i32_1 : i32, i32, i32
  }
  func.func @transform_4(%arg0: i32) -> (i32, i32, i32, i32) {
    %c0_i32 = arith.constant 0 : i32
    %c0_i32_0 = arith.constant 0 : i32
    %c0_i32_1 = arith.constant 0 : i32
    %c0_i32_2 = arith.constant 0 : i32
    return %arg0, %c0_i32, %c0_i32_0, %c0_i32_1 : i32, i32, i32, i32
  }
}

module attributes {stable_mosaic.version = 11 : i64} {
  func.func @kernel(%arg0: i32, %arg1: memref<1x16x16x4xf32, #tpu.memory_space<vmem>>, %arg2: memref<1x1x4xf32, #tpu.memory_space<vmem>>, %arg3: memref<1x1x4xf32, #tpu.memory_space<vmem>>, %arg4: memref<36x4xbf16, #tpu.memory_space<vmem>>, %arg5: memref<1x16x16x4xf32, #tpu.memory_space<vmem>>, %arg6: memref<1x2x4xf32, #tpu.memory_space<vmem>>, %arg7: memref<18x18x4xf32, #tpu.memory_space<vmem>>, %arg8: memref<256x36xbf16, #tpu.memory_space<vmem>>) attributes {dimension_semantics = [#tpu.dimension_semantics<parallel>], iteration_bounds = array<i64: 2>, scalar_prefetch = 0 : i64, scratch_operands = 2 : i64, tpu.core_type = #tpu.core_type<tc>, window_params = [{transform_indices = @transform_0, window_bounds = array<i64: 1, 16, 16, 4>}, {pipeline_mode = #tpu.pipeline_mode<synchronous>, transform_indices = @transform_1, window_bounds = array<i64: 1, 1, 4>}, {pipeline_mode = #tpu.pipeline_mode<synchronous>, transform_indices = @transform_2, window_bounds = array<i64: 1, 1, 4>}, {pipeline_mode = #tpu.pipeline_mode<synchronous>, transform_indices = @transform_3, window_bounds = array<i64: 36, 4>}, {transform_indices = @transform_4, window_bounds = array<i64: 1, 16, 16, 4>}, {transform_indices = @transform_5, window_bounds = array<i64: 1, 2, 4>}]} {
    %cst = arith.constant 0.000000e+00 : f32
    %0 = vector.broadcast %cst : f32 to vector<1x18x4xf32>
    %c0 = arith.constant 0 : index
    %c0_0 = arith.constant 0 : index
    %c0_1 = arith.constant 0 : index
    %1 = vector.load %arg7[%c0, %c0_0, %c0_1] : memref<18x18x4xf32, #tpu.memory_space<vmem>>, vector<1x18x4xf32>
    tpu.vector_store %arg7[%c0, %c0_0, %c0_1], %0 {strides = array<i32>} : memref<18x18x4xf32, #tpu.memory_space<vmem>>, vector<1x18x4xf32>,
    %cst_2 = arith.constant 0.000000e+00 : f32
    %2 = vector.broadcast %cst_2 : f32 to vector<1x18x4xf32>
    %c17 = arith.constant 17 : index
    %c0_3 = arith.constant 0 : index
    %c0_4 = arith.constant 0 : index
    %3 = vector.load %arg7[%c17, %c0_3, %c0_4] : memref<18x18x4xf32, #tpu.memory_space<vmem>>, vector<1x18x4xf32>
    tpu.vector_store %arg7[%c17, %c0_3, %c0_4], %2 {strides = array<i32>} : memref<18x18x4xf32, #tpu.memory_space<vmem>>, vector<1x18x4xf32>,
    %cst_5 = arith.constant 0.000000e+00 : f32
    %4 = vector.broadcast %cst_5 : f32 to vector<18x1x4xf32>
    %c0_6 = arith.constant 0 : index
    %c0_7 = arith.constant 0 : index
    %c0_8 = arith.constant 0 : index
    %5 = vector.load %arg7[%c0_6, %c0_7, %c0_8] : memref<18x18x4xf32, #tpu.memory_space<vmem>>, vector<18x1x4xf32>
    tpu.vector_store %arg7[%c0_6, %c0_7, %c0_8], %4 {strides = array<i32>} : memref<18x18x4xf32, #tpu.memory_space<vmem>>, vector<18x1x4xf32>,
    %cst_9 = arith.constant 0.000000e+00 : f32
    %6 = vector.broadcast %cst_9 : f32 to vector<18x1x4xf32>
    %c0_10 = arith.constant 0 : index
    %c17_11 = arith.constant 17 : index
    %c0_12 = arith.constant 0 : index
    %7 = vector.load %arg7[%c0_10, %c17_11, %c0_12] : memref<18x18x4xf32, #tpu.memory_space<vmem>>, vector<18x1x4xf32>
    tpu.vector_store %arg7[%c0_10, %c17_11, %c0_12], %6 {strides = array<i32>} : memref<18x18x4xf32, #tpu.memory_space<vmem>>, vector<18x1x4xf32>,
    %c0_13 = arith.constant 0 : index
    %c0_14 = arith.constant 0 : index
    %c0_15 = arith.constant 0 : index
    %c0_16 = arith.constant 0 : index
    %8 = vector.load %arg1[%c0_13, %c0_14, %c0_15, %c0_16] : memref<1x16x16x4xf32, #tpu.memory_space<vmem>>, vector<1x16x16x4xf32>
    %9 = vector.shape_cast %8 : vector<1x16x16x4xf32> to vector<16x16x4xf32>
    %c0_17 = arith.constant 0 : index
    %c0_18 = arith.constant 0 : index
    %c0_19 = arith.constant 0 : index
    %10 = vector.load %arg2[%c0_17, %c0_18, %c0_19] : memref<1x1x4xf32, #tpu.memory_space<vmem>>, vector<1x1x4xf32>
    %11 = vector.broadcast %10 : vector<1x1x4xf32> to vector<16x16x4xf32>
    %12 = arith.mulf %9, %11 : vector<16x16x4xf32>
    %c0_20 = arith.constant 0 : index
    %c0_21 = arith.constant 0 : index
    %c0_22 = arith.constant 0 : index
    %13 = vector.load %arg3[%c0_20, %c0_21, %c0_22] : memref<1x1x4xf32, #tpu.memory_space<vmem>>, vector<1x1x4xf32>
    %14 = vector.broadcast %13 : vector<1x1x4xf32> to vector<16x16x4xf32>
    %15 = arith.addf %12, %14 : vector<16x16x4xf32>
    %cst_23 = arith.constant 0.000000e+00 : f32
    %16 = vector.broadcast %cst_23 : f32 to vector<16x16x4xf32>
    %17 = arith.maximumf %15, %16 : vector<16x16x4xf32>
    %c1 = arith.constant 1 : index
    %c1_24 = arith.constant 1 : index
    %c0_25 = arith.constant 0 : index
    %18 = vector.load %arg7[%c1, %c1_24, %c0_25] : memref<18x18x4xf32, #tpu.memory_space<vmem>>, vector<16x16x4xf32>
    tpu.vector_store %arg7[%c1, %c1_24, %c0_25], %17 {strides = array<i32>} : memref<18x18x4xf32, #tpu.memory_space<vmem>>, vector<16x16x4xf32>,
    %c0_26 = arith.constant 0 : index
    %c0_27 = arith.constant 0 : index
    %c0_28 = arith.constant 0 : index
    %19 = vector.load %arg7[%c0_26, %c0_27, %c0_28] : memref<18x18x4xf32, #tpu.memory_space<vmem>>, vector<16x16x4xf32>
    %20 = vector.shape_cast %19 : vector<16x16x4xf32> to vector<256x4xf32>
    %21 = arith.truncf %20 : vector<256x4xf32> to vector<256x4xbf16>
    %c0_29 = arith.constant 0 : index
    %c0_30 = arith.constant 0 : index
    %22 = vector.load %arg8[%c0_29, %c0_30] : memref<256x36xbf16, #tpu.memory_space<vmem>>, vector<256x4xbf16>
    tpu.vector_store %arg8[%c0_29, %c0_30], %21 {strides = array<i32>} : memref<256x36xbf16, #tpu.memory_space<vmem>>, vector<256x4xbf16>,
    %c0_31 = arith.constant 0 : index
    %c1_32 = arith.constant 1 : index
    %c0_33 = arith.constant 0 : index
    %23 = vector.load %arg7[%c0_31, %c1_32, %c0_33] : memref<18x18x4xf32, #tpu.memory_space<vmem>>, vector<16x16x4xf32>
    %24 = vector.shape_cast %23 : vector<16x16x4xf32> to vector<256x4xf32>
    %25 = arith.truncf %24 : vector<256x4xf32> to vector<256x4xbf16>
    %c0_34 = arith.constant 0 : index
    %c4 = arith.constant 4 : index
    %26 = vector.load %arg8[%c0_34, %c4] : memref<256x36xbf16, #tpu.memory_space<vmem>>, vector<256x4xbf16>
    tpu.vector_store %arg8[%c0_34, %c4], %25 {strides = array<i32>} : memref<256x36xbf16, #tpu.memory_space<vmem>>, vector<256x4xbf16>,
    %c0_35 = arith.constant 0 : index
    %c2 = arith.constant 2 : index
    %c0_36 = arith.constant 0 : index
    %27 = vector.load %arg7[%c0_35, %c2, %c0_36] : memref<18x18x4xf32, #tpu.memory_space<vmem>>, vector<16x16x4xf32>
    %28 = vector.shape_cast %27 : vector<16x16x4xf32> to vector<256x4xf32>
    %29 = arith.truncf %28 : vector<256x4xf32> to vector<256x4xbf16>
    %c0_37 = arith.constant 0 : index
    %c8 = arith.constant 8 : index
    %30 = vector.load %arg8[%c0_37, %c8] : memref<256x36xbf16, #tpu.memory_space<vmem>>, vector<256x4xbf16>
    tpu.vector_store %arg8[%c0_37, %c8], %29 {strides = array<i32>} : memref<256x36xbf16, #tpu.memory_space<vmem>>, vector<256x4xbf16>,
    %c1_38 = arith.constant 1 : index
    %c0_39 = arith.constant 0 : index
    %c0_40 = arith.constant 0 : index
    %31 = vector.load %arg7[%c1_38, %c0_39, %c0_40] : memref<18x18x4xf32, #tpu.memory_space<vmem>>, vector<16x16x4xf32>
    %32 = vector.shape_cast %31 : vector<16x16x4xf32> to vector<256x4xf32>
    %33 = arith.truncf %32 : vector<256x4xf32> to vector<256x4xbf16>
    %c0_41 = arith.constant 0 : index
    %c12 = arith.constant 12 : index
    %34 = vector.load %arg8[%c0_41, %c12] : memref<256x36xbf16, #tpu.memory_space<vmem>>, vector<256x4xbf16>
    tpu.vector_store %arg8[%c0_41, %c12], %33 {strides = array<i32>} : memref<256x36xbf16, #tpu.memory_space<vmem>>, vector<256x4xbf16>,
    %c1_42 = arith.constant 1 : index
    %c1_43 = arith.constant 1 : index
    %c0_44 = arith.constant 0 : index
    %35 = vector.load %arg7[%c1_42, %c1_43, %c0_44] : memref<18x18x4xf32, #tpu.memory_space<vmem>>, vector<16x16x4xf32>
    %36 = vector.shape_cast %35 : vector<16x16x4xf32> to vector<256x4xf32>
    %37 = arith.truncf %36 : vector<256x4xf32> to vector<256x4xbf16>
    %c0_45 = arith.constant 0 : index
    %c16 = arith.constant 16 : index
    %38 = vector.load %arg8[%c0_45, %c16] : memref<256x36xbf16, #tpu.memory_space<vmem>>, vector<256x4xbf16>
    tpu.vector_store %arg8[%c0_45, %c16], %37 {strides = array<i32>} : memref<256x36xbf16, #tpu.memory_space<vmem>>, vector<256x4xbf16>,
    %c1_46 = arith.constant 1 : index
    %c2_47 = arith.constant 2 : index
    %c0_48 = arith.constant 0 : index
    %39 = vector.load %arg7[%c1_46, %c2_47, %c0_48] : memref<18x18x4xf32, #tpu.memory_space<vmem>>, vector<16x16x4xf32>
    %40 = vector.shape_cast %39 : vector<16x16x4xf32> to vector<256x4xf32>
    %41 = arith.truncf %40 : vector<256x4xf32> to vector<256x4xbf16>
    %c0_49 = arith.constant 0 : index
    %c20 = arith.constant 20 : index
    %42 = vector.load %arg8[%c0_49, %c20] : memref<256x36xbf16, #tpu.memory_space<vmem>>, vector<256x4xbf16>
    tpu.vector_store %arg8[%c0_49, %c20], %41 {strides = array<i32>} : memref<256x36xbf16, #tpu.memory_space<vmem>>, vector<256x4xbf16>,
    %c2_50 = arith.constant 2 : index
    %c0_51 = arith.constant 0 : index
    %c0_52 = arith.constant 0 : index
    %43 = vector.load %arg7[%c2_50, %c0_51, %c0_52] : memref<18x18x4xf32, #tpu.memory_space<vmem>>, vector<16x16x4xf32>
    %44 = vector.shape_cast %43 : vector<16x16x4xf32> to vector<256x4xf32>
    %45 = arith.truncf %44 : vector<256x4xf32> to vector<256x4xbf16>
    %c0_53 = arith.constant 0 : index
    %c24 = arith.constant 24 : index
    %46 = vector.load %arg8[%c0_53, %c24] : memref<256x36xbf16, #tpu.memory_space<vmem>>, vector<256x4xbf16>
    tpu.vector_store %arg8[%c0_53, %c24], %45 {strides = array<i32>} : memref<256x36xbf16, #tpu.memory_space<vmem>>, vector<256x4xbf16>,
    %c2_54 = arith.constant 2 : index
    %c1_55 = arith.constant 1 : index
    %c0_56 = arith.constant 0 : index
    %47 = vector.load %arg7[%c2_54, %c1_55, %c0_56] : memref<18x18x4xf32, #tpu.memory_space<vmem>>, vector<16x16x4xf32>
    %48 = vector.shape_cast %47 : vector<16x16x4xf32> to vector<256x4xf32>
    %49 = arith.truncf %48 : vector<256x4xf32> to vector<256x4xbf16>
    %c0_57 = arith.constant 0 : index
    %c28 = arith.constant 28 : index
    %50 = vector.load %arg8[%c0_57, %c28] : memref<256x36xbf16, #tpu.memory_space<vmem>>, vector<256x4xbf16>
    tpu.vector_store %arg8[%c0_57, %c28], %49 {strides = array<i32>} : memref<256x36xbf16, #tpu.memory_space<vmem>>, vector<256x4xbf16>,
    %c2_58 = arith.constant 2 : index
    %c2_59 = arith.constant 2 : index
    %c0_60 = arith.constant 0 : index
    %51 = vector.load %arg7[%c2_58, %c2_59, %c0_60] : memref<18x18x4xf32, #tpu.memory_space<vmem>>, vector<16x16x4xf32>
    %52 = vector.shape_cast %51 : vector<16x16x4xf32> to vector<256x4xf32>
    %53 = arith.truncf %52 : vector<256x4xf32> to vector<256x4xbf16>
    %c0_61 = arith.constant 0 : index
    %c32 = arith.constant 32 : index
    %54 = vector.load %arg8[%c0_61, %c32] : memref<256x36xbf16, #tpu.memory_space<vmem>>, vector<256x4xbf16>
    tpu.vector_store %arg8[%c0_61, %c32], %53 {strides = array<i32>} : memref<256x36xbf16, #tpu.memory_space<vmem>>, vector<256x4xbf16>,
    %c0_62 = arith.constant 0 : index
    %c0_63 = arith.constant 0 : index
    %55 = vector.load %arg8[%c0_62, %c0_63] : memref<256x36xbf16, #tpu.memory_space<vmem>>, vector<256x36xbf16>
    %c0_64 = arith.constant 0 : index
    %c0_65 = arith.constant 0 : index
    %56 = vector.load %arg4[%c0_64, %c0_65] : memref<36x4xbf16, #tpu.memory_space<vmem>>, vector<36x4xbf16>
    %cst_66 = arith.constant dense<0.000000e+00> : vector<256x4xf32>
    %57 = tpu.matmul %55, %56, %cst_66 {dimension_numbers = #tpu.dot_dimension_numbers<[1], [0], [0], [1], [0, 0, 1, 1], [], []>} : vector<256x36xbf16>, vector<36x4xbf16>, vector<256x4xf32> -> vector<256x4xf32>
    %cst_67 = arith.constant dense<0.000000e+00> : vector<4xf32>
    %58 = vector.multi_reduction <add>, %57, %cst_67 [0] : vector<256x4xf32> to vector<4xf32>
    %59 = vector.shape_cast %58 : vector<4xf32> to vector<1x4xf32>
    %60 = arith.mulf %57, %57 : vector<256x4xf32>
    %cst_68 = arith.constant dense<0.000000e+00> : vector<4xf32>
    %61 = vector.multi_reduction <add>, %60, %cst_68 [0] : vector<256x4xf32> to vector<4xf32>
    %62 = vector.shape_cast %61 : vector<4xf32> to vector<1x4xf32>
    %c0_69 = arith.constant 0 : index
    %c0_70 = arith.constant 0 : index
    %c0_71 = arith.constant 0 : index
    %63 = vector.load %arg6[%c0_69, %c0_70, %c0_71] : memref<1x2x4xf32, #tpu.memory_space<vmem>>, vector<1x1x4xf32>
    %64 = vector.shape_cast %63 : vector<1x1x4xf32> to vector<1x4xf32>
    %65 = vector.shape_cast %59 : vector<1x4xf32> to vector<1x1x4xf32>
    tpu.vector_store %arg6[%c0_69, %c0_70, %c0_71], %65 {strides = array<i32>} : memref<1x2x4xf32, #tpu.memory_space<vmem>>, vector<1x1x4xf32>,
    %c0_72 = arith.constant 0 : index
    %c1_73 = arith.constant 1 : index
    %c0_74 = arith.constant 0 : index
    %66 = vector.load %arg6[%c0_72, %c1_73, %c0_74] : memref<1x2x4xf32, #tpu.memory_space<vmem>>, vector<1x1x4xf32>
    %67 = vector.shape_cast %66 : vector<1x1x4xf32> to vector<1x4xf32>
    %68 = vector.shape_cast %62 : vector<1x4xf32> to vector<1x1x4xf32>
    tpu.vector_store %arg6[%c0_72, %c1_73, %c0_74], %68 {strides = array<i32>} : memref<1x2x4xf32, #tpu.memory_space<vmem>>, vector<1x1x4xf32>,
    %69 = vector.shape_cast %57 : vector<256x4xf32> to vector<16x16x4xf32>
    %c0_75 = arith.constant 0 : index
    %c0_76 = arith.constant 0 : index
    %c0_77 = arith.constant 0 : index
    %c0_78 = arith.constant 0 : index
    %70 = vector.load %arg5[%c0_75, %c0_76, %c0_77, %c0_78] : memref<1x16x16x4xf32, #tpu.memory_space<vmem>>, vector<1x16x16x4xf32>
    %71 = vector.shape_cast %70 : vector<1x16x16x4xf32> to vector<16x16x4xf32>
    %72 = vector.shape_cast %69 : vector<16x16x4xf32> to vector<1x16x16x4xf32>
    tpu.vector_store %arg5[%c0_75, %c0_76, %c0_77, %c0_78], %72 {strides = array<i32>} : memref<1x16x16x4xf32, #tpu.memory_space<vmem>>, vector<1x16x16x4xf32>,
    return
  }
  func.func @transform_0(%arg0: i32) -> (i32, i32, i32, i32) {
    %c0_i32 = arith.constant 0 : i32
    %c0_i32_0 = arith.constant 0 : i32
    %c0_i32_1 = arith.constant 0 : i32
    %c0_i32_2 = arith.constant 0 : i32
    return %arg0, %c0_i32, %c0_i32_0, %c0_i32_1 : i32, i32, i32, i32
  }
  func.func @transform_1(%arg0: i32) -> (i32, i32, i32) {
    %c0_i32 = arith.constant 0 : i32
    %c0_i32_0 = arith.constant 0 : i32
    %c0_i32_1 = arith.constant 0 : i32
    %c0_i32_2 = arith.constant 0 : i32
    return %c0_i32, %c0_i32_0, %c0_i32_1 : i32, i32, i32
  }
  func.func @transform_2(%arg0: i32) -> (i32, i32, i32) {
    %c0_i32 = arith.constant 0 : i32
    %c0_i32_0 = arith.constant 0 : i32
    %c0_i32_1 = arith.constant 0 : i32
    %c0_i32_2 = arith.constant 0 : i32
    return %c0_i32, %c0_i32_0, %c0_i32_1 : i32, i32, i32
  }
  func.func @transform_3(%arg0: i32) -> (i32, i32) {
    %c0_i32 = arith.constant 0 : i32
    %c0_i32_0 = arith.constant 0 : i32
    %c0_i32_1 = arith.constant 0 : i32
    return %c0_i32, %c0_i32_0 : i32, i32
  }
  func.func @transform_4(%arg0: i32) -> (i32, i32, i32, i32) {
    %c0_i32 = arith.constant 0 : i32
    %c0_i32_0 = arith.constant 0 : i32
    %c0_i32_1 = arith.constant 0 : i32
    %c0_i32_2 = arith.constant 0 : i32
    return %arg0, %c0_i32, %c0_i32_0, %c0_i32_1 : i32, i32, i32, i32
  }
  func.func @transform_5(%arg0: i32) -> (i32, i32, i32) {
    %c0_i32 = arith.constant 0 : i32
    %c0_i32_0 = arith.constant 0 : i32
    %c0_i32_1 = arith.constant 0 : i32
    return %arg0, %c0_i32, %c0_i32_0 : i32, i32, i32
  }
}

module attributes {stable_mosaic.version = 11 : i64} {
  func.func @kernel(%arg0: i32, %arg1: memref<1x16x16x4xf32, #tpu.memory_space<vmem>>, %arg2: memref<1x1x4xf32, #tpu.memory_space<vmem>>, %arg3: memref<1x1x4xf32, #tpu.memory_space<vmem>>, %arg4: memref<36x4xbf16, #tpu.memory_space<vmem>>, %arg5: memref<1x16x16x4xf32, #tpu.memory_space<vmem>>, %arg6: memref<1x2x4xf32, #tpu.memory_space<vmem>>, %arg7: memref<18x18x4xf32, #tpu.memory_space<vmem>>, %arg8: memref<256x36xbf16, #tpu.memory_space<vmem>>) attributes {dimension_semantics = [#tpu.dimension_semantics<parallel>], iteration_bounds = array<i64: 2>, scalar_prefetch = 0 : i64, scratch_operands = 2 : i64, tpu.core_type = #tpu.core_type<tc>, window_params = [{transform_indices = @transform_0, window_bounds = array<i64: 1, 16, 16, 4>}, {pipeline_mode = #tpu.pipeline_mode<synchronous>, transform_indices = @transform_1, window_bounds = array<i64: 1, 1, 4>}, {pipeline_mode = #tpu.pipeline_mode<synchronous>, transform_indices = @transform_2, window_bounds = array<i64: 1, 1, 4>}, {pipeline_mode = #tpu.pipeline_mode<synchronous>, transform_indices = @transform_3, window_bounds = array<i64: 36, 4>}, {transform_indices = @transform_4, window_bounds = array<i64: 1, 16, 16, 4>}, {transform_indices = @transform_5, window_bounds = array<i64: 1, 2, 4>}]} {
    %cst = arith.constant 0.000000e+00 : f32
    %0 = vector.broadcast %cst : f32 to vector<1x18x4xf32>
    %c0 = arith.constant 0 : index
    %c0_0 = arith.constant 0 : index
    %c0_1 = arith.constant 0 : index
    %1 = vector.load %arg7[%c0, %c0_0, %c0_1] : memref<18x18x4xf32, #tpu.memory_space<vmem>>, vector<1x18x4xf32>
    tpu.vector_store %arg7[%c0, %c0_0, %c0_1], %0 {strides = array<i32>} : memref<18x18x4xf32, #tpu.memory_space<vmem>>, vector<1x18x4xf32>,
    %cst_2 = arith.constant 0.000000e+00 : f32
    %2 = vector.broadcast %cst_2 : f32 to vector<1x18x4xf32>
    %c17 = arith.constant 17 : index
    %c0_3 = arith.constant 0 : index
    %c0_4 = arith.constant 0 : index
    %3 = vector.load %arg7[%c17, %c0_3, %c0_4] : memref<18x18x4xf32, #tpu.memory_space<vmem>>, vector<1x18x4xf32>
    tpu.vector_store %arg7[%c17, %c0_3, %c0_4], %2 {strides = array<i32>} : memref<18x18x4xf32, #tpu.memory_space<vmem>>, vector<1x18x4xf32>,
    %cst_5 = arith.constant 0.000000e+00 : f32
    %4 = vector.broadcast %cst_5 : f32 to vector<18x1x4xf32>
    %c0_6 = arith.constant 0 : index
    %c0_7 = arith.constant 0 : index
    %c0_8 = arith.constant 0 : index
    %5 = vector.load %arg7[%c0_6, %c0_7, %c0_8] : memref<18x18x4xf32, #tpu.memory_space<vmem>>, vector<18x1x4xf32>
    tpu.vector_store %arg7[%c0_6, %c0_7, %c0_8], %4 {strides = array<i32>} : memref<18x18x4xf32, #tpu.memory_space<vmem>>, vector<18x1x4xf32>,
    %cst_9 = arith.constant 0.000000e+00 : f32
    %6 = vector.broadcast %cst_9 : f32 to vector<18x1x4xf32>
    %c0_10 = arith.constant 0 : index
    %c17_11 = arith.constant 17 : index
    %c0_12 = arith.constant 0 : index
    %7 = vector.load %arg7[%c0_10, %c17_11, %c0_12] : memref<18x18x4xf32, #tpu.memory_space<vmem>>, vector<18x1x4xf32>
    tpu.vector_store %arg7[%c0_10, %c17_11, %c0_12], %6 {strides = array<i32>} : memref<18x18x4xf32, #tpu.memory_space<vmem>>, vector<18x1x4xf32>,
    %c0_13 = arith.constant 0 : index
    %c0_14 = arith.constant 0 : index
    %c0_15 = arith.constant 0 : index
    %c0_16 = arith.constant 0 : index
    %8 = vector.load %arg1[%c0_13, %c0_14, %c0_15, %c0_16] : memref<1x16x16x4xf32, #tpu.memory_space<vmem>>, vector<1x16x16x4xf32>
    %9 = vector.shape_cast %8 : vector<1x16x16x4xf32> to vector<16x16x4xf32>
    %c1 = arith.constant 1 : index
    %c1_17 = arith.constant 1 : index
    %c0_18 = arith.constant 0 : index
    %10 = vector.load %arg7[%c1, %c1_17, %c0_18] : memref<18x18x4xf32, #tpu.memory_space<vmem>>, vector<16x16x4xf32>
    tpu.vector_store %arg7[%c1, %c1_17, %c0_18], %9 {strides = array<i32>} : memref<18x18x4xf32, #tpu.memory_space<vmem>>, vector<16x16x4xf32>,
    %c0_19 = arith.constant 0 : index
    %c0_20 = arith.constant 0 : index
    %c0_21 = arith.constant 0 : index
    %11 = vector.load %arg7[%c0_19, %c0_20, %c0_21] : memref<18x18x4xf32, #tpu.memory_space<vmem>>, vector<16x16x4xf32>
    %12 = vector.shape_cast %11 : vector<16x16x4xf32> to vector<256x4xf32>
    %13 = arith.truncf %12 : vector<256x4xf32> to vector<256x4xbf16>
    %c0_22 = arith.constant 0 : index
    %c0_23 = arith.constant 0 : index
    %14 = vector.load %arg8[%c0_22, %c0_23] : memref<256x36xbf16, #tpu.memory_space<vmem>>, vector<256x4xbf16>
    tpu.vector_store %arg8[%c0_22, %c0_23], %13 {strides = array<i32>} : memref<256x36xbf16, #tpu.memory_space<vmem>>, vector<256x4xbf16>,
    %c0_24 = arith.constant 0 : index
    %c1_25 = arith.constant 1 : index
    %c0_26 = arith.constant 0 : index
    %15 = vector.load %arg7[%c0_24, %c1_25, %c0_26] : memref<18x18x4xf32, #tpu.memory_space<vmem>>, vector<16x16x4xf32>
    %16 = vector.shape_cast %15 : vector<16x16x4xf32> to vector<256x4xf32>
    %17 = arith.truncf %16 : vector<256x4xf32> to vector<256x4xbf16>
    %c0_27 = arith.constant 0 : index
    %c4 = arith.constant 4 : index
    %18 = vector.load %arg8[%c0_27, %c4] : memref<256x36xbf16, #tpu.memory_space<vmem>>, vector<256x4xbf16>
    tpu.vector_store %arg8[%c0_27, %c4], %17 {strides = array<i32>} : memref<256x36xbf16, #tpu.memory_space<vmem>>, vector<256x4xbf16>,
    %c0_28 = arith.constant 0 : index
    %c2 = arith.constant 2 : index
    %c0_29 = arith.constant 0 : index
    %19 = vector.load %arg7[%c0_28, %c2, %c0_29] : memref<18x18x4xf32, #tpu.memory_space<vmem>>, vector<16x16x4xf32>
    %20 = vector.shape_cast %19 : vector<16x16x4xf32> to vector<256x4xf32>
    %21 = arith.truncf %20 : vector<256x4xf32> to vector<256x4xbf16>
    %c0_30 = arith.constant 0 : index
    %c8 = arith.constant 8 : index
    %22 = vector.load %arg8[%c0_30, %c8] : memref<256x36xbf16, #tpu.memory_space<vmem>>, vector<256x4xbf16>
    tpu.vector_store %arg8[%c0_30, %c8], %21 {strides = array<i32>} : memref<256x36xbf16, #tpu.memory_space<vmem>>, vector<256x4xbf16>,
    %c1_31 = arith.constant 1 : index
    %c0_32 = arith.constant 0 : index
    %c0_33 = arith.constant 0 : index
    %23 = vector.load %arg7[%c1_31, %c0_32, %c0_33] : memref<18x18x4xf32, #tpu.memory_space<vmem>>, vector<16x16x4xf32>
    %24 = vector.shape_cast %23 : vector<16x16x4xf32> to vector<256x4xf32>
    %25 = arith.truncf %24 : vector<256x4xf32> to vector<256x4xbf16>
    %c0_34 = arith.constant 0 : index
    %c12 = arith.constant 12 : index
    %26 = vector.load %arg8[%c0_34, %c12] : memref<256x36xbf16, #tpu.memory_space<vmem>>, vector<256x4xbf16>
    tpu.vector_store %arg8[%c0_34, %c12], %25 {strides = array<i32>} : memref<256x36xbf16, #tpu.memory_space<vmem>>, vector<256x4xbf16>,
    %c1_35 = arith.constant 1 : index
    %c1_36 = arith.constant 1 : index
    %c0_37 = arith.constant 0 : index
    %27 = vector.load %arg7[%c1_35, %c1_36, %c0_37] : memref<18x18x4xf32, #tpu.memory_space<vmem>>, vector<16x16x4xf32>
    %28 = vector.shape_cast %27 : vector<16x16x4xf32> to vector<256x4xf32>
    %29 = arith.truncf %28 : vector<256x4xf32> to vector<256x4xbf16>
    %c0_38 = arith.constant 0 : index
    %c16 = arith.constant 16 : index
    %30 = vector.load %arg8[%c0_38, %c16] : memref<256x36xbf16, #tpu.memory_space<vmem>>, vector<256x4xbf16>
    tpu.vector_store %arg8[%c0_38, %c16], %29 {strides = array<i32>} : memref<256x36xbf16, #tpu.memory_space<vmem>>, vector<256x4xbf16>,
    %c1_39 = arith.constant 1 : index
    %c2_40 = arith.constant 2 : index
    %c0_41 = arith.constant 0 : index
    %31 = vector.load %arg7[%c1_39, %c2_40, %c0_41] : memref<18x18x4xf32, #tpu.memory_space<vmem>>, vector<16x16x4xf32>
    %32 = vector.shape_cast %31 : vector<16x16x4xf32> to vector<256x4xf32>
    %33 = arith.truncf %32 : vector<256x4xf32> to vector<256x4xbf16>
    %c0_42 = arith.constant 0 : index
    %c20 = arith.constant 20 : index
    %34 = vector.load %arg8[%c0_42, %c20] : memref<256x36xbf16, #tpu.memory_space<vmem>>, vector<256x4xbf16>
    tpu.vector_store %arg8[%c0_42, %c20], %33 {strides = array<i32>} : memref<256x36xbf16, #tpu.memory_space<vmem>>, vector<256x4xbf16>,
    %c2_43 = arith.constant 2 : index
    %c0_44 = arith.constant 0 : index
    %c0_45 = arith.constant 0 : index
    %35 = vector.load %arg7[%c2_43, %c0_44, %c0_45] : memref<18x18x4xf32, #tpu.memory_space<vmem>>, vector<16x16x4xf32>
    %36 = vector.shape_cast %35 : vector<16x16x4xf32> to vector<256x4xf32>
    %37 = arith.truncf %36 : vector<256x4xf32> to vector<256x4xbf16>
    %c0_46 = arith.constant 0 : index
    %c24 = arith.constant 24 : index
    %38 = vector.load %arg8[%c0_46, %c24] : memref<256x36xbf16, #tpu.memory_space<vmem>>, vector<256x4xbf16>
    tpu.vector_store %arg8[%c0_46, %c24], %37 {strides = array<i32>} : memref<256x36xbf16, #tpu.memory_space<vmem>>, vector<256x4xbf16>,
    %c2_47 = arith.constant 2 : index
    %c1_48 = arith.constant 1 : index
    %c0_49 = arith.constant 0 : index
    %39 = vector.load %arg7[%c2_47, %c1_48, %c0_49] : memref<18x18x4xf32, #tpu.memory_space<vmem>>, vector<16x16x4xf32>
    %40 = vector.shape_cast %39 : vector<16x16x4xf32> to vector<256x4xf32>
    %41 = arith.truncf %40 : vector<256x4xf32> to vector<256x4xbf16>
    %c0_50 = arith.constant 0 : index
    %c28 = arith.constant 28 : index
    %42 = vector.load %arg8[%c0_50, %c28] : memref<256x36xbf16, #tpu.memory_space<vmem>>, vector<256x4xbf16>
    tpu.vector_store %arg8[%c0_50, %c28], %41 {strides = array<i32>} : memref<256x36xbf16, #tpu.memory_space<vmem>>, vector<256x4xbf16>,
    %c2_51 = arith.constant 2 : index
    %c2_52 = arith.constant 2 : index
    %c0_53 = arith.constant 0 : index
    %43 = vector.load %arg7[%c2_51, %c2_52, %c0_53] : memref<18x18x4xf32, #tpu.memory_space<vmem>>, vector<16x16x4xf32>
    %44 = vector.shape_cast %43 : vector<16x16x4xf32> to vector<256x4xf32>
    %45 = arith.truncf %44 : vector<256x4xf32> to vector<256x4xbf16>
    %c0_54 = arith.constant 0 : index
    %c32 = arith.constant 32 : index
    %46 = vector.load %arg8[%c0_54, %c32] : memref<256x36xbf16, #tpu.memory_space<vmem>>, vector<256x4xbf16>
    tpu.vector_store %arg8[%c0_54, %c32], %45 {strides = array<i32>} : memref<256x36xbf16, #tpu.memory_space<vmem>>, vector<256x4xbf16>,
    %c0_55 = arith.constant 0 : index
    %c0_56 = arith.constant 0 : index
    %47 = vector.load %arg8[%c0_55, %c0_56] : memref<256x36xbf16, #tpu.memory_space<vmem>>, vector<256x36xbf16>
    %c0_57 = arith.constant 0 : index
    %c0_58 = arith.constant 0 : index
    %48 = vector.load %arg4[%c0_57, %c0_58] : memref<36x4xbf16, #tpu.memory_space<vmem>>, vector<36x4xbf16>
    %cst_59 = arith.constant dense<0.000000e+00> : vector<256x4xf32>
    %49 = tpu.matmul %47, %48, %cst_59 {dimension_numbers = #tpu.dot_dimension_numbers<[1], [0], [0], [1], [0, 0, 1, 1], [], []>} : vector<256x36xbf16>, vector<36x4xbf16>, vector<256x4xf32> -> vector<256x4xf32>
    %cst_60 = arith.constant dense<0.000000e+00> : vector<4xf32>
    %50 = vector.multi_reduction <add>, %49, %cst_60 [0] : vector<256x4xf32> to vector<4xf32>
    %51 = vector.shape_cast %50 : vector<4xf32> to vector<1x4xf32>
    %52 = arith.mulf %49, %49 : vector<256x4xf32>
    %cst_61 = arith.constant dense<0.000000e+00> : vector<4xf32>
    %53 = vector.multi_reduction <add>, %52, %cst_61 [0] : vector<256x4xf32> to vector<4xf32>
    %54 = vector.shape_cast %53 : vector<4xf32> to vector<1x4xf32>
    %c0_62 = arith.constant 0 : index
    %c0_63 = arith.constant 0 : index
    %c0_64 = arith.constant 0 : index
    %55 = vector.load %arg6[%c0_62, %c0_63, %c0_64] : memref<1x2x4xf32, #tpu.memory_space<vmem>>, vector<1x1x4xf32>
    %56 = vector.shape_cast %55 : vector<1x1x4xf32> to vector<1x4xf32>
    %57 = vector.shape_cast %51 : vector<1x4xf32> to vector<1x1x4xf32>
    tpu.vector_store %arg6[%c0_62, %c0_63, %c0_64], %57 {strides = array<i32>} : memref<1x2x4xf32, #tpu.memory_space<vmem>>, vector<1x1x4xf32>,
    %c0_65 = arith.constant 0 : index
    %c1_66 = arith.constant 1 : index
    %c0_67 = arith.constant 0 : index
    %58 = vector.load %arg6[%c0_65, %c1_66, %c0_67] : memref<1x2x4xf32, #tpu.memory_space<vmem>>, vector<1x1x4xf32>
    %59 = vector.shape_cast %58 : vector<1x1x4xf32> to vector<1x4xf32>
    %60 = vector.shape_cast %54 : vector<1x4xf32> to vector<1x1x4xf32>
    tpu.vector_store %arg6[%c0_65, %c1_66, %c0_67], %60 {strides = array<i32>} : memref<1x2x4xf32, #tpu.memory_space<vmem>>, vector<1x1x4xf32>,
    %61 = vector.shape_cast %49 : vector<256x4xf32> to vector<16x16x4xf32>
    %c0_68 = arith.constant 0 : index
    %c0_69 = arith.constant 0 : index
    %c0_70 = arith.constant 0 : index
    %c0_71 = arith.constant 0 : index
    %62 = vector.load %arg5[%c0_68, %c0_69, %c0_70, %c0_71] : memref<1x16x16x4xf32, #tpu.memory_space<vmem>>, vector<1x16x16x4xf32>
    %63 = vector.shape_cast %62 : vector<1x16x16x4xf32> to vector<16x16x4xf32>
    %64 = vector.shape_cast %61 : vector<16x16x4xf32> to vector<1x16x16x4xf32>
    tpu.vector_store %arg5[%c0_68, %c0_69, %c0_70, %c0_71], %64 {strides = array<i32>} : memref<1x16x16x4xf32, #tpu.memory_space<vmem>>, vector<1x16x16x4xf32>,
    return
  }
  func.func @transform_0(%arg0: i32) -> (i32, i32, i32, i32) {
    %c0_i32 = arith.constant 0 : i32
    %c0_i32_0 = arith.constant 0 : i32
    %c0_i32_1 = arith.constant 0 : i32
    %c0_i32_2 = arith.constant 0 : i32
    return %arg0, %c0_i32, %c0_i32_0, %c0_i32_1 : i32, i32, i32, i32
  }
  func.func @transform_1(%arg0: i32) -> (i32, i32, i32) {
    %c0_i32 = arith.constant 0 : i32
    %c0_i32_0 = arith.constant 0 : i32
    %c0_i32_1 = arith.constant 0 : i32
    %c0_i32_2 = arith.constant 0 : i32
    return %c0_i32, %c0_i32_0, %c0_i32_1 : i32, i32, i32
  }
  func.func @transform_2(%arg0: i32) -> (i32, i32, i32) {
    %c0_i32 = arith.constant 0 : i32
    %c0_i32_0 = arith.constant 0 : i32
    %c0_i32_1 = arith.constant 0 : i32
    %c0_i32_2 = arith.constant 0 : i32
    return %c0_i32, %c0_i32_0, %c0_i32_1 : i32, i32, i32
  }
  func.func @transform_3(%arg0: i32) -> (i32, i32) {
    %c0_i32 = arith.constant 0 : i32
    %c0_i32_0 = arith.constant 0 : i32
    %c0_i32_1 = arith.constant 0 : i32
    return %c0_i32, %c0_i32_0 : i32, i32
  }
  func.func @transform_4(%arg0: i32) -> (i32, i32, i32, i32) {
    %c0_i32 = arith.constant 0 : i32
    %c0_i32_0 = arith.constant 0 : i32
    %c0_i32_1 = arith.constant 0 : i32
    %c0_i32_2 = arith.constant 0 : i32
    return %arg0, %c0_i32, %c0_i32_0, %c0_i32_1 : i32, i32, i32, i32
  }
  func.func @transform_5(%arg0: i32) -> (i32, i32, i32) {
    %c0_i32 = arith.constant 0 : i32
    %c0_i32_0 = arith.constant 0 : i32
    %c0_i32_1 = arith.constant 0 : i32
    return %arg0, %c0_i32, %c0_i32_0 : i32, i32, i32
  }
}

</mosaic_0001>

<llo_original>
// kernel: resnet_block.7
$region0: #{resnet_block.7}
  #allocation0 [shape = 'u32[]', space=smem, size = 0x4, offset = 0x4, fixed_abs, tag = 'smem constant byte address 0x4 - core index']
  #allocation1 [shape = 'u32[72,128]{1,0:T(1,128)}', space=vmem, size = 0x9000, scoped, tag = 'internal scratch']
  %s0 = inlined_call_operand.vmem [shape: f32[2,16,16,4], index: 0, kind: input, shape index: {}]
  %s1 = inlined_call_operand.vmem [shape: f32[2,16,16,4], index: 1, kind: input, shape index: {}]
  %s2 = inlined_call_operand.vmem [shape: f32[1,1,4], index: 2, kind: input, shape index: {}]
  %s3 = inlined_call_operand.vmem [shape: f32[1,1,4], index: 3, kind: input, shape index: {}]
  %s4 = inlined_call_operand.vmem [shape: f32[2,16,16,4], index: 4, kind: output, shape index: {}]
  %s5 = sld [smem:[#allocation0]]
  $region49: #{resnet_block.7} parent=0
    _
  %s7 = ssub.s32 1, %s5
  %s8 = scalar_select 0, %s7, %s5
  loop: start=0, step=1, limit=4
  $region2: #{resnet_block.7} parent=0 // loop_pre_header
    _
  $region3: #{resnet_block.7} parent=0 // loop_header
    %s10 = sphi 0, %s14
    %p11 = scmp.ge.s32.totalorder %s10, 4
    %s20 = sphi 0, %s22
    %s23 = sphi 0, %s20
    %s24 = sphi 0, %s23
    %s40 = sphi 0, %s24
    %s46 = sphi 0, %s48
    %s49 = sphi 0, %s46
    %s50 = sphi 0, %s49
    %s66 = sphi 0, %s50
    %s70 = sphi 0, %s70
    %s72 = sphi 0, %s70
    %s73 = sphi 0, %s72
    %s87 = sphi 0, %s73
    %s91 = sphi 0, %s91
    %s93 = sphi 0, %s91
    %s94 = sphi 0, %s93
    %s108 = sphi 0, %s94
    %s114 = sphi 0, %s116
    %s117 = sphi 0, %s114
    %s118 = sphi 0, %s117
    %s134 = sphi 0, %s118
  $region4: #{resnet_block.7} parent=0 // loop_header_branch
    %13 = sbr.rel (%p11) target = $region8
  $region5: #{resnet_block.7} parent=0 // loop_body
    %s15 = ssub.s32 %s10, 1
    %s16 = ssub.s32 %s10, 2
    %s17 = sadd.s32 %s10, 1
    %s18 = ssub.s32 %s10, %s17
    %p19 = scmp.eq.s32.totalorder %s18, 0
    %s21 = sadd.s32 %s20, 1
    %s22 = scalar_select %p19, %s20, %s21
    %p25 = pneg %p19
    %p26 = scmp.eq.s32.totalorder %s10, 1
    %p27 = por %p25, %p26
    %p28 = scmp.ne.s32.totalorder %s20, %s23
    %p29 = scmp.eq.s32.totalorder %s10, 0
    %p30 = por %p28, %p29
    %p31 = scmp.ne.s32.totalorder %s20, %s23
    %p32 = scmp.eq.s32.totalorder %s15, 1
    %p33 = por %p31, %p32
    %p34 = scmp.ne.s32.totalorder %s23, %s24
    %p35 = scmp.eq.s32.totalorder %s15, 0
    %p36 = por %p34, %p35
    %p37 = scmp.ne.s32.totalorder %s23, %s24
    %p38 = scmp.eq.s32.totalorder %s16, 1
    %p39 = por %p37, %p38
    %p41 = scmp.ne.s32.totalorder %s24, %s40
    %p42 = scmp.eq.s32.totalorder %s16, 0
    %p43 = por %p41, %p42
    %s44 = ssub.s32 %s10, %s17
    %p45 = scmp.eq.s32.totalorder %s44, 0
    %s47 = sadd.s32 %s46, 1
    %s48 = scalar_select %p45, %s46, %s47
    %p51 = pneg %p45
    %p52 = scmp.eq.s32.totalorder %s10, 1
    %p53 = por %p51, %p52
    %p54 = scmp.ne.s32.totalorder %s46, %s49
    %p55 = scmp.eq.s32.totalorder %s10, 0
    %p56 = por %p54, %p55
    %p57 = scmp.ne.s32.totalorder %s46, %s49
    %p58 = scmp.eq.s32.totalorder %s15, 1
    %p59 = por %p57, %p58
    %p60 = scmp.ne.s32.totalorder %s49, %s50
    %p61 = scmp.eq.s32.totalorder %s15, 0
    %p62 = por %p60, %p61
    %p63 = scmp.ne.s32.totalorder %s49, %s50
    %p64 = scmp.eq.s32.totalorder %s16, 1
    %p65 = por %p63, %p64
    %p67 = scmp.ne.s32.totalorder %s50, %s66
    %p68 = scmp.eq.s32.totalorder %s16, 0
    %p69 = por %p67, %p68
    %s71 = sadd.s32 %s70, 1
    %p74 = scmp.eq.s32.totalorder %s10, 1
    %p75 = scmp.ne.s32.totalorder %s70, %s72
    %p76 = scmp.eq.s32.totalorder %s10, 0
    %p77 = por %p75, %p76
    %p78 = scmp.ne.s32.totalorder %s70, %s72
    %p79 = scmp.eq.s32.totalorder %s15, 1
    %p80 = por %p78, %p79
    %p81 = scmp.ne.s32.totalorder %s72, %s73
    %p82 = scmp.eq.s32.totalorder %s15, 0
    %p83 = por %p81, %p82
    %p84 = scmp.ne.s32.totalorder %s72, %s73
    %p85 = scmp.eq.s32.totalorder %s16, 1
    %p86 = por %p84, %p85
    %p88 = scmp.ne.s32.totalorder %s73, %s87
    %p89 = scmp.eq.s32.totalorder %s16, 0
    %p90 = por %p88, %p89
    %s92 = sadd.s32 %s91, 1
    %p95 = scmp.eq.s32.totalorder %s10, 1
    %p96 = scmp.ne.s32.totalorder %s91, %s93
    %p97 = scmp.eq.s32.totalorder %s10, 0
    %p98 = por %p96, %p97
    %p99 = scmp.ne.s32.totalorder %s91, %s93
    %p100 = scmp.eq.s32.totalorder %s15, 1
    %p101 = por %p99, %p100
    %p102 = scmp.ne.s32.totalorder %s93, %s94
    %p103 = scmp.eq.s32.totalorder %s15, 0
    %p104 = por %p102, %p103
    %p105 = scmp.ne.s32.totalorder %s93, %s94
    %p106 = scmp.eq.s32.totalorder %s16, 1
    %p107 = por %p105, %p106
    %p109 = scmp.ne.s32.totalorder %s94, %s108
    %p110 = scmp.eq.s32.totalorder %s16, 0
    %p111 = por %p109, %p110
    %s112 = ssub.s32 %s10, %s17
    %p113 = scmp.eq.s32.totalorder %s112, 0
    %s115 = sadd.s32 %s114, 1
    %s116 = scalar_select %p113, %s114, %s115
    %p119 = pneg %p113
    %p120 = scmp.eq.s32.totalorder %s10, 1
    %p121 = por %p119, %p120
    %p122 = scmp.ne.s32.totalorder %s114, %s117
    %p123 = scmp.eq.s32.totalorder %s10, 0
    %p124 = por %p122, %p123
    %p125 = scmp.ne.s32.totalorder %s114, %s117
    %p126 = scmp.eq.s32.totalorder %s15, 1
    %p127 = por %p125, %p126
    %p128 = scmp.ne.s32.totalorder %s117, %s118
    %p129 = scmp.eq.s32.totalorder %s15, 0
    %p130 = por %p128, %p129
    %p131 = scmp.ne.s32.totalorder %s117, %s118
    %p132 = scmp.eq.s32.totalorder %s16, 1
    %p133 = por %p131, %p132
    %p135 = scmp.ne.s32.totalorder %s118, %s134
    %p136 = scmp.eq.s32.totalorder %s16, 0
    %p137 = por %p135, %p136
    %p138 = scmp.le.s32.totalorder 1, %s10
    %p139 = scmp.lt.s32.totalorder %s10, 3
    %p140 = pnand %p138, %p139
    %p141 = pneg %p140
    // Predicated region
    $region9: #{resnet_block.7} parent=5 // pred_check
      _
    $region10: #{resnet_block.7} parent=5 // pred_check_branch
      %143 = sbr.rel (%p140) target = $region12
    $region11: #{resnet_block.7} parent=5 // pred_region
      %s144 = ssub.s32 %s10, 1
      // Predicated region
      $region13: #{resnet_block.7} parent=11 // pred_check
        %p145 = pneg %p83
      $region14: #{resnet_block.7} parent=11 // pred_check_branch
        %147 = sbr.rel (%p145) target = $region16
      $region15: #{resnet_block.7} parent=11 // pred_region
        _
      $region16: #{resnet_block.7} parent=11 // pred_fallthru
        _
      // Predicated region
      $region17: #{resnet_block.7} parent=11 // pred_check
        %p148 = pneg %p104
      $region18: #{resnet_block.7} parent=11 // pred_check_branch
        %150 = sbr.rel (%p148) target = $region20
      $region19: #{resnet_block.7} parent=11 // pred_region
        _
      $region20: #{resnet_block.7} parent=11 // pred_fallthru
        _
    $region12: #{resnet_block.7} parent=5 // pred_fallthru
      _
    %p151 = scmp.lt.s32.totalorder %s10, 2
    // Predicated region
    $region21: #{resnet_block.7} parent=5 // pred_check
      %p152 = pneg %p151
    $region22: #{resnet_block.7} parent=5 // pred_check_branch
      %154 = sbr.rel (%p152) target = $region24
    $region23: #{resnet_block.7} parent=5 // pred_region
      // Predicated region
      $region25: #{resnet_block.7} parent=23 // pred_check
        %p155 = pneg %p30
      $region26: #{resnet_block.7} parent=23 // pred_check_branch
        %157 = sbr.rel (%p155) target = $region28
      $region27: #{resnet_block.7} parent=23 // pred_region
        %p158 = scmp.lt.s32.totalorder %s10, 1
        %s159 = scalar_select %p158, %s10, 1
        %s160 = smul.addr %s159, 32
        %s161 = smul.addr %s160, 8
        %s162 = scalar_lea.vmem %s0, %s161
      $region28: #{resnet_block.7} parent=23 // pred_fallthru
        _
      // Predicated region
      $region29: #{resnet_block.7} parent=23 // pred_check
        %p163 = pneg %p56
      $region30: #{resnet_block.7} parent=23 // pred_check_branch
        %165 = sbr.rel (%p163) target = $region32
      $region31: #{resnet_block.7} parent=23 // pred_region
        %p166 = scmp.lt.s32.totalorder %s10, 1
        %s167 = scalar_select %p166, %s10, 1
        %s168 = smul.addr %s167, 32
        %s169 = smul.addr %s168, 8
        %s170 = scalar_lea.vmem %s1, %s169
      $region32: #{resnet_block.7} parent=23 // pred_fallthru
        _
    $region24: #{resnet_block.7} parent=5 // pred_fallthru
      _
    %p171 = scmp.le.s32.totalorder 1, %s10
    %p172 = scmp.lt.s32.totalorder %s10, 3
    %p173 = pnand %p171, %p172
    %p174 = pneg %p173
    // Predicated region
    $region33: #{resnet_block.7} parent=5 // pred_check
      _
    $region34: #{resnet_block.7} parent=5 // pred_check_branch
      %176 = sbr.rel (%p173) target = $region36
    $region35: #{resnet_block.7} parent=5 // pred_region
      %s177 = ssub.s32 %s10, 1
      %p178 = scmp.lt.s32.totalorder %s15, 1
      %s179 = scalar_select %p178, %s15, 1
      %s180 = smul.addr %s179, 32
      %s181 = smul.addr %s180, 8
      %s182 = scalar_lea.vmem %s0, %s181
      %p183 = pneg %p36
      %p184 = pneg %p33
      %p185 = scmp.lt.s32.totalorder %s15, 1
      %s186 = scalar_select %p185, %s15, 1
      %s187 = smul.addr %s186, 32
      %s188 = smul.addr %s187, 8
      %s189 = scalar_lea.vmem %s1, %s188
      %p190 = pneg %p62
      %p191 = pneg %p59
      %p192 = pneg %p83
      %p193 = pneg %p80
      %p194 = pneg %p104
      %p195 = pneg %p101
      %p196 = pneg %p130
      %p197 = pneg %p127
      %p198 = scmp.lt.s32.totalorder %s15, 1
      %s199 = scalar_select %p198, %s15, 1
      %s200 = smul.addr %s199, 32
      %s201 = smul.addr %s200, 8
      %s202 = scalar_lea.vmem %s4, %s201
      %p203 = scmp.lt.s32.totalorder %s15, 1
      %s204 = scalar_select %p203, %s15, 1
      %s205 = smul.addr %s204, 32
      %s206 = smul.addr %s205, 8
      %s207 = scalar_lea.vmem %s0, %s206
      %p208 = scmp.lt.s32.totalorder %s15, 1
      %s209 = scalar_select %p208, %s15, 1
      %s210 = smul.addr %s209, 32
      %s211 = smul.addr %s210, 8
      %s212 = scalar_lea.vmem %s1, %s211
      %p213 = scmp.lt.s32.totalorder %s15, 1
      %s214 = scalar_select %p213, %s15, 1
      %s215 = smul.addr %s214, 32
      %s216 = smul.addr %s215, 8
      %s217 = scalar_lea.vmem %s4, %s216
      %v218 = vld [vmem:[%s207] sm:$0xff]
      %v219 = vld [vmem:[%s207 + $0x8] sm:$0xff]
      %v220 = vld [vmem:[%s207 + $0x10] sm:$0xff]
      %v221 = vld [vmem:[%s207 + $0x18] sm:$0xff]
      %v222 = vld [vmem:[%s207 + $0x20] sm:$0xff]
      %v223 = vld [vmem:[%s207 + $0x28] sm:$0xff]
      %v224 = vld [vmem:[%s207 + $0x30] sm:$0xff]
      %v225 = vld [vmem:[%s207 + $0x38] sm:$0xff]
      %v226 = vld [vmem:[%s207 + $0x40] sm:$0xff]
      %v227 = vld [vmem:[%s207 + $0x48] sm:$0xff]
      %v228 = vld [vmem:[%s207 + $0x50] sm:$0xff]
      %v229 = vld [vmem:[%s207 + $0x58] sm:$0xff]
      %v230 = vld [vmem:[%s207 + $0x60] sm:$0xff]
      %v231 = vld [vmem:[%s207 + $0x68] sm:$0xff]
      %v232 = vld [vmem:[%s207 + $0x70] sm:$0xff]
      %v233 = vld [vmem:[%s207 + $0x78] sm:$0xff]
      %v234 = vld [vmem:[%s207 + $0x80] sm:$0xff]
      %v235 = vld [vmem:[%s207 + $0x88] sm:$0xff]
      %v236 = vld [vmem:[%s207 + $0x90] sm:$0xff]
      %v237 = vld [vmem:[%s207 + $0x98] sm:$0xff]
      %v238 = vld [vmem:[%s207 + $0xa0] sm:$0xff]
      %v239 = vld [vmem:[%s207 + $0xa8] sm:$0xff]
      %v240 = vld [vmem:[%s207 + $0xb0] sm:$0xff]
      %v241 = vld [vmem:[%s207 + $0xb8] sm:$0xff]
      %v242 = vld [vmem:[%s207 + $0xc0] sm:$0xff]
      %v243 = vld [vmem:[%s207 + $0xc8] sm:$0xff]
      %v244 = vld [vmem:[%s207 + $0xd0] sm:$0xff]
      %v245 = vld [vmem:[%s207 + $0xd8] sm:$0xff]
      %v246 = vld [vmem:[%s207 + $0xe0] sm:$0xff]
      %v247 = vld [vmem:[%s207 + $0xe8] sm:$0xff]
      %v248 = vld [vmem:[%s207 + $0xf0] sm:$0xff]
      %v249 = vld [vmem:[%s207 + $0xf8] sm:$0xff]
      %v250 = vld [vmem:[%s2] sm:$0x1]
      %v252 = vperm.slane %v250, 0
      %v254 = vmul.f32 %v218, %v252
      %v255 = vmul.f32 %v219, %v252
      %v256 = vmul.f32 %v220, %v252
      %v257 = vmul.f32 %v221, %v252
      %v258 = vmul.f32 %v222, %v252
      %v259 = vmul.f32 %v223, %v252
      %v260 = vmul.f32 %v224, %v252
      %v261 = vmul.f32 %v225, %v252
      %v262 = vmul.f32 %v226, %v252
      %v263 = vmul.f32 %v227, %v252
      %v264 = vmul.f32 %v228, %v252
      %v265 = vmul.f32 %v229, %v252
      %v266 = vmul.f32 %v230, %v252
      %v267 = vmul.f32 %v231, %v252
      %v268 = vmul.f32 %v232, %v252
      %v269 = vmul.f32 %v233, %v252
      %v270 = vmul.f32 %v234, %v252
      %v271 = vmul.f32 %v235, %v252
      %v272 = vmul.f32 %v236, %v252
      %v273 = vmul.f32 %v237, %v252
      %v274 = vmul.f32 %v238, %v252
      %v275 = vmul.f32 %v239, %v252
      %v276 = vmul.f32 %v240, %v252
      %v277 = vmul.f32 %v241, %v252
      %v278 = vmul.f32 %v242, %v252
      %v279 = vmul.f32 %v243, %v252
      %v280 = vmul.f32 %v244, %v252
      %v281 = vmul.f32 %v245, %v252
      %v282 = vmul.f32 %v246, %v252
      %v283 = vmul.f32 %v247, %v252
      %v284 = vmul.f32 %v248, %v252
      %v285 = vmul.f32 %v249, %v252
      %v286 = vld [vmem:[%s3] sm:$0x1]
      %v288 = vperm.slane %v286, 0
      %v290 = vadd.f32 %v254, %v288
      %v291 = vadd.f32 %v255, %v288
      %v292 = vadd.f32 %v256, %v288
      %v293 = vadd.f32 %v257, %v288
      %v294 = vadd.f32 %v258, %v288
      %v295 = vadd.f32 %v259, %v288
      %v296 = vadd.f32 %v260, %v288
      %v297 = vadd.f32 %v261, %v288
      %v298 = vadd.f32 %v262, %v288
      %v299 = vadd.f32 %v263, %v288
      %v300 = vadd.f32 %v264, %v288
      %v301 = vadd.f32 %v265, %v288
      %v302 = vadd.f32 %v266, %v288
      %v303 = vadd.f32 %v267, %v288
      %v304 = vadd.f32 %v268, %v288
      %v305 = vadd.f32 %v269, %v288
      %v306 = vadd.f32 %v270, %v288
      %v307 = vadd.f32 %v271, %v288
      %v308 = vadd.f32 %v272, %v288
      %v309 = vadd.f32 %v273, %v288
      %v310 = vadd.f32 %v274, %v288
      %v311 = vadd.f32 %v275, %v288
      %v312 = vadd.f32 %v276, %v288
      %v313 = vadd.f32 %v277, %v288
      %v314 = vadd.f32 %v278, %v288
      %v315 = vadd.f32 %v279, %v288
      %v316 = vadd.f32 %v280, %v288
      %v317 = vadd.f32 %v281, %v288
      %v318 = vadd.f32 %v282, %v288
      %v319 = vadd.f32 %v283, %v288
      %v320 = vadd.f32 %v284, %v288
      %v321 = vadd.f32 %v285, %v288
      %v322 = vld [vmem:[%s212] sm:$0xff]
      %v323 = vld [vmem:[%s212 + $0x8] sm:$0xff]
      %v324 = vld [vmem:[%s212 + $0x10] sm:$0xff]
      %v325 = vld [vmem:[%s212 + $0x18] sm:$0xff]
      %v326 = vld [vmem:[%s212 + $0x20] sm:$0xff]
      %v327 = vld [vmem:[%s212 + $0x28] sm:$0xff]
      %v328 = vld [vmem:[%s212 + $0x30] sm:$0xff]
      %v329 = vld [vmem:[%s212 + $0x38] sm:$0xff]
      %v330 = vld [vmem:[%s212 + $0x40] sm:$0xff]
      %v331 = vld [vmem:[%s212 + $0x48] sm:$0xff]
      %v332 = vld [vmem:[%s212 + $0x50] sm:$0xff]
      %v333 = vld [vmem:[%s212 + $0x58] sm:$0xff]
      %v334 = vld [vmem:[%s212 + $0x60] sm:$0xff]
      %v335 = vld [vmem:[%s212 + $0x68] sm:$0xff]
      %v336 = vld [vmem:[%s212 + $0x70] sm:$0xff]
      %v337 = vld [vmem:[%s212 + $0x78] sm:$0xff]
      %v338 = vld [vmem:[%s212 + $0x80] sm:$0xff]
      %v339 = vld [vmem:[%s212 + $0x88] sm:$0xff]
      %v340 = vld [vmem:[%s212 + $0x90] sm:$0xff]
      %v341 = vld [vmem:[%s212 + $0x98] sm:$0xff]
      %v342 = vld [vmem:[%s212 + $0xa0] sm:$0xff]
      %v343 = vld [vmem:[%s212 + $0xa8] sm:$0xff]
      %v344 = vld [vmem:[%s212 + $0xb0] sm:$0xff]
      %v345 = vld [vmem:[%s212 + $0xb8] sm:$0xff]
      %v346 = vld [vmem:[%s212 + $0xc0] sm:$0xff]
      %v347 = vld [vmem:[%s212 + $0xc8] sm:$0xff]
      %v348 = vld [vmem:[%s212 + $0xd0] sm:$0xff]
      %v349 = vld [vmem:[%s212 + $0xd8] sm:$0xff]
      %v350 = vld [vmem:[%s212 + $0xe0] sm:$0xff]
      %v351 = vld [vmem:[%s212 + $0xe8] sm:$0xff]
      %v352 = vld [vmem:[%s212 + $0xf0] sm:$0xff]
      %v353 = vld [vmem:[%s212 + $0xf8] sm:$0xff]
      %v354 = vadd.f32 %v290, %v322
      %v355 = vadd.f32 %v291, %v323
      %v356 = vadd.f32 %v292, %v324
      %v357 = vadd.f32 %v293, %v325
      %v358 = vadd.f32 %v294, %v326
      %v359 = vadd.f32 %v295, %v327
      %v360 = vadd.f32 %v296, %v328
      %v361 = vadd.f32 %v297, %v329
      %v362 = vadd.f32 %v298, %v330
      %v363 = vadd.f32 %v299, %v331
      %v364 = vadd.f32 %v300, %v332
      %v365 = vadd.f32 %v301, %v333
      %v366 = vadd.f32 %v302, %v334
      %v367 = vadd.f32 %v303, %v335
      %v368 = vadd.f32 %v304, %v336
      %v369 = vadd.f32 %v305, %v337
      %v370 = vadd.f32 %v306, %v338
      %v371 = vadd.f32 %v307, %v339
      %v372 = vadd.f32 %v308, %v340
      %v373 = vadd.f32 %v309, %v341
      %v374 = vadd.f32 %v310, %v342
      %v375 = vadd.f32 %v311, %v343
      %v376 = vadd.f32 %v312, %v344
      %v377 = vadd.f32 %v313, %v345
      %v378 = vadd.f32 %v314, %v346
      %v379 = vadd.f32 %v315, %v347
      %v380 = vadd.f32 %v316, %v348
      %v381 = vadd.f32 %v317, %v349
      %v382 = vadd.f32 %v318, %v350
      %v383 = vadd.f32 %v319, %v351
      %v384 = vadd.f32 %v320, %v352
      %v385 = vadd.f32 %v321, %v353
      %v386 = vmax.f32 %v354, 0.0
      %v387 = vmax.f32 %v355, 0.0
      %v388 = vmax.f32 %v356, 0.0
      %v389 = vmax.f32 %v357, 0.0
      %v390 = vmax.f32 %v358, 0.0
      %v391 = vmax.f32 %v359, 0.0
      %v392 = vmax.f32 %v360, 0.0
      %v393 = vmax.f32 %v361, 0.0
      %v394 = vmax.f32 %v362, 0.0
      %v395 = vmax.f32 %v363, 0.0
      %v396 = vmax.f32 %v364, 0.0
      %v397 = vmax.f32 %v365, 0.0
      %v398 = vmax.f32 %v366, 0.0
      %v399 = vmax.f32 %v367, 0.0
      %v400 = vmax.f32 %v368, 0.0
      %v401 = vmax.f32 %v369, 0.0
      %v402 = vmax.f32 %v370, 0.0
      %v403 = vmax.f32 %v371, 0.0
      %v404 = vmax.f32 %v372, 0.0
      %v405 = vmax.f32 %v373, 0.0
      %v406 = vmax.f32 %v374, 0.0
      %v407 = vmax.f32 %v375, 0.0
      %v408 = vmax.f32 %v376, 0.0
      %v409 = vmax.f32 %v377, 0.0
      %v410 = vmax.f32 %v378, 0.0
      %v411 = vmax.f32 %v379, 0.0
      %v412 = vmax.f32 %v380, 0.0
      %v413 = vmax.f32 %v381, 0.0
      %v414 = vmax.f32 %v382, 0.0
      %v415 = vmax.f32 %v383, 0.0
      %v416 = vmax.f32 %v384, 0.0
      %v417 = vmax.f32 %v385, 0.0
      %vm418 = vcmask 31744
      %419 = vst.msk [vmem:[%s217] sm:$0xff] %vm418, %v386
      %420 = vst.msk [vmem:[%s217 + $0x8] sm:$0xff] %vm418, %v387
      %421 = vst.msk [vmem:[%s217 + $0x10] sm:$0xff] %vm418, %v388
      %422 = vst.msk [vmem:[%s217 + $0x18] sm:$0xff] %vm418, %v389
      %423 = vst.msk [vmem:[%s217 + $0x20] sm:$0xff] %vm418, %v390
      %424 = vst.msk [vmem:[%s217 + $0x28] sm:$0xff] %vm418, %v391
      %425 = vst.msk [vmem:[%s217 + $0x30] sm:$0xff] %vm418, %v392
      %426 = vst.msk [vmem:[%s217 + $0x38] sm:$0xff] %vm418, %v393
      %427 = vst.msk [vmem:[%s217 + $0x40] sm:$0xff] %vm418, %v394
      %428 = vst.msk [vmem:[%s217 + $0x48] sm:$0xff] %vm418, %v395
      %429 = vst.msk [vmem:[%s217 + $0x50] sm:$0xff] %vm418, %v396
      %430 = vst.msk [vmem:[%s217 + $0x58] sm:$0xff] %vm418, %v397
      %431 = vst.msk [vmem:[%s217 + $0x60] sm:$0xff] %vm418, %v398
      %432 = vst.msk [vmem:[%s217 + $0x68] sm:$0xff] %vm418, %v399
      %433 = vst.msk [vmem:[%s217 + $0x70] sm:$0xff] %vm418, %v400
      %434 = vst.msk [vmem:[%s217 + $0x78] sm:$0xff] %vm418, %v401
      %435 = vst.msk [vmem:[%s217 + $0x80] sm:$0xff] %vm418, %v402
      %436 = vst.msk [vmem:[%s217 + $0x88] sm:$0xff] %vm418, %v403
      %437 = vst.msk [vmem:[%s217 + $0x90] sm:$0xff] %vm418, %v404
      %438 = vst.msk [vmem:[%s217 + $0x98] sm:$0xff] %vm418, %v405
      %439 = vst.msk [vmem:[%s217 + $0xa0] sm:$0xff] %vm418, %v406
      %440 = vst.msk [vmem:[%s217 + $0xa8] sm:$0xff] %vm418, %v407
      %441 = vst.msk [vmem:[%s217 + $0xb0] sm:$0xff] %vm418, %v408
      %442 = vst.msk [vmem:[%s217 + $0xb8] sm:$0xff] %vm418, %v409
      %443 = vst.msk [vmem:[%s217 + $0xc0] sm:$0xff] %vm418, %v410
      %444 = vst.msk [vmem:[%s217 + $0xc8] sm:$0xff] %vm418, %v411
      %445 = vst.msk [vmem:[%s217 + $0xd0] sm:$0xff] %vm418, %v412
      %446 = vst.msk [vmem:[%s217 + $0xd8] sm:$0xff] %vm418, %v413
      %447 = vst.msk [vmem:[%s217 + $0xe0] sm:$0xff] %vm418, %v414
      %448 = vst.msk [vmem:[%s217 + $0xe8] sm:$0xff] %vm418, %v415
      %449 = vst.msk [vmem:[%s217 + $0xf0] sm:$0xff] %vm418, %v416
      %450 = vst.msk [vmem:[%s217 + $0xf8] sm:$0xff] %vm418, %v417
      %p451 = scmp.lt.s32.totalorder %s15, 1
      %s452 = scalar_select %p451, %s15, 1
      %s453 = smul.addr %s452, 32
      %s454 = smul.addr %s453, 8
      %s455 = scalar_lea.vmem %s4, %s454
      // Predicated region
      $region37: #{resnet_block.7} parent=35 // pred_check
        %p456 = pneg %p127
      $region38: #{resnet_block.7} parent=35 // pred_check_branch
        %458 = sbr.rel (%p456) target = $region40
      $region39: #{resnet_block.7} parent=35 // pred_region
        _
      $region40: #{resnet_block.7} parent=35 // pred_fallthru
        _
    $region36: #{resnet_block.7} parent=5 // pred_fallthru
      _
    %p459 = scmp.le.s32.totalorder 2, %s10
    // Predicated region
    $region41: #{resnet_block.7} parent=5 // pred_check
      %p460 = pneg %p459
    $region42: #{resnet_block.7} parent=5 // pred_check_branch
      %462 = sbr.rel (%p460) target = $region44
    $region43: #{resnet_block.7} parent=5 // pred_region
      %s463 = ssub.s32 %s10, 2
      // Predicated region
      $region45: #{resnet_block.7} parent=43 // pred_check
        %p464 = pneg %p133
      $region46: #{resnet_block.7} parent=43 // pred_check_branch
        %466 = sbr.rel (%p464) target = $region48
      $region47: #{resnet_block.7} parent=43 // pred_region
        %p467 = scmp.lt.s32.totalorder %s16, 1
        %s468 = scalar_select %p467, %s16, 1
        %s469 = smul.addr %s468, 32
        %s470 = smul.addr %s469, 8
        %s471 = scalar_lea.vmem %s4, %s470
      $region48: #{resnet_block.7} parent=43 // pred_fallthru
        _
    $region44: #{resnet_block.7} parent=5 // pred_fallthru
      _
  $region6: #{resnet_block.7} parent=0 // loop_footer
    %s14 = sadd.s32 1, %s10
  $region7: #{resnet_block.7} parent=0 // loop_footer_branch
    %9 = sbr.rel target = $region3
  $region8: #{resnet_block.7} parent=0 // loop_exit
    _

// kernel: resnet_block.4
$region0: #{resnet_block.4}
  #allocation0 [shape = 'u32[]', space=smem, size = 0x4, offset = 0x4, fixed_abs, tag = 'smem constant byte address 0x4 - core index']
  #allocation1 [shape = 'u32[72,128]{1,0:T(1,128)}', space=vmem, size = 0x9000, scoped, tag = 'internal scratch']
  #allocation2 [shape = 'f32[18,18,4]{2,1,0:T(8,128)}', space=vmem, size = 0x36000, scoped, tag = 'scratch operand']
  #allocation3 [shape = 'bf16[256,36]{1,0:T(8,128)(2,1)}', space=vmem, size = 0x10000, scoped, tag = 'scratch operand']
  %s0 = inlined_call_operand.vmem [shape: f32[2,16,16,4], index: 0, kind: input, shape index: {}]
  %s1 = inlined_call_operand.vmem [shape: f32[1,1,4], index: 1, kind: input, shape index: {}]
  %s2 = inlined_call_operand.vmem [shape: f32[1,1,4], index: 2, kind: input, shape index: {}]
  %s3 = inlined_call_operand.vmem [shape: bf16[36,4], index: 3, kind: input, shape index: {}]
  %s4 = inlined_call_operand.vmem [shape: f32[2,16,16,4], index: 4, kind: output, shape index: {0}]
  %s5 = inlined_call_operand.vmem [shape: f32[2,2,4], index: 5, kind: output, shape index: {1}]
  %6 = xla_tuple %s4, %s5
  %s7 = sld [smem:[#allocation0]]
  $region57: #{resnet_block.4} parent=0
    _
  %s9 = ssub.s32 1, %s7
  %s10 = scalar_select 0, %s9, %s7
  loop: start=0, step=1, limit=4
  $region2: #{resnet_block.4} parent=0 // loop_pre_header
    _
  $region3: #{resnet_block.4} parent=0 // loop_header
    %s12 = sphi 0, %s16
    %p13 = scmp.ge.s32.totalorder %s12, 4
    %s22 = sphi 0, %s24
    %s25 = sphi 0, %s22
    %s26 = sphi 0, %s25
    %s42 = sphi 0, %s26
    %s46 = sphi 0, %s46
    %s48 = sphi 0, %s46
    %s49 = sphi 0, %s48
    %s63 = sphi 0, %s49
    %s67 = sphi 0, %s67
    %s69 = sphi 0, %s67
    %s70 = sphi 0, %s69
    %s84 = sphi 0, %s70
    %s88 = sphi 0, %s88
    %s90 = sphi 0, %s88
    %s91 = sphi 0, %s90
    %s105 = sphi 0, %s91
    %s111 = sphi 0, %s113
    %s114 = sphi 0, %s111
    %s115 = sphi 0, %s114
    %s131 = sphi 0, %s115
    %s137 = sphi 0, %s139
    %s140 = sphi 0, %s137
    %s141 = sphi 0, %s140
    %s157 = sphi 0, %s141
  $region4: #{resnet_block.4} parent=0 // loop_header_branch
    %15 = sbr.rel (%p13) target = $region8
  $region5: #{resnet_block.4} parent=0 // loop_body
    %s17 = ssub.s32 %s12, 1
    %s18 = ssub.s32 %s12, 2
    %s19 = sadd.s32 %s12, 1
    %s20 = ssub.s32 %s12, %s19
    %p21 = scmp.eq.s32.totalorder %s20, 0
    %s23 = sadd.s32 %s22, 1
    %s24 = scalar_select %p21, %s22, %s23
    %p27 = pneg %p21
    %p28 = scmp.eq.s32.totalorder %s12, 1
    %p29 = por %p27, %p28
    %p30 = scmp.ne.s32.totalorder %s22, %s25
    %p31 = scmp.eq.s32.totalorder %s12, 0
    %p32 = por %p30, %p31
    %p33 = scmp.ne.s32.totalorder %s22, %s25
    %p34 = scmp.eq.s32.totalorder %s17, 1
    %p35 = por %p33, %p34
    %p36 = scmp.ne.s32.totalorder %s25, %s26
    %p37 = scmp.eq.s32.totalorder %s17, 0
    %p38 = por %p36, %p37
    %p39 = scmp.ne.s32.totalorder %s25, %s26
    %p40 = scmp.eq.s32.totalorder %s18, 1
    %p41 = por %p39, %p40
    %p43 = scmp.ne.s32.totalorder %s26, %s42
    %p44 = scmp.eq.s32.totalorder %s18, 0
    %p45 = por %p43, %p44
    %s47 = sadd.s32 %s46, 1
    %p50 = scmp.eq.s32.totalorder %s12, 1
    %p51 = scmp.ne.s32.totalorder %s46, %s48
    %p52 = scmp.eq.s32.totalorder %s12, 0
    %p53 = por %p51, %p52
    %p54 = scmp.ne.s32.totalorder %s46, %s48
    %p55 = scmp.eq.s32.totalorder %s17, 1
    %p56 = por %p54, %p55
    %p57 = scmp.ne.s32.totalorder %s48, %s49
    %p58 = scmp.eq.s32.totalorder %s17, 0
    %p59 = por %p57, %p58
    %p60 = scmp.ne.s32.totalorder %s48, %s49
    %p61 = scmp.eq.s32.totalorder %s18, 1
    %p62 = por %p60, %p61
    %p64 = scmp.ne.s32.totalorder %s49, %s63
    %p65 = scmp.eq.s32.totalorder %s18, 0
    %p66 = por %p64, %p65
    %s68 = sadd.s32 %s67, 1
    %p71 = scmp.eq.s32.totalorder %s12, 1
    %p72 = scmp.ne.s32.totalorder %s67, %s69
    %p73 = scmp.eq.s32.totalorder %s12, 0
    %p74 = por %p72, %p73
    %p75 = scmp.ne.s32.totalorder %s67, %s69
    %p76 = scmp.eq.s32.totalorder %s17, 1
    %p77 = por %p75, %p76
    %p78 = scmp.ne.s32.totalorder %s69, %s70
    %p79 = scmp.eq.s32.totalorder %s17, 0
    %p80 = por %p78, %p79
    %p81 = scmp.ne.s32.totalorder %s69, %s70
    %p82 = scmp.eq.s32.totalorder %s18, 1
    %p83 = por %p81, %p82
    %p85 = scmp.ne.s32.totalorder %s70, %s84
    %p86 = scmp.eq.s32.totalorder %s18, 0
    %p87 = por %p85, %p86
    %s89 = sadd.s32 %s88, 1
    %p92 = scmp.eq.s32.totalorder %s12, 1
    %p93 = scmp.ne.s32.totalorder %s88, %s90
    %p94 = scmp.eq.s32.totalorder %s12, 0
    %p95 = por %p93, %p94
    %p96 = scmp.ne.s32.totalorder %s88, %s90
    %p97 = scmp.eq.s32.totalorder %s17, 1
    %p98 = por %p96, %p97
    %p99 = scmp.ne.s32.totalorder %s90, %s91
    %p100 = scmp.eq.s32.totalorder %s17, 0
    %p101 = por %p99, %p100
    %p102 = scmp.ne.s32.totalorder %s90, %s91
    %p103 = scmp.eq.s32.totalorder %s18, 1
    %p104 = por %p102, %p103
    %p106 = scmp.ne.s32.totalorder %s91, %s105
    %p107 = scmp.eq.s32.totalorder %s18, 0
    %p108 = por %p106, %p107
    %s109 = ssub.s32 %s12, %s19
    %p110 = scmp.eq.s32.totalorder %s109, 0
    %s112 = sadd.s32 %s111, 1
    %s113 = scalar_select %p110, %s111, %s112
    %p116 = pneg %p110
    %p117 = scmp.eq.s32.totalorder %s12, 1
    %p118 = por %p116, %p117
    %p119 = scmp.ne.s32.totalorder %s111, %s114
    %p120 = scmp.eq.s32.totalorder %s12, 0
    %p121 = por %p119, %p120
    %p122 = scmp.ne.s32.totalorder %s111, %s114
    %p123 = scmp.eq.s32.totalorder %s17, 1
    %p124 = por %p122, %p123
    %p125 = scmp.ne.s32.totalorder %s114, %s115
    %p126 = scmp.eq.s32.totalorder %s17, 0
    %p127 = por %p125, %p126
    %p128 = scmp.ne.s32.totalorder %s114, %s115
    %p129 = scmp.eq.s32.totalorder %s18, 1
    %p130 = por %p128, %p129
    %p132 = scmp.ne.s32.totalorder %s115, %s131
    %p133 = scmp.eq.s32.totalorder %s18, 0
    %p134 = por %p132, %p133
    %s135 = ssub.s32 %s12, %s19
    %p136 = scmp.eq.s32.totalorder %s135, 0
    %s138 = sadd.s32 %s137, 1
    %s139 = scalar_select %p136, %s137, %s138
    %p142 = pneg %p136
    %p143 = scmp.eq.s32.totalorder %s12, 1
    %p144 = por %p142, %p143
    %p145 = scmp.ne.s32.totalorder %s137, %s140
    %p146 = scmp.eq.s32.totalorder %s12, 0
    %p147 = por %p145, %p146
    %p148 = scmp.ne.s32.totalorder %s137, %s140
    %p149 = scmp.eq.s32.totalorder %s17, 1
    %p150 = por %p148, %p149
    %p151 = scmp.ne.s32.totalorder %s140, %s141
    %p152 = scmp.eq.s32.totalorder %s17, 0
    %p153 = por %p151, %p152
    %p154 = scmp.ne.s32.totalorder %s140, %s141
    %p155 = scmp.eq.s32.totalorder %s18, 1
    %p156 = por %p154, %p155
    %p158 = scmp.ne.s32.totalorder %s141, %s157
    %p159 = scmp.eq.s32.totalorder %s18, 0
    %p160 = por %p158, %p159
    %p161 = scmp.le.s32.totalorder 1, %s12
    %p162 = scmp.lt.s32.totalorder %s12, 3
    %p163 = pnand %p161, %p162
    %p164 = pneg %p163
    // Predicated region
    $region9: #{resnet_block.4} parent=5 // pred_check
      _
    $region10: #{resnet_block.4} parent=5 // pred_check_branch
      %166 = sbr.rel (%p163) target = $region12
    $region11: #{resnet_block.4} parent=5 // pred_region
      %s167 = ssub.s32 %s12, 1
      // Predicated region
      $region13: #{resnet_block.4} parent=11 // pred_check
        %p168 = pneg %p59
      $region14: #{resnet_block.4} parent=11 // pred_check_branch
        %170 = sbr.rel (%p168) target = $region16
      $region15: #{resnet_block.4} parent=11 // pred_region
        _
      $region16: #{resnet_block.4} parent=11 // pred_fallthru
        _
      // Predicated region
      $region17: #{resnet_block.4} parent=11 // pred_check
        %p171 = pneg %p80
      $region18: #{resnet_block.4} parent=11 // pred_check_branch
        %173 = sbr.rel (%p171) target = $region20
      $region19: #{resnet_block.4} parent=11 // pred_region
        _
      $region20: #{resnet_block.4} parent=11 // pred_fallthru
        _
      // Predicated region
      $region21: #{resnet_block.4} parent=11 // pred_check
        %p174 = pneg %p101
      $region22: #{resnet_block.4} parent=11 // pred_check_branch
        %176 = sbr.rel (%p174) target = $region24
      $region23: #{resnet_block.4} parent=11 // pred_region
        _
      $region24: #{resnet_block.4} parent=11 // pred_fallthru
        _
    $region12: #{resnet_block.4} parent=5 // pred_fallthru
      _
    %p177 = scmp.lt.s32.totalorder %s12, 2
    // Predicated region
    $region25: #{resnet_block.4} parent=5 // pred_check
      %p178 = pneg %p177
    $region26: #{resnet_block.4} parent=5 // pred_check_branch
      %180 = sbr.rel (%p178) target = $region28
    $region27: #{resnet_block.4} parent=5 // pred_region
      // Predicated region
      $region29: #{resnet_block.4} parent=27 // pred_check
        %p181 = pneg %p32
      $region30: #{resnet_block.4} parent=27 // pred_check_branch
        %183 = sbr.rel (%p181) target = $region32
      $region31: #{resnet_block.4} parent=27 // pred_region
        %p184 = scmp.lt.s32.totalorder %s12, 1
        %s185 = scalar_select %p184, %s12, 1
        %s186 = smul.addr %s185, 32
        %s187 = smul.addr %s186, 8
        %s188 = scalar_lea.vmem %s0, %s187
      $region32: #{resnet_block.4} parent=27 // pred_fallthru
        _
    $region28: #{resnet_block.4} parent=5 // pred_fallthru
      _
    %p189 = scmp.le.s32.totalorder 1, %s12
    %p190 = scmp.lt.s32.totalorder %s12, 3
    %p191 = pnand %p189, %p190
    %p192 = pneg %p191
    // Predicated region
    $region33: #{resnet_block.4} parent=5 // pred_check
      _
    $region34: #{resnet_block.4} parent=5 // pred_check_branch
      %194 = sbr.rel (%p191) target = $region36
    $region35: #{resnet_block.4} parent=5 // pred_region
      %s195 = ssub.s32 %s12, 1
      %p196 = scmp.lt.s32.totalorder %s17, 1
      %s197 = scalar_select %p196, %s17, 1
      %s198 = smul.addr %s197, 32
      %s199 = smul.addr %s198, 8
      %s200 = scalar_lea.vmem %s0, %s199
      %p201 = pneg %p38
      %p202 = pneg %p35
      %p203 = pneg %p59
      %p204 = pneg %p56
      %p205 = pneg %p80
      %p206 = pneg %p77
      %p207 = pneg %p101
      %p208 = pneg %p98
      %p209 = pneg %p127
      %p210 = pneg %p124
      %p211 = scmp.lt.s32.totalorder %s17, 1
      %s212 = scalar_select %p211, %s17, 1
      %s213 = smul.addr %s212, 32
      %s214 = smul.addr %s213, 8
      %s215 = scalar_lea.vmem %s4, %s214
      %p216 = pneg %p153
      %p217 = pneg %p150
      %p218 = scmp.lt.s32.totalorder %s17, 1
      %s219 = scalar_select %p218, %s17, 1
      %s220 = smul.addr %s219, 2
      %s221 = scalar_lea.vmem %s5, %s220
      %p222 = scmp.lt.s32.totalorder %s17, 1
      %s223 = scalar_select %p222, %s17, 1
      %s224 = smul.addr %s223, 32
      %s225 = smul.addr %s224, 8
      %s226 = scalar_lea.vmem %s0, %s225
      %p227 = scmp.lt.s32.totalorder %s17, 1
      %s228 = scalar_select %p227, %s17, 1
      %s229 = smul.addr %s228, 32
      %s230 = smul.addr %s229, 8
      %s231 = scalar_lea.vmem %s4, %s230
      %p232 = scmp.lt.s32.totalorder %s17, 1
      %s233 = scalar_select %p232, %s17, 1
      %s234 = smul.addr %s233, 2
      %s235 = scalar_lea.vmem %s5, %s234
      %vm237 = vcmask 31744
      %238 = vst.msk [vmem:[#allocation2] sm:$0xff] %vm237, 0.0
      %239 = vst.msk [vmem:[#allocation2 + $0x8] sm:$0xff] %vm237, 0.0
      %vm240 = vcmask 25600
      %241 = vst.msk [vmem:[#allocation2 + $0x10] sm:$0x3] %vm240, 0.0
      %s242 = scalar_lea.vmem [#allocation2], 408
      %243 = vst.msk [vmem:[%s242] sm:$0xff] %vm237, 0.0
      %244 = vst.msk [vmem:[%s242 + $0x8] sm:$0xff] %vm237, 0.0
      %245 = vst.msk [vmem:[%s242 + $0x10] sm:$0x3] %vm240, 0.0
      %vm246 = vcmask 24576
      %247 = vst.msk [vmem:[#allocation2] sm:$0x1] %vm246, 0.0
      %248 = vst.msk [vmem:[#allocation2 + $0x18] sm:$0x1] %vm246, 0.0
      %249 = vst.msk [vmem:[#allocation2 + $0x30] sm:$0x1] %vm246, 0.0
      %250 = vst.msk [vmem:[#allocation2 + $0x48] sm:$0x1] %vm246, 0.0
      %251 = vst.msk [vmem:[#allocation2 + $0x60] sm:$0x1] %vm246, 0.0
      %252 = vst.msk [vmem:[#allocation2 + $0x78] sm:$0x1] %vm246, 0.0
      %253 = vst.msk [vmem:[#allocation2 + $0x90] sm:$0x1] %vm246, 0.0
      %254 = vst.msk [vmem:[#allocation2 + $0xa8] sm:$0x1] %vm246, 0.0
      %255 = vst.msk [vmem:[#allocation2 + $0xc0] sm:$0x1] %vm246, 0.0
      %256 = vst.msk [vmem:[#allocation2 + $0xd8] sm:$0x1] %vm246, 0.0
      %257 = vst.msk [vmem:[#allocation2 + $0xf0] sm:$0x1] %vm246, 0.0
      %258 = vst.msk [vmem:[#allocation2 + $0x108] sm:$0x1] %vm246, 0.0
      %259 = vst.msk [vmem:[#allocation2 + $0x120] sm:$0x1] %vm246, 0.0
      %260 = vst.msk [vmem:[#allocation2 + $0x138] sm:$0x1] %vm246, 0.0
      %261 = vst.msk [vmem:[#allocation2 + $0x150] sm:$0x1] %vm246, 0.0
      %262 = vst.msk [vmem:[#allocation2 + $0x168] sm:$0x1] %vm246, 0.0
      %263 = vst.msk [vmem:[#allocation2 + $0x180] sm:$0x1] %vm246, 0.0
      %264 = vst.msk [vmem:[#allocation2 + $0x198] sm:$0x1] %vm246, 0.0
      %265 = vst.msk [vmem:[#allocation2 + $0x11] sm:$0x1] %vm246, 0.0
      %266 = vst.msk [vmem:[#allocation2 + $0x29] sm:$0x1] %vm246, 0.0
      %267 = vst.msk [vmem:[#allocation2 + $0x41] sm:$0x1] %vm246, 0.0
      %268 = vst.msk [vmem:[#allocation2 + $0x59] sm:$0x1] %vm246, 0.0
      %269 = vst.msk [vmem:[#allocation2 + $0x71] sm:$0x1] %vm246, 0.0
      %270 = vst.msk [vmem:[#allocation2 + $0x89] sm:$0x1] %vm246, 0.0
      %271 = vst.msk [vmem:[#allocation2 + $0xa1] sm:$0x1] %vm246, 0.0
      %272 = vst.msk [vmem:[#allocation2 + $0xb9] sm:$0x1] %vm246, 0.0
      %273 = vst.msk [vmem:[#allocation2 + $0xd1] sm:$0x1] %vm246, 0.0
      %274 = vst.msk [vmem:[#allocation2 + $0xe9] sm:$0x1] %vm246, 0.0
      %275 = vst.msk [vmem:[#allocation2 + $0x101] sm:$0x1] %vm246, 0.0
      %276 = vst.msk [vmem:[#allocation2 + $0x119] sm:$0x1] %vm246, 0.0
      %277 = vst.msk [vmem:[#allocation2 + $0x131] sm:$0x1] %vm246, 0.0
      %278 = vst.msk [vmem:[#allocation2 + $0x149] sm:$0x1] %vm246, 0.0
      %279 = vst.msk [vmem:[#allocation2 + $0x161] sm:$0x1] %vm246, 0.0
      %280 = vst.msk [vmem:[#allocation2 + $0x179] sm:$0x1] %vm246, 0.0
      %281 = vst.msk [vmem:[#allocation2 + $0x191] sm:$0x1] %vm246, 0.0
      %282 = vst.msk [vmem:[#allocation2 + $0x1a9] sm:$0x1] %vm246, 0.0
      %v283 = vld [vmem:[%s226] sm:$0xff]
      %v284 = vld [vmem:[%s226 + $0x8] sm:$0xff]
      %v285 = vld [vmem:[%s226 + $0x10] sm:$0xff]
      %v286 = vld [vmem:[%s226 + $0x18] sm:$0xff]
      %v287 = vld [vmem:[%s226 + $0x20] sm:$0xff]
      %v288 = vld [vmem:[%s226 + $0x28] sm:$0xff]
      %v289 = vld [vmem:[%s226 + $0x30] sm:$0xff]
      %v290 = vld [vmem:[%s226 + $0x38] sm:$0xff]
      %v291 = vld [vmem:[%s226 + $0x40] sm:$0xff]
      %v292 = vld [vmem:[%s226 + $0x48] sm:$0xff]
      %v293 = vld [vmem:[%s226 + $0x50] sm:$0xff]
      %v294 = vld [vmem:[%s226 + $0x58] sm:$0xff]
      %v295 = vld [vmem:[%s226 + $0x60] sm:$0xff]
      %v296 = vld [vmem:[%s226 + $0x68] sm:$0xff]
      %v297 = vld [vmem:[%s226 + $0x70] sm:$0xff]
      %v298 = vld [vmem:[%s226 + $0x78] sm:$0xff]
      %v299 = vld [vmem:[%s226 + $0x80] sm:$0xff]
      %v300 = vld [vmem:[%s226 + $0x88] sm:$0xff]
      %v301 = vld [vmem:[%s226 + $0x90] sm:$0xff]
      %v302 = vld [vmem:[%s226 + $0x98] sm:$0xff]
      %v303 = vld [vmem:[%s226 + $0xa0] sm:$0xff]
      %v304 = vld [vmem:[%s226 + $0xa8] sm:$0xff]
      %v305 = vld [vmem:[%s226 + $0xb0] sm:$0xff]
      %v306 = vld [vmem:[%s226 + $0xb8] sm:$0xff]
      %v307 = vld [vmem:[%s226 + $0xc0] sm:$0xff]
      %v308 = vld [vmem:[%s226 + $0xc8] sm:$0xff]
      %v309 = vld [vmem:[%s226 + $0xd0] sm:$0xff]
      %v310 = vld [vmem:[%s226 + $0xd8] sm:$0xff]
      %v311 = vld [vmem:[%s226 + $0xe0] sm:$0xff]
      %v312 = vld [vmem:[%s226 + $0xe8] sm:$0xff]
      %v313 = vld [vmem:[%s226 + $0xf0] sm:$0xff]
      %v314 = vld [vmem:[%s226 + $0xf8] sm:$0xff]
      %s315 = scalar_lea.vmem [#allocation2], 24
      %316 = vst.msk [vmem:[%s315 + $0x1] sm:$0xff] %vm237, %v283
      %317 = vst.msk [vmem:[%s315 + $0x9] sm:$0xff] %vm237, %v284
      %318 = vst.msk [vmem:[%s315 + $0x19] sm:$0xff] %vm237, %v285
      %319 = vst.msk [vmem:[%s315 + $0x21] sm:$0xff] %vm237, %v286
      %320 = vst.msk [vmem:[%s315 + $0x31] sm:$0xff] %vm237, %v287
      %321 = vst.msk [vmem:[%s315 + $0x39] sm:$0xff] %vm237, %v288
      %322 = vst.msk [vmem:[%s315 + $0x49] sm:$0xff] %vm237, %v289
      %323 = vst.msk [vmem:[%s315 + $0x51] sm:$0xff] %vm237, %v290
      %324 = vst.msk [vmem:[%s315 + $0x61] sm:$0xff] %vm237, %v291
      %325 = vst.msk [vmem:[%s315 + $0x69] sm:$0xff] %vm237, %v292
      %326 = vst.msk [vmem:[%s315 + $0x79] sm:$0xff] %vm237, %v293
      %327 = vst.msk [vmem:[%s315 + $0x81] sm:$0xff] %vm237, %v294
      %328 = vst.msk [vmem:[%s315 + $0x91] sm:$0xff] %vm237, %v295
      %329 = vst.msk [vmem:[%s315 + $0x99] sm:$0xff] %vm237, %v296
      %330 = vst.msk [vmem:[%s315 + $0xa9] sm:$0xff] %vm237, %v297
      %331 = vst.msk [vmem:[%s315 + $0xb1] sm:$0xff] %vm237, %v298
      %332 = vst.msk [vmem:[%s315 + $0xc1] sm:$0xff] %vm237, %v299
      %333 = vst.msk [vmem:[%s315 + $0xc9] sm:$0xff] %vm237, %v300
      %334 = vst.msk [vmem:[%s315 + $0xd9] sm:$0xff] %vm237, %v301
      %335 = vst.msk [vmem:[%s315 + $0xe1] sm:$0xff] %vm237, %v302
      %336 = vst.msk [vmem:[%s315 + $0xf1] sm:$0xff] %vm237, %v303
      %337 = vst.msk [vmem:[%s315 + $0xf9] sm:$0xff] %vm237, %v304
      %338 = vst.msk [vmem:[%s315 + $0x109] sm:$0xff] %vm237, %v305
      %339 = vst.msk [vmem:[%s315 + $0x111] sm:$0xff] %vm237, %v306
      %340 = vst.msk [vmem:[%s315 + $0x121] sm:$0xff] %vm237, %v307
      %341 = vst.msk [vmem:[%s315 + $0x129] sm:$0xff] %vm237, %v308
      %342 = vst.msk [vmem:[%s315 + $0x139] sm:$0xff] %vm237, %v309
      %343 = vst.msk [vmem:[%s315 + $0x141] sm:$0xff] %vm237, %v310
      %344 = vst.msk [vmem:[%s315 + $0x151] sm:$0xff] %vm237, %v311
      %345 = vst.msk [vmem:[%s315 + $0x159] sm:$0xff] %vm237, %v312
      %346 = vst.msk [vmem:[%s315 + $0x169] sm:$0xff] %vm237, %v313
      %347 = vst.msk [vmem:[%s315 + $0x171] sm:$0xff] %vm237, %v314
      %v348 = vld [vmem:[#allocation2] sm:$0xff]
      %v349 = vld [vmem:[#allocation2 + $0x8] sm:$0xff]
      %v350 = vld [vmem:[#allocation2 + $0x18] sm:$0xff]
      %v351 = vld [vmem:[#allocation2 + $0x20] sm:$0xff]
      %v352 = vld [vmem:[#allocation2 + $0x30] sm:$0xff]
      %v353 = vld [vmem:[#allocation2 + $0x38] sm:$0xff]
      %v354 = vld [vmem:[#allocation2 + $0x48] sm:$0xff]
      %v355 = vld [vmem:[#allocation2 + $0x50] sm:$0xff]
      %v356 = vld [vmem:[#allocation2 + $0x60] sm:$0xff]
      %v357 = vld [vmem:[#allocation2 + $0x68] sm:$0xff]
      %v358 = vld [vmem:[#allocation2 + $0x78] sm:$0xff]
      %v359 = vld [vmem:[#allocation2 + $0x80] sm:$0xff]
      %v360 = vld [vmem:[#allocation2 + $0x90] sm:$0xff]
      %v361 = vld [vmem:[#allocation2 + $0x98] sm:$0xff]
      %v362 = vld [vmem:[#allocation2 + $0xa8] sm:$0xff]
      %v363 = vld [vmem:[#allocation2 + $0xb0] sm:$0xff]
      %v364 = vld [vmem:[#allocation2 + $0xc0] sm:$0xff]
      %v365 = vld [vmem:[#allocation2 + $0xc8] sm:$0xff]
      %v366 = vld [vmem:[#allocation2 + $0xd8] sm:$0xff]
      %v367 = vld [vmem:[#allocation2 + $0xe0] sm:$0xff]
      %v368 = vld [vmem:[#allocation2 + $0xf0] sm:$0xff]
      %v369 = vld [vmem:[#allocation2 + $0xf8] sm:$0xff]
      %v370 = vld [vmem:[#allocation2 + $0x108] sm:$0xff]
      %v371 = vld [vmem:[#allocation2 + $0x110] sm:$0xff]
      %v372 = vld [vmem:[#allocation2 + $0x120] sm:$0xff]
      %v373 = vld [vmem:[#allocation2 + $0x128] sm:$0xff]
      %v374 = vld [vmem:[#allocation2 + $0x138] sm:$0xff]
      %v375 = vld [vmem:[#allocation2 + $0x140] sm:$0xff]
      %v376 = vld [vmem:[#allocation2 + $0x150] sm:$0xff]
      %v377 = vld [vmem:[#allocation2 + $0x158] sm:$0xff]
      %v378 = vld [vmem:[#allocation2 + $0x168] sm:$0xff]
      %v379 = vld [vmem:[#allocation2 + $0x170] sm:$0xff]
      %v380 = vpack.c.bf16 %v348, %v348
      %v381 = vpack.c.bf16 %v349, %v349
      %v382 = vpack.c.bf16 %v350, %v350
      %v383 = vpack.c.bf16 %v351, %v351
      %v384 = vpack.c.bf16 %v352, %v352
      %v385 = vpack.c.bf16 %v353, %v353
      %v386 = vpack.c.bf16 %v354, %v354
      %v387 = vpack.c.bf16 %v355, %v355
      %v388 = vpack.c.bf16 %v356, %v356
      %v389 = vpack.c.bf16 %v357, %v357
      %v390 = vpack.c.bf16 %v358, %v358
      %v391 = vpack.c.bf16 %v359, %v359
      %v392 = vpack.c.bf16 %v360, %v360
      %v393 = vpack.c.bf16 %v361, %v361
      %v394 = vpack.c.bf16 %v362, %v362
      %v395 = vpack.c.bf16 %v363, %v363
      %v396 = vpack.c.bf16 %v364, %v364
      %v397 = vpack.c.bf16 %v365, %v365
      %v398 = vpack.c.bf16 %v366, %v366
      %v399 = vpack.c.bf16 %v367, %v367
      %v400 = vpack.c.bf16 %v368, %v368
      %v401 = vpack.c.bf16 %v369, %v369
      %v402 = vpack.c.bf16 %v370, %v370
      %v403 = vpack.c.bf16 %v371, %v371
      %v404 = vpack.c.bf16 %v372, %v372
      %v405 = vpack.c.bf16 %v373, %v373
      %v406 = vpack.c.bf16 %v374, %v374
      %v407 = vpack.c.bf16 %v375, %v375
      %v408 = vpack.c.bf16 %v376, %v376
      %v409 = vpack.c.bf16 %v377, %v377
      %v410 = vpack.c.bf16 %v378, %v378
      %v411 = vpack.c.bf16 %v379, %v379
      %vm412 = vcmask 27648
      %413 = vst.msk [vmem:[#allocation3] sm:$0xf] %vm412, %v380
      %414 = vst.msk [vmem:[#allocation3 + $0x4] sm:$0xf] %vm412, %v381
      %415 = vst.msk [vmem:[#allocation3 + $0x8] sm:$0xf] %vm412, %v382
      %416 = vst.msk [vmem:[#allocation3 + $0xc] sm:$0xf] %vm412, %v383
      %417 = vst.msk [vmem:[#allocation3 + $0x10] sm:$0xf] %vm412, %v384
      %418 = vst.msk [vmem:[#allocation3 + $0x14] sm:$0xf] %vm412, %v385
      %419 = vst.msk [vmem:[#allocation3 + $0x18] sm:$0xf] %vm412, %v386
      %420 = vst.msk [vmem:[#allocation3 + $0x1c] sm:$0xf] %vm412, %v387
      %421 = vst.msk [vmem:[#allocation3 + $0x20] sm:$0xf] %vm412, %v388
      %422 = vst.msk [vmem:[#allocation3 + $0x24] sm:$0xf] %vm412, %v389
      %423 = vst.msk [vmem:[#allocation3 + $0x28] sm:$0xf] %vm412, %v390
      %424 = vst.msk [vmem:[#allocation3 + $0x2c] sm:$0xf] %vm412, %v391
      %425 = vst.msk [vmem:[#allocation3 + $0x30] sm:$0xf] %vm412, %v392
      %426 = vst.msk [vmem:[#allocation3 + $0x34] sm:$0xf] %vm412, %v393
      %427 = vst.msk [vmem:[#allocation3 + $0x38] sm:$0xf] %vm412, %v394
      %428 = vst.msk [vmem:[#allocation3 + $0x3c] sm:$0xf] %vm412, %v395
      %429 = vst.msk [vmem:[#allocation3 + $0x40] sm:$0xf] %vm412, %v396
      %430 = vst.msk [vmem:[#allocation3 + $0x44] sm:$0xf] %vm412, %v397
      %431 = vst.msk [vmem:[#allocation3 + $0x48] sm:$0xf] %vm412, %v398
      %432 = vst.msk [vmem:[#allocation3 + $0x4c] sm:$0xf] %vm412, %v399
      %433 = vst.msk [vmem:[#allocation3 + $0x50] sm:$0xf] %vm412, %v400
      %434 = vst.msk [vmem:[#allocation3 + $0x54] sm:$0xf] %vm412, %v401
      %435 = vst.msk [vmem:[#allocation3 + $0x58] sm:$0xf] %vm412, %v402
      %436 = vst.msk [vmem:[#allocation3 + $0x5c] sm:$0xf] %vm412, %v403
      %437 = vst.msk [vmem:[#allocation3 + $0x60] sm:$0xf] %vm412, %v404
      %438 = vst.msk [vmem:[#allocation3 + $0x64] sm:$0xf] %vm412, %v405
      %439 = vst.msk [vmem:[#allocation3 + $0x68] sm:$0xf] %vm412, %v406
      %440 = vst.msk [vmem:[#allocation3 + $0x6c] sm:$0xf] %vm412, %v407
      %441 = vst.msk [vmem:[#allocation3 + $0x70] sm:$0xf] %vm412, %v408
      %442 = vst.msk [vmem:[#allocation3 + $0x74] sm:$0xf] %vm412, %v409
      %443 = vst.msk [vmem:[#allocation3 + $0x78] sm:$0xf] %vm412, %v410
      %444 = vst.msk [vmem:[#allocation3 + $0x7c] sm:$0xf] %vm412, %v411
      %v445 = vld [vmem:[#allocation2 + $0x1] sm:$0xff]
      %v446 = vld [vmem:[#allocation2 + $0x9] sm:$0xff]
      %v447 = vld [vmem:[#allocation2 + $0x19] sm:$0xff]
      %v448 = vld [vmem:[#allocation2 + $0x21] sm:$0xff]
      %v449 = vld [vmem:[#allocation2 + $0x31] sm:$0xff]
      %v450 = vld [vmem:[#allocation2 + $0x39] sm:$0xff]
      %v451 = vld [vmem:[#allocation2 + $0x49] sm:$0xff]
      %v452 = vld [vmem:[#allocation2 + $0x51] sm:$0xff]
      %v453 = vld [vmem:[#allocation2 + $0x61] sm:$0xff]
      %v454 = vld [vmem:[#allocation2 + $0x69] sm:$0xff]
      %v455 = vld [vmem:[#allocation2 + $0x79] sm:$0xff]
      %v456 = vld [vmem:[#allocation2 + $0x81] sm:$0xff]
      %v457 = vld [vmem:[#allocation2 + $0x91] sm:$0xff]
      %v458 = vld [vmem:[#allocation2 + $0x99] sm:$0xff]
      %v459 = vld [vmem:[#allocation2 + $0xa9] sm:$0xff]
      %v460 = vld [vmem:[#allocation2 + $0xb1] sm:$0xff]
      %v461 = vld [vmem:[#allocation2 + $0xc1] sm:$0xff]
      %v462 = vld [vmem:[#allocation2 + $0xc9] sm:$0xff]
      %v463 = vld [vmem:[#allocation2 + $0xd9] sm:$0xff]
      %v464 = vld [vmem:[#allocation2 + $0xe1] sm:$0xff]
      %v465 = vld [vmem:[#allocation2 + $0xf1] sm:$0xff]
      %v466 = vld [vmem:[#allocation2 + $0xf9] sm:$0xff]
      %v467 = vld [vmem:[#allocation2 + $0x109] sm:$0xff]
      %v468 = vld [vmem:[#allocation2 + $0x111] sm:$0xff]
      %v469 = vld [vmem:[#allocation2 + $0x121] sm:$0xff]
      %v470 = vld [vmem:[#allocation2 + $0x129] sm:$0xff]
      %v471 = vld [vmem:[#allocation2 + $0x139] sm:$0xff]
      %v472 = vld [vmem:[#allocation2 + $0x141] sm:$0xff]
      %v473 = vld [vmem:[#allocation2 + $0x151] sm:$0xff]
      %v474 = vld [vmem:[#allocation2 + $0x159] sm:$0xff]
      %v475 = vld [vmem:[#allocation2 + $0x169] sm:$0xff]
      %v476 = vld [vmem:[#allocation2 + $0x171] sm:$0xff]
      %v477 = vpack.c.bf16 %v445, %v445
      %v478 = vpack.c.bf16 %v446, %v446
      %v479 = vpack.c.bf16 %v447, %v447
      %v480 = vpack.c.bf16 %v448, %v448
      %v481 = vpack.c.bf16 %v449, %v449
      %v482 = vpack.c.bf16 %v450, %v450
      %v483 = vpack.c.bf16 %v451, %v451
      %v484 = vpack.c.bf16 %v452, %v452
      %v485 = vpack.c.bf16 %v453, %v453
      %v486 = vpack.c.bf16 %v454, %v454
      %v487 = vpack.c.bf16 %v455, %v455
      %v488 = vpack.c.bf16 %v456, %v456
      %v489 = vpack.c.bf16 %v457, %v457
      %v490 = vpack.c.bf16 %v458, %v458
      %v491 = vpack.c.bf16 %v459, %v459
      %v492 = vpack.c.bf16 %v460, %v460
      %v493 = vpack.c.bf16 %v461, %v461
      %v494 = vpack.c.bf16 %v462, %v462
      %v495 = vpack.c.bf16 %v463, %v463
      %v496 = vpack.c.bf16 %v464, %v464
      %v497 = vpack.c.bf16 %v465, %v465
      %v498 = vpack.c.bf16 %v466, %v466
      %v499 = vpack.c.bf16 %v467, %v467
      %v500 = vpack.c.bf16 %v468, %v468
      %v501 = vpack.c.bf16 %v469, %v469
      %v502 = vpack.c.bf16 %v470, %v470
      %v503 = vpack.c.bf16 %v471, %v471
      %v504 = vpack.c.bf16 %v472, %v472
      %v505 = vpack.c.bf16 %v473, %v473
      %v506 = vpack.c.bf16 %v474, %v474
      %v507 = vpack.c.bf16 %v475, %v475
      %v508 = vpack.c.bf16 %v476, %v476
      %541 = vrot.lane.b32.xlu0 %v477, 4
      %v542 = vpop.permute.xlu0 %541
      %543 = vrot.lane.b32.xlu0 %v478, 4
      %v544 = vpop.permute.xlu0 %543
      %545 = vrot.lane.b32.xlu0 %v479, 4
      %v546 = vpop.permute.xlu0 %545
      %547 = vrot.lane.b32.xlu0 %v480, 4
      %v548 = vpop.permute.xlu0 %547
      %549 = vrot.lane.b32.xlu0 %v481, 4
      %v550 = vpop.permute.xlu0 %549
      %551 = vrot.lane.b32.xlu0 %v482, 4
      %v552 = vpop.permute.xlu0 %551
      %553 = vrot.lane.b32.xlu0 %v483, 4
      %v554 = vpop.permute.xlu0 %553
      %555 = vrot.lane.b32.xlu0 %v484, 4
      %v556 = vpop.permute.xlu0 %555
      %557 = vrot.lane.b32.xlu0 %v485, 4
      %v558 = vpop.permute.xlu0 %557
      %559 = vrot.lane.b32.xlu0 %v486, 4
      %v560 = vpop.permute.xlu0 %559
      %561 = vrot.lane.b32.xlu0 %v487, 4
      %v562 = vpop.permute.xlu0 %561
      %563 = vrot.lane.b32.xlu0 %v488, 4
      %v564 = vpop.permute.xlu0 %563
      %565 = vrot.lane.b32.xlu0 %v489, 4
      %v566 = vpop.permute.xlu0 %565
      %567 = vrot.lane.b32.xlu0 %v490, 4
      %v568 = vpop.permute.xlu0 %567
      %569 = vrot.lane.b32.xlu0 %v491, 4
      %v570 = vpop.permute.xlu0 %569
      %571 = vrot.lane.b32.xlu0 %v492, 4
      %v572 = vpop.permute.xlu0 %571
      %573 = vrot.lane.b32.xlu0 %v493, 4
      %v574 = vpop.permute.xlu0 %573
      %575 = vrot.lane.b32.xlu0 %v494, 4
      %v576 = vpop.permute.xlu0 %575
      %577 = vrot.lane.b32.xlu0 %v495, 4
      %v578 = vpop.permute.xlu0 %577
      %579 = vrot.lane.b32.xlu0 %v496, 4
      %v580 = vpop.permute.xlu0 %579
      %581 = vrot.lane.b32.xlu0 %v497, 4
      %v582 = vpop.permute.xlu0 %581
      %583 = vrot.lane.b32.xlu0 %v498, 4
      %v584 = vpop.permute.xlu0 %583
      %585 = vrot.lane.b32.xlu0 %v499, 4
      %v586 = vpop.permute.xlu0 %585
      %587 = vrot.lane.b32.xlu0 %v500, 4
      %v588 = vpop.permute.xlu0 %587
      %589 = vrot.lane.b32.xlu0 %v501, 4
      %v590 = vpop.permute.xlu0 %589
      %591 = vrot.lane.b32.xlu0 %v502, 4
      %v592 = vpop.permute.xlu0 %591
      %593 = vrot.lane.b32.xlu0 %v503, 4
      %v594 = vpop.permute.xlu0 %593
      %595 = vrot.lane.b32.xlu0 %v504, 4
      %v596 = vpop.permute.xlu0 %595
      %597 = vrot.lane.b32.xlu0 %v505, 4
      %v598 = vpop.permute.xlu0 %597
      %599 = vrot.lane.b32.xlu0 %v506, 4
      %v600 = vpop.permute.xlu0 %599
      %601 = vrot.lane.b32.xlu0 %v507, 4
      %v602 = vpop.permute.xlu0 %601
      %603 = vrot.lane.b32.xlu0 %v508, 4
      %v604 = vpop.permute.xlu0 %603
      %vm637 = vcmask 60448
      %638 = vst.msk [vmem:[#allocation3] sm:$0xf] %vm637, %v542
      %639 = vst.msk [vmem:[#allocation3 + $0x4] sm:$0xf] %vm637, %v544
      %640 = vst.msk [vmem:[#allocation3 + $0x8] sm:$0xf] %vm637, %v546
      %641 = vst.msk [vmem:[#allocation3 + $0xc] sm:$0xf] %vm637, %v548
      %642 = vst.msk [vmem:[#allocation3 + $0x10] sm:$0xf] %vm637, %v550
      %643 = vst.msk [vmem:[#allocation3 + $0x14] sm:$0xf] %vm637, %v552
      %644 = vst.msk [vmem:[#allocation3 + $0x18] sm:$0xf] %vm637, %v554
      %645 = vst.msk [vmem:[#allocation3 + $0x1c] sm:$0xf] %vm637, %v556
      %646 = vst.msk [vmem:[#allocation3 + $0x20] sm:$0xf] %vm637, %v558
      %647 = vst.msk [vmem:[#allocation3 + $0x24] sm:$0xf] %vm637, %v560
      %648 = vst.msk [vmem:[#allocation3 + $0x28] sm:$0xf] %vm637, %v562
      %649 = vst.msk [vmem:[#allocation3 + $0x2c] sm:$0xf] %vm637, %v564
      %650 = vst.msk [vmem:[#allocation3 + $0x30] sm:$0xf] %vm637, %v566
      %651 = vst.msk [vmem:[#allocation3 + $0x34] sm:$0xf] %vm637, %v568
      %652 = vst.msk [vmem:[#allocation3 + $0x38] sm:$0xf] %vm637, %v570
      %653 = vst.msk [vmem:[#allocation3 + $0x3c] sm:$0xf] %vm637, %v572
      %654 = vst.msk [vmem:[#allocation3 + $0x40] sm:$0xf] %vm637, %v574
      %655 = vst.msk [vmem:[#allocation3 + $0x44] sm:$0xf] %vm637, %v576
      %656 = vst.msk [vmem:[#allocation3 + $0x48] sm:$0xf] %vm637, %v578
      %657 = vst.msk [vmem:[#allocation3 + $0x4c] sm:$0xf] %vm637, %v580
      %658 = vst.msk [vmem:[#allocation3 + $0x50] sm:$0xf] %vm637, %v582
      %659 = vst.msk [vmem:[#allocation3 + $0x54] sm:$0xf] %vm637, %v584
      %660 = vst.msk [vmem:[#allocation3 + $0x58] sm:$0xf] %vm637, %v586
      %661 = vst.msk [vmem:[#allocation3 + $0x5c] sm:$0xf] %vm637, %v588
      %662 = vst.msk [vmem:[#allocation3 + $0x60] sm:$0xf] %vm637, %v590
      %663 = vst.msk [vmem:[#allocation3 + $0x64] sm:$0xf] %vm637, %v592
      %664 = vst.msk [vmem:[#allocation3 + $0x68] sm:$0xf] %vm637, %v594
      %665 = vst.msk [vmem:[#allocation3 + $0x6c] sm:$0xf] %vm637, %v596
      %666 = vst.msk [vmem:[#allocation3 + $0x70] sm:$0xf] %vm637, %v598
      %667 = vst.msk [vmem:[#allocation3 + $0x74] sm:$0xf] %vm637, %v600
      %668 = vst.msk [vmem:[#allocation3 + $0x78] sm:$0xf] %vm637, %v602
      %669 = vst.msk [vmem:[#allocation3 + $0x7c] sm:$0xf] %vm637, %v604
      %v670 = vld [vmem:[#allocation2 + $0x2] sm:$0xff]
      %v671 = vld [vmem:[#allocation2 + $0xa] sm:$0xff]
      %v672 = vld [vmem:[#allocation2 + $0x1a] sm:$0xff]
      %v673 = vld [vmem:[#allocation2 + $0x22] sm:$0xff]
      %v674 = vld [vmem:[#allocation2 + $0x32] sm:$0xff]
      %v675 = vld [vmem:[#allocation2 + $0x3a] sm:$0xff]
      %v676 = vld [vmem:[#allocation2 + $0x4a] sm:$0xff]
      %v677 = vld [vmem:[#allocation2 + $0x52] sm:$0xff]
      %v678 = vld [vmem:[#allocation2 + $0x62] sm:$0xff]
      %v679 = vld [vmem:[#allocation2 + $0x6a] sm:$0xff]
      %v680 = vld [vmem:[#allocation2 + $0x7a] sm:$0xff]
      %v681 = vld [vmem:[#allocation2 + $0x82] sm:$0xff]
      %v682 = vld [vmem:[#allocation2 + $0x92] sm:$0xff]
      %v683 = vld [vmem:[#allocation2 + $0x9a] sm:$0xff]
      %v684 = vld [vmem:[#allocation2 + $0xaa] sm:$0xff]
      %v685 = vld [vmem:[#allocation2 + $0xb2] sm:$0xff]
      %v686 = vld [vmem:[#allocation2 + $0xc2] sm:$0xff]
      %v687 = vld [vmem:[#allocation2 + $0xca] sm:$0xff]
      %v688 = vld [vmem:[#allocation2 + $0xda] sm:$0xff]
      %v689 = vld [vmem:[#allocation2 + $0xe2] sm:$0xff]
      %v690 = vld [vmem:[#allocation2 + $0xf2] sm:$0xff]
      %v691 = vld [vmem:[#allocation2 + $0xfa] sm:$0xff]
      %v692 = vld [vmem:[#allocation2 + $0x10a] sm:$0xff]
      %v693 = vld [vmem:[#allocation2 + $0x112] sm:$0xff]
      %v694 = vld [vmem:[#allocation2 + $0x122] sm:$0xff]
      %v695 = vld [vmem:[#allocation2 + $0x12a] sm:$0xff]
      %v696 = vld [vmem:[#allocation2 + $0x13a] sm:$0xff]
      %v697 = vld [vmem:[#allocation2 + $0x142] sm:$0xff]
      %v698 = vld [vmem:[#allocation2 + $0x152] sm:$0xff]
      %v699 = vld [vmem:[#allocation2 + $0x15a] sm:$0xff]
      %v700 = vld [vmem:[#allocation2 + $0x16a] sm:$0xff]
      %v701 = vld [vmem:[#allocation2 + $0x172] sm:$0xff]
      %v702 = vpack.c.bf16 %v670, %v670
      %v703 = vpack.c.bf16 %v671, %v671
      %v704 = vpack.c.bf16 %v672, %v672
      %v705 = vpack.c.bf16 %v673, %v673
      %v706 = vpack.c.bf16 %v674, %v674
      %v707 = vpack.c.bf16 %v675, %v675
      %v708 = vpack.c.bf16 %v676, %v676
      %v709 = vpack.c.bf16 %v677, %v677
      %v710 = vpack.c.bf16 %v678, %v678
      %v711 = vpack.c.bf16 %v679, %v679
      %v712 = vpack.c.bf16 %v680, %v680
      %v713 = vpack.c.bf16 %v681, %v681
      %v714 = vpack.c.bf16 %v682, %v682
      %v715 = vpack.c.bf16 %v683, %v683
      %v716 = vpack.c.bf16 %v684, %v684
      %v717 = vpack.c.bf16 %v685, %v685
      %v718 = vpack.c.bf16 %v686, %v686
      %v719 = vpack.c.bf16 %v687, %v687
      %v720 = vpack.c.bf16 %v688, %v688
      %v721 = vpack.c.bf16 %v689, %v689
      %v722 = vpack.c.bf16 %v690, %v690
      %v723 = vpack.c.bf16 %v691, %v691
      %v724 = vpack.c.bf16 %v692, %v692
      %v725 = vpack.c.bf16 %v693, %v693
      %v726 = vpack.c.bf16 %v694, %v694
      %v727 = vpack.c.bf16 %v695, %v695
      %v728 = vpack.c.bf16 %v696, %v696
      %v729 = vpack.c.bf16 %v697, %v697
      %v730 = vpack.c.bf16 %v698, %v698
      %v731 = vpack.c.bf16 %v699, %v699
      %v732 = vpack.c.bf16 %v700, %v700
      %v733 = vpack.c.bf16 %v701, %v701
      %766 = vrot.lane.b32.xlu0 %v702, 8
      %v767 = vpop.permute.xlu0 %766
      %768 = vrot.lane.b32.xlu0 %v703, 8
      %v769 = vpop.permute.xlu0 %768
      %770 = vrot.lane.b32.xlu0 %v704, 8
      %v771 = vpop.permute.xlu0 %770
      %772 = vrot.lane.b32.xlu0 %v705, 8
      %v773 = vpop.permute.xlu0 %772
      %774 = vrot.lane.b32.xlu0 %v706, 8
      %v775 = vpop.permute.xlu0 %774
      %776 = vrot.lane.b32.xlu0 %v707, 8
      %v777 = vpop.permute.xlu0 %776
      %778 = vrot.lane.b32.xlu0 %v708, 8
      %v779 = vpop.permute.xlu0 %778
      %780 = vrot.lane.b32.xlu0 %v709, 8
      %v781 = vpop.permute.xlu0 %780
      %782 = vrot.lane.b32.xlu0 %v710, 8
      %v783 = vpop.permute.xlu0 %782
      %784 = vrot.lane.b32.xlu0 %v711, 8
      %v785 = vpop.permute.xlu0 %784
      %786 = vrot.lane.b32.xlu0 %v712, 8
      %v787 = vpop.permute.xlu0 %786
      %788 = vrot.lane.b32.xlu0 %v713, 8
      %v789 = vpop.permute.xlu0 %788
      %790 = vrot.lane.b32.xlu0 %v714, 8
      %v791 = vpop.permute.xlu0 %790
      %792 = vrot.lane.b32.xlu0 %v715, 8
      %v793 = vpop.permute.xlu0 %792
      %794 = vrot.lane.b32.xlu0 %v716, 8
      %v795 = vpop.permute.xlu0 %794
      %796 = vrot.lane.b32.xlu0 %v717, 8
      %v797 = vpop.permute.xlu0 %796
      %798 = vrot.lane.b32.xlu0 %v718, 8
      %v799 = vpop.permute.xlu0 %798
      %800 = vrot.lane.b32.xlu0 %v719, 8
      %v801 = vpop.permute.xlu0 %800
      %802 = vrot.lane.b32.xlu0 %v720, 8
      %v803 = vpop.permute.xlu0 %802
      %804 = vrot.lane.b32.xlu0 %v721, 8
      %v805 = vpop.permute.xlu0 %804
      %806 = vrot.lane.b32.xlu0 %v722, 8
      %v807 = vpop.permute.xlu0 %806
      %808 = vrot.lane.b32.xlu0 %v723, 8
      %v809 = vpop.permute.xlu0 %808
      %810 = vrot.lane.b32.xlu0 %v724, 8
      %v811 = vpop.permute.xlu0 %810
      %812 = vrot.lane.b32.xlu0 %v725, 8
      %v813 = vpop.permute.xlu0 %812
      %814 = vrot.lane.b32.xlu0 %v726, 8
      %v815 = vpop.permute.xlu0 %814
      %816 = vrot.lane.b32.xlu0 %v727, 8
      %v817 = vpop.permute.xlu0 %816
      %818 = vrot.lane.b32.xlu0 %v728, 8
      %v819 = vpop.permute.xlu0 %818
      %820 = vrot.lane.b32.xlu0 %v729, 8
      %v821 = vpop.permute.xlu0 %820
      %822 = vrot.lane.b32.xlu0 %v730, 8
      %v823 = vpop.permute.xlu0 %822
      %824 = vrot.lane.b32.xlu0 %v731, 8
      %v825 = vpop.permute.xlu0 %824
      %826 = vrot.lane.b32.xlu0 %v732, 8
      %v827 = vpop.permute.xlu0 %826
      %828 = vrot.lane.b32.xlu0 %v733, 8
      %v829 = vpop.permute.xlu0 %828
      %vm862 = vcmask 93248
      %863 = vst.msk [vmem:[#allocation3] sm:$0xf] %vm862, %v767
      %864 = vst.msk [vmem:[#allocation3 + $0x4] sm:$0xf] %vm862, %v769
      %865 = vst.msk [vmem:[#allocation3 + $0x8] sm:$0xf] %vm862, %v771
      %866 = vst.msk [vmem:[#allocation3 + $0xc] sm:$0xf] %vm862, %v773
      %867 = vst.msk [vmem:[#allocation3 + $0x10] sm:$0xf] %vm862, %v775
      %868 = vst.msk [vmem:[#allocation3 + $0x14] sm:$0xf] %vm862, %v777
      %869 = vst.msk [vmem:[#allocation3 + $0x18] sm:$0xf] %vm862, %v779
      %870 = vst.msk [vmem:[#allocation3 + $0x1c] sm:$0xf] %vm862, %v781
      %871 = vst.msk [vmem:[#allocation3 + $0x20] sm:$0xf] %vm862, %v783
      %872 = vst.msk [vmem:[#allocation3 + $0x24] sm:$0xf] %vm862, %v785
      %873 = vst.msk [vmem:[#allocation3 + $0x28] sm:$0xf] %vm862, %v787
      %874 = vst.msk [vmem:[#allocation3 + $0x2c] sm:$0xf] %vm862, %v789
      %875 = vst.msk [vmem:[#allocation3 + $0x30] sm:$0xf] %vm862, %v791
      %876 = vst.msk [vmem:[#allocation3 + $0x34] sm:$0xf] %vm862, %v793
      %877 = vst.msk [vmem:[#allocation3 + $0x38] sm:$0xf] %vm862, %v795
      %878 = vst.msk [vmem:[#allocation3 + $0x3c] sm:$0xf] %vm862, %v797
      %879 = vst.msk [vmem:[#allocation3 + $0x40] sm:$0xf] %vm862, %v799
      %880 = vst.msk [vmem:[#allocation3 + $0x44] sm:$0xf] %vm862, %v801
      %881 = vst.msk [vmem:[#allocation3 + $0x48] sm:$0xf] %vm862, %v803
      %882 = vst.msk [vmem:[#allocation3 + $0x4c] sm:$0xf] %vm862, %v805
      %883 = vst.msk [vmem:[#allocation3 + $0x50] sm:$0xf] %vm862, %v807
      %884 = vst.msk [vmem:[#allocation3 + $0x54] sm:$0xf] %vm862, %v809
      %885 = vst.msk [vmem:[#allocation3 + $0x58] sm:$0xf] %vm862, %v811
      %886 = vst.msk [vmem:[#allocation3 + $0x5c] sm:$0xf] %vm862, %v813
      %887 = vst.msk [vmem:[#allocation3 + $0x60] sm:$0xf] %vm862, %v815
      %888 = vst.msk [vmem:[#allocation3 + $0x64] sm:$0xf] %vm862, %v817
      %889 = vst.msk [vmem:[#allocation3 + $0x68] sm:$0xf] %vm862, %v819
      %890 = vst.msk [vmem:[#allocation3 + $0x6c] sm:$0xf] %vm862, %v821
      %891 = vst.msk [vmem:[#allocation3 + $0x70] sm:$0xf] %vm862, %v823
      %892 = vst.msk [vmem:[#allocation3 + $0x74] sm:$0xf] %vm862, %v825
      %893 = vst.msk [vmem:[#allocation3 + $0x78] sm:$0xf] %vm862, %v827
      %894 = vst.msk [vmem:[#allocation3 + $0x7c] sm:$0xf] %vm862, %v829
      %v895 = vld [vmem:[%s315] sm:$0xff]
      %v896 = vld [vmem:[%s315 + $0x8] sm:$0xff]
      %v897 = vld [vmem:[%s315 + $0x18] sm:$0xff]
      %v898 = vld [vmem:[%s315 + $0x20] sm:$0xff]
      %v899 = vld [vmem:[%s315 + $0x30] sm:$0xff]
      %v900 = vld [vmem:[%s315 + $0x38] sm:$0xff]
      %v901 = vld [vmem:[%s315 + $0x48] sm:$0xff]
      %v902 = vld [vmem:[%s315 + $0x50] sm:$0xff]
      %v903 = vld [vmem:[%s315 + $0x60] sm:$0xff]
      %v904 = vld [vmem:[%s315 + $0x68] sm:$0xff]
      %v905 = vld [vmem:[%s315 + $0x78] sm:$0xff]
      %v906 = vld [vmem:[%s315 + $0x80] sm:$0xff]
      %v907 = vld [vmem:[%s315 + $0x90] sm:$0xff]
      %v908 = vld [vmem:[%s315 + $0x98] sm:$0xff]
      %v909 = vld [vmem:[%s315 + $0xa8] sm:$0xff]
      %v910 = vld [vmem:[%s315 + $0xb0] sm:$0xff]
      %v911 = vld [vmem:[%s315 + $0xc0] sm:$0xff]
      %v912 = vld [vmem:[%s315 + $0xc8] sm:$0xff]
      %v913 = vld [vmem:[%s315 + $0xd8] sm:$0xff]
      %v914 = vld [vmem:[%s315 + $0xe0] sm:$0xff]
      %v915 = vld [vmem:[%s315 + $0xf0] sm:$0xff]
      %v916 = vld [vmem:[%s315 + $0xf8] sm:$0xff]
      %v917 = vld [vmem:[%s315 + $0x108] sm:$0xff]
      %v918 = vld [vmem:[%s315 + $0x110] sm:$0xff]
      %v919 = vld [vmem:[%s315 + $0x120] sm:$0xff]
      %v920 = vld [vmem:[%s315 + $0x128] sm:$0xff]
      %v921 = vld [vmem:[%s315 + $0x138] sm:$0xff]
      %v922 = vld [vmem:[%s315 + $0x140] sm:$0xff]
      %v923 = vld [vmem:[%s315 + $0x150] sm:$0xff]
      %v924 = vld [vmem:[%s315 + $0x158] sm:$0xff]
      %v925 = vld [vmem:[%s315 + $0x168] sm:$0xff]
      %v926 = vld [vmem:[%s315 + $0x170] sm:$0xff]
      %v927 = vpack.c.bf16 %v895, %v895
      %v928 = vpack.c.bf16 %v896, %v896
      %v929 = vpack.c.bf16 %v897, %v897
      %v930 = vpack.c.bf16 %v898, %v898
      %v931 = vpack.c.bf16 %v899, %v899
      %v932 = vpack.c.bf16 %v900, %v900
      %v933 = vpack.c.bf16 %v901, %v901
      %v934 = vpack.c.bf16 %v902, %v902
      %v935 = vpack.c.bf16 %v903, %v903
      %v936 = vpack.c.bf16 %v904, %v904
      %v937 = vpack.c.bf16 %v905, %v905
      %v938 = vpack.c.bf16 %v906, %v906
      %v939 = vpack.c.bf16 %v907, %v907
      %v940 = vpack.c.bf16 %v908, %v908
      %v941 = vpack.c.bf16 %v909, %v909
      %v942 = vpack.c.bf16 %v910, %v910
      %v943 = vpack.c.bf16 %v911, %v911
      %v944 = vpack.c.bf16 %v912, %v912
      %v945 = vpack.c.bf16 %v913, %v913
      %v946 = vpack.c.bf16 %v914, %v914
      %v947 = vpack.c.bf16 %v915, %v915
      %v948 = vpack.c.bf16 %v916, %v916
      %v949 = vpack.c.bf16 %v917, %v917
      %v950 = vpack.c.bf16 %v918, %v918
      %v951 = vpack.c.bf16 %v919, %v919
      %v952 = vpack.c.bf16 %v920, %v920
      %v953 = vpack.c.bf16 %v921, %v921
      %v954 = vpack.c.bf16 %v922, %v922
      %v955 = vpack.c.bf16 %v923, %v923
      %v956 = vpack.c.bf16 %v924, %v924
      %v957 = vpack.c.bf16 %v925, %v925
      %v958 = vpack.c.bf16 %v926, %v926
      %991 = vrot.lane.b32.xlu0 %v927, 12
      %v992 = vpop.permute.xlu0 %991
      %993 = vrot.lane.b32.xlu0 %v928, 12
      %v994 = vpop.permute.xlu0 %993
      %995 = vrot.lane.b32.xlu0 %v929, 12
      %v996 = vpop.permute.xlu0 %995
      %997 = vrot.lane.b32.xlu0 %v930, 12
      %v998 = vpop.permute.xlu0 %997
      %999 = vrot.lane.b32.xlu0 %v931, 12
      %v1000 = vpop.permute.xlu0 %999
      %1001 = vrot.lane.b32.xlu0 %v932, 12
      %v1002 = vpop.permute.xlu0 %1001
      %1003 = vrot.lane.b32.xlu0 %v933, 12
      %v1004 = vpop.permute.xlu0 %1003
      %1005 = vrot.lane.b32.xlu0 %v934, 12
      %v1006 = vpop.permute.xlu0 %1005
      %1007 = vrot.lane.b32.xlu0 %v935, 12
      %v1008 = vpop.permute.xlu0 %1007
      %1009 = vrot.lane.b32.xlu0 %v936, 12
      %v1010 = vpop.permute.xlu0 %1009
      %1011 = vrot.lane.b32.xlu0 %v937, 12
      %v1012 = vpop.permute.xlu0 %1011
      %1013 = vrot.lane.b32.xlu0 %v938, 12
      %v1014 = vpop.permute.xlu0 %1013
      %1015 = vrot.lane.b32.xlu0 %v939, 12
      %v1016 = vpop.permute.xlu0 %1015
      %1017 = vrot.lane.b32.xlu0 %v940, 12
      %v1018 = vpop.permute.xlu0 %1017
      %1019 = vrot.lane.b32.xlu0 %v941, 12
      %v1020 = vpop.permute.xlu0 %1019
      %1021 = vrot.lane.b32.xlu0 %v942, 12
      %v1022 = vpop.permute.xlu0 %1021
      %1023 = vrot.lane.b32.xlu0 %v943, 12
      %v1024 = vpop.permute.xlu0 %1023
      %1025 = vrot.lane.b32.xlu0 %v944, 12
      %v1026 = vpop.permute.xlu0 %1025
      %1027 = vrot.lane.b32.xlu0 %v945, 12
      %v1028 = vpop.permute.xlu0 %1027
      %1029 = vrot.lane.b32.xlu0 %v946, 12
      %v1030 = vpop.permute.xlu0 %1029
      %1031 = vrot.lane.b32.xlu0 %v947, 12
      %v1032 = vpop.permute.xlu0 %1031
      %1033 = vrot.lane.b32.xlu0 %v948, 12
      %v1034 = vpop.permute.xlu0 %1033
      %1035 = vrot.lane.b32.xlu0 %v949, 12
      %v1036 = vpop.permute.xlu0 %1035
      %1037 = vrot.lane.b32.xlu0 %v950, 12
      %v1038 = vpop.permute.xlu0 %1037
      %1039 = vrot.lane.b32.xlu0 %v951, 12
      %v1040 = vpop.permute.xlu0 %1039
      %1041 = vrot.lane.b32.xlu0 %v952, 12
      %v1042 = vpop.permute.xlu0 %1041
      %1043 = vrot.lane.b32.xlu0 %v953, 12
      %v1044 = vpop.permute.xlu0 %1043
      %1045 = vrot.lane.b32.xlu0 %v954, 12
      %v1046 = vpop.permute.xlu0 %1045
      %1047 = vrot.lane.b32.xlu0 %v955, 12
      %v1048 = vpop.permute.xlu0 %1047
      %1049 = vrot.lane.b32.xlu0 %v956, 12
      %v1050 = vpop.permute.xlu0 %1049
      %1051 = vrot.lane.b32.xlu0 %v957, 12
      %v1052 = vpop.permute.xlu0 %1051
      %1053 = vrot.lane.b32.xlu0 %v958, 12
      %v1054 = vpop.permute.xlu0 %1053
      %vm1087 = vcmask 126048
      %1088 = vst.msk [vmem:[#allocation3] sm:$0xf] %vm1087, %v992
      %1089 = vst.msk [vmem:[#allocation3 + $0x4] sm:$0xf] %vm1087, %v994
      %1090 = vst.msk [vmem:[#allocation3 + $0x8] sm:$0xf] %vm1087, %v996
      %1091 = vst.msk [vmem:[#allocation3 + $0xc] sm:$0xf] %vm1087, %v998
      %1092 = vst.msk [vmem:[#allocation3 + $0x10] sm:$0xf] %vm1087, %v1000
      %1093 = vst.msk [vmem:[#allocation3 + $0x14] sm:$0xf] %vm1087, %v1002
      %1094 = vst.msk [vmem:[#allocation3 + $0x18] sm:$0xf] %vm1087, %v1004
      %1095 = vst.msk [vmem:[#allocation3 + $0x1c] sm:$0xf] %vm1087, %v1006
      %1096 = vst.msk [vmem:[#allocation3 + $0x20] sm:$0xf] %vm1087, %v1008
      %1097 = vst.msk [vmem:[#allocation3 + $0x24] sm:$0xf] %vm1087, %v1010
      %1098 = vst.msk [vmem:[#allocation3 + $0x28] sm:$0xf] %vm1087, %v1012
      %1099 = vst.msk [vmem:[#allocation3 + $0x2c] sm:$0xf] %vm1087, %v1014
      %1100 = vst.msk [vmem:[#allocation3 + $0x30] sm:$0xf] %vm1087, %v1016
      %1101 = vst.msk [vmem:[#allocation3 + $0x34] sm:$0xf] %vm1087, %v1018
      %1102 = vst.msk [vmem:[#allocation3 + $0x38] sm:$0xf] %vm1087, %v1020
      %1103 = vst.msk [vmem:[#allocation3 + $0x3c] sm:$0xf] %vm1087, %v1022
      %1104 = vst.msk [vmem:[#allocation3 + $0x40] sm:$0xf] %vm1087, %v1024
      %1105 = vst.msk [vmem:[#allocation3 + $0x44] sm:$0xf] %vm1087, %v1026
      %1106 = vst.msk [vmem:[#allocation3 + $0x48] sm:$0xf] %vm1087, %v1028
      %1107 = vst.msk [vmem:[#allocation3 + $0x4c] sm:$0xf] %vm1087, %v1030
      %1108 = vst.msk [vmem:[#allocation3 + $0x50] sm:$0xf] %vm1087, %v1032
      %1109 = vst.msk [vmem:[#allocation3 + $0x54] sm:$0xf] %vm1087, %v1034
      %1110 = vst.msk [vmem:[#allocation3 + $0x58] sm:$0xf] %vm1087, %v1036
      %1111 = vst.msk [vmem:[#allocation3 + $0x5c] sm:$0xf] %vm1087, %v1038
      %1112 = vst.msk [vmem:[#allocation3 + $0x60] sm:$0xf] %vm1087, %v1040
      %1113 = vst.msk [vmem:[#allocation3 + $0x64] sm:$0xf] %vm1087, %v1042
      %1114 = vst.msk [vmem:[#allocation3 + $0x68] sm:$0xf] %vm1087, %v1044
      %1115 = vst.msk [vmem:[#allocation3 + $0x6c] sm:$0xf] %vm1087, %v1046
      %1116 = vst.msk [vmem:[#allocation3 + $0x70] sm:$0xf] %vm1087, %v1048
      %1117 = vst.msk [vmem:[#allocation3 + $0x74] sm:$0xf] %vm1087, %v1050
      %1118 = vst.msk [vmem:[#allocation3 + $0x78] sm:$0xf] %vm1087, %v1052
      %1119 = vst.msk [vmem:[#allocation3 + $0x7c] sm:$0xf] %vm1087, %v1054
      %v1120 = vld [vmem:[%s315 + $0x1] sm:$0xff]
      %v1121 = vld [vmem:[%s315 + $0x9] sm:$0xff]
      %v1122 = vld [vmem:[%s315 + $0x19] sm:$0xff]
      %v1123 = vld [vmem:[%s315 + $0x21] sm:$0xff]
      %v1124 = vld [vmem:[%s315 + $0x31] sm:$0xff]
      %v1125 = vld [vmem:[%s315 + $0x39] sm:$0xff]
      %v1126 = vld [vmem:[%s315 + $0x49] sm:$0xff]
      %v1127 = vld [vmem:[%s315 + $0x51] sm:$0xff]
      %v1128 = vld [vmem:[%s315 + $0x61] sm:$0xff]
      %v1129 = vld [vmem:[%s315 + $0x69] sm:$0xff]
      %v1130 = vld [vmem:[%s315 + $0x79] sm:$0xff]
      %v1131 = vld [vmem:[%s315 + $0x81] sm:$0xff]
      %v1132 = vld [vmem:[%s315 + $0x91] sm:$0xff]
      %v1133 = vld [vmem:[%s315 + $0x99] sm:$0xff]
      %v1134 = vld [vmem:[%s315 + $0xa9] sm:$0xff]
      %v1135 = vld [vmem:[%s315 + $0xb1] sm:$0xff]
      %v1136 = vld [vmem:[%s315 + $0xc1] sm:$0xff]
      %v1137 = vld [vmem:[%s315 + $0xc9] sm:$0xff]
      %v1138 = vld [vmem:[%s315 + $0xd9] sm:$0xff]
      %v1139 = vld [vmem:[%s315 + $0xe1] sm:$0xff]
      %v1140 = vld [vmem:[%s315 + $0xf1] sm:$0xff]
      %v1141 = vld [vmem:[%s315 + $0xf9] sm:$0xff]
      %v1142 = vld [vmem:[%s315 + $0x109] sm:$0xff]
      %v1143 = vld [vmem:[%s315 + $0x111] sm:$0xff]
      %v1144 = vld [vmem:[%s315 + $0x121] sm:$0xff]
      %v1145 = vld [vmem:[%s315 + $0x129] sm:$0xff]
      %v1146 = vld [vmem:[%s315 + $0x139] sm:$0xff]
      %v1147 = vld [vmem:[%s315 + $0x141] sm:$0xff]
      %v1148 = vld [vmem:[%s315 + $0x151] sm:$0xff]
      %v1149 = vld [vmem:[%s315 + $0x159] sm:$0xff]
      %v1150 = vld [vmem:[%s315 + $0x169] sm:$0xff]
      %v1151 = vld [vmem:[%s315 + $0x171] sm:$0xff]
      %v1152 = vpack.c.bf16 %v1120, %v1120
      %v1153 = vpack.c.bf16 %v1121, %v1121
      %v1154 = vpack.c.bf16 %v1122, %v1122
      %v1155 = vpack.c.bf16 %v1123, %v1123
      %v1156 = vpack.c.bf16 %v1124, %v1124
      %v1157 = vpack.c.bf16 %v1125, %v1125
      %v1158 = vpack.c.bf16 %v1126, %v1126
      %v1159 = vpack.c.bf16 %v1127, %v1127
      %v1160 = vpack.c.bf16 %v1128, %v1128
      %v1161 = vpack.c.bf16 %v1129, %v1129
      %v1162 = vpack.c.bf16 %v1130, %v1130
      %v1163 = vpack.c.bf16 %v1131, %v1131
      %v1164 = vpack.c.bf16 %v1132, %v1132
      %v1165 = vpack.c.bf16 %v1133, %v1133
      %v1166 = vpack.c.bf16 %v1134, %v1134
      %v1167 = vpack.c.bf16 %v1135, %v1135
      %v1168 = vpack.c.bf16 %v1136, %v1136
      %v1169 = vpack.c.bf16 %v1137, %v1137
      %v1170 = vpack.c.bf16 %v1138, %v1138
      %v1171 = vpack.c.bf16 %v1139, %v1139
      %v1172 = vpack.c.bf16 %v1140, %v1140
      %v1173 = vpack.c.bf16 %v1141, %v1141
      %v1174 = vpack.c.bf16 %v1142, %v1142
      %v1175 = vpack.c.bf16 %v1143, %v1143
      %v1176 = vpack.c.bf16 %v1144, %v1144
      %v1177 = vpack.c.bf16 %v1145, %v1145
      %v1178 = vpack.c.bf16 %v1146, %v1146
      %v1179 = vpack.c.bf16 %v1147, %v1147
      %v1180 = vpack.c.bf16 %v1148, %v1148
      %v1181 = vpack.c.bf16 %v1149, %v1149
      %v1182 = vpack.c.bf16 %v1150, %v1150
      %v1183 = vpack.c.bf16 %v1151, %v1151
      %1216 = vrot.lane.b32.xlu0 %v1152, 16
      %v1217 = vpop.permute.xlu0 %1216
      %1218 = vrot.lane.b32.xlu0 %v1153, 16
      %v1219 = vpop.permute.xlu0 %1218
      %1220 = vrot.lane.b32.xlu0 %v1154, 16
      %v1221 = vpop.permute.xlu0 %1220
      %1222 = vrot.lane.b32.xlu0 %v1155, 16
      %v1223 = vpop.permute.xlu0 %1222
      %1224 = vrot.lane.b32.xlu0 %v1156, 16
      %v1225 = vpop.permute.xlu0 %1224
      %1226 = vrot.lane.b32.xlu0 %v1157, 16
      %v1227 = vpop.permute.xlu0 %1226
      %1228 = vrot.lane.b32.xlu0 %v1158, 16
      %v1229 = vpop.permute.xlu0 %1228
      %1230 = vrot.lane.b32.xlu0 %v1159, 16
      %v1231 = vpop.permute.xlu0 %1230
      %1232 = vrot.lane.b32.xlu0 %v1160, 16
      %v1233 = vpop.permute.xlu0 %1232
      %1234 = vrot.lane.b32.xlu0 %v1161, 16
      %v1235 = vpop.permute.xlu0 %1234
      %1236 = vrot.lane.b32.xlu0 %v1162, 16
      %v1237 = vpop.permute.xlu0 %1236
      %1238 = vrot.lane.b32.xlu0 %v1163, 16
      %v1239 = vpop.permute.xlu0 %1238
      %1240 = vrot.lane.b32.xlu0 %v1164, 16
      %v1241 = vpop.permute.xlu0 %1240
      %1242 = vrot.lane.b32.xlu0 %v1165, 16
      %v1243 = vpop.permute.xlu0 %1242
      %1244 = vrot.lane.b32.xlu0 %v1166, 16
      %v1245 = vpop.permute.xlu0 %1244
      %1246 = vrot.lane.b32.xlu0 %v1167, 16
      %v1247 = vpop.permute.xlu0 %1246
      %1248 = vrot.lane.b32.xlu0 %v1168, 16
      %v1249 = vpop.permute.xlu0 %1248
      %1250 = vrot.lane.b32.xlu0 %v1169, 16
      %v1251 = vpop.permute.xlu0 %1250
      %1252 = vrot.lane.b32.xlu0 %v1170, 16
      %v1253 = vpop.permute.xlu0 %1252
      %1254 = vrot.lane.b32.xlu0 %v1171, 16
      %v1255 = vpop.permute.xlu0 %1254
      %1256 = vrot.lane.b32.xlu0 %v1172, 16
      %v1257 = vpop.permute.xlu0 %1256
      %1258 = vrot.lane.b32.xlu0 %v1173, 16
      %v1259 = vpop.permute.xlu0 %1258
      %1260 = vrot.lane.b32.xlu0 %v1174, 16
      %v1261 = vpop.permute.xlu0 %1260
      %1262 = vrot.lane.b32.xlu0 %v1175, 16
      %v1263 = vpop.permute.xlu0 %1262
      %1264 = vrot.lane.b32.xlu0 %v1176, 16
      %v1265 = vpop.permute.xlu0 %1264
      %1266 = vrot.lane.b32.xlu0 %v1177, 16
      %v1267 = vpop.permute.xlu0 %1266
      %1268 = vrot.lane.b32.xlu0 %v1178, 16
      %v1269 = vpop.permute.xlu0 %1268
      %1270 = vrot.lane.b32.xlu0 %v1179, 16
      %v1271 = vpop.permute.xlu0 %1270
      %1272 = vrot.lane.b32.xlu0 %v1180, 16
      %v1273 = vpop.permute.xlu0 %1272
      %1274 = vrot.lane.b32.xlu0 %v1181, 16
      %v1275 = vpop.permute.xlu0 %1274
      %1276 = vrot.lane.b32.xlu0 %v1182, 16
      %v1277 = vpop.permute.xlu0 %1276
      %1278 = vrot.lane.b32.xlu0 %v1183, 16
      %v1279 = vpop.permute.xlu0 %1278
      %vm1312 = vcmask 158848
      %1313 = vst.msk [vmem:[#allocation3] sm:$0xf] %vm1312, %v1217
      %1314 = vst.msk [vmem:[#allocation3 + $0x4] sm:$0xf] %vm1312, %v1219
      %1315 = vst.msk [vmem:[#allocation3 + $0x8] sm:$0xf] %vm1312, %v1221
      %1316 = vst.msk [vmem:[#allocation3 + $0xc] sm:$0xf] %vm1312, %v1223
      %1317 = vst.msk [vmem:[#allocation3 + $0x10] sm:$0xf] %vm1312, %v1225
      %1318 = vst.msk [vmem:[#allocation3 + $0x14] sm:$0xf] %vm1312, %v1227
      %1319 = vst.msk [vmem:[#allocation3 + $0x18] sm:$0xf] %vm1312, %v1229
      %1320 = vst.msk [vmem:[#allocation3 + $0x1c] sm:$0xf] %vm1312, %v1231
      %1321 = vst.msk [vmem:[#allocation3 + $0x20] sm:$0xf] %vm1312, %v1233
      %1322 = vst.msk [vmem:[#allocation3 + $0x24] sm:$0xf] %vm1312, %v1235
      %1323 = vst.msk [vmem:[#allocation3 + $0x28] sm:$0xf] %vm1312, %v1237
      %1324 = vst.msk [vmem:[#allocation3 + $0x2c] sm:$0xf] %vm1312, %v1239
      %1325 = vst.msk [vmem:[#allocation3 + $0x30] sm:$0xf] %vm1312, %v1241
      %1326 = vst.msk [vmem:[#allocation3 + $0x34] sm:$0xf] %vm1312, %v1243
      %1327 = vst.msk [vmem:[#allocation3 + $0x38] sm:$0xf] %vm1312, %v1245
      %1328 = vst.msk [vmem:[#allocation3 + $0x3c] sm:$0xf] %vm1312, %v1247
      %1329 = vst.msk [vmem:[#allocation3 + $0x40] sm:$0xf] %vm1312, %v1249
      %1330 = vst.msk [vmem:[#allocation3 + $0x44] sm:$0xf] %vm1312, %v1251
      %1331 = vst.msk [vmem:[#allocation3 + $0x48] sm:$0xf] %vm1312, %v1253
      %1332 = vst.msk [vmem:[#allocation3 + $0x4c] sm:$0xf] %vm1312, %v1255
      %1333 = vst.msk [vmem:[#allocation3 + $0x50] sm:$0xf] %vm1312, %v1257
      %1334 = vst.msk [vmem:[#allocation3 + $0x54] sm:$0xf] %vm1312, %v1259
      %1335 = vst.msk [vmem:[#allocation3 + $0x58] sm:$0xf] %vm1312, %v1261
      %1336 = vst.msk [vmem:[#allocation3 + $0x5c] sm:$0xf] %vm1312, %v1263
      %1337 = vst.msk [vmem:[#allocation3 + $0x60] sm:$0xf] %vm1312, %v1265
      %1338 = vst.msk [vmem:[#allocation3 + $0x64] sm:$0xf] %vm1312, %v1267
      %1339 = vst.msk [vmem:[#allocation3 + $0x68] sm:$0xf] %vm1312, %v1269
      %1340 = vst.msk [vmem:[#allocation3 + $0x6c] sm:$0xf] %vm1312, %v1271
      %1341 = vst.msk [vmem:[#allocation3 + $0x70] sm:$0xf] %vm1312, %v1273
      %1342 = vst.msk [vmem:[#allocation3 + $0x74] sm:$0xf] %vm1312, %v1275
      %1343 = vst.msk [vmem:[#allocation3 + $0x78] sm:$0xf] %vm1312, %v1277
      %1344 = vst.msk [vmem:[#allocation3 + $0x7c] sm:$0xf] %vm1312, %v1279
      %v1345 = vld [vmem:[%s315 + $0x2] sm:$0xff]
      %v1346 = vld [vmem:[%s315 + $0xa] sm:$0xff]
      %v1347 = vld [vmem:[%s315 + $0x1a] sm:$0xff]
      %v1348 = vld [vmem:[%s315 + $0x22] sm:$0xff]
      %v1349 = vld [vmem:[%s315 + $0x32] sm:$0xff]
      %v1350 = vld [vmem:[%s315 + $0x3a] sm:$0xff]
      %v1351 = vld [vmem:[%s315 + $0x4a] sm:$0xff]
      %v1352 = vld [vmem:[%s315 + $0x52] sm:$0xff]
      %v1353 = vld [vmem:[%s315 + $0x62] sm:$0xff]
      %v1354 = vld [vmem:[%s315 + $0x6a] sm:$0xff]
      %v1355 = vld [vmem:[%s315 + $0x7a] sm:$0xff]
      %v1356 = vld [vmem:[%s315 + $0x82] sm:$0xff]
      %v1357 = vld [vmem:[%s315 + $0x92] sm:$0xff]
      %v1358 = vld [vmem:[%s315 + $0x9a] sm:$0xff]
      %v1359 = vld [vmem:[%s315 + $0xaa] sm:$0xff]
      %v1360 = vld [vmem:[%s315 + $0xb2] sm:$0xff]
      %v1361 = vld [vmem:[%s315 + $0xc2] sm:$0xff]
      %v1362 = vld [vmem:[%s315 + $0xca] sm:$0xff]
      %v1363 = vld [vmem:[%s315 + $0xda] sm:$0xff]
      %v1364 = vld [vmem:[%s315 + $0xe2] sm:$0xff]
      %v1365 = vld [vmem:[%s315 + $0xf2] sm:$0xff]
      %v1366 = vld [vmem:[%s315 + $0xfa] sm:$0xff]
      %v1367 = vld [vmem:[%s315 + $0x10a] sm:$0xff]
      %v1368 = vld [vmem:[%s315 + $0x112] sm:$0xff]
      %v1369 = vld [vmem:[%s315 + $0x122] sm:$0xff]
      %v1370 = vld [vmem:[%s315 + $0x12a] sm:$0xff]
      %v1371 = vld [vmem:[%s315 + $0x13a] sm:$0xff]
      %v1372 = vld [vmem:[%s315 + $0x142] sm:$0xff]
      %v1373 = vld [vmem:[%s315 + $0x152] sm:$0xff]
      %v1374 = vld [vmem:[%s315 + $0x15a] sm:$0xff]
      %v1375 = vld [vmem:[%s315 + $0x16a] sm:$0xff]
      %v1376 = vld [vmem:[%s315 + $0x172] sm:$0xff]
      %v1377 = vpack.c.bf16 %v1345, %v1345
      %v1378 = vpack.c.bf16 %v1346, %v1346
      %v1379 = vpack.c.bf16 %v1347, %v1347
      %v1380 = vpack.c.bf16 %v1348, %v1348
      %v1381 = vpack.c.bf16 %v1349, %v1349
      %v1382 = vpack.c.bf16 %v1350, %v1350
      %v1383 = vpack.c.bf16 %v1351, %v1351
      %v1384 = vpack.c.bf16 %v1352, %v1352
      %v1385 = vpack.c.bf16 %v1353, %v1353
      %v1386 = vpack.c.bf16 %v1354, %v1354
      %v1387 = vpack.c.bf16 %v1355, %v1355
      %v1388 = vpack.c.bf16 %v1356, %v1356
      %v1389 = vpack.c.bf16 %v1357, %v1357
      %v1390 = vpack.c.bf16 %v1358, %v1358
      %v1391 = vpack.c.bf16 %v1359, %v1359
      %v1392 = vpack.c.bf16 %v1360, %v1360
      %v1393 = vpack.c.bf16 %v1361, %v1361
      %v1394 = vpack.c.bf16 %v1362, %v1362
      %v1395 = vpack.c.bf16 %v1363, %v1363
      %v1396 = vpack.c.bf16 %v1364, %v1364
      %v1397 = vpack.c.bf16 %v1365, %v1365
      %v1398 = vpack.c.bf16 %v1366, %v1366
      %v1399 = vpack.c.bf16 %v1367, %v1367
      %v1400 = vpack.c.bf16 %v1368, %v1368
      %v1401 = vpack.c.bf16 %v1369, %v1369
      %v1402 = vpack.c.bf16 %v1370, %v1370
      %v1403 = vpack.c.bf16 %v1371, %v1371
      %v1404 = vpack.c.bf16 %v1372, %v1372
      %v1405 = vpack.c.bf16 %v1373, %v1373
      %v1406 = vpack.c.bf16 %v1374, %v1374
      %v1407 = vpack.c.bf16 %v1375, %v1375
      %v1408 = vpack.c.bf16 %v1376, %v1376
      %1441 = vrot.lane.b32.xlu0 %v1377, 20
      %v1442 = vpop.permute.xlu0 %1441
      %1443 = vrot.lane.b32.xlu0 %v1378, 20
      %v1444 = vpop.permute.xlu0 %1443
      %1445 = vrot.lane.b32.xlu0 %v1379, 20
      %v1446 = vpop.permute.xlu0 %1445
      %1447 = vrot.lane.b32.xlu0 %v1380, 20
      %v1448 = vpop.permute.xlu0 %1447
      %1449 = vrot.lane.b32.xlu0 %v1381, 20
      %v1450 = vpop.permute.xlu0 %1449
      %1451 = vrot.lane.b32.xlu0 %v1382, 20
      %v1452 = vpop.permute.xlu0 %1451
      %1453 = vrot.lane.b32.xlu0 %v1383, 20
      %v1454 = vpop.permute.xlu0 %1453
      %1455 = vrot.lane.b32.xlu0 %v1384, 20
      %v1456 = vpop.permute.xlu0 %1455
      %1457 = vrot.lane.b32.xlu0 %v1385, 20
      %v1458 = vpop.permute.xlu0 %1457
      %1459 = vrot.lane.b32.xlu0 %v1386, 20
      %v1460 = vpop.permute.xlu0 %1459
      %1461 = vrot.lane.b32.xlu0 %v1387, 20
      %v1462 = vpop.permute.xlu0 %1461
      %1463 = vrot.lane.b32.xlu0 %v1388, 20
      %v1464 = vpop.permute.xlu0 %1463
      %1465 = vrot.lane.b32.xlu0 %v1389, 20
      %v1466 = vpop.permute.xlu0 %1465
      %1467 = vrot.lane.b32.xlu0 %v1390, 20
      %v1468 = vpop.permute.xlu0 %1467
      %1469 = vrot.lane.b32.xlu0 %v1391, 20
      %v1470 = vpop.permute.xlu0 %1469
      %1471 = vrot.lane.b32.xlu0 %v1392, 20
      %v1472 = vpop.permute.xlu0 %1471
      %1473 = vrot.lane.b32.xlu0 %v1393, 20
      %v1474 = vpop.permute.xlu0 %1473
      %1475 = vrot.lane.b32.xlu0 %v1394, 20
      %v1476 = vpop.permute.xlu0 %1475
      %1477 = vrot.lane.b32.xlu0 %v1395, 20
      %v1478 = vpop.permute.xlu0 %1477
      %1479 = vrot.lane.b32.xlu0 %v1396, 20
      %v1480 = vpop.permute.xlu0 %1479
      %1481 = vrot.lane.b32.xlu0 %v1397, 20
      %v1482 = vpop.permute.xlu0 %1481
      %1483 = vrot.lane.b32.xlu0 %v1398, 20
      %v1484 = vpop.permute.xlu0 %1483
      %1485 = vrot.lane.b32.xlu0 %v1399, 20
      %v1486 = vpop.permute.xlu0 %1485
      %1487 = vrot.lane.b32.xlu0 %v1400, 20
      %v1488 = vpop.permute.xlu0 %1487
      %1489 = vrot.lane.b32.xlu0 %v1401, 20
      %v1490 = vpop.permute.xlu0 %1489
      %1491 = vrot.lane.b32.xlu0 %v1402, 20
      %v1492 = vpop.permute.xlu0 %1491
      %1493 = vrot.lane.b32.xlu0 %v1403, 20
      %v1494 = vpop.permute.xlu0 %1493
      %1495 = vrot.lane.b32.xlu0 %v1404, 20
      %v1496 = vpop.permute.xlu0 %1495
      %1497 = vrot.lane.b32.xlu0 %v1405, 20
      %v1498 = vpop.permute.xlu0 %1497
      %1499 = vrot.lane.b32.xlu0 %v1406, 20
      %v1500 = vpop.permute.xlu0 %1499
      %1501 = vrot.lane.b32.xlu0 %v1407, 20
      %v1502 = vpop.permute.xlu0 %1501
      %1503 = vrot.lane.b32.xlu0 %v1408, 20
      %v1504 = vpop.permute.xlu0 %1503
      %vm1537 = vcmask 191648
      %1538 = vst.msk [vmem:[#allocation3] sm:$0xf] %vm1537, %v1442
      %1539 = vst.msk [vmem:[#allocation3 + $0x4] sm:$0xf] %vm1537, %v1444
      %1540 = vst.msk [vmem:[#allocation3 + $0x8] sm:$0xf] %vm1537, %v1446
      %1541 = vst.msk [vmem:[#allocation3 + $0xc] sm:$0xf] %vm1537, %v1448
      %1542 = vst.msk [vmem:[#allocation3 + $0x10] sm:$0xf] %vm1537, %v1450
      %1543 = vst.msk [vmem:[#allocation3 + $0x14] sm:$0xf] %vm1537, %v1452
      %1544 = vst.msk [vmem:[#allocation3 + $0x18] sm:$0xf] %vm1537, %v1454
      %1545 = vst.msk [vmem:[#allocation3 + $0x1c] sm:$0xf] %vm1537, %v1456
      %1546 = vst.msk [vmem:[#allocation3 + $0x20] sm:$0xf] %vm1537, %v1458
      %1547 = vst.msk [vmem:[#allocation3 + $0x24] sm:$0xf] %vm1537, %v1460
      %1548 = vst.msk [vmem:[#allocation3 + $0x28] sm:$0xf] %vm1537, %v1462
      %1549 = vst.msk [vmem:[#allocation3 + $0x2c] sm:$0xf] %vm1537, %v1464
      %1550 = vst.msk [vmem:[#allocation3 + $0x30] sm:$0xf] %vm1537, %v1466
      %1551 = vst.msk [vmem:[#allocation3 + $0x34] sm:$0xf] %vm1537, %v1468
      %1552 = vst.msk [vmem:[#allocation3 + $0x38] sm:$0xf] %vm1537, %v1470
      %1553 = vst.msk [vmem:[#allocation3 + $0x3c] sm:$0xf] %vm1537, %v1472
      %1554 = vst.msk [vmem:[#allocation3 + $0x40] sm:$0xf] %vm1537, %v1474
      %1555 = vst.msk [vmem:[#allocation3 + $0x44] sm:$0xf] %vm1537, %v1476
      %1556 = vst.msk [vmem:[#allocation3 + $0x48] sm:$0xf] %vm1537, %v1478
      %1557 = vst.msk [vmem:[#allocation3 + $0x4c] sm:$0xf] %vm1537, %v1480
      %1558 = vst.msk [vmem:[#allocation3 + $0x50] sm:$0xf] %vm1537, %v1482
      %1559 = vst.msk [vmem:[#allocation3 + $0x54] sm:$0xf] %vm1537, %v1484
      %1560 = vst.msk [vmem:[#allocation3 + $0x58] sm:$0xf] %vm1537, %v1486
      %1561 = vst.msk [vmem:[#allocation3 + $0x5c] sm:$0xf] %vm1537, %v1488
      %1562 = vst.msk [vmem:[#allocation3 + $0x60] sm:$0xf] %vm1537, %v1490
      %1563 = vst.msk [vmem:[#allocation3 + $0x64] sm:$0xf] %vm1537, %v1492
      %1564 = vst.msk [vmem:[#allocation3 + $0x68] sm:$0xf] %vm1537, %v1494
      %1565 = vst.msk [vmem:[#allocation3 + $0x6c] sm:$0xf] %vm1537, %v1496
      %1566 = vst.msk [vmem:[#allocation3 + $0x70] sm:$0xf] %vm1537, %v1498
      %1567 = vst.msk [vmem:[#allocation3 + $0x74] sm:$0xf] %vm1537, %v1500
      %1568 = vst.msk [vmem:[#allocation3 + $0x78] sm:$0xf] %vm1537, %v1502
      %1569 = vst.msk [vmem:[#allocation3 + $0x7c] sm:$0xf] %vm1537, %v1504
      %s1570 = scalar_lea.vmem [#allocation2], 48
      %v1571 = vld [vmem:[%s1570] sm:$0xff]
      %v1572 = vld [vmem:[%s1570 + $0x8] sm:$0xff]
      %v1573 = vld [vmem:[%s1570 + $0x18] sm:$0xff]
      %v1574 = vld [vmem:[%s1570 + $0x20] sm:$0xff]
      %v1575 = vld [vmem:[%s1570 + $0x30] sm:$0xff]
      %v1576 = vld [vmem:[%s1570 + $0x38] sm:$0xff]
      %v1577 = vld [vmem:[%s1570 + $0x48] sm:$0xff]
      %v1578 = vld [vmem:[%s1570 + $0x50] sm:$0xff]
      %v1579 = vld [vmem:[%s1570 + $0x60] sm:$0xff]
      %v1580 = vld [vmem:[%s1570 + $0x68] sm:$0xff]
      %v1581 = vld [vmem:[%s1570 + $0x78] sm:$0xff]
      %v1582 = vld [vmem:[%s1570 + $0x80] sm:$0xff]
      %v1583 = vld [vmem:[%s1570 + $0x90] sm:$0xff]
      %v1584 = vld [vmem:[%s1570 + $0x98] sm:$0xff]
      %v1585 = vld [vmem:[%s1570 + $0xa8] sm:$0xff]
      %v1586 = vld [vmem:[%s1570 + $0xb0] sm:$0xff]
      %v1587 = vld [vmem:[%s1570 + $0xc0] sm:$0xff]
      %v1588 = vld [vmem:[%s1570 + $0xc8] sm:$0xff]
      %v1589 = vld [vmem:[%s1570 + $0xd8] sm:$0xff]
      %v1590 = vld [vmem:[%s1570 + $0xe0] sm:$0xff]
      %v1591 = vld [vmem:[%s1570 + $0xf0] sm:$0xff]
      %v1592 = vld [vmem:[%s1570 + $0xf8] sm:$0xff]
      %v1593 = vld [vmem:[%s1570 + $0x108] sm:$0xff]
      %v1594 = vld [vmem:[%s1570 + $0x110] sm:$0xff]
      %v1595 = vld [vmem:[%s1570 + $0x120] sm:$0xff]
      %v1596 = vld [vmem:[%s1570 + $0x128] sm:$0xff]
      %v1597 = vld [vmem:[%s1570 + $0x138] sm:$0xff]
      %v1598 = vld [vmem:[%s1570 + $0x140] sm:$0xff]
      %v1599 = vld [vmem:[%s1570 + $0x150] sm:$0xff]
      %v1600 = vld [vmem:[%s1570 + $0x158] sm:$0xff]
      %v1601 = vld [vmem:[%s1570 + $0x168] sm:$0xff]
      %v1602 = vld [vmem:[%s1570 + $0x170] sm:$0xff]
      %v1603 = vpack.c.bf16 %v1571, %v1571
      %v1604 = vpack.c.bf16 %v1572, %v1572
      %v1605 = vpack.c.bf16 %v1573, %v1573
      %v1606 = vpack.c.bf16 %v1574, %v1574
      %v1607 = vpack.c.bf16 %v1575, %v1575
      %v1608 = vpack.c.bf16 %v1576, %v1576
      %v1609 = vpack.c.bf16 %v1577, %v1577
      %v1610 = vpack.c.bf16 %v1578, %v1578
      %v1611 = vpack.c.bf16 %v1579, %v1579
      %v1612 = vpack.c.bf16 %v1580, %v1580
      %v1613 = vpack.c.bf16 %v1581, %v1581
      %v1614 = vpack.c.bf16 %v1582, %v1582
      %v1615 = vpack.c.bf16 %v1583, %v1583
      %v1616 = vpack.c.bf16 %v1584, %v1584
      %v1617 = vpack.c.bf16 %v1585, %v1585
      %v1618 = vpack.c.bf16 %v1586, %v1586
      %v1619 = vpack.c.bf16 %v1587, %v1587
      %v1620 = vpack.c.bf16 %v1588, %v1588
      %v1621 = vpack.c.bf16 %v1589, %v1589
      %v1622 = vpack.c.bf16 %v1590, %v1590
      %v1623 = vpack.c.bf16 %v1591, %v1591
      %v1624 = vpack.c.bf16 %v1592, %v1592
      %v1625 = vpack.c.bf16 %v1593, %v1593
      %v1626 = vpack.c.bf16 %v1594, %v1594
      %v1627 = vpack.c.bf16 %v1595, %v1595
      %v1628 = vpack.c.bf16 %v1596, %v1596
      %v1629 = vpack.c.bf16 %v1597, %v1597
      %v1630 = vpack.c.bf16 %v1598, %v1598
      %v1631 = vpack.c.bf16 %v1599, %v1599
      %v1632 = vpack.c.bf16 %v1600, %v1600
      %v1633 = vpack.c.bf16 %v1601, %v1601
      %v1634 = vpack.c.bf16 %v1602, %v1602
      %1667 = vrot.lane.b32.xlu0 %v1603, 24
      %v1668 = vpop.permute.xlu0 %1667
      %1669 = vrot.lane.b32.xlu0 %v1604, 24
      %v1670 = vpop.permute.xlu0 %1669
      %1671 = vrot.lane.b32.xlu0 %v1605, 24
      %v1672 = vpop.permute.xlu0 %1671
      %1673 = vrot.lane.b32.xlu0 %v1606, 24
      %v1674 = vpop.permute.xlu0 %1673
      %1675 = vrot.lane.b32.xlu0 %v1607, 24
      %v1676 = vpop.permute.xlu0 %1675
      %1677 = vrot.lane.b32.xlu0 %v1608, 24
      %v1678 = vpop.permute.xlu0 %1677
      %1679 = vrot.lane.b32.xlu0 %v1609, 24
      %v1680 = vpop.permute.xlu0 %1679
      %1681 = vrot.lane.b32.xlu0 %v1610, 24
      %v1682 = vpop.permute.xlu0 %1681
      %1683 = vrot.lane.b32.xlu0 %v1611, 24
      %v1684 = vpop.permute.xlu0 %1683
      %1685 = vrot.lane.b32.xlu0 %v1612, 24
      %v1686 = vpop.permute.xlu0 %1685
      %1687 = vrot.lane.b32.xlu0 %v1613, 24
      %v1688 = vpop.permute.xlu0 %1687
      %1689 = vrot.lane.b32.xlu0 %v1614, 24
      %v1690 = vpop.permute.xlu0 %1689
      %1691 = vrot.lane.b32.xlu0 %v1615, 24
      %v1692 = vpop.permute.xlu0 %1691
      %1693 = vrot.lane.b32.xlu0 %v1616, 24
      %v1694 = vpop.permute.xlu0 %1693
      %1695 = vrot.lane.b32.xlu0 %v1617, 24
      %v1696 = vpop.permute.xlu0 %1695
      %1697 = vrot.lane.b32.xlu0 %v1618, 24
      %v1698 = vpop.permute.xlu0 %1697
      %1699 = vrot.lane.b32.xlu0 %v1619, 24
      %v1700 = vpop.permute.xlu0 %1699
      %1701 = vrot.lane.b32.xlu0 %v1620, 24
      %v1702 = vpop.permute.xlu0 %1701
      %1703 = vrot.lane.b32.xlu0 %v1621, 24
      %v1704 = vpop.permute.xlu0 %1703
      %1705 = vrot.lane.b32.xlu0 %v1622, 24
      %v1706 = vpop.permute.xlu0 %1705
      %1707 = vrot.lane.b32.xlu0 %v1623, 24
      %v1708 = vpop.permute.xlu0 %1707
      %1709 = vrot.lane.b32.xlu0 %v1624, 24
      %v1710 = vpop.permute.xlu0 %1709
      %1711 = vrot.lane.b32.xlu0 %v1625, 24
      %v1712 = vpop.permute.xlu0 %1711
      %1713 = vrot.lane.b32.xlu0 %v1626, 24
      %v1714 = vpop.permute.xlu0 %1713
      %1715 = vrot.lane.b32.xlu0 %v1627, 24
      %v1716 = vpop.permute.xlu0 %1715
      %1717 = vrot.lane.b32.xlu0 %v1628, 24
      %v1718 = vpop.permute.xlu0 %1717
      %1719 = vrot.lane.b32.xlu0 %v1629, 24
      %v1720 = vpop.permute.xlu0 %1719
      %1721 = vrot.lane.b32.xlu0 %v1630, 24
      %v1722 = vpop.permute.xlu0 %1721
      %1723 = vrot.lane.b32.xlu0 %v1631, 24
      %v1724 = vpop.permute.xlu0 %1723
      %1725 = vrot.lane.b32.xlu0 %v1632, 24
      %v1726 = vpop.permute.xlu0 %1725
      %1727 = vrot.lane.b32.xlu0 %v1633, 24
      %v1728 = vpop.permute.xlu0 %1727
      %1729 = vrot.lane.b32.xlu0 %v1634, 24
      %v1730 = vpop.permute.xlu0 %1729
      %vm1763 = vcmask 224448
      %1764 = vst.msk [vmem:[#allocation3] sm:$0xf] %vm1763, %v1668
      %1765 = vst.msk [vmem:[#allocation3 + $0x4] sm:$0xf] %vm1763, %v1670
      %1766 = vst.msk [vmem:[#allocation3 + $0x8] sm:$0xf] %vm1763, %v1672
      %1767 = vst.msk [vmem:[#allocation3 + $0xc] sm:$0xf] %vm1763, %v1674
      %1768 = vst.msk [vmem:[#allocation3 + $0x10] sm:$0xf] %vm1763, %v1676
      %1769 = vst.msk [vmem:[#allocation3 + $0x14] sm:$0xf] %vm1763, %v1678
      %1770 = vst.msk [vmem:[#allocation3 + $0x18] sm:$0xf] %vm1763, %v1680
      %1771 = vst.msk [vmem:[#allocation3 + $0x1c] sm:$0xf] %vm1763, %v1682
      %1772 = vst.msk [vmem:[#allocation3 + $0x20] sm:$0xf] %vm1763, %v1684
      %1773 = vst.msk [vmem:[#allocation3 + $0x24] sm:$0xf] %vm1763, %v1686
      %1774 = vst.msk [vmem:[#allocation3 + $0x28] sm:$0xf] %vm1763, %v1688
      %1775 = vst.msk [vmem:[#allocation3 + $0x2c] sm:$0xf] %vm1763, %v1690
      %1776 = vst.msk [vmem:[#allocation3 + $0x30] sm:$0xf] %vm1763, %v1692
      %1777 = vst.msk [vmem:[#allocation3 + $0x34] sm:$0xf] %vm1763, %v1694
      %1778 = vst.msk [vmem:[#allocation3 + $0x38] sm:$0xf] %vm1763, %v1696
      %1779 = vst.msk [vmem:[#allocation3 + $0x3c] sm:$0xf] %vm1763, %v1698
      %1780 = vst.msk [vmem:[#allocation3 + $0x40] sm:$0xf] %vm1763, %v1700
      %1781 = vst.msk [vmem:[#allocation3 + $0x44] sm:$0xf] %vm1763, %v1702
      %1782 = vst.msk [vmem:[#allocation3 + $0x48] sm:$0xf] %vm1763, %v1704
      %1783 = vst.msk [vmem:[#allocation3 + $0x4c] sm:$0xf] %vm1763, %v1706
      %1784 = vst.msk [vmem:[#allocation3 + $0x50] sm:$0xf] %vm1763, %v1708
      %1785 = vst.msk [vmem:[#allocation3 + $0x54] sm:$0xf] %vm1763, %v1710
      %1786 = vst.msk [vmem:[#allocation3 + $0x58] sm:$0xf] %vm1763, %v1712
      %1787 = vst.msk [vmem:[#allocation3 + $0x5c] sm:$0xf] %vm1763, %v1714
      %1788 = vst.msk [vmem:[#allocation3 + $0x60] sm:$0xf] %vm1763, %v1716
      %1789 = vst.msk [vmem:[#allocation3 + $0x64] sm:$0xf] %vm1763, %v1718
      %1790 = vst.msk [vmem:[#allocation3 + $0x68] sm:$0xf] %vm1763, %v1720
      %1791 = vst.msk [vmem:[#allocation3 + $0x6c] sm:$0xf] %vm1763, %v1722
      %1792 = vst.msk [vmem:[#allocation3 + $0x70] sm:$0xf] %vm1763, %v1724
      %1793 = vst.msk [vmem:[#allocation3 + $0x74] sm:$0xf] %vm1763, %v1726
      %1794 = vst.msk [vmem:[#allocation3 + $0x78] sm:$0xf] %vm1763, %v1728
      %1795 = vst.msk [vmem:[#allocation3 + $0x7c] sm:$0xf] %vm1763, %v1730
      %v1796 = vld [vmem:[%s1570 + $0x1] sm:$0xff]
      %v1797 = vld [vmem:[%s1570 + $0x9] sm:$0xff]
      %v1798 = vld [vmem:[%s1570 + $0x19] sm:$0xff]
      %v1799 = vld [vmem:[%s1570 + $0x21] sm:$0xff]
      %v1800 = vld [vmem:[%s1570 + $0x31] sm:$0xff]
      %v1801 = vld [vmem:[%s1570 + $0x39] sm:$0xff]
      %v1802 = vld [vmem:[%s1570 + $0x49] sm:$0xff]
      %v1803 = vld [vmem:[%s1570 + $0x51] sm:$0xff]
      %v1804 = vld [vmem:[%s1570 + $0x61] sm:$0xff]
      %v1805 = vld [vmem:[%s1570 + $0x69] sm:$0xff]
      %v1806 = vld [vmem:[%s1570 + $0x79] sm:$0xff]
      %v1807 = vld [vmem:[%s1570 + $0x81] sm:$0xff]
      %v1808 = vld [vmem:[%s1570 + $0x91] sm:$0xff]
      %v1809 = vld [vmem:[%s1570 + $0x99] sm:$0xff]
      %v1810 = vld [vmem:[%s1570 + $0xa9] sm:$0xff]
      %v1811 = vld [vmem:[%s1570 + $0xb1] sm:$0xff]
      %v1812 = vld [vmem:[%s1570 + $0xc1] sm:$0xff]
      %v1813 = vld [vmem:[%s1570 + $0xc9] sm:$0xff]
      %v1814 = vld [vmem:[%s1570 + $0xd9] sm:$0xff]
      %v1815 = vld [vmem:[%s1570 + $0xe1] sm:$0xff]
      %v1816 = vld [vmem:[%s1570 + $0xf1] sm:$0xff]
      %v1817 = vld [vmem:[%s1570 + $0xf9] sm:$0xff]
      %v1818 = vld [vmem:[%s1570 + $0x109] sm:$0xff]
      %v1819 = vld [vmem:[%s1570 + $0x111] sm:$0xff]
      %v1820 = vld [vmem:[%s1570 + $0x121] sm:$0xff]
      %v1821 = vld [vmem:[%s1570 + $0x129] sm:$0xff]
      %v1822 = vld [vmem:[%s1570 + $0x139] sm:$0xff]
      %v1823 = vld [vmem:[%s1570 + $0x141] sm:$0xff]
      %v1824 = vld [vmem:[%s1570 + $0x151] sm:$0xff]
      %v1825 = vld [vmem:[%s1570 + $0x159] sm:$0xff]
      %v1826 = vld [vmem:[%s1570 + $0x169] sm:$0xff]
      %v1827 = vld [vmem:[%s1570 + $0x171] sm:$0xff]
      %v1828 = vpack.c.bf16 %v1796, %v1796
      %v1829 = vpack.c.bf16 %v1797, %v1797
      %v1830 = vpack.c.bf16 %v1798, %v1798
      %v1831 = vpack.c.bf16 %v1799, %v1799
      %v1832 = vpack.c.bf16 %v1800, %v1800
      %v1833 = vpack.c.bf16 %v1801, %v1801
      %v1834 = vpack.c.bf16 %v1802, %v1802
      %v1835 = vpack.c.bf16 %v1803, %v1803
      %v1836 = vpack.c.bf16 %v1804, %v1804
      %v1837 = vpack.c.bf16 %v1805, %v1805
      %v1838 = vpack.c.bf16 %v1806, %v1806
      %v1839 = vpack.c.bf16 %v1807, %v1807
      %v1840 = vpack.c.bf16 %v1808, %v1808
      %v1841 = vpack.c.bf16 %v1809, %v1809
      %v1842 = vpack.c.bf16 %v1810, %v1810
      %v1843 = vpack.c.bf16 %v1811, %v1811
      %v1844 = vpack.c.bf16 %v1812, %v1812
      %v1845 = vpack.c.bf16 %v1813, %v1813
      %v1846 = vpack.c.bf16 %v1814, %v1814
      %v1847 = vpack.c.bf16 %v1815, %v1815
      %v1848 = vpack.c.bf16 %v1816, %v1816
      %v1849 = vpack.c.bf16 %v1817, %v1817
      %v1850 = vpack.c.bf16 %v1818, %v1818
      %v1851 = vpack.c.bf16 %v1819, %v1819
      %v1852 = vpack.c.bf16 %v1820, %v1820
      %v1853 = vpack.c.bf16 %v1821, %v1821
      %v1854 = vpack.c.bf16 %v1822, %v1822
      %v1855 = vpack.c.bf16 %v1823, %v1823
      %v1856 = vpack.c.bf16 %v1824, %v1824
      %v1857 = vpack.c.bf16 %v1825, %v1825
      %v1858 = vpack.c.bf16 %v1826, %v1826
      %v1859 = vpack.c.bf16 %v1827, %v1827
      %1892 = vrot.lane.b32.xlu0 %v1828, 28
      %v1893 = vpop.permute.xlu0 %1892
      %1894 = vrot.lane.b32.xlu0 %v1829, 28
      %v1895 = vpop.permute.xlu0 %1894
      %1896 = vrot.lane.b32.xlu0 %v1830, 28
      %v1897 = vpop.permute.xlu0 %1896
      %1898 = vrot.lane.b32.xlu0 %v1831, 28
      %v1899 = vpop.permute.xlu0 %1898
      %1900 = vrot.lane.b32.xlu0 %v1832, 28
      %v1901 = vpop.permute.xlu0 %1900
      %1902 = vrot.lane.b32.xlu0 %v1833, 28
      %v1903 = vpop.permute.xlu0 %1902
      %1904 = vrot.lane.b32.xlu0 %v1834, 28
      %v1905 = vpop.permute.xlu0 %1904
      %1906 = vrot.lane.b32.xlu0 %v1835, 28
      %v1907 = vpop.permute.xlu0 %1906
      %1908 = vrot.lane.b32.xlu0 %v1836, 28
      %v1909 = vpop.permute.xlu0 %1908
      %1910 = vrot.lane.b32.xlu0 %v1837, 28
      %v1911 = vpop.permute.xlu0 %1910
      %1912 = vrot.lane.b32.xlu0 %v1838, 28
      %v1913 = vpop.permute.xlu0 %1912
      %1914 = vrot.lane.b32.xlu0 %v1839, 28
      %v1915 = vpop.permute.xlu0 %1914
      %1916 = vrot.lane.b32.xlu0 %v1840, 28
      %v1917 = vpop.permute.xlu0 %1916
      %1918 = vrot.lane.b32.xlu0 %v1841, 28
      %v1919 = vpop.permute.xlu0 %1918
      %1920 = vrot.lane.b32.xlu0 %v1842, 28
      %v1921 = vpop.permute.xlu0 %1920
      %1922 = vrot.lane.b32.xlu0 %v1843, 28
      %v1923 = vpop.permute.xlu0 %1922
      %1924 = vrot.lane.b32.xlu0 %v1844, 28
      %v1925 = vpop.permute.xlu0 %1924
      %1926 = vrot.lane.b32.xlu0 %v1845, 28
      %v1927 = vpop.permute.xlu0 %1926
      %1928 = vrot.lane.b32.xlu0 %v1846, 28
      %v1929 = vpop.permute.xlu0 %1928
      %1930 = vrot.lane.b32.xlu0 %v1847, 28
      %v1931 = vpop.permute.xlu0 %1930
      %1932 = vrot.lane.b32.xlu0 %v1848, 28
      %v1933 = vpop.permute.xlu0 %1932
      %1934 = vrot.lane.b32.xlu0 %v1849, 28
      %v1935 = vpop.permute.xlu0 %1934
      %1936 = vrot.lane.b32.xlu0 %v1850, 28
      %v1937 = vpop.permute.xlu0 %1936
      %1938 = vrot.lane.b32.xlu0 %v1851, 28
      %v1939 = vpop.permute.xlu0 %1938
      %1940 = vrot.lane.b32.xlu0 %v1852, 28
      %v1941 = vpop.permute.xlu0 %1940
      %1942 = vrot.lane.b32.xlu0 %v1853, 28
      %v1943 = vpop.permute.xlu0 %1942
      %1944 = vrot.lane.b32.xlu0 %v1854, 28
      %v1945 = vpop.permute.xlu0 %1944
      %1946 = vrot.lane.b32.xlu0 %v1855, 28
      %v1947 = vpop.permute.xlu0 %1946
      %1948 = vrot.lane.b32.xlu0 %v1856, 28
      %v1949 = vpop.permute.xlu0 %1948
      %1950 = vrot.lane.b32.xlu0 %v1857, 28
      %v1951 = vpop.permute.xlu0 %1950
      %1952 = vrot.lane.b32.xlu0 %v1858, 28
      %v1953 = vpop.permute.xlu0 %1952
      %1954 = vrot.lane.b32.xlu0 %v1859, 28
      %v1955 = vpop.permute.xlu0 %1954
      %vm1988 = vcmask 257248
      %1989 = vst.msk [vmem:[#allocation3] sm:$0xf] %vm1988, %v1893
      %1990 = vst.msk [vmem:[#allocation3 + $0x4] sm:$0xf] %vm1988, %v1895
      %1991 = vst.msk [vmem:[#allocation3 + $0x8] sm:$0xf] %vm1988, %v1897
      %1992 = vst.msk [vmem:[#allocation3 + $0xc] sm:$0xf] %vm1988, %v1899
      %1993 = vst.msk [vmem:[#allocation3 + $0x10] sm:$0xf] %vm1988, %v1901
      %1994 = vst.msk [vmem:[#allocation3 + $0x14] sm:$0xf] %vm1988, %v1903
      %1995 = vst.msk [vmem:[#allocation3 + $0x18] sm:$0xf] %vm1988, %v1905
      %1996 = vst.msk [vmem:[#allocation3 + $0x1c] sm:$0xf] %vm1988, %v1907
      %1997 = vst.msk [vmem:[#allocation3 + $0x20] sm:$0xf] %vm1988, %v1909
      %1998 = vst.msk [vmem:[#allocation3 + $0x24] sm:$0xf] %vm1988, %v1911
      %1999 = vst.msk [vmem:[#allocation3 + $0x28] sm:$0xf] %vm1988, %v1913
      %2000 = vst.msk [vmem:[#allocation3 + $0x2c] sm:$0xf] %vm1988, %v1915
      %2001 = vst.msk [vmem:[#allocation3 + $0x30] sm:$0xf] %vm1988, %v1917
      %2002 = vst.msk [vmem:[#allocation3 + $0x34] sm:$0xf] %vm1988, %v1919
      %2003 = vst.msk [vmem:[#allocation3 + $0x38] sm:$0xf] %vm1988, %v1921
      %2004 = vst.msk [vmem:[#allocation3 + $0x3c] sm:$0xf] %vm1988, %v1923
      %2005 = vst.msk [vmem:[#allocation3 + $0x40] sm:$0xf] %vm1988, %v1925
      %2006 = vst.msk [vmem:[#allocation3 + $0x44] sm:$0xf] %vm1988, %v1927
      %2007 = vst.msk [vmem:[#allocation3 + $0x48] sm:$0xf] %vm1988, %v1929
      %2008 = vst.msk [vmem:[#allocation3 + $0x4c] sm:$0xf] %vm1988, %v1931
      %2009 = vst.msk [vmem:[#allocation3 + $0x50] sm:$0xf] %vm1988, %v1933
      %2010 = vst.msk [vmem:[#allocation3 + $0x54] sm:$0xf] %vm1988, %v1935
      %2011 = vst.msk [vmem:[#allocation3 + $0x58] sm:$0xf] %vm1988, %v1937
      %2012 = vst.msk [vmem:[#allocation3 + $0x5c] sm:$0xf] %vm1988, %v1939
      %2013 = vst.msk [vmem:[#allocation3 + $0x60] sm:$0xf] %vm1988, %v1941
      %2014 = vst.msk [vmem:[#allocation3 + $0x64] sm:$0xf] %vm1988, %v1943
      %2015 = vst.msk [vmem:[#allocation3 + $0x68] sm:$0xf] %vm1988, %v1945
      %2016 = vst.msk [vmem:[#allocation3 + $0x6c] sm:$0xf] %vm1988, %v1947
      %2017 = vst.msk [vmem:[#allocation3 + $0x70] sm:$0xf] %vm1988, %v1949
      %2018 = vst.msk [vmem:[#allocation3 + $0x74] sm:$0xf] %vm1988, %v1951
      %2019 = vst.msk [vmem:[#allocation3 + $0x78] sm:$0xf] %vm1988, %v1953
      %2020 = vst.msk [vmem:[#allocation3 + $0x7c] sm:$0xf] %vm1988, %v1955
      %v2021 = vld [vmem:[%s1570 + $0x2] sm:$0xff]
      %v2022 = vld [vmem:[%s1570 + $0xa] sm:$0xff]
      %v2023 = vld [vmem:[%s1570 + $0x1a] sm:$0xff]
      %v2024 = vld [vmem:[%s1570 + $0x22] sm:$0xff]
      %v2025 = vld [vmem:[%s1570 + $0x32] sm:$0xff]
      %v2026 = vld [vmem:[%s1570 + $0x3a] sm:$0xff]
      %v2027 = vld [vmem:[%s1570 + $0x4a] sm:$0xff]
      %v2028 = vld [vmem:[%s1570 + $0x52] sm:$0xff]
      %v2029 = vld [vmem:[%s1570 + $0x62] sm:$0xff]
      %v2030 = vld [vmem:[%s1570 + $0x6a] sm:$0xff]
      %v2031 = vld [vmem:[%s1570 + $0x7a] sm:$0xff]
      %v2032 = vld [vmem:[%s1570 + $0x82] sm:$0xff]
      %v2033 = vld [vmem:[%s1570 + $0x92] sm:$0xff]
      %v2034 = vld [vmem:[%s1570 + $0x9a] sm:$0xff]
      %v2035 = vld [vmem:[%s1570 + $0xaa] sm:$0xff]
      %v2036 = vld [vmem:[%s1570 + $0xb2] sm:$0xff]
      %v2037 = vld [vmem:[%s1570 + $0xc2] sm:$0xff]
      %v2038 = vld [vmem:[%s1570 + $0xca] sm:$0xff]
      %v2039 = vld [vmem:[%s1570 + $0xda] sm:$0xff]
      %v2040 = vld [vmem:[%s1570 + $0xe2] sm:$0xff]
      %v2041 = vld [vmem:[%s1570 + $0xf2] sm:$0xff]
      %v2042 = vld [vmem:[%s1570 + $0xfa] sm:$0xff]
      %v2043 = vld [vmem:[%s1570 + $0x10a] sm:$0xff]
      %v2044 = vld [vmem:[%s1570 + $0x112] sm:$0xff]
      %v2045 = vld [vmem:[%s1570 + $0x122] sm:$0xff]
      %v2046 = vld [vmem:[%s1570 + $0x12a] sm:$0xff]
      %v2047 = vld [vmem:[%s1570 + $0x13a] sm:$0xff]
      %v2048 = vld [vmem:[%s1570 + $0x142] sm:$0xff]
      %v2049 = vld [vmem:[%s1570 + $0x152] sm:$0xff]
      %v2050 = vld [vmem:[%s1570 + $0x15a] sm:$0xff]
      %v2051 = vld [vmem:[%s1570 + $0x16a] sm:$0xff]
      %v2052 = vld [vmem:[%s1570 + $0x172] sm:$0xff]
      %v2053 = vpack.c.bf16 %v2021, %v2021
      %v2054 = vpack.c.bf16 %v2022, %v2022
      %v2055 = vpack.c.bf16 %v2023, %v2023
      %v2056 = vpack.c.bf16 %v2024, %v2024
      %v2057 = vpack.c.bf16 %v2025, %v2025
      %v2058 = vpack.c.bf16 %v2026, %v2026
      %v2059 = vpack.c.bf16 %v2027, %v2027
      %v2060 = vpack.c.bf16 %v2028, %v2028
      %v2061 = vpack.c.bf16 %v2029, %v2029
      %v2062 = vpack.c.bf16 %v2030, %v2030
      %v2063 = vpack.c.bf16 %v2031, %v2031
      %v2064 = vpack.c.bf16 %v2032, %v2032
      %v2065 = vpack.c.bf16 %v2033, %v2033
      %v2066 = vpack.c.bf16 %v2034, %v2034
      %v2067 = vpack.c.bf16 %v2035, %v2035
      %v2068 = vpack.c.bf16 %v2036, %v2036
      %v2069 = vpack.c.bf16 %v2037, %v2037
      %v2070 = vpack.c.bf16 %v2038, %v2038
      %v2071 = vpack.c.bf16 %v2039, %v2039
      %v2072 = vpack.c.bf16 %v2040, %v2040
      %v2073 = vpack.c.bf16 %v2041, %v2041
      %v2074 = vpack.c.bf16 %v2042, %v2042
      %v2075 = vpack.c.bf16 %v2043, %v2043
      %v2076 = vpack.c.bf16 %v2044, %v2044
      %v2077 = vpack.c.bf16 %v2045, %v2045
      %v2078 = vpack.c.bf16 %v2046, %v2046
      %v2079 = vpack.c.bf16 %v2047, %v2047
      %v2080 = vpack.c.bf16 %v2048, %v2048
      %v2081 = vpack.c.bf16 %v2049, %v2049
      %v2082 = vpack.c.bf16 %v2050, %v2050
      %v2083 = vpack.c.bf16 %v2051, %v2051
      %v2084 = vpack.c.bf16 %v2052, %v2052
      %2117 = vrot.lane.b32.xlu0 %v2053, 32
      %v2118 = vpop.permute.xlu0 %2117
      %2119 = vrot.lane.b32.xlu0 %v2054, 32
      %v2120 = vpop.permute.xlu0 %2119
      %2121 = vrot.lane.b32.xlu0 %v2055, 32
      %v2122 = vpop.permute.xlu0 %2121
      %2123 = vrot.lane.b32.xlu0 %v2056, 32
      %v2124 = vpop.permute.xlu0 %2123
      %2125 = vrot.lane.b32.xlu0 %v2057, 32
      %v2126 = vpop.permute.xlu0 %2125
      %2127 = vrot.lane.b32.xlu0 %v2058, 32
      %v2128 = vpop.permute.xlu0 %2127
      %2129 = vrot.lane.b32.xlu0 %v2059, 32
      %v2130 = vpop.permute.xlu0 %2129
      %2131 = vrot.lane.b32.xlu0 %v2060, 32
      %v2132 = vpop.permute.xlu0 %2131
      %2133 = vrot.lane.b32.xlu0 %v2061, 32
      %v2134 = vpop.permute.xlu0 %2133
      %2135 = vrot.lane.b32.xlu0 %v2062, 32
      %v2136 = vpop.permute.xlu0 %2135
      %2137 = vrot.lane.b32.xlu0 %v2063, 32
      %v2138 = vpop.permute.xlu0 %2137
      %2139 = vrot.lane.b32.xlu0 %v2064, 32
      %v2140 = vpop.permute.xlu0 %2139
      %2141 = vrot.lane.b32.xlu0 %v2065, 32
      %v2142 = vpop.permute.xlu0 %2141
      %2143 = vrot.lane.b32.xlu0 %v2066, 32
      %v2144 = vpop.permute.xlu0 %2143
      %2145 = vrot.lane.b32.xlu0 %v2067, 32
      %v2146 = vpop.permute.xlu0 %2145
      %2147 = vrot.lane.b32.xlu0 %v2068, 32
      %v2148 = vpop.permute.xlu0 %2147
      %2149 = vrot.lane.b32.xlu0 %v2069, 32
      %v2150 = vpop.permute.xlu0 %2149
      %2151 = vrot.lane.b32.xlu0 %v2070, 32
      %v2152 = vpop.permute.xlu0 %2151
      %2153 = vrot.lane.b32.xlu0 %v2071, 32
      %v2154 = vpop.permute.xlu0 %2153
      %2155 = vrot.lane.b32.xlu0 %v2072, 32
      %v2156 = vpop.permute.xlu0 %2155
      %2157 = vrot.lane.b32.xlu0 %v2073, 32
      %v2158 = vpop.permute.xlu0 %2157
      %2159 = vrot.lane.b32.xlu0 %v2074, 32
      %v2160 = vpop.permute.xlu0 %2159
      %2161 = vrot.lane.b32.xlu0 %v2075, 32
      %v2162 = vpop.permute.xlu0 %2161
      %2163 = vrot.lane.b32.xlu0 %v2076, 32
      %v2164 = vpop.permute.xlu0 %2163
      %2165 = vrot.lane.b32.xlu0 %v2077, 32
      %v2166 = vpop.permute.xlu0 %2165
      %2167 = vrot.lane.b32.xlu0 %v2078, 32
      %v2168 = vpop.permute.xlu0 %2167
      %2169 = vrot.lane.b32.xlu0 %v2079, 32
      %v2170 = vpop.permute.xlu0 %2169
      %2171 = vrot.lane.b32.xlu0 %v2080, 32
      %v2172 = vpop.permute.xlu0 %2171
      %2173 = vrot.lane.b32.xlu0 %v2081, 32
      %v2174 = vpop.permute.xlu0 %2173
      %2175 = vrot.lane.b32.xlu0 %v2082, 32
      %v2176 = vpop.permute.xlu0 %2175
      %2177 = vrot.lane.b32.xlu0 %v2083, 32
      %v2178 = vpop.permute.xlu0 %2177
      %2179 = vrot.lane.b32.xlu0 %v2084, 32
      %v2180 = vpop.permute.xlu0 %2179
      %vm2213 = vcmask 290048
      %2214 = vst.msk [vmem:[#allocation3] sm:$0xf] %vm2213, %v2118
      %2215 = vst.msk [vmem:[#allocation3 + $0x4] sm:$0xf] %vm2213, %v2120
      %2216 = vst.msk [vmem:[#allocation3 + $0x8] sm:$0xf] %vm2213, %v2122
      %2217 = vst.msk [vmem:[#allocation3 + $0xc] sm:$0xf] %vm2213, %v2124
      %2218 = vst.msk [vmem:[#allocation3 + $0x10] sm:$0xf] %vm2213, %v2126
      %2219 = vst.msk [vmem:[#allocation3 + $0x14] sm:$0xf] %vm2213, %v2128
      %2220 = vst.msk [vmem:[#allocation3 + $0x18] sm:$0xf] %vm2213, %v2130
      %2221 = vst.msk [vmem:[#allocation3 + $0x1c] sm:$0xf] %vm2213, %v2132
      %2222 = vst.msk [vmem:[#allocation3 + $0x20] sm:$0xf] %vm2213, %v2134
      %2223 = vst.msk [vmem:[#allocation3 + $0x24] sm:$0xf] %vm2213, %v2136
      %2224 = vst.msk [vmem:[#allocation3 + $0x28] sm:$0xf] %vm2213, %v2138
      %2225 = vst.msk [vmem:[#allocation3 + $0x2c] sm:$0xf] %vm2213, %v2140
      %2226 = vst.msk [vmem:[#allocation3 + $0x30] sm:$0xf] %vm2213, %v2142
      %2227 = vst.msk [vmem:[#allocation3 + $0x34] sm:$0xf] %vm2213, %v2144
      %2228 = vst.msk [vmem:[#allocation3 + $0x38] sm:$0xf] %vm2213, %v2146
      %2229 = vst.msk [vmem:[#allocation3 + $0x3c] sm:$0xf] %vm2213, %v2148
      %2230 = vst.msk [vmem:[#allocation3 + $0x40] sm:$0xf] %vm2213, %v2150
      %2231 = vst.msk [vmem:[#allocation3 + $0x44] sm:$0xf] %vm2213, %v2152
      %2232 = vst.msk [vmem:[#allocation3 + $0x48] sm:$0xf] %vm2213, %v2154
      %2233 = vst.msk [vmem:[#allocation3 + $0x4c] sm:$0xf] %vm2213, %v2156
      %2234 = vst.msk [vmem:[#allocation3 + $0x50] sm:$0xf] %vm2213, %v2158
      %2235 = vst.msk [vmem:[#allocation3 + $0x54] sm:$0xf] %vm2213, %v2160
      %2236 = vst.msk [vmem:[#allocation3 + $0x58] sm:$0xf] %vm2213, %v2162
      %2237 = vst.msk [vmem:[#allocation3 + $0x5c] sm:$0xf] %vm2213, %v2164
      %2238 = vst.msk [vmem:[#allocation3 + $0x60] sm:$0xf] %vm2213, %v2166
      %2239 = vst.msk [vmem:[#allocation3 + $0x64] sm:$0xf] %vm2213, %v2168
      %2240 = vst.msk [vmem:[#allocation3 + $0x68] sm:$0xf] %vm2213, %v2170
      %2241 = vst.msk [vmem:[#allocation3 + $0x6c] sm:$0xf] %vm2213, %v2172
      %2242 = vst.msk [vmem:[#allocation3 + $0x70] sm:$0xf] %vm2213, %v2174
      %2243 = vst.msk [vmem:[#allocation3 + $0x74] sm:$0xf] %vm2213, %v2176
      %2244 = vst.msk [vmem:[#allocation3 + $0x78] sm:$0xf] %vm2213, %v2178
      %2245 = vst.msk [vmem:[#allocation3 + $0x7c] sm:$0xf] %vm2213, %v2180
      %v2246 = vld [vmem:[#allocation3] sm:$0xf]
      %v2247 = vld [vmem:[#allocation3 + $0x4] sm:$0xf]
      %v2248 = vld [vmem:[#allocation3 + $0x8] sm:$0xf]
      %v2249 = vld [vmem:[#allocation3 + $0xc] sm:$0xf]
      %v2250 = vld [vmem:[#allocation3 + $0x10] sm:$0xf]
      %v2251 = vld [vmem:[#allocation3 + $0x14] sm:$0xf]
      %v2252 = vld [vmem:[#allocation3 + $0x18] sm:$0xf]
      %v2253 = vld [vmem:[#allocation3 + $0x1c] sm:$0xf]
      %v2254 = vld [vmem:[#allocation3 + $0x20] sm:$0xf]
      %v2255 = vld [vmem:[#allocation3 + $0x24] sm:$0xf]
      %v2256 = vld [vmem:[#allocation3 + $0x28] sm:$0xf]
      %v2257 = vld [vmem:[#allocation3 + $0x2c] sm:$0xf]
      %v2258 = vld [vmem:[#allocation3 + $0x30] sm:$0xf]
      %v2259 = vld [vmem:[#allocation3 + $0x34] sm:$0xf]
      %v2260 = vld [vmem:[#allocation3 + $0x38] sm:$0xf]
      %v2261 = vld [vmem:[#allocation3 + $0x3c] sm:$0xf]
      %v2262 = vld [vmem:[#allocation3 + $0x40] sm:$0xf]
      %v2263 = vld [vmem:[#allocation3 + $0x44] sm:$0xf]
      %v2264 = vld [vmem:[#allocation3 + $0x48] sm:$0xf]
      %v2265 = vld [vmem:[#allocation3 + $0x4c] sm:$0xf]
      %v2266 = vld [vmem:[#allocation3 + $0x50] sm:$0xf]
      %v2267 = vld [vmem:[#allocation3 + $0x54] sm:$0xf]
      %v2268 = vld [vmem:[#allocation3 + $0x58] sm:$0xf]
      %v2269 = vld [vmem:[#allocation3 + $0x5c] sm:$0xf]
      %v2270 = vld [vmem:[#allocation3 + $0x60] sm:$0xf]
      %v2271 = vld [vmem:[#allocation3 + $0x64] sm:$0xf]
      %v2272 = vld [vmem:[#allocation3 + $0x68] sm:$0xf]
      %v2273 = vld [vmem:[#allocation3 + $0x6c] sm:$0xf]
      %v2274 = vld [vmem:[#allocation3 + $0x70] sm:$0xf]
      %v2275 = vld [vmem:[#allocation3 + $0x74] sm:$0xf]
      %v2276 = vld [vmem:[#allocation3 + $0x78] sm:$0xf]
      %v2277 = vld [vmem:[#allocation3 + $0x7c] sm:$0xf]
      %v2278 = vld [vmem:[%s3] sm:$0xf]
      %v2279 = vld [vmem:[%s3 + $0x4] sm:$0xf]
      %v2280 = vld [vmem:[%s3 + $0x8] sm:$0xf]
      %v2281 = vld [vmem:[%s3 + $0xc] sm:$0xf]
      %v2282 = vld [vmem:[%s3 + $0x10] sm:$0x3]
      %v2315 = vunpack.c.l.b16 %v2246
      %v2316 = vunpack.c.l.b16 %v2247
      %v2317 = vunpack.c.l.b16 %v2248
      %v2318 = vunpack.c.l.b16 %v2249
      %v2319 = vunpack.c.l.b16 %v2250
      %v2320 = vunpack.c.l.b16 %v2251
      %v2321 = vunpack.c.l.b16 %v2252
      %v2322 = vunpack.c.l.b16 %v2253
      %v2323 = vunpack.c.l.b16 %v2254
      %v2324 = vunpack.c.l.b16 %v2255
      %v2325 = vunpack.c.l.b16 %v2256
      %v2326 = vunpack.c.l.b16 %v2257
      %v2327 = vunpack.c.l.b16 %v2258
      %v2328 = vunpack.c.l.b16 %v2259
      %v2329 = vunpack.c.l.b16 %v2260
      %v2330 = vunpack.c.l.b16 %v2261
      %v2331 = vunpack.c.l.b16 %v2262
      %v2332 = vunpack.c.l.b16 %v2263
      %v2333 = vunpack.c.l.b16 %v2264
      %v2334 = vunpack.c.l.b16 %v2265
      %v2335 = vunpack.c.l.b16 %v2266
      %v2336 = vunpack.c.l.b16 %v2267
      %v2337 = vunpack.c.l.b16 %v2268
      %v2338 = vunpack.c.l.b16 %v2269
      %v2339 = vunpack.c.l.b16 %v2270
      %v2340 = vunpack.c.l.b16 %v2271
      %v2341 = vunpack.c.l.b16 %v2272
      %v2342 = vunpack.c.l.b16 %v2273
      %v2343 = vunpack.c.l.b16 %v2274
      %v2344 = vunpack.c.l.b16 %v2275
      %v2345 = vunpack.c.l.b16 %v2276
      %v2346 = vunpack.c.l.b16 %v2277
      %v2347 = vpack.c.b16 %v2316, %v2315
      %v2348 = vpack.c.b16 %v2318, %v2317
      %v2349 = vpack.c.b16 %v2320, %v2319
      %v2350 = vpack.c.b16 %v2322, %v2321
      %v2351 = vpack.c.b16 %v2324, %v2323
      %v2352 = vpack.c.b16 %v2326, %v2325
      %v2353 = vpack.c.b16 %v2328, %v2327
      %v2354 = vpack.c.b16 %v2330, %v2329
      %v2355 = vpack.c.b16 %v2332, %v2331
      %v2356 = vpack.c.b16 %v2334, %v2333
      %v2357 = vpack.c.b16 %v2336, %v2335
      %v2358 = vpack.c.b16 %v2338, %v2337
      %v2359 = vpack.c.b16 %v2340, %v2339
      %v2360 = vpack.c.b16 %v2342, %v2341
      %v2361 = vpack.c.b16 %v2344, %v2343
      %v2362 = vpack.c.b16 %v2346, %v2345
      %v2368 = vunpack.c.l.b16 %v2278
      %v2369 = vunpack.c.l.b16 %v2279
      %v2370 = vunpack.c.l.b16 %v2280
      %v2371 = vunpack.c.l.b16 %v2281
      %v2372 = vunpack.c.l.b16 %v2282
      %v2373 = vpack.c.b16 %v2369, %v2368
      %v2374 = vpack.c.b16 %v2371, %v2370
      %v2375 = vpack.c.b16 %v2372, %v2372
      %vm2378 = vcmask 293888
      %v2380 = vsel %vm2378, %v2347, 0
      %v2383 = vsel %vm2378, %v2348, 0
      %v2386 = vsel %vm2378, %v2349, 0
      %v2389 = vsel %vm2378, %v2350, 0
      %v2392 = vsel %vm2378, %v2351, 0
      %v2395 = vsel %vm2378, %v2352, 0
      %v2398 = vsel %vm2378, %v2353, 0
      %v2401 = vsel %vm2378, %v2354, 0
      %v2404 = vsel %vm2378, %v2355, 0
      %v2407 = vsel %vm2378, %v2356, 0
      %v2410 = vsel %vm2378, %v2357, 0
      %v2413 = vsel %vm2378, %v2358, 0
      %v2416 = vsel %vm2378, %v2359, 0
      %v2419 = vsel %vm2378, %v2360, 0
      %v2422 = vsel %vm2378, %v2361, 0
      %v2425 = vsel %vm2378, %v2362, 0
      %vm2427 = vcmask 1041408
      %v2429 = vsel %vm2427, %v2375, 0
      %2431 = vmatpush.bf16.msra.mxu0 0
      %2432 = vmatpush.bf16.msra.mxu0 0
      %2433 = vmatpush.bf16.msra.mxu0 0
      %2434 = vmatpush.bf16.msra.mxu0 0
      %2435 = vmatpush.bf16.msra.mxu0 0
      %2436 = vmatpush.bf16.msra.mxu0 %v2429
      %2437 = vmatpush.bf16.msra.mxu0 %v2374
      %2438 = vmatpush.bf16.msra.mxu0 %v2373
      %2439 = vmatmul.bf16.gmra.mxu0 %v2380
      %v2440 = vpop.f32.mrf.mxu0
      %v2441 = vadd.f32 0.0, %v2440
      %v2442 = vpop.f32.mrf.mxu0
      %v2443 = vadd.f32 0.0, %v2442
      %2444 = vmatmul.bf16.gmra.mxu0 %v2383
      %v2445 = vpop.f32.mrf.mxu0
      %v2446 = vadd.f32 0.0, %v2445
      %v2447 = vpop.f32.mrf.mxu0
      %v2448 = vadd.f32 0.0, %v2447
      %2449 = vmatmul.bf16.gmra.mxu0 %v2386
      %v2450 = vpop.f32.mrf.mxu0
      %v2451 = vadd.f32 0.0, %v2450
      %v2452 = vpop.f32.mrf.mxu0
      %v2453 = vadd.f32 0.0, %v2452
      %2454 = vmatmul.bf16.gmra.mxu0 %v2389
      %v2455 = vpop.f32.mrf.mxu0
      %v2456 = vadd.f32 0.0, %v2455
      %v2457 = vpop.f32.mrf.mxu0
      %v2458 = vadd.f32 0.0, %v2457
      %2459 = vmatmul.bf16.gmra.mxu0 %v2392
      %v2460 = vpop.f32.mrf.mxu0
      %v2461 = vadd.f32 0.0, %v2460
      %v2462 = vpop.f32.mrf.mxu0
      %v2463 = vadd.f32 0.0, %v2462
      %2464 = vmatmul.bf16.gmra.mxu0 %v2395
      %v2465 = vpop.f32.mrf.mxu0
      %v2466 = vadd.f32 0.0, %v2465
      %v2467 = vpop.f32.mrf.mxu0
      %v2468 = vadd.f32 0.0, %v2467
      %2469 = vmatmul.bf16.gmra.mxu0 %v2398
      %v2470 = vpop.f32.mrf.mxu0
      %v2471 = vadd.f32 0.0, %v2470
      %v2472 = vpop.f32.mrf.mxu0
      %v2473 = vadd.f32 0.0, %v2472
      %2474 = vmatmul.bf16.gmra.mxu0 %v2401
      %v2475 = vpop.f32.mrf.mxu0
      %v2476 = vadd.f32 0.0, %v2475
      %v2477 = vpop.f32.mrf.mxu0
      %v2478 = vadd.f32 0.0, %v2477
      %2479 = vmatmul.bf16.gmra.mxu0 %v2404
      %v2480 = vpop.f32.mrf.mxu0
      %v2481 = vadd.f32 0.0, %v2480
      %v2482 = vpop.f32.mrf.mxu0
      %v2483 = vadd.f32 0.0, %v2482
      %2484 = vmatmul.bf16.gmra.mxu0 %v2407
      %v2485 = vpop.f32.mrf.mxu0
      %v2486 = vadd.f32 0.0, %v2485
      %v2487 = vpop.f32.mrf.mxu0
      %v2488 = vadd.f32 0.0, %v2487
      %2489 = vmatmul.bf16.gmra.mxu0 %v2410
      %v2490 = vpop.f32.mrf.mxu0
      %v2491 = vadd.f32 0.0, %v2490
      %v2492 = vpop.f32.mrf.mxu0
      %v2493 = vadd.f32 0.0, %v2492
      %2494 = vmatmul.bf16.gmra.mxu0 %v2413
      %v2495 = vpop.f32.mrf.mxu0
      %v2496 = vadd.f32 0.0, %v2495
      %v2497 = vpop.f32.mrf.mxu0
      %v2498 = vadd.f32 0.0, %v2497
      %2499 = vmatmul.bf16.gmra.mxu0 %v2416
      %v2500 = vpop.f32.mrf.mxu0
      %v2501 = vadd.f32 0.0, %v2500
      %v2502 = vpop.f32.mrf.mxu0
      %v2503 = vadd.f32 0.0, %v2502
      %2504 = vmatmul.bf16.gmra.mxu0 %v2419
      %v2505 = vpop.f32.mrf.mxu0
      %v2506 = vadd.f32 0.0, %v2505
      %v2507 = vpop.f32.mrf.mxu0
      %v2508 = vadd.f32 0.0, %v2507
      %2509 = vmatmul.bf16.gmra.mxu0 %v2422
      %v2510 = vpop.f32.mrf.mxu0
      %v2511 = vadd.f32 0.0, %v2510
      %v2512 = vpop.f32.mrf.mxu0
      %v2513 = vadd.f32 0.0, %v2512
      %2514 = vmatmul.bf16.gmra.mxu0 %v2425
      %v2515 = vpop.f32.mrf.mxu0
      %v2516 = vadd.f32 0.0, %v2515
      %v2517 = vpop.f32.mrf.mxu0
      %v2518 = vadd.f32 0.0, %v2517
      %2519 = vdwg.mxu0
      %v2520 = vsel %vm237, %v2441, 0.0
      %v2521 = vsel %vm237, %v2443, 0.0
      %v2522 = vadd.f32 %v2520, %v2521
      %v2523 = vsel %vm237, %v2446, 0.0
      %v2524 = vadd.f32 %v2522, %v2523
      %v2525 = vsel %vm237, %v2448, 0.0
      %v2526 = vadd.f32 %v2524, %v2525
      %v2527 = vsel %vm237, %v2451, 0.0
      %v2528 = vadd.f32 %v2526, %v2527
      %v2529 = vsel %vm237, %v2453, 0.0
      %v2530 = vadd.f32 %v2528, %v2529
      %v2531 = vsel %vm237, %v2456, 0.0
      %v2532 = vadd.f32 %v2530, %v2531
      %v2533 = vsel %vm237, %v2458, 0.0
      %v2534 = vadd.f32 %v2532, %v2533
      %v2535 = vsel %vm237, %v2461, 0.0
      %v2536 = vadd.f32 %v2534, %v2535
      %v2537 = vsel %vm237, %v2463, 0.0
      %v2538 = vadd.f32 %v2536, %v2537
      %v2539 = vsel %vm237, %v2466, 0.0
      %v2540 = vadd.f32 %v2538, %v2539
      %v2541 = vsel %vm237, %v2468, 0.0
      %v2542 = vadd.f32 %v2540, %v2541
      %v2543 = vsel %vm237, %v2471, 0.0
      %v2544 = vadd.f32 %v2542, %v2543
      %v2545 = vsel %vm237, %v2473, 0.0
      %v2546 = vadd.f32 %v2544, %v2545
      %v2547 = vsel %vm237, %v2476, 0.0
      %v2548 = vadd.f32 %v2546, %v2547
      %v2549 = vsel %vm237, %v2478, 0.0
      %v2550 = vadd.f32 %v2548, %v2549
      %v2551 = vsel %vm237, %v2481, 0.0
      %v2552 = vadd.f32 %v2550, %v2551
      %v2553 = vsel %vm237, %v2483, 0.0
      %v2554 = vadd.f32 %v2552, %v2553
      %v2555 = vsel %vm237, %v2486, 0.0
      %v2556 = vadd.f32 %v2554, %v2555
      %v2557 = vsel %vm237, %v2488, 0.0
      %v2558 = vadd.f32 %v2556, %v2557
      %v2559 = vsel %vm237, %v2491, 0.0
      %v2560 = vadd.f32 %v2558, %v2559
      %v2561 = vsel %vm237, %v2493, 0.0
      %v2562 = vadd.f32 %v2560, %v2561
      %v2563 = vsel %vm237, %v2496, 0.0
      %v2564 = vadd.f32 %v2562, %v2563
      %v2565 = vsel %vm237, %v2498, 0.0
      %v2566 = vadd.f32 %v2564, %v2565
      %v2567 = vsel %vm237, %v2501, 0.0
      %v2568 = vadd.f32 %v2566, %v2567
      %v2569 = vsel %vm237, %v2503, 0.0
      %v2570 = vadd.f32 %v2568, %v2569
      %v2571 = vsel %vm237, %v2506, 0.0
      %v2572 = vadd.f32 %v2570, %v2571
      %v2573 = vsel %vm237, %v2508, 0.0
      %v2574 = vadd.f32 %v2572, %v2573
      %v2575 = vsel %vm237, %v2511, 0.0
      %v2576 = vadd.f32 %v2574, %v2575
      %v2577 = vsel %vm237, %v2513, 0.0
      %v2578 = vadd.f32 %v2576, %v2577
      %v2579 = vsel %vm237, %v2516, 0.0
      %v2580 = vadd.f32 %v2578, %v2579
      %v2581 = vsel %vm237, %v2518, 0.0
      %v2582 = vadd.f32 %v2580, %v2581
      %v2583 = vrot.slane %v2582, 4
      %v2584 = vadd.f32 %v2582, %v2583
      %v2585 = vrot.slane %v2584, 2
      %v2586 = vadd.f32 %v2584, %v2585
      %v2587 = vrot.slane %v2586, 1
      %v2588 = vadd.f32 %v2586, %v2587
      %v2589 = vmul.f32 %v2441, %v2441
      %v2590 = vmul.f32 %v2443, %v2443
      %v2591 = vmul.f32 %v2446, %v2446
      %v2592 = vmul.f32 %v2448, %v2448
      %v2593 = vmul.f32 %v2451, %v2451
      %v2594 = vmul.f32 %v2453, %v2453
      %v2595 = vmul.f32 %v2456, %v2456
      %v2596 = vmul.f32 %v2458, %v2458
      %v2597 = vmul.f32 %v2461, %v2461
      %v2598 = vmul.f32 %v2463, %v2463
      %v2599 = vmul.f32 %v2466, %v2466
      %v2600 = vmul.f32 %v2468, %v2468
      %v2601 = vmul.f32 %v2471, %v2471
      %v2602 = vmul.f32 %v2473, %v2473
      %v2603 = vmul.f32 %v2476, %v2476
      %v2604 = vmul.f32 %v2478, %v2478
      %v2605 = vmul.f32 %v2481, %v2481
      %v2606 = vmul.f32 %v2483, %v2483
      %v2607 = vmul.f32 %v2486, %v2486
      %v2608 = vmul.f32 %v2488, %v2488
      %v2609 = vmul.f32 %v2491, %v2491
      %v2610 = vmul.f32 %v2493, %v2493
      %v2611 = vmul.f32 %v2496, %v2496
      %v2612 = vmul.f32 %v2498, %v2498
      %v2613 = vmul.f32 %v2501, %v2501
      %v2614 = vmul.f32 %v2503, %v2503
      %v2615 = vmul.f32 %v2506, %v2506
      %v2616 = vmul.f32 %v2508, %v2508
      %v2617 = vmul.f32 %v2511, %v2511
      %v2618 = vmul.f32 %v2513, %v2513
      %v2619 = vmul.f32 %v2516, %v2516
      %v2620 = vmul.f32 %v2518, %v2518
      %v2621 = vsel %vm237, %v2589, 0.0
      %v2622 = vsel %vm237, %v2590, 0.0
      %v2623 = vadd.f32 %v2621, %v2622
      %v2624 = vsel %vm237, %v2591, 0.0
      %v2625 = vadd.f32 %v2623, %v2624
      %v2626 = vsel %vm237, %v2592, 0.0
      %v2627 = vadd.f32 %v2625, %v2626
      %v2628 = vsel %vm237, %v2593, 0.0
      %v2629 = vadd.f32 %v2627, %v2628
      %v2630 = vsel %vm237, %v2594, 0.0
      %v2631 = vadd.f32 %v2629, %v2630
      %v2632 = vsel %vm237, %v2595, 0.0
      %v2633 = vadd.f32 %v2631, %v2632
      %v2634 = vsel %vm237, %v2596, 0.0
      %v2635 = vadd.f32 %v2633, %v2634
      %v2636 = vsel %vm237, %v2597, 0.0
      %v2637 = vadd.f32 %v2635, %v2636
      %v2638 = vsel %vm237, %v2598, 0.0
      %v2639 = vadd.f32 %v2637, %v2638
      %v2640 = vsel %vm237, %v2599, 0.0
      %v2641 = vadd.f32 %v2639, %v2640
      %v2642 = vsel %vm237, %v2600, 0.0
      %v2643 = vadd.f32 %v2641, %v2642
      %v2644 = vsel %vm237, %v2601, 0.0
      %v2645 = vadd.f32 %v2643, %v2644
      %v2646 = vsel %vm237, %v2602, 0.0
      %v2647 = vadd.f32 %v2645, %v2646
      %v2648 = vsel %vm237, %v2603, 0.0
      %v2649 = vadd.f32 %v2647, %v2648
      %v2650 = vsel %vm237, %v2604, 0.0
      %v2651 = vadd.f32 %v2649, %v2650
      %v2652 = vsel %vm237, %v2605, 0.0
      %v2653 = vadd.f32 %v2651, %v2652
      %v2654 = vsel %vm237, %v2606, 0.0
      %v2655 = vadd.f32 %v2653, %v2654
      %v2656 = vsel %vm237, %v2607, 0.0
      %v2657 = vadd.f32 %v2655, %v2656
      %v2658 = vsel %vm237, %v2608, 0.0
      %v2659 = vadd.f32 %v2657, %v2658
      %v2660 = vsel %vm237, %v2609, 0.0
      %v2661 = vadd.f32 %v2659, %v2660
      %v2662 = vsel %vm237, %v2610, 0.0
      %v2663 = vadd.f32 %v2661, %v2662
      %v2664 = vsel %vm237, %v2611, 0.0
      %v2665 = vadd.f32 %v2663, %v2664
      %v2666 = vsel %vm237, %v2612, 0.0
      %v2667 = vadd.f32 %v2665, %v2666
      %v2668 = vsel %vm237, %v2613, 0.0
      %v2669 = vadd.f32 %v2667, %v2668
      %v2670 = vsel %vm237, %v2614, 0.0
      %v2671 = vadd.f32 %v2669, %v2670
      %v2672 = vsel %vm237, %v2615, 0.0
      %v2673 = vadd.f32 %v2671, %v2672
      %v2674 = vsel %vm237, %v2616, 0.0
      %v2675 = vadd.f32 %v2673, %v2674
      %v2676 = vsel %vm237, %v2617, 0.0
      %v2677 = vadd.f32 %v2675, %v2676
      %v2678 = vsel %vm237, %v2618, 0.0
      %v2679 = vadd.f32 %v2677, %v2678
      %v2680 = vsel %vm237, %v2619, 0.0
      %v2681 = vadd.f32 %v2679, %v2680
      %v2682 = vsel %vm237, %v2620, 0.0
      %v2683 = vadd.f32 %v2681, %v2682
      %v2684 = vrot.slane %v2683, 4
      %v2685 = vadd.f32 %v2683, %v2684
      %v2686 = vrot.slane %v2685, 2
      %v2687 = vadd.f32 %v2685, %v2686
      %v2688 = vrot.slane %v2687, 1
      %v2689 = vadd.f32 %v2687, %v2688
      %2690 = vst.msk [vmem:[%s235] sm:$0x1] %vm246, %v2588
      %2691 = vst.msk [vmem:[%s235 + $0x1] sm:$0x1] %vm246, %v2689
      %2692 = vst.msk [vmem:[%s231] sm:$0xff] %vm237, %v2441
      %2693 = vst.msk [vmem:[%s231 + $0x8] sm:$0xff] %vm237, %v2443
      %2694 = vst.msk [vmem:[%s231 + $0x10] sm:$0xff] %vm237, %v2446
      %2695 = vst.msk [vmem:[%s231 + $0x18] sm:$0xff] %vm237, %v2448
      %2696 = vst.msk [vmem:[%s231 + $0x20] sm:$0xff] %vm237, %v2451
      %2697 = vst.msk [vmem:[%s231 + $0x28] sm:$0xff] %vm237, %v2453
      %2698 = vst.msk [vmem:[%s231 + $0x30] sm:$0xff] %vm237, %v2456
      %2699 = vst.msk [vmem:[%s231 + $0x38] sm:$0xff] %vm237, %v2458
      %2700 = vst.msk [vmem:[%s231 + $0x40] sm:$0xff] %vm237, %v2461
      %2701 = vst.msk [vmem:[%s231 + $0x48] sm:$0xff] %vm237, %v2463
      %2702 = vst.msk [vmem:[%s231 + $0x50] sm:$0xff] %vm237, %v2466
      %2703 = vst.msk [vmem:[%s231 + $0x58] sm:$0xff] %vm237, %v2468
      %2704 = vst.msk [vmem:[%s231 + $0x60] sm:$0xff] %vm237, %v2471
      %2705 = vst.msk [vmem:[%s231 + $0x68] sm:$0xff] %vm237, %v2473
      %2706 = vst.msk [vmem:[%s231 + $0x70] sm:$0xff] %vm237, %v2476
      %2707 = vst.msk [vmem:[%s231 + $0x78] sm:$0xff] %vm237, %v2478
      %2708 = vst.msk [vmem:[%s231 + $0x80] sm:$0xff] %vm237, %v2481
      %2709 = vst.msk [vmem:[%s231 + $0x88] sm:$0xff] %vm237, %v2483
      %2710 = vst.msk [vmem:[%s231 + $0x90] sm:$0xff] %vm237, %v2486
      %2711 = vst.msk [vmem:[%s231 + $0x98] sm:$0xff] %vm237, %v2488
      %2712 = vst.msk [vmem:[%s231 + $0xa0] sm:$0xff] %vm237, %v2491
      %2713 = vst.msk [vmem:[%s231 + $0xa8] sm:$0xff] %vm237, %v2493
      %2714 = vst.msk [vmem:[%s231 + $0xb0] sm:$0xff] %vm237, %v2496
      %2715 = vst.msk [vmem:[%s231 + $0xb8] sm:$0xff] %vm237, %v2498
      %2716 = vst.msk [vmem:[%s231 + $0xc0] sm:$0xff] %vm237, %v2501
      %2717 = vst.msk [vmem:[%s231 + $0xc8] sm:$0xff] %vm237, %v2503
      %2718 = vst.msk [vmem:[%s231 + $0xd0] sm:$0xff] %vm237, %v2506
      %2719 = vst.msk [vmem:[%s231 + $0xd8] sm:$0xff] %vm237, %v2508
      %2720 = vst.msk [vmem:[%s231 + $0xe0] sm:$0xff] %vm237, %v2511
      %2721 = vst.msk [vmem:[%s231 + $0xe8] sm:$0xff] %vm237, %v2513
      %2722 = vst.msk [vmem:[%s231 + $0xf0] sm:$0xff] %vm237, %v2516
      %2723 = vst.msk [vmem:[%s231 + $0xf8] sm:$0xff] %vm237, %v2518
      %p2724 = scmp.lt.s32.totalorder %s17, 1
      %s2725 = scalar_select %p2724, %s17, 1
      %s2726 = smul.addr %s2725, 32
      %s2727 = smul.addr %s2726, 8
      %s2728 = scalar_lea.vmem %s4, %s2727
      %p2729 = scmp.lt.s32.totalorder %s17, 1
      %s2730 = scalar_select %p2729, %s17, 1
      %s2731 = smul.addr %s2730, 2
      %s2732 = scalar_lea.vmem %s5, %s2731
      // Predicated region
      $region37: #{resnet_block.4} parent=35 // pred_check
        %p2733 = pneg %p124
      $region38: #{resnet_block.4} parent=35 // pred_check_branch
        %2735 = sbr.rel (%p2733) target = $region40
      $region39: #{resnet_block.4} parent=35 // pred_region
        _
      $region40: #{resnet_block.4} parent=35 // pred_fallthru
        _
      // Predicated region
      $region41: #{resnet_block.4} parent=35 // pred_check
        %p2736 = pneg %p150
      $region42: #{resnet_block.4} parent=35 // pred_check_branch
        %2738 = sbr.rel (%p2736) target = $region44
      $region43: #{resnet_block.4} parent=35 // pred_region
        _
      $region44: #{resnet_block.4} parent=35 // pred_fallthru
        _
    $region36: #{resnet_block.4} parent=5 // pred_fallthru
      _
    %p2739 = scmp.le.s32.totalorder 2, %s12
    // Predicated region
    $region45: #{resnet_block.4} parent=5 // pred_check
      %p2740 = pneg %p2739
    $region46: #{resnet_block.4} parent=5 // pred_check_branch
      %2742 = sbr.rel (%p2740) target = $region48
    $region47: #{resnet_block.4} parent=5 // pred_region
      %s2743 = ssub.s32 %s12, 2
      // Predicated region
      $region49: #{resnet_block.4} parent=47 // pred_check
        %p2744 = pneg %p130
      $region50: #{resnet_block.4} parent=47 // pred_check_branch
        %2746 = sbr.rel (%p2744) target = $region52
      $region51: #{resnet_block.4} parent=47 // pred_region
        %p2747 = scmp.lt.s32.totalorder %s18, 1
        %s2748 = scalar_select %p2747, %s18, 1
        %s2749 = smul.addr %s2748, 32
        %s2750 = smul.addr %s2749, 8
        %s2751 = scalar_lea.vmem %s4, %s2750
      $region52: #{resnet_block.4} parent=47 // pred_fallthru
        _
      // Predicated region
      $region53: #{resnet_block.4} parent=47 // pred_check
        %p2752 = pneg %p156
      $region54: #{resnet_block.4} parent=47 // pred_check_branch
        %2754 = sbr.rel (%p2752) target = $region56
      $region55: #{resnet_block.4} parent=47 // pred_region
        %p2755 = scmp.lt.s32.totalorder %s18, 1
        %s2756 = scalar_select %p2755, %s18, 1
        %s2757 = smul.addr %s2756, 2
        %s2758 = scalar_lea.vmem %s5, %s2757
      $region56: #{resnet_block.4} parent=47 // pred_fallthru
        _
    $region48: #{resnet_block.4} parent=5 // pred_fallthru
      _
  $region6: #{resnet_block.4} parent=0 // loop_footer
    %s16 = sadd.s32 1, %s12
  $region7: #{resnet_block.4} parent=0 // loop_footer_branch
    %11 = sbr.rel target = $region3
  $region8: #{resnet_block.4} parent=0 // loop_exit
    _

// kernel: resnet_block.5
$region0: #{resnet_block.5}
  #allocation0 [shape = 'u32[]', space=smem, size = 0x4, offset = 0x4, fixed_abs, tag = 'smem constant byte address 0x4 - core index']
  #allocation1 [shape = 'u32[72,128]{1,0:T(1,128)}', space=vmem, size = 0x9000, scoped, tag = 'internal scratch']
  #allocation2 [shape = 'f32[18,18,4]{2,1,0:T(8,128)}', space=vmem, size = 0x36000, scoped, tag = 'scratch operand']
  #allocation3 [shape = 'bf16[256,36]{1,0:T(8,128)(2,1)}', space=vmem, size = 0x10000, scoped, tag = 'scratch operand']
  %s0 = inlined_call_operand.vmem [shape: f32[2,16,16,4], index: 0, kind: input, shape index: {}]
  %s1 = inlined_call_operand.vmem [shape: f32[1,1,4], index: 1, kind: input, shape index: {}]
  %s2 = inlined_call_operand.vmem [shape: f32[1,1,4], index: 2, kind: input, shape index: {}]
  %s3 = inlined_call_operand.vmem [shape: bf16[36,4], index: 3, kind: input, shape index: {}]
  %s4 = inlined_call_operand.vmem [shape: f32[2,16,16,4], index: 4, kind: output, shape index: {0}]
  %s5 = inlined_call_operand.vmem [shape: f32[2,2,4], index: 5, kind: output, shape index: {1}]
  %6 = xla_tuple %s4, %s5
  %s7 = sld [smem:[#allocation0]]
  $region57: #{resnet_block.5} parent=0
    _
  %s9 = ssub.s32 1, %s7
  %s10 = scalar_select 0, %s9, %s7
  loop: start=0, step=1, limit=4
  $region2: #{resnet_block.5} parent=0 // loop_pre_header
    _
  $region3: #{resnet_block.5} parent=0 // loop_header
    %s12 = sphi 0, %s16
    %p13 = scmp.ge.s32.totalorder %s12, 4
    %s22 = sphi 0, %s24
    %s25 = sphi 0, %s22
    %s26 = sphi 0, %s25
    %s42 = sphi 0, %s26
    %s46 = sphi 0, %s46
    %s48 = sphi 0, %s46
    %s49 = sphi 0, %s48
    %s63 = sphi 0, %s49
    %s67 = sphi 0, %s67
    %s69 = sphi 0, %s67
    %s70 = sphi 0, %s69
    %s84 = sphi 0, %s70
    %s88 = sphi 0, %s88
    %s90 = sphi 0, %s88
    %s91 = sphi 0, %s90
    %s105 = sphi 0, %s91
    %s111 = sphi 0, %s113
    %s114 = sphi 0, %s111
    %s115 = sphi 0, %s114
    %s131 = sphi 0, %s115
    %s137 = sphi 0, %s139
    %s140 = sphi 0, %s137
    %s141 = sphi 0, %s140
    %s157 = sphi 0, %s141
  $region4: #{resnet_block.5} parent=0 // loop_header_branch
    %15 = sbr.rel (%p13) target = $region8
  $region5: #{resnet_block.5} parent=0 // loop_body
    %s17 = ssub.s32 %s12, 1
    %s18 = ssub.s32 %s12, 2
    %s19 = sadd.s32 %s12, 1
    %s20 = ssub.s32 %s12, %s19
    %p21 = scmp.eq.s32.totalorder %s20, 0
    %s23 = sadd.s32 %s22, 1
    %s24 = scalar_select %p21, %s22, %s23
    %p27 = pneg %p21
    %p28 = scmp.eq.s32.totalorder %s12, 1
    %p29 = por %p27, %p28
    %p30 = scmp.ne.s32.totalorder %s22, %s25
    %p31 = scmp.eq.s32.totalorder %s12, 0
    %p32 = por %p30, %p31
    %p33 = scmp.ne.s32.totalorder %s22, %s25
    %p34 = scmp.eq.s32.totalorder %s17, 1
    %p35 = por %p33, %p34
    %p36 = scmp.ne.s32.totalorder %s25, %s26
    %p37 = scmp.eq.s32.totalorder %s17, 0
    %p38 = por %p36, %p37
    %p39 = scmp.ne.s32.totalorder %s25, %s26
    %p40 = scmp.eq.s32.totalorder %s18, 1
    %p41 = por %p39, %p40
    %p43 = scmp.ne.s32.totalorder %s26, %s42
    %p44 = scmp.eq.s32.totalorder %s18, 0
    %p45 = por %p43, %p44
    %s47 = sadd.s32 %s46, 1
    %p50 = scmp.eq.s32.totalorder %s12, 1
    %p51 = scmp.ne.s32.totalorder %s46, %s48
    %p52 = scmp.eq.s32.totalorder %s12, 0
    %p53 = por %p51, %p52
    %p54 = scmp.ne.s32.totalorder %s46, %s48
    %p55 = scmp.eq.s32.totalorder %s17, 1
    %p56 = por %p54, %p55
    %p57 = scmp.ne.s32.totalorder %s48, %s49
    %p58 = scmp.eq.s32.totalorder %s17, 0
    %p59 = por %p57, %p58
    %p60 = scmp.ne.s32.totalorder %s48, %s49
    %p61 = scmp.eq.s32.totalorder %s18, 1
    %p62 = por %p60, %p61
    %p64 = scmp.ne.s32.totalorder %s49, %s63
    %p65 = scmp.eq.s32.totalorder %s18, 0
    %p66 = por %p64, %p65
    %s68 = sadd.s32 %s67, 1
    %p71 = scmp.eq.s32.totalorder %s12, 1
    %p72 = scmp.ne.s32.totalorder %s67, %s69
    %p73 = scmp.eq.s32.totalorder %s12, 0
    %p74 = por %p72, %p73
    %p75 = scmp.ne.s32.totalorder %s67, %s69
    %p76 = scmp.eq.s32.totalorder %s17, 1
    %p77 = por %p75, %p76
    %p78 = scmp.ne.s32.totalorder %s69, %s70
    %p79 = scmp.eq.s32.totalorder %s17, 0
    %p80 = por %p78, %p79
    %p81 = scmp.ne.s32.totalorder %s69, %s70
    %p82 = scmp.eq.s32.totalorder %s18, 1
    %p83 = por %p81, %p82
    %p85 = scmp.ne.s32.totalorder %s70, %s84
    %p86 = scmp.eq.s32.totalorder %s18, 0
    %p87 = por %p85, %p86
    %s89 = sadd.s32 %s88, 1
    %p92 = scmp.eq.s32.totalorder %s12, 1
    %p93 = scmp.ne.s32.totalorder %s88, %s90
    %p94 = scmp.eq.s32.totalorder %s12, 0
    %p95 = por %p93, %p94
    %p96 = scmp.ne.s32.totalorder %s88, %s90
    %p97 = scmp.eq.s32.totalorder %s17, 1
    %p98 = por %p96, %p97
    %p99 = scmp.ne.s32.totalorder %s90, %s91
    %p100 = scmp.eq.s32.totalorder %s17, 0
    %p101 = por %p99, %p100
    %p102 = scmp.ne.s32.totalorder %s90, %s91
    %p103 = scmp.eq.s32.totalorder %s18, 1
    %p104 = por %p102, %p103
    %p106 = scmp.ne.s32.totalorder %s91, %s105
    %p107 = scmp.eq.s32.totalorder %s18, 0
    %p108 = por %p106, %p107
    %s109 = ssub.s32 %s12, %s19
    %p110 = scmp.eq.s32.totalorder %s109, 0
    %s112 = sadd.s32 %s111, 1
    %s113 = scalar_select %p110, %s111, %s112
    %p116 = pneg %p110
    %p117 = scmp.eq.s32.totalorder %s12, 1
    %p118 = por %p116, %p117
    %p119 = scmp.ne.s32.totalorder %s111, %s114
    %p120 = scmp.eq.s32.totalorder %s12, 0
    %p121 = por %p119, %p120
    %p122 = scmp.ne.s32.totalorder %s111, %s114
    %p123 = scmp.eq.s32.totalorder %s17, 1
    %p124 = por %p122, %p123
    %p125 = scmp.ne.s32.totalorder %s114, %s115
    %p126 = scmp.eq.s32.totalorder %s17, 0
    %p127 = por %p125, %p126
    %p128 = scmp.ne.s32.totalorder %s114, %s115
    %p129 = scmp.eq.s32.totalorder %s18, 1
    %p130 = por %p128, %p129
    %p132 = scmp.ne.s32.totalorder %s115, %s131
    %p133 = scmp.eq.s32.totalorder %s18, 0
    %p134 = por %p132, %p133
    %s135 = ssub.s32 %s12, %s19
    %p136 = scmp.eq.s32.totalorder %s135, 0
    %s138 = sadd.s32 %s137, 1
    %s139 = scalar_select %p136, %s137, %s138
    %p142 = pneg %p136
    %p143 = scmp.eq.s32.totalorder %s12, 1
    %p144 = por %p142, %p143
    %p145 = scmp.ne.s32.totalorder %s137, %s140
    %p146 = scmp.eq.s32.totalorder %s12, 0
    %p147 = por %p145, %p146
    %p148 = scmp.ne.s32.totalorder %s137, %s140
    %p149 = scmp.eq.s32.totalorder %s17, 1
    %p150 = por %p148, %p149
    %p151 = scmp.ne.s32.totalorder %s140, %s141
    %p152 = scmp.eq.s32.totalorder %s17, 0
    %p153 = por %p151, %p152
    %p154 = scmp.ne.s32.totalorder %s140, %s141
    %p155 = scmp.eq.s32.totalorder %s18, 1
    %p156 = por %p154, %p155
    %p158 = scmp.ne.s32.totalorder %s141, %s157
    %p159 = scmp.eq.s32.totalorder %s18, 0
    %p160 = por %p158, %p159
    %p161 = scmp.le.s32.totalorder 1, %s12
    %p162 = scmp.lt.s32.totalorder %s12, 3
    %p163 = pnand %p161, %p162
    %p164 = pneg %p163
    // Predicated region
    $region9: #{resnet_block.5} parent=5 // pred_check
      _
    $region10: #{resnet_block.5} parent=5 // pred_check_branch
      %166 = sbr.rel (%p163) target = $region12
    $region11: #{resnet_block.5} parent=5 // pred_region
      %s167 = ssub.s32 %s12, 1
      // Predicated region
      $region13: #{resnet_block.5} parent=11 // pred_check
        %p168 = pneg %p59
      $region14: #{resnet_block.5} parent=11 // pred_check_branch
        %170 = sbr.rel (%p168) target = $region16
      $region15: #{resnet_block.5} parent=11 // pred_region
        _
      $region16: #{resnet_block.5} parent=11 // pred_fallthru
        _
      // Predicated region
      $region17: #{resnet_block.5} parent=11 // pred_check
        %p171 = pneg %p80
      $region18: #{resnet_block.5} parent=11 // pred_check_branch
        %173 = sbr.rel (%p171) target = $region20
      $region19: #{resnet_block.5} parent=11 // pred_region
        _
      $region20: #{resnet_block.5} parent=11 // pred_fallthru
        _
      // Predicated region
      $region21: #{resnet_block.5} parent=11 // pred_check
        %p174 = pneg %p101
      $region22: #{resnet_block.5} parent=11 // pred_check_branch
        %176 = sbr.rel (%p174) target = $region24
      $region23: #{resnet_block.5} parent=11 // pred_region
        _
      $region24: #{resnet_block.5} parent=11 // pred_fallthru
        _
    $region12: #{resnet_block.5} parent=5 // pred_fallthru
      _
    %p177 = scmp.lt.s32.totalorder %s12, 2
    // Predicated region
    $region25: #{resnet_block.5} parent=5 // pred_check
      %p178 = pneg %p177
    $region26: #{resnet_block.5} parent=5 // pred_check_branch
      %180 = sbr.rel (%p178) target = $region28
    $region27: #{resnet_block.5} parent=5 // pred_region
      // Predicated region
      $region29: #{resnet_block.5} parent=27 // pred_check
        %p181 = pneg %p32
      $region30: #{resnet_block.5} parent=27 // pred_check_branch
        %183 = sbr.rel (%p181) target = $region32
      $region31: #{resnet_block.5} parent=27 // pred_region
        %p184 = scmp.lt.s32.totalorder %s12, 1
        %s185 = scalar_select %p184, %s12, 1
        %s186 = smul.addr %s185, 32
        %s187 = smul.addr %s186, 8
        %s188 = scalar_lea.vmem %s0, %s187
      $region32: #{resnet_block.5} parent=27 // pred_fallthru
        _
    $region28: #{resnet_block.5} parent=5 // pred_fallthru
      _
    %p189 = scmp.le.s32.totalorder 1, %s12
    %p190 = scmp.lt.s32.totalorder %s12, 3
    %p191 = pnand %p189, %p190
    %p192 = pneg %p191
    // Predicated region
    $region33: #{resnet_block.5} parent=5 // pred_check
      _
    $region34: #{resnet_block.5} parent=5 // pred_check_branch
      %194 = sbr.rel (%p191) target = $region36
    $region35: #{resnet_block.5} parent=5 // pred_region
      %s195 = ssub.s32 %s12, 1
      %p196 = scmp.lt.s32.totalorder %s17, 1
      %s197 = scalar_select %p196, %s17, 1
      %s198 = smul.addr %s197, 32
      %s199 = smul.addr %s198, 8
      %s200 = scalar_lea.vmem %s0, %s199
      %p201 = pneg %p38
      %p202 = pneg %p35
      %p203 = pneg %p59
      %p204 = pneg %p56
      %p205 = pneg %p80
      %p206 = pneg %p77
      %p207 = pneg %p101
      %p208 = pneg %p98
      %p209 = pneg %p127
      %p210 = pneg %p124
      %p211 = scmp.lt.s32.totalorder %s17, 1
      %s212 = scalar_select %p211, %s17, 1
      %s213 = smul.addr %s212, 32
      %s214 = smul.addr %s213, 8
      %s215 = scalar_lea.vmem %s4, %s214
      %p216 = pneg %p153
      %p217 = pneg %p150
      %p218 = scmp.lt.s32.totalorder %s17, 1
      %s219 = scalar_select %p218, %s17, 1
      %s220 = smul.addr %s219, 2
      %s221 = scalar_lea.vmem %s5, %s220
      %p222 = scmp.lt.s32.totalorder %s17, 1
      %s223 = scalar_select %p222, %s17, 1
      %s224 = smul.addr %s223, 32
      %s225 = smul.addr %s224, 8
      %s226 = scalar_lea.vmem %s0, %s225
      %p227 = scmp.lt.s32.totalorder %s17, 1
      %s228 = scalar_select %p227, %s17, 1
      %s229 = smul.addr %s228, 32
      %s230 = smul.addr %s229, 8
      %s231 = scalar_lea.vmem %s4, %s230
      %p232 = scmp.lt.s32.totalorder %s17, 1
      %s233 = scalar_select %p232, %s17, 1
      %s234 = smul.addr %s233, 2
      %s235 = scalar_lea.vmem %s5, %s234
      %vm237 = vcmask 31744
      %238 = vst.msk [vmem:[#allocation2] sm:$0xff] %vm237, 0.0
      %239 = vst.msk [vmem:[#allocation2 + $0x8] sm:$0xff] %vm237, 0.0
      %vm240 = vcmask 25600
      %241 = vst.msk [vmem:[#allocation2 + $0x10] sm:$0x3] %vm240, 0.0
      %s242 = scalar_lea.vmem [#allocation2], 408
      %243 = vst.msk [vmem:[%s242] sm:$0xff] %vm237, 0.0
      %244 = vst.msk [vmem:[%s242 + $0x8] sm:$0xff] %vm237, 0.0
      %245 = vst.msk [vmem:[%s242 + $0x10] sm:$0x3] %vm240, 0.0
      %vm246 = vcmask 24576
      %247 = vst.msk [vmem:[#allocation2] sm:$0x1] %vm246, 0.0
      %248 = vst.msk [vmem:[#allocation2 + $0x18] sm:$0x1] %vm246, 0.0
      %249 = vst.msk [vmem:[#allocation2 + $0x30] sm:$0x1] %vm246, 0.0
      %250 = vst.msk [vmem:[#allocation2 + $0x48] sm:$0x1] %vm246, 0.0
      %251 = vst.msk [vmem:[#allocation2 + $0x60] sm:$0x1] %vm246, 0.0
      %252 = vst.msk [vmem:[#allocation2 + $0x78] sm:$0x1] %vm246, 0.0
      %253 = vst.msk [vmem:[#allocation2 + $0x90] sm:$0x1] %vm246, 0.0
      %254 = vst.msk [vmem:[#allocation2 + $0xa8] sm:$0x1] %vm246, 0.0
      %255 = vst.msk [vmem:[#allocation2 + $0xc0] sm:$0x1] %vm246, 0.0
      %256 = vst.msk [vmem:[#allocation2 + $0xd8] sm:$0x1] %vm246, 0.0
      %257 = vst.msk [vmem:[#allocation2 + $0xf0] sm:$0x1] %vm246, 0.0
      %258 = vst.msk [vmem:[#allocation2 + $0x108] sm:$0x1] %vm246, 0.0
      %259 = vst.msk [vmem:[#allocation2 + $0x120] sm:$0x1] %vm246, 0.0
      %260 = vst.msk [vmem:[#allocation2 + $0x138] sm:$0x1] %vm246, 0.0
      %261 = vst.msk [vmem:[#allocation2 + $0x150] sm:$0x1] %vm246, 0.0
      %262 = vst.msk [vmem:[#allocation2 + $0x168] sm:$0x1] %vm246, 0.0
      %263 = vst.msk [vmem:[#allocation2 + $0x180] sm:$0x1] %vm246, 0.0
      %264 = vst.msk [vmem:[#allocation2 + $0x198] sm:$0x1] %vm246, 0.0
      %265 = vst.msk [vmem:[#allocation2 + $0x11] sm:$0x1] %vm246, 0.0
      %266 = vst.msk [vmem:[#allocation2 + $0x29] sm:$0x1] %vm246, 0.0
      %267 = vst.msk [vmem:[#allocation2 + $0x41] sm:$0x1] %vm246, 0.0
      %268 = vst.msk [vmem:[#allocation2 + $0x59] sm:$0x1] %vm246, 0.0
      %269 = vst.msk [vmem:[#allocation2 + $0x71] sm:$0x1] %vm246, 0.0
      %270 = vst.msk [vmem:[#allocation2 + $0x89] sm:$0x1] %vm246, 0.0
      %271 = vst.msk [vmem:[#allocation2 + $0xa1] sm:$0x1] %vm246, 0.0
      %272 = vst.msk [vmem:[#allocation2 + $0xb9] sm:$0x1] %vm246, 0.0
      %273 = vst.msk [vmem:[#allocation2 + $0xd1] sm:$0x1] %vm246, 0.0
      %274 = vst.msk [vmem:[#allocation2 + $0xe9] sm:$0x1] %vm246, 0.0
      %275 = vst.msk [vmem:[#allocation2 + $0x101] sm:$0x1] %vm246, 0.0
      %276 = vst.msk [vmem:[#allocation2 + $0x119] sm:$0x1] %vm246, 0.0
      %277 = vst.msk [vmem:[#allocation2 + $0x131] sm:$0x1] %vm246, 0.0
      %278 = vst.msk [vmem:[#allocation2 + $0x149] sm:$0x1] %vm246, 0.0
      %279 = vst.msk [vmem:[#allocation2 + $0x161] sm:$0x1] %vm246, 0.0
      %280 = vst.msk [vmem:[#allocation2 + $0x179] sm:$0x1] %vm246, 0.0
      %281 = vst.msk [vmem:[#allocation2 + $0x191] sm:$0x1] %vm246, 0.0
      %282 = vst.msk [vmem:[#allocation2 + $0x1a9] sm:$0x1] %vm246, 0.0
      %v283 = vld [vmem:[%s226] sm:$0xff]
      %v284 = vld [vmem:[%s226 + $0x8] sm:$0xff]
      %v285 = vld [vmem:[%s226 + $0x10] sm:$0xff]
      %v286 = vld [vmem:[%s226 + $0x18] sm:$0xff]
      %v287 = vld [vmem:[%s226 + $0x20] sm:$0xff]
      %v288 = vld [vmem:[%s226 + $0x28] sm:$0xff]
      %v289 = vld [vmem:[%s226 + $0x30] sm:$0xff]
      %v290 = vld [vmem:[%s226 + $0x38] sm:$0xff]
      %v291 = vld [vmem:[%s226 + $0x40] sm:$0xff]
      %v292 = vld [vmem:[%s226 + $0x48] sm:$0xff]
      %v293 = vld [vmem:[%s226 + $0x50] sm:$0xff]
      %v294 = vld [vmem:[%s226 + $0x58] sm:$0xff]
      %v295 = vld [vmem:[%s226 + $0x60] sm:$0xff]
      %v296 = vld [vmem:[%s226 + $0x68] sm:$0xff]
      %v297 = vld [vmem:[%s226 + $0x70] sm:$0xff]
      %v298 = vld [vmem:[%s226 + $0x78] sm:$0xff]
      %v299 = vld [vmem:[%s226 + $0x80] sm:$0xff]
      %v300 = vld [vmem:[%s226 + $0x88] sm:$0xff]
      %v301 = vld [vmem:[%s226 + $0x90] sm:$0xff]
      %v302 = vld [vmem:[%s226 + $0x98] sm:$0xff]
      %v303 = vld [vmem:[%s226 + $0xa0] sm:$0xff]
      %v304 = vld [vmem:[%s226 + $0xa8] sm:$0xff]
      %v305 = vld [vmem:[%s226 + $0xb0] sm:$0xff]
      %v306 = vld [vmem:[%s226 + $0xb8] sm:$0xff]
      %v307 = vld [vmem:[%s226 + $0xc0] sm:$0xff]
      %v308 = vld [vmem:[%s226 + $0xc8] sm:$0xff]
      %v309 = vld [vmem:[%s226 + $0xd0] sm:$0xff]
      %v310 = vld [vmem:[%s226 + $0xd8] sm:$0xff]
      %v311 = vld [vmem:[%s226 + $0xe0] sm:$0xff]
      %v312 = vld [vmem:[%s226 + $0xe8] sm:$0xff]
      %v313 = vld [vmem:[%s226 + $0xf0] sm:$0xff]
      %v314 = vld [vmem:[%s226 + $0xf8] sm:$0xff]
      %v315 = vld [vmem:[%s1] sm:$0x1]
      %v317 = vperm.slane %v315, 0
      %v319 = vmul.f32 %v283, %v317
      %v320 = vmul.f32 %v284, %v317
      %v321 = vmul.f32 %v285, %v317
      %v322 = vmul.f32 %v286, %v317
      %v323 = vmul.f32 %v287, %v317
      %v324 = vmul.f32 %v288, %v317
      %v325 = vmul.f32 %v289, %v317
      %v326 = vmul.f32 %v290, %v317
      %v327 = vmul.f32 %v291, %v317
      %v328 = vmul.f32 %v292, %v317
      %v329 = vmul.f32 %v293, %v317
      %v330 = vmul.f32 %v294, %v317
      %v331 = vmul.f32 %v295, %v317
      %v332 = vmul.f32 %v296, %v317
      %v333 = vmul.f32 %v297, %v317
      %v334 = vmul.f32 %v298, %v317
      %v335 = vmul.f32 %v299, %v317
      %v336 = vmul.f32 %v300, %v317
      %v337 = vmul.f32 %v301, %v317
      %v338 = vmul.f32 %v302, %v317
      %v339 = vmul.f32 %v303, %v317
      %v340 = vmul.f32 %v304, %v317
      %v341 = vmul.f32 %v305, %v317
      %v342 = vmul.f32 %v306, %v317
      %v343 = vmul.f32 %v307, %v317
      %v344 = vmul.f32 %v308, %v317
      %v345 = vmul.f32 %v309, %v317
      %v346 = vmul.f32 %v310, %v317
      %v347 = vmul.f32 %v311, %v317
      %v348 = vmul.f32 %v312, %v317
      %v349 = vmul.f32 %v313, %v317
      %v350 = vmul.f32 %v314, %v317
      %v351 = vld [vmem:[%s2] sm:$0x1]
      %v353 = vperm.slane %v351, 0
      %v355 = vadd.f32 %v319, %v353
      %v356 = vadd.f32 %v320, %v353
      %v357 = vadd.f32 %v321, %v353
      %v358 = vadd.f32 %v322, %v353
      %v359 = vadd.f32 %v323, %v353
      %v360 = vadd.f32 %v324, %v353
      %v361 = vadd.f32 %v325, %v353
      %v362 = vadd.f32 %v326, %v353
      %v363 = vadd.f32 %v327, %v353
      %v364 = vadd.f32 %v328, %v353
      %v365 = vadd.f32 %v329, %v353
      %v366 = vadd.f32 %v330, %v353
      %v367 = vadd.f32 %v331, %v353
      %v368 = vadd.f32 %v332, %v353
      %v369 = vadd.f32 %v333, %v353
      %v370 = vadd.f32 %v334, %v353
      %v371 = vadd.f32 %v335, %v353
      %v372 = vadd.f32 %v336, %v353
      %v373 = vadd.f32 %v337, %v353
      %v374 = vadd.f32 %v338, %v353
      %v375 = vadd.f32 %v339, %v353
      %v376 = vadd.f32 %v340, %v353
      %v377 = vadd.f32 %v341, %v353
      %v378 = vadd.f32 %v342, %v353
      %v379 = vadd.f32 %v343, %v353
      %v380 = vadd.f32 %v344, %v353
      %v381 = vadd.f32 %v345, %v353
      %v382 = vadd.f32 %v346, %v353
      %v383 = vadd.f32 %v347, %v353
      %v384 = vadd.f32 %v348, %v353
      %v385 = vadd.f32 %v349, %v353
      %v386 = vadd.f32 %v350, %v353
      %v387 = vmax.f32 %v355, 0.0
      %v388 = vmax.f32 %v356, 0.0
      %v389 = vmax.f32 %v357, 0.0
      %v390 = vmax.f32 %v358, 0.0
      %v391 = vmax.f32 %v359, 0.0
      %v392 = vmax.f32 %v360, 0.0
      %v393 = vmax.f32 %v361, 0.0
      %v394 = vmax.f32 %v362, 0.0
      %v395 = vmax.f32 %v363, 0.0
      %v396 = vmax.f32 %v364, 0.0
      %v397 = vmax.f32 %v365, 0.0
      %v398 = vmax.f32 %v366, 0.0
      %v399 = vmax.f32 %v367, 0.0
      %v400 = vmax.f32 %v368, 0.0
      %v401 = vmax.f32 %v369, 0.0
      %v402 = vmax.f32 %v370, 0.0
      %v403 = vmax.f32 %v371, 0.0
      %v404 = vmax.f32 %v372, 0.0
      %v405 = vmax.f32 %v373, 0.0
      %v406 = vmax.f32 %v374, 0.0
      %v407 = vmax.f32 %v375, 0.0
      %v408 = vmax.f32 %v376, 0.0
      %v409 = vmax.f32 %v377, 0.0
      %v410 = vmax.f32 %v378, 0.0
      %v411 = vmax.f32 %v379, 0.0
      %v412 = vmax.f32 %v380, 0.0
      %v413 = vmax.f32 %v381, 0.0
      %v414 = vmax.f32 %v382, 0.0
      %v415 = vmax.f32 %v383, 0.0
      %v416 = vmax.f32 %v384, 0.0
      %v417 = vmax.f32 %v385, 0.0
      %v418 = vmax.f32 %v386, 0.0
      %s419 = scalar_lea.vmem [#allocation2], 24
      %420 = vst.msk [vmem:[%s419 + $0x1] sm:$0xff] %vm237, %v387
      %421 = vst.msk [vmem:[%s419 + $0x9] sm:$0xff] %vm237, %v388
      %422 = vst.msk [vmem:[%s419 + $0x19] sm:$0xff] %vm237, %v389
      %423 = vst.msk [vmem:[%s419 + $0x21] sm:$0xff] %vm237, %v390
      %424 = vst.msk [vmem:[%s419 + $0x31] sm:$0xff] %vm237, %v391
      %425 = vst.msk [vmem:[%s419 + $0x39] sm:$0xff] %vm237, %v392
      %426 = vst.msk [vmem:[%s419 + $0x49] sm:$0xff] %vm237, %v393
      %427 = vst.msk [vmem:[%s419 + $0x51] sm:$0xff] %vm237, %v394
      %428 = vst.msk [vmem:[%s419 + $0x61] sm:$0xff] %vm237, %v395
      %429 = vst.msk [vmem:[%s419 + $0x69] sm:$0xff] %vm237, %v396
      %430 = vst.msk [vmem:[%s419 + $0x79] sm:$0xff] %vm237, %v397
      %431 = vst.msk [vmem:[%s419 + $0x81] sm:$0xff] %vm237, %v398
      %432 = vst.msk [vmem:[%s419 + $0x91] sm:$0xff] %vm237, %v399
      %433 = vst.msk [vmem:[%s419 + $0x99] sm:$0xff] %vm237, %v400
      %434 = vst.msk [vmem:[%s419 + $0xa9] sm:$0xff] %vm237, %v401
      %435 = vst.msk [vmem:[%s419 + $0xb1] sm:$0xff] %vm237, %v402
      %436 = vst.msk [vmem:[%s419 + $0xc1] sm:$0xff] %vm237, %v403
      %437 = vst.msk [vmem:[%s419 + $0xc9] sm:$0xff] %vm237, %v404
      %438 = vst.msk [vmem:[%s419 + $0xd9] sm:$0xff] %vm237, %v405
      %439 = vst.msk [vmem:[%s419 + $0xe1] sm:$0xff] %vm237, %v406
      %440 = vst.msk [vmem:[%s419 + $0xf1] sm:$0xff] %vm237, %v407
      %441 = vst.msk [vmem:[%s419 + $0xf9] sm:$0xff] %vm237, %v408
      %442 = vst.msk [vmem:[%s419 + $0x109] sm:$0xff] %vm237, %v409
      %443 = vst.msk [vmem:[%s419 + $0x111] sm:$0xff] %vm237, %v410
      %444 = vst.msk [vmem:[%s419 + $0x121] sm:$0xff] %vm237, %v411
      %445 = vst.msk [vmem:[%s419 + $0x129] sm:$0xff] %vm237, %v412
      %446 = vst.msk [vmem:[%s419 + $0x139] sm:$0xff] %vm237, %v413
      %447 = vst.msk [vmem:[%s419 + $0x141] sm:$0xff] %vm237, %v414
      %448 = vst.msk [vmem:[%s419 + $0x151] sm:$0xff] %vm237, %v415
      %449 = vst.msk [vmem:[%s419 + $0x159] sm:$0xff] %vm237, %v416
      %450 = vst.msk [vmem:[%s419 + $0x169] sm:$0xff] %vm237, %v417
      %451 = vst.msk [vmem:[%s419 + $0x171] sm:$0xff] %vm237, %v418
      %v452 = vld [vmem:[#allocation2] sm:$0xff]
      %v453 = vld [vmem:[#allocation2 + $0x8] sm:$0xff]
      %v454 = vld [vmem:[#allocation2 + $0x18] sm:$0xff]
      %v455 = vld [vmem:[#allocation2 + $0x20] sm:$0xff]
      %v456 = vld [vmem:[#allocation2 + $0x30] sm:$0xff]
      %v457 = vld [vmem:[#allocation2 + $0x38] sm:$0xff]
      %v458 = vld [vmem:[#allocation2 + $0x48] sm:$0xff]
      %v459 = vld [vmem:[#allocation2 + $0x50] sm:$0xff]
      %v460 = vld [vmem:[#allocation2 + $0x60] sm:$0xff]
      %v461 = vld [vmem:[#allocation2 + $0x68] sm:$0xff]
      %v462 = vld [vmem:[#allocation2 + $0x78] sm:$0xff]
      %v463 = vld [vmem:[#allocation2 + $0x80] sm:$0xff]
      %v464 = vld [vmem:[#allocation2 + $0x90] sm:$0xff]
      %v465 = vld [vmem:[#allocation2 + $0x98] sm:$0xff]
      %v466 = vld [vmem:[#allocation2 + $0xa8] sm:$0xff]
      %v467 = vld [vmem:[#allocation2 + $0xb0] sm:$0xff]
      %v468 = vld [vmem:[#allocation2 + $0xc0] sm:$0xff]
      %v469 = vld [vmem:[#allocation2 + $0xc8] sm:$0xff]
      %v470 = vld [vmem:[#allocation2 + $0xd8] sm:$0xff]
      %v471 = vld [vmem:[#allocation2 + $0xe0] sm:$0xff]
      %v472 = vld [vmem:[#allocation2 + $0xf0] sm:$0xff]
      %v473 = vld [vmem:[#allocation2 + $0xf8] sm:$0xff]
      %v474 = vld [vmem:[#allocation2 + $0x108] sm:$0xff]
      %v475 = vld [vmem:[#allocation2 + $0x110] sm:$0xff]
      %v476 = vld [vmem:[#allocation2 + $0x120] sm:$0xff]
      %v477 = vld [vmem:[#allocation2 + $0x128] sm:$0xff]
      %v478 = vld [vmem:[#allocation2 + $0x138] sm:$0xff]
      %v479 = vld [vmem:[#allocation2 + $0x140] sm:$0xff]
      %v480 = vld [vmem:[#allocation2 + $0x150] sm:$0xff]
      %v481 = vld [vmem:[#allocation2 + $0x158] sm:$0xff]
      %v482 = vld [vmem:[#allocation2 + $0x168] sm:$0xff]
      %v483 = vld [vmem:[#allocation2 + $0x170] sm:$0xff]
      %v484 = vpack.c.bf16 %v452, %v452
      %v485 = vpack.c.bf16 %v453, %v453
      %v486 = vpack.c.bf16 %v454, %v454
      %v487 = vpack.c.bf16 %v455, %v455
      %v488 = vpack.c.bf16 %v456, %v456
      %v489 = vpack.c.bf16 %v457, %v457
      %v490 = vpack.c.bf16 %v458, %v458
      %v491 = vpack.c.bf16 %v459, %v459
      %v492 = vpack.c.bf16 %v460, %v460
      %v493 = vpack.c.bf16 %v461, %v461
      %v494 = vpack.c.bf16 %v462, %v462
      %v495 = vpack.c.bf16 %v463, %v463
      %v496 = vpack.c.bf16 %v464, %v464
      %v497 = vpack.c.bf16 %v465, %v465
      %v498 = vpack.c.bf16 %v466, %v466
      %v499 = vpack.c.bf16 %v467, %v467
      %v500 = vpack.c.bf16 %v468, %v468
      %v501 = vpack.c.bf16 %v469, %v469
      %v502 = vpack.c.bf16 %v470, %v470
      %v503 = vpack.c.bf16 %v471, %v471
      %v504 = vpack.c.bf16 %v472, %v472
      %v505 = vpack.c.bf16 %v473, %v473
      %v506 = vpack.c.bf16 %v474, %v474
      %v507 = vpack.c.bf16 %v475, %v475
      %v508 = vpack.c.bf16 %v476, %v476
      %v509 = vpack.c.bf16 %v477, %v477
      %v510 = vpack.c.bf16 %v478, %v478
      %v511 = vpack.c.bf16 %v479, %v479
      %v512 = vpack.c.bf16 %v480, %v480
      %v513 = vpack.c.bf16 %v481, %v481
      %v514 = vpack.c.bf16 %v482, %v482
      %v515 = vpack.c.bf16 %v483, %v483
      %vm516 = vcmask 27648
      %517 = vst.msk [vmem:[#allocation3] sm:$0xf] %vm516, %v484
      %518 = vst.msk [vmem:[#allocation3 + $0x4] sm:$0xf] %vm516, %v485
      %519 = vst.msk [vmem:[#allocation3 + $0x8] sm:$0xf] %vm516, %v486
      %520 = vst.msk [vmem:[#allocation3 + $0xc] sm:$0xf] %vm516, %v487
      %521 = vst.msk [vmem:[#allocation3 + $0x10] sm:$0xf] %vm516, %v488
      %522 = vst.msk [vmem:[#allocation3 + $0x14] sm:$0xf] %vm516, %v489
      %523 = vst.msk [vmem:[#allocation3 + $0x18] sm:$0xf] %vm516, %v490
      %524 = vst.msk [vmem:[#allocation3 + $0x1c] sm:$0xf] %vm516, %v491
      %525 = vst.msk [vmem:[#allocation3 + $0x20] sm:$0xf] %vm516, %v492
      %526 = vst.msk [vmem:[#allocation3 + $0x24] sm:$0xf] %vm516, %v493
      %527 = vst.msk [vmem:[#allocation3 + $0x28] sm:$0xf] %vm516, %v494
      %528 = vst.msk [vmem:[#allocation3 + $0x2c] sm:$0xf] %vm516, %v495
      %529 = vst.msk [vmem:[#allocation3 + $0x30] sm:$0xf] %vm516, %v496
      %530 = vst.msk [vmem:[#allocation3 + $0x34] sm:$0xf] %vm516, %v497
      %531 = vst.msk [vmem:[#allocation3 + $0x38] sm:$0xf] %vm516, %v498
      %532 = vst.msk [vmem:[#allocation3 + $0x3c] sm:$0xf] %vm516, %v499
      %533 = vst.msk [vmem:[#allocation3 + $0x40] sm:$0xf] %vm516, %v500
      %534 = vst.msk [vmem:[#allocation3 + $0x44] sm:$0xf] %vm516, %v501
      %535 = vst.msk [vmem:[#allocation3 + $0x48] sm:$0xf] %vm516, %v502
      %536 = vst.msk [vmem:[#allocation3 + $0x4c] sm:$0xf] %vm516, %v503
      %537 = vst.msk [vmem:[#allocation3 + $0x50] sm:$0xf] %vm516, %v504
      %538 = vst.msk [vmem:[#allocation3 + $0x54] sm:$0xf] %vm516, %v505
      %539 = vst.msk [vmem:[#allocation3 + $0x58] sm:$0xf] %vm516, %v506
      %540 = vst.msk [vmem:[#allocation3 + $0x5c] sm:$0xf] %vm516, %v507
      %541 = vst.msk [vmem:[#allocation3 + $0x60] sm:$0xf] %vm516, %v508
      %542 = vst.msk [vmem:[#allocation3 + $0x64] sm:$0xf] %vm516, %v509
      %543 = vst.msk [vmem:[#allocation3 + $0x68] sm:$0xf] %vm516, %v510
      %544 = vst.msk [vmem:[#allocation3 + $0x6c] sm:$0xf] %vm516, %v511
      %545 = vst.msk [vmem:[#allocation3 + $0x70] sm:$0xf] %vm516, %v512
      %546 = vst.msk [vmem:[#allocation3 + $0x74] sm:$0xf] %vm516, %v513
      %547 = vst.msk [vmem:[#allocation3 + $0x78] sm:$0xf] %vm516, %v514
      %548 = vst.msk [vmem:[#allocation3 + $0x7c] sm:$0xf] %vm516, %v515
      %v549 = vld [vmem:[#allocation2 + $0x1] sm:$0xff]
      %v550 = vld [vmem:[#allocation2 + $0x9] sm:$0xff]
      %v551 = vld [vmem:[#allocation2 + $0x19] sm:$0xff]
      %v552 = vld [vmem:[#allocation2 + $0x21] sm:$0xff]
      %v553 = vld [vmem:[#allocation2 + $0x31] sm:$0xff]
      %v554 = vld [vmem:[#allocation2 + $0x39] sm:$0xff]
      %v555 = vld [vmem:[#allocation2 + $0x49] sm:$0xff]
      %v556 = vld [vmem:[#allocation2 + $0x51] sm:$0xff]
      %v557 = vld [vmem:[#allocation2 + $0x61] sm:$0xff]
      %v558 = vld [vmem:[#allocation2 + $0x69] sm:$0xff]
      %v559 = vld [vmem:[#allocation2 + $0x79] sm:$0xff]
      %v560 = vld [vmem:[#allocation2 + $0x81] sm:$0xff]
      %v561 = vld [vmem:[#allocation2 + $0x91] sm:$0xff]
      %v562 = vld [vmem:[#allocation2 + $0x99] sm:$0xff]
      %v563 = vld [vmem:[#allocation2 + $0xa9] sm:$0xff]
      %v564 = vld [vmem:[#allocation2 + $0xb1] sm:$0xff]
      %v565 = vld [vmem:[#allocation2 + $0xc1] sm:$0xff]
      %v566 = vld [vmem:[#allocation2 + $0xc9] sm:$0xff]
      %v567 = vld [vmem:[#allocation2 + $0xd9] sm:$0xff]
      %v568 = vld [vmem:[#allocation2 + $0xe1] sm:$0xff]
      %v569 = vld [vmem:[#allocation2 + $0xf1] sm:$0xff]
      %v570 = vld [vmem:[#allocation2 + $0xf9] sm:$0xff]
      %v571 = vld [vmem:[#allocation2 + $0x109] sm:$0xff]
      %v572 = vld [vmem:[#allocation2 + $0x111] sm:$0xff]
      %v573 = vld [vmem:[#allocation2 + $0x121] sm:$0xff]
      %v574 = vld [vmem:[#allocation2 + $0x129] sm:$0xff]
      %v575 = vld [vmem:[#allocation2 + $0x139] sm:$0xff]
      %v576 = vld [vmem:[#allocation2 + $0x141] sm:$0xff]
      %v577 = vld [vmem:[#allocation2 + $0x151] sm:$0xff]
      %v578 = vld [vmem:[#allocation2 + $0x159] sm:$0xff]
      %v579 = vld [vmem:[#allocation2 + $0x169] sm:$0xff]
      %v580 = vld [vmem:[#allocation2 + $0x171] sm:$0xff]
      %v581 = vpack.c.bf16 %v549, %v549
      %v582 = vpack.c.bf16 %v550, %v550
      %v583 = vpack.c.bf16 %v551, %v551
      %v584 = vpack.c.bf16 %v552, %v552
      %v585 = vpack.c.bf16 %v553, %v553
      %v586 = vpack.c.bf16 %v554, %v554
      %v587 = vpack.c.bf16 %v555, %v555
      %v588 = vpack.c.bf16 %v556, %v556
      %v589 = vpack.c.bf16 %v557, %v557
      %v590 = vpack.c.bf16 %v558, %v558
      %v591 = vpack.c.bf16 %v559, %v559
      %v592 = vpack.c.bf16 %v560, %v560
      %v593 = vpack.c.bf16 %v561, %v561
      %v594 = vpack.c.bf16 %v562, %v562
      %v595 = vpack.c.bf16 %v563, %v563
      %v596 = vpack.c.bf16 %v564, %v564
      %v597 = vpack.c.bf16 %v565, %v565
      %v598 = vpack.c.bf16 %v566, %v566
      %v599 = vpack.c.bf16 %v567, %v567
      %v600 = vpack.c.bf16 %v568, %v568
      %v601 = vpack.c.bf16 %v569, %v569
      %v602 = vpack.c.bf16 %v570, %v570
      %v603 = vpack.c.bf16 %v571, %v571
      %v604 = vpack.c.bf16 %v572, %v572
      %v605 = vpack.c.bf16 %v573, %v573
      %v606 = vpack.c.bf16 %v574, %v574
      %v607 = vpack.c.bf16 %v575, %v575
      %v608 = vpack.c.bf16 %v576, %v576
      %v609 = vpack.c.bf16 %v577, %v577
      %v610 = vpack.c.bf16 %v578, %v578
      %v611 = vpack.c.bf16 %v579, %v579
      %v612 = vpack.c.bf16 %v580, %v580
      %645 = vrot.lane.b32.xlu0 %v581, 4
      %v646 = vpop.permute.xlu0 %645
      %647 = vrot.lane.b32.xlu0 %v582, 4
      %v648 = vpop.permute.xlu0 %647
      %649 = vrot.lane.b32.xlu0 %v583, 4
      %v650 = vpop.permute.xlu0 %649
      %651 = vrot.lane.b32.xlu0 %v584, 4
      %v652 = vpop.permute.xlu0 %651
      %653 = vrot.lane.b32.xlu0 %v585, 4
      %v654 = vpop.permute.xlu0 %653
      %655 = vrot.lane.b32.xlu0 %v586, 4
      %v656 = vpop.permute.xlu0 %655
      %657 = vrot.lane.b32.xlu0 %v587, 4
      %v658 = vpop.permute.xlu0 %657
      %659 = vrot.lane.b32.xlu0 %v588, 4
      %v660 = vpop.permute.xlu0 %659
      %661 = vrot.lane.b32.xlu0 %v589, 4
      %v662 = vpop.permute.xlu0 %661
      %663 = vrot.lane.b32.xlu0 %v590, 4
      %v664 = vpop.permute.xlu0 %663
      %665 = vrot.lane.b32.xlu0 %v591, 4
      %v666 = vpop.permute.xlu0 %665
      %667 = vrot.lane.b32.xlu0 %v592, 4
      %v668 = vpop.permute.xlu0 %667
      %669 = vrot.lane.b32.xlu0 %v593, 4
      %v670 = vpop.permute.xlu0 %669
      %671 = vrot.lane.b32.xlu0 %v594, 4
      %v672 = vpop.permute.xlu0 %671
      %673 = vrot.lane.b32.xlu0 %v595, 4
      %v674 = vpop.permute.xlu0 %673
      %675 = vrot.lane.b32.xlu0 %v596, 4
      %v676 = vpop.permute.xlu0 %675
      %677 = vrot.lane.b32.xlu0 %v597, 4
      %v678 = vpop.permute.xlu0 %677
      %679 = vrot.lane.b32.xlu0 %v598, 4
      %v680 = vpop.permute.xlu0 %679
      %681 = vrot.lane.b32.xlu0 %v599, 4
      %v682 = vpop.permute.xlu0 %681
      %683 = vrot.lane.b32.xlu0 %v600, 4
      %v684 = vpop.permute.xlu0 %683
      %685 = vrot.lane.b32.xlu0 %v601, 4
      %v686 = vpop.permute.xlu0 %685
      %687 = vrot.lane.b32.xlu0 %v602, 4
      %v688 = vpop.permute.xlu0 %687
      %689 = vrot.lane.b32.xlu0 %v603, 4
      %v690 = vpop.permute.xlu0 %689
      %691 = vrot.lane.b32.xlu0 %v604, 4
      %v692 = vpop.permute.xlu0 %691
      %693 = vrot.lane.b32.xlu0 %v605, 4
      %v694 = vpop.permute.xlu0 %693
      %695 = vrot.lane.b32.xlu0 %v606, 4
      %v696 = vpop.permute.xlu0 %695
      %697 = vrot.lane.b32.xlu0 %v607, 4
      %v698 = vpop.permute.xlu0 %697
      %699 = vrot.lane.b32.xlu0 %v608, 4
      %v700 = vpop.permute.xlu0 %699
      %701 = vrot.lane.b32.xlu0 %v609, 4
      %v702 = vpop.permute.xlu0 %701
      %703 = vrot.lane.b32.xlu0 %v610, 4
      %v704 = vpop.permute.xlu0 %703
      %705 = vrot.lane.b32.xlu0 %v611, 4
      %v706 = vpop.permute.xlu0 %705
      %707 = vrot.lane.b32.xlu0 %v612, 4
      %v708 = vpop.permute.xlu0 %707
      %vm741 = vcmask 60448
      %742 = vst.msk [vmem:[#allocation3] sm:$0xf] %vm741, %v646
      %743 = vst.msk [vmem:[#allocation3 + $0x4] sm:$0xf] %vm741, %v648
      %744 = vst.msk [vmem:[#allocation3 + $0x8] sm:$0xf] %vm741, %v650
      %745 = vst.msk [vmem:[#allocation3 + $0xc] sm:$0xf] %vm741, %v652
      %746 = vst.msk [vmem:[#allocation3 + $0x10] sm:$0xf] %vm741, %v654
      %747 = vst.msk [vmem:[#allocation3 + $0x14] sm:$0xf] %vm741, %v656
      %748 = vst.msk [vmem:[#allocation3 + $0x18] sm:$0xf] %vm741, %v658
      %749 = vst.msk [vmem:[#allocation3 + $0x1c] sm:$0xf] %vm741, %v660
      %750 = vst.msk [vmem:[#allocation3 + $0x20] sm:$0xf] %vm741, %v662
      %751 = vst.msk [vmem:[#allocation3 + $0x24] sm:$0xf] %vm741, %v664
      %752 = vst.msk [vmem:[#allocation3 + $0x28] sm:$0xf] %vm741, %v666
      %753 = vst.msk [vmem:[#allocation3 + $0x2c] sm:$0xf] %vm741, %v668
      %754 = vst.msk [vmem:[#allocation3 + $0x30] sm:$0xf] %vm741, %v670
      %755 = vst.msk [vmem:[#allocation3 + $0x34] sm:$0xf] %vm741, %v672
      %756 = vst.msk [vmem:[#allocation3 + $0x38] sm:$0xf] %vm741, %v674
      %757 = vst.msk [vmem:[#allocation3 + $0x3c] sm:$0xf] %vm741, %v676
      %758 = vst.msk [vmem:[#allocation3 + $0x40] sm:$0xf] %vm741, %v678
      %759 = vst.msk [vmem:[#allocation3 + $0x44] sm:$0xf] %vm741, %v680
      %760 = vst.msk [vmem:[#allocation3 + $0x48] sm:$0xf] %vm741, %v682
      %761 = vst.msk [vmem:[#allocation3 + $0x4c] sm:$0xf] %vm741, %v684
      %762 = vst.msk [vmem:[#allocation3 + $0x50] sm:$0xf] %vm741, %v686
      %763 = vst.msk [vmem:[#allocation3 + $0x54] sm:$0xf] %vm741, %v688
      %764 = vst.msk [vmem:[#allocation3 + $0x58] sm:$0xf] %vm741, %v690
      %765 = vst.msk [vmem:[#allocation3 + $0x5c] sm:$0xf] %vm741, %v692
      %766 = vst.msk [vmem:[#allocation3 + $0x60] sm:$0xf] %vm741, %v694
      %767 = vst.msk [vmem:[#allocation3 + $0x64] sm:$0xf] %vm741, %v696
      %768 = vst.msk [vmem:[#allocation3 + $0x68] sm:$0xf] %vm741, %v698
      %769 = vst.msk [vmem:[#allocation3 + $0x6c] sm:$0xf] %vm741, %v700
      %770 = vst.msk [vmem:[#allocation3 + $0x70] sm:$0xf] %vm741, %v702
      %771 = vst.msk [vmem:[#allocation3 + $0x74] sm:$0xf] %vm741, %v704
      %772 = vst.msk [vmem:[#allocation3 + $0x78] sm:$0xf] %vm741, %v706
      %773 = vst.msk [vmem:[#allocation3 + $0x7c] sm:$0xf] %vm741, %v708
      %v774 = vld [vmem:[#allocation2 + $0x2] sm:$0xff]
      %v775 = vld [vmem:[#allocation2 + $0xa] sm:$0xff]
      %v776 = vld [vmem:[#allocation2 + $0x1a] sm:$0xff]
      %v777 = vld [vmem:[#allocation2 + $0x22] sm:$0xff]
      %v778 = vld [vmem:[#allocation2 + $0x32] sm:$0xff]
      %v779 = vld [vmem:[#allocation2 + $0x3a] sm:$0xff]
      %v780 = vld [vmem:[#allocation2 + $0x4a] sm:$0xff]
      %v781 = vld [vmem:[#allocation2 + $0x52] sm:$0xff]
      %v782 = vld [vmem:[#allocation2 + $0x62] sm:$0xff]
      %v783 = vld [vmem:[#allocation2 + $0x6a] sm:$0xff]
      %v784 = vld [vmem:[#allocation2 + $0x7a] sm:$0xff]
      %v785 = vld [vmem:[#allocation2 + $0x82] sm:$0xff]
      %v786 = vld [vmem:[#allocation2 + $0x92] sm:$0xff]
      %v787 = vld [vmem:[#allocation2 + $0x9a] sm:$0xff]
      %v788 = vld [vmem:[#allocation2 + $0xaa] sm:$0xff]
      %v789 = vld [vmem:[#allocation2 + $0xb2] sm:$0xff]
      %v790 = vld [vmem:[#allocation2 + $0xc2] sm:$0xff]
      %v791 = vld [vmem:[#allocation2 + $0xca] sm:$0xff]
      %v792 = vld [vmem:[#allocation2 + $0xda] sm:$0xff]
      %v793 = vld [vmem:[#allocation2 + $0xe2] sm:$0xff]
      %v794 = vld [vmem:[#allocation2 + $0xf2] sm:$0xff]
      %v795 = vld [vmem:[#allocation2 + $0xfa] sm:$0xff]
      %v796 = vld [vmem:[#allocation2 + $0x10a] sm:$0xff]
      %v797 = vld [vmem:[#allocation2 + $0x112] sm:$0xff]
      %v798 = vld [vmem:[#allocation2 + $0x122] sm:$0xff]
      %v799 = vld [vmem:[#allocation2 + $0x12a] sm:$0xff]
      %v800 = vld [vmem:[#allocation2 + $0x13a] sm:$0xff]
      %v801 = vld [vmem:[#allocation2 + $0x142] sm:$0xff]
      %v802 = vld [vmem:[#allocation2 + $0x152] sm:$0xff]
      %v803 = vld [vmem:[#allocation2 + $0x15a] sm:$0xff]
      %v804 = vld [vmem:[#allocation2 + $0x16a] sm:$0xff]
      %v805 = vld [vmem:[#allocation2 + $0x172] sm:$0xff]
      %v806 = vpack.c.bf16 %v774, %v774
      %v807 = vpack.c.bf16 %v775, %v775
      %v808 = vpack.c.bf16 %v776, %v776
      %v809 = vpack.c.bf16 %v777, %v777
      %v810 = vpack.c.bf16 %v778, %v778
      %v811 = vpack.c.bf16 %v779, %v779
      %v812 = vpack.c.bf16 %v780, %v780
      %v813 = vpack.c.bf16 %v781, %v781
      %v814 = vpack.c.bf16 %v782, %v782
      %v815 = vpack.c.bf16 %v783, %v783
      %v816 = vpack.c.bf16 %v784, %v784
      %v817 = vpack.c.bf16 %v785, %v785
      %v818 = vpack.c.bf16 %v786, %v786
      %v819 = vpack.c.bf16 %v787, %v787
      %v820 = vpack.c.bf16 %v788, %v788
      %v821 = vpack.c.bf16 %v789, %v789
      %v822 = vpack.c.bf16 %v790, %v790
      %v823 = vpack.c.bf16 %v791, %v791
      %v824 = vpack.c.bf16 %v792, %v792
      %v825 = vpack.c.bf16 %v793, %v793
      %v826 = vpack.c.bf16 %v794, %v794
      %v827 = vpack.c.bf16 %v795, %v795
      %v828 = vpack.c.bf16 %v796, %v796
      %v829 = vpack.c.bf16 %v797, %v797
      %v830 = vpack.c.bf16 %v798, %v798
      %v831 = vpack.c.bf16 %v799, %v799
      %v832 = vpack.c.bf16 %v800, %v800
      %v833 = vpack.c.bf16 %v801, %v801
      %v834 = vpack.c.bf16 %v802, %v802
      %v835 = vpack.c.bf16 %v803, %v803
      %v836 = vpack.c.bf16 %v804, %v804
      %v837 = vpack.c.bf16 %v805, %v805
      %870 = vrot.lane.b32.xlu0 %v806, 8
      %v871 = vpop.permute.xlu0 %870
      %872 = vrot.lane.b32.xlu0 %v807, 8
      %v873 = vpop.permute.xlu0 %872
      %874 = vrot.lane.b32.xlu0 %v808, 8
      %v875 = vpop.permute.xlu0 %874
      %876 = vrot.lane.b32.xlu0 %v809, 8
      %v877 = vpop.permute.xlu0 %876
      %878 = vrot.lane.b32.xlu0 %v810, 8
      %v879 = vpop.permute.xlu0 %878
      %880 = vrot.lane.b32.xlu0 %v811, 8
      %v881 = vpop.permute.xlu0 %880
      %882 = vrot.lane.b32.xlu0 %v812, 8
      %v883 = vpop.permute.xlu0 %882
      %884 = vrot.lane.b32.xlu0 %v813, 8
      %v885 = vpop.permute.xlu0 %884
      %886 = vrot.lane.b32.xlu0 %v814, 8
      %v887 = vpop.permute.xlu0 %886
      %888 = vrot.lane.b32.xlu0 %v815, 8
      %v889 = vpop.permute.xlu0 %888
      %890 = vrot.lane.b32.xlu0 %v816, 8
      %v891 = vpop.permute.xlu0 %890
      %892 = vrot.lane.b32.xlu0 %v817, 8
      %v893 = vpop.permute.xlu0 %892
      %894 = vrot.lane.b32.xlu0 %v818, 8
      %v895 = vpop.permute.xlu0 %894
      %896 = vrot.lane.b32.xlu0 %v819, 8
      %v897 = vpop.permute.xlu0 %896
      %898 = vrot.lane.b32.xlu0 %v820, 8
      %v899 = vpop.permute.xlu0 %898
      %900 = vrot.lane.b32.xlu0 %v821, 8
      %v901 = vpop.permute.xlu0 %900
      %902 = vrot.lane.b32.xlu0 %v822, 8
      %v903 = vpop.permute.xlu0 %902
      %904 = vrot.lane.b32.xlu0 %v823, 8
      %v905 = vpop.permute.xlu0 %904
      %906 = vrot.lane.b32.xlu0 %v824, 8
      %v907 = vpop.permute.xlu0 %906
      %908 = vrot.lane.b32.xlu0 %v825, 8
      %v909 = vpop.permute.xlu0 %908
      %910 = vrot.lane.b32.xlu0 %v826, 8
      %v911 = vpop.permute.xlu0 %910
      %912 = vrot.lane.b32.xlu0 %v827, 8
      %v913 = vpop.permute.xlu0 %912
      %914 = vrot.lane.b32.xlu0 %v828, 8
      %v915 = vpop.permute.xlu0 %914
      %916 = vrot.lane.b32.xlu0 %v829, 8
      %v917 = vpop.permute.xlu0 %916
      %918 = vrot.lane.b32.xlu0 %v830, 8
      %v919 = vpop.permute.xlu0 %918
      %920 = vrot.lane.b32.xlu0 %v831, 8
      %v921 = vpop.permute.xlu0 %920
      %922 = vrot.lane.b32.xlu0 %v832, 8
      %v923 = vpop.permute.xlu0 %922
      %924 = vrot.lane.b32.xlu0 %v833, 8
      %v925 = vpop.permute.xlu0 %924
      %926 = vrot.lane.b32.xlu0 %v834, 8
      %v927 = vpop.permute.xlu0 %926
      %928 = vrot.lane.b32.xlu0 %v835, 8
      %v929 = vpop.permute.xlu0 %928
      %930 = vrot.lane.b32.xlu0 %v836, 8
      %v931 = vpop.permute.xlu0 %930
      %932 = vrot.lane.b32.xlu0 %v837, 8
      %v933 = vpop.permute.xlu0 %932
      %vm966 = vcmask 93248
      %967 = vst.msk [vmem:[#allocation3] sm:$0xf] %vm966, %v871
      %968 = vst.msk [vmem:[#allocation3 + $0x4] sm:$0xf] %vm966, %v873
      %969 = vst.msk [vmem:[#allocation3 + $0x8] sm:$0xf] %vm966, %v875
      %970 = vst.msk [vmem:[#allocation3 + $0xc] sm:$0xf] %vm966, %v877
      %971 = vst.msk [vmem:[#allocation3 + $0x10] sm:$0xf] %vm966, %v879
      %972 = vst.msk [vmem:[#allocation3 + $0x14] sm:$0xf] %vm966, %v881
      %973 = vst.msk [vmem:[#allocation3 + $0x18] sm:$0xf] %vm966, %v883
      %974 = vst.msk [vmem:[#allocation3 + $0x1c] sm:$0xf] %vm966, %v885
      %975 = vst.msk [vmem:[#allocation3 + $0x20] sm:$0xf] %vm966, %v887
      %976 = vst.msk [vmem:[#allocation3 + $0x24] sm:$0xf] %vm966, %v889
      %977 = vst.msk [vmem:[#allocation3 + $0x28] sm:$0xf] %vm966, %v891
      %978 = vst.msk [vmem:[#allocation3 + $0x2c] sm:$0xf] %vm966, %v893
      %979 = vst.msk [vmem:[#allocation3 + $0x30] sm:$0xf] %vm966, %v895
      %980 = vst.msk [vmem:[#allocation3 + $0x34] sm:$0xf] %vm966, %v897
      %981 = vst.msk [vmem:[#allocation3 + $0x38] sm:$0xf] %vm966, %v899
      %982 = vst.msk [vmem:[#allocation3 + $0x3c] sm:$0xf] %vm966, %v901
      %983 = vst.msk [vmem:[#allocation3 + $0x40] sm:$0xf] %vm966, %v903
      %984 = vst.msk [vmem:[#allocation3 + $0x44] sm:$0xf] %vm966, %v905
      %985 = vst.msk [vmem:[#allocation3 + $0x48] sm:$0xf] %vm966, %v907
      %986 = vst.msk [vmem:[#allocation3 + $0x4c] sm:$0xf] %vm966, %v909
      %987 = vst.msk [vmem:[#allocation3 + $0x50] sm:$0xf] %vm966, %v911
      %988 = vst.msk [vmem:[#allocation3 + $0x54] sm:$0xf] %vm966, %v913
      %989 = vst.msk [vmem:[#allocation3 + $0x58] sm:$0xf] %vm966, %v915
      %990 = vst.msk [vmem:[#allocation3 + $0x5c] sm:$0xf] %vm966, %v917
      %991 = vst.msk [vmem:[#allocation3 + $0x60] sm:$0xf] %vm966, %v919
      %992 = vst.msk [vmem:[#allocation3 + $0x64] sm:$0xf] %vm966, %v921
      %993 = vst.msk [vmem:[#allocation3 + $0x68] sm:$0xf] %vm966, %v923
      %994 = vst.msk [vmem:[#allocation3 + $0x6c] sm:$0xf] %vm966, %v925
      %995 = vst.msk [vmem:[#allocation3 + $0x70] sm:$0xf] %vm966, %v927
      %996 = vst.msk [vmem:[#allocation3 + $0x74] sm:$0xf] %vm966, %v929
      %997 = vst.msk [vmem:[#allocation3 + $0x78] sm:$0xf] %vm966, %v931
      %998 = vst.msk [vmem:[#allocation3 + $0x7c] sm:$0xf] %vm966, %v933
      %v999 = vld [vmem:[%s419] sm:$0xff]
      %v1000 = vld [vmem:[%s419 + $0x8] sm:$0xff]
      %v1001 = vld [vmem:[%s419 + $0x18] sm:$0xff]
      %v1002 = vld [vmem:[%s419 + $0x20] sm:$0xff]
      %v1003 = vld [vmem:[%s419 + $0x30] sm:$0xff]
      %v1004 = vld [vmem:[%s419 + $0x38] sm:$0xff]
      %v1005 = vld [vmem:[%s419 + $0x48] sm:$0xff]
      %v1006 = vld [vmem:[%s419 + $0x50] sm:$0xff]
      %v1007 = vld [vmem:[%s419 + $0x60] sm:$0xff]
      %v1008 = vld [vmem:[%s419 + $0x68] sm:$0xff]
      %v1009 = vld [vmem:[%s419 + $0x78] sm:$0xff]
      %v1010 = vld [vmem:[%s419 + $0x80] sm:$0xff]
      %v1011 = vld [vmem:[%s419 + $0x90] sm:$0xff]
      %v1012 = vld [vmem:[%s419 + $0x98] sm:$0xff]
      %v1013 = vld [vmem:[%s419 + $0xa8] sm:$0xff]
      %v1014 = vld [vmem:[%s419 + $0xb0] sm:$0xff]
      %v1015 = vld [vmem:[%s419 + $0xc0] sm:$0xff]
      %v1016 = vld [vmem:[%s419 + $0xc8] sm:$0xff]
      %v1017 = vld [vmem:[%s419 + $0xd8] sm:$0xff]
      %v1018 = vld [vmem:[%s419 + $0xe0] sm:$0xff]
      %v1019 = vld [vmem:[%s419 + $0xf0] sm:$0xff]
      %v1020 = vld [vmem:[%s419 + $0xf8] sm:$0xff]
      %v1021 = vld [vmem:[%s419 + $0x108] sm:$0xff]
      %v1022 = vld [vmem:[%s419 + $0x110] sm:$0xff]
      %v1023 = vld [vmem:[%s419 + $0x120] sm:$0xff]
      %v1024 = vld [vmem:[%s419 + $0x128] sm:$0xff]
      %v1025 = vld [vmem:[%s419 + $0x138] sm:$0xff]
      %v1026 = vld [vmem:[%s419 + $0x140] sm:$0xff]
      %v1027 = vld [vmem:[%s419 + $0x150] sm:$0xff]
      %v1028 = vld [vmem:[%s419 + $0x158] sm:$0xff]
      %v1029 = vld [vmem:[%s419 + $0x168] sm:$0xff]
      %v1030 = vld [vmem:[%s419 + $0x170] sm:$0xff]
      %v1031 = vpack.c.bf16 %v999, %v999
      %v1032 = vpack.c.bf16 %v1000, %v1000
      %v1033 = vpack.c.bf16 %v1001, %v1001
      %v1034 = vpack.c.bf16 %v1002, %v1002
      %v1035 = vpack.c.bf16 %v1003, %v1003
      %v1036 = vpack.c.bf16 %v1004, %v1004
      %v1037 = vpack.c.bf16 %v1005, %v1005
      %v1038 = vpack.c.bf16 %v1006, %v1006
      %v1039 = vpack.c.bf16 %v1007, %v1007
      %v1040 = vpack.c.bf16 %v1008, %v1008
      %v1041 = vpack.c.bf16 %v1009, %v1009
      %v1042 = vpack.c.bf16 %v1010, %v1010
      %v1043 = vpack.c.bf16 %v1011, %v1011
      %v1044 = vpack.c.bf16 %v1012, %v1012
      %v1045 = vpack.c.bf16 %v1013, %v1013
      %v1046 = vpack.c.bf16 %v1014, %v1014
      %v1047 = vpack.c.bf16 %v1015, %v1015
      %v1048 = vpack.c.bf16 %v1016, %v1016
      %v1049 = vpack.c.bf16 %v1017, %v1017
      %v1050 = vpack.c.bf16 %v1018, %v1018
      %v1051 = vpack.c.bf16 %v1019, %v1019
      %v1052 = vpack.c.bf16 %v1020, %v1020
      %v1053 = vpack.c.bf16 %v1021, %v1021
      %v1054 = vpack.c.bf16 %v1022, %v1022
      %v1055 = vpack.c.bf16 %v1023, %v1023
      %v1056 = vpack.c.bf16 %v1024, %v1024
      %v1057 = vpack.c.bf16 %v1025, %v1025
      %v1058 = vpack.c.bf16 %v1026, %v1026
      %v1059 = vpack.c.bf16 %v1027, %v1027
      %v1060 = vpack.c.bf16 %v1028, %v1028
      %v1061 = vpack.c.bf16 %v1029, %v1029
      %v1062 = vpack.c.bf16 %v1030, %v1030
      %1095 = vrot.lane.b32.xlu0 %v1031, 12
      %v1096 = vpop.permute.xlu0 %1095
      %1097 = vrot.lane.b32.xlu0 %v1032, 12
      %v1098 = vpop.permute.xlu0 %1097
      %1099 = vrot.lane.b32.xlu0 %v1033, 12
      %v1100 = vpop.permute.xlu0 %1099
      %1101 = vrot.lane.b32.xlu0 %v1034, 12
      %v1102 = vpop.permute.xlu0 %1101
      %1103 = vrot.lane.b32.xlu0 %v1035, 12
      %v1104 = vpop.permute.xlu0 %1103
      %1105 = vrot.lane.b32.xlu0 %v1036, 12
      %v1106 = vpop.permute.xlu0 %1105
      %1107 = vrot.lane.b32.xlu0 %v1037, 12
      %v1108 = vpop.permute.xlu0 %1107
      %1109 = vrot.lane.b32.xlu0 %v1038, 12
      %v1110 = vpop.permute.xlu0 %1109
      %1111 = vrot.lane.b32.xlu0 %v1039, 12
      %v1112 = vpop.permute.xlu0 %1111
      %1113 = vrot.lane.b32.xlu0 %v1040, 12
      %v1114 = vpop.permute.xlu0 %1113
      %1115 = vrot.lane.b32.xlu0 %v1041, 12
      %v1116 = vpop.permute.xlu0 %1115
      %1117 = vrot.lane.b32.xlu0 %v1042, 12
      %v1118 = vpop.permute.xlu0 %1117
      %1119 = vrot.lane.b32.xlu0 %v1043, 12
      %v1120 = vpop.permute.xlu0 %1119
      %1121 = vrot.lane.b32.xlu0 %v1044, 12
      %v1122 = vpop.permute.xlu0 %1121
      %1123 = vrot.lane.b32.xlu0 %v1045, 12
      %v1124 = vpop.permute.xlu0 %1123
      %1125 = vrot.lane.b32.xlu0 %v1046, 12
      %v1126 = vpop.permute.xlu0 %1125
      %1127 = vrot.lane.b32.xlu0 %v1047, 12
      %v1128 = vpop.permute.xlu0 %1127
      %1129 = vrot.lane.b32.xlu0 %v1048, 12
      %v1130 = vpop.permute.xlu0 %1129
      %1131 = vrot.lane.b32.xlu0 %v1049, 12
      %v1132 = vpop.permute.xlu0 %1131
      %1133 = vrot.lane.b32.xlu0 %v1050, 12
      %v1134 = vpop.permute.xlu0 %1133
      %1135 = vrot.lane.b32.xlu0 %v1051, 12
      %v1136 = vpop.permute.xlu0 %1135
      %1137 = vrot.lane.b32.xlu0 %v1052, 12
      %v1138 = vpop.permute.xlu0 %1137
      %1139 = vrot.lane.b32.xlu0 %v1053, 12
      %v1140 = vpop.permute.xlu0 %1139
      %1141 = vrot.lane.b32.xlu0 %v1054, 12
      %v1142 = vpop.permute.xlu0 %1141
      %1143 = vrot.lane.b32.xlu0 %v1055, 12
      %v1144 = vpop.permute.xlu0 %1143
      %1145 = vrot.lane.b32.xlu0 %v1056, 12
      %v1146 = vpop.permute.xlu0 %1145
      %1147 = vrot.lane.b32.xlu0 %v1057, 12
      %v1148 = vpop.permute.xlu0 %1147
      %1149 = vrot.lane.b32.xlu0 %v1058, 12
      %v1150 = vpop.permute.xlu0 %1149
      %1151 = vrot.lane.b32.xlu0 %v1059, 12
      %v1152 = vpop.permute.xlu0 %1151
      %1153 = vrot.lane.b32.xlu0 %v1060, 12
      %v1154 = vpop.permute.xlu0 %1153
      %1155 = vrot.lane.b32.xlu0 %v1061, 12
      %v1156 = vpop.permute.xlu0 %1155
      %1157 = vrot.lane.b32.xlu0 %v1062, 12
      %v1158 = vpop.permute.xlu0 %1157
      %vm1191 = vcmask 126048
      %1192 = vst.msk [vmem:[#allocation3] sm:$0xf] %vm1191, %v1096
      %1193 = vst.msk [vmem:[#allocation3 + $0x4] sm:$0xf] %vm1191, %v1098
      %1194 = vst.msk [vmem:[#allocation3 + $0x8] sm:$0xf] %vm1191, %v1100
      %1195 = vst.msk [vmem:[#allocation3 + $0xc] sm:$0xf] %vm1191, %v1102
      %1196 = vst.msk [vmem:[#allocation3 + $0x10] sm:$0xf] %vm1191, %v1104
      %1197 = vst.msk [vmem:[#allocation3 + $0x14] sm:$0xf] %vm1191, %v1106
      %1198 = vst.msk [vmem:[#allocation3 + $0x18] sm:$0xf] %vm1191, %v1108
      %1199 = vst.msk [vmem:[#allocation3 + $0x1c] sm:$0xf] %vm1191, %v1110
      %1200 = vst.msk [vmem:[#allocation3 + $0x20] sm:$0xf] %vm1191, %v1112
      %1201 = vst.msk [vmem:[#allocation3 + $0x24] sm:$0xf] %vm1191, %v1114
      %1202 = vst.msk [vmem:[#allocation3 + $0x28] sm:$0xf] %vm1191, %v1116
      %1203 = vst.msk [vmem:[#allocation3 + $0x2c] sm:$0xf] %vm1191, %v1118
      %1204 = vst.msk [vmem:[#allocation3 + $0x30] sm:$0xf] %vm1191, %v1120
      %1205 = vst.msk [vmem:[#allocation3 + $0x34] sm:$0xf] %vm1191, %v1122
      %1206 = vst.msk [vmem:[#allocation3 + $0x38] sm:$0xf] %vm1191, %v1124
      %1207 = vst.msk [vmem:[#allocation3 + $0x3c] sm:$0xf] %vm1191, %v1126
      %1208 = vst.msk [vmem:[#allocation3 + $0x40] sm:$0xf] %vm1191, %v1128
      %1209 = vst.msk [vmem:[#allocation3 + $0x44] sm:$0xf] %vm1191, %v1130
      %1210 = vst.msk [vmem:[#allocation3 + $0x48] sm:$0xf] %vm1191, %v1132
      %1211 = vst.msk [vmem:[#allocation3 + $0x4c] sm:$0xf] %vm1191, %v1134
      %1212 = vst.msk [vmem:[#allocation3 + $0x50] sm:$0xf] %vm1191, %v1136
      %1213 = vst.msk [vmem:[#allocation3 + $0x54] sm:$0xf] %vm1191, %v1138
      %1214 = vst.msk [vmem:[#allocation3 + $0x58] sm:$0xf] %vm1191, %v1140
      %1215 = vst.msk [vmem:[#allocation3 + $0x5c] sm:$0xf] %vm1191, %v1142
      %1216 = vst.msk [vmem:[#allocation3 + $0x60] sm:$0xf] %vm1191, %v1144
      %1217 = vst.msk [vmem:[#allocation3 + $0x64] sm:$0xf] %vm1191, %v1146
      %1218 = vst.msk [vmem:[#allocation3 + $0x68] sm:$0xf] %vm1191, %v1148
      %1219 = vst.msk [vmem:[#allocation3 + $0x6c] sm:$0xf] %vm1191, %v1150
      %1220 = vst.msk [vmem:[#allocation3 + $0x70] sm:$0xf] %vm1191, %v1152
      %1221 = vst.msk [vmem:[#allocation3 + $0x74] sm:$0xf] %vm1191, %v1154
      %1222 = vst.msk [vmem:[#allocation3 + $0x78] sm:$0xf] %vm1191, %v1156
      %1223 = vst.msk [vmem:[#allocation3 + $0x7c] sm:$0xf] %vm1191, %v1158
      %v1224 = vld [vmem:[%s419 + $0x1] sm:$0xff]
      %v1225 = vld [vmem:[%s419 + $0x9] sm:$0xff]
      %v1226 = vld [vmem:[%s419 + $0x19] sm:$0xff]
      %v1227 = vld [vmem:[%s419 + $0x21] sm:$0xff]
      %v1228 = vld [vmem:[%s419 + $0x31] sm:$0xff]
      %v1229 = vld [vmem:[%s419 + $0x39] sm:$0xff]
      %v1230 = vld [vmem:[%s419 + $0x49] sm:$0xff]
      %v1231 = vld [vmem:[%s419 + $0x51] sm:$0xff]
      %v1232 = vld [vmem:[%s419 + $0x61] sm:$0xff]
      %v1233 = vld [vmem:[%s419 + $0x69] sm:$0xff]
      %v1234 = vld [vmem:[%s419 + $0x79] sm:$0xff]
      %v1235 = vld [vmem:[%s419 + $0x81] sm:$0xff]
      %v1236 = vld [vmem:[%s419 + $0x91] sm:$0xff]
      %v1237 = vld [vmem:[%s419 + $0x99] sm:$0xff]
      %v1238 = vld [vmem:[%s419 + $0xa9] sm:$0xff]
      %v1239 = vld [vmem:[%s419 + $0xb1] sm:$0xff]
      %v1240 = vld [vmem:[%s419 + $0xc1] sm:$0xff]
      %v1241 = vld [vmem:[%s419 + $0xc9] sm:$0xff]
      %v1242 = vld [vmem:[%s419 + $0xd9] sm:$0xff]
      %v1243 = vld [vmem:[%s419 + $0xe1] sm:$0xff]
      %v1244 = vld [vmem:[%s419 + $0xf1] sm:$0xff]
      %v1245 = vld [vmem:[%s419 + $0xf9] sm:$0xff]
      %v1246 = vld [vmem:[%s419 + $0x109] sm:$0xff]
      %v1247 = vld [vmem:[%s419 + $0x111] sm:$0xff]
      %v1248 = vld [vmem:[%s419 + $0x121] sm:$0xff]
      %v1249 = vld [vmem:[%s419 + $0x129] sm:$0xff]
      %v1250 = vld [vmem:[%s419 + $0x139] sm:$0xff]
      %v1251 = vld [vmem:[%s419 + $0x141] sm:$0xff]
      %v1252 = vld [vmem:[%s419 + $0x151] sm:$0xff]
      %v1253 = vld [vmem:[%s419 + $0x159] sm:$0xff]
      %v1254 = vld [vmem:[%s419 + $0x169] sm:$0xff]
      %v1255 = vld [vmem:[%s419 + $0x171] sm:$0xff]
      %v1256 = vpack.c.bf16 %v1224, %v1224
      %v1257 = vpack.c.bf16 %v1225, %v1225
      %v1258 = vpack.c.bf16 %v1226, %v1226
      %v1259 = vpack.c.bf16 %v1227, %v1227
      %v1260 = vpack.c.bf16 %v1228, %v1228
      %v1261 = vpack.c.bf16 %v1229, %v1229
      %v1262 = vpack.c.bf16 %v1230, %v1230
      %v1263 = vpack.c.bf16 %v1231, %v1231
      %v1264 = vpack.c.bf16 %v1232, %v1232
      %v1265 = vpack.c.bf16 %v1233, %v1233
      %v1266 = vpack.c.bf16 %v1234, %v1234
      %v1267 = vpack.c.bf16 %v1235, %v1235
      %v1268 = vpack.c.bf16 %v1236, %v1236
      %v1269 = vpack.c.bf16 %v1237, %v1237
      %v1270 = vpack.c.bf16 %v1238, %v1238
      %v1271 = vpack.c.bf16 %v1239, %v1239
      %v1272 = vpack.c.bf16 %v1240, %v1240
      %v1273 = vpack.c.bf16 %v1241, %v1241
      %v1274 = vpack.c.bf16 %v1242, %v1242
      %v1275 = vpack.c.bf16 %v1243, %v1243
      %v1276 = vpack.c.bf16 %v1244, %v1244
      %v1277 = vpack.c.bf16 %v1245, %v1245
      %v1278 = vpack.c.bf16 %v1246, %v1246
      %v1279 = vpack.c.bf16 %v1247, %v1247
      %v1280 = vpack.c.bf16 %v1248, %v1248
      %v1281 = vpack.c.bf16 %v1249, %v1249
      %v1282 = vpack.c.bf16 %v1250, %v1250
      %v1283 = vpack.c.bf16 %v1251, %v1251
      %v1284 = vpack.c.bf16 %v1252, %v1252
      %v1285 = vpack.c.bf16 %v1253, %v1253
      %v1286 = vpack.c.bf16 %v1254, %v1254
      %v1287 = vpack.c.bf16 %v1255, %v1255
      %1320 = vrot.lane.b32.xlu0 %v1256, 16
      %v1321 = vpop.permute.xlu0 %1320
      %1322 = vrot.lane.b32.xlu0 %v1257, 16
      %v1323 = vpop.permute.xlu0 %1322
      %1324 = vrot.lane.b32.xlu0 %v1258, 16
      %v1325 = vpop.permute.xlu0 %1324
      %1326 = vrot.lane.b32.xlu0 %v1259, 16
      %v1327 = vpop.permute.xlu0 %1326
      %1328 = vrot.lane.b32.xlu0 %v1260, 16
      %v1329 = vpop.permute.xlu0 %1328
      %1330 = vrot.lane.b32.xlu0 %v1261, 16
      %v1331 = vpop.permute.xlu0 %1330
      %1332 = vrot.lane.b32.xlu0 %v1262, 16
      %v1333 = vpop.permute.xlu0 %1332
      %1334 = vrot.lane.b32.xlu0 %v1263, 16
      %v1335 = vpop.permute.xlu0 %1334
      %1336 = vrot.lane.b32.xlu0 %v1264, 16
      %v1337 = vpop.permute.xlu0 %1336
      %1338 = vrot.lane.b32.xlu0 %v1265, 16
      %v1339 = vpop.permute.xlu0 %1338
      %1340 = vrot.lane.b32.xlu0 %v1266, 16
      %v1341 = vpop.permute.xlu0 %1340
      %1342 = vrot.lane.b32.xlu0 %v1267, 16
      %v1343 = vpop.permute.xlu0 %1342
      %1344 = vrot.lane.b32.xlu0 %v1268, 16
      %v1345 = vpop.permute.xlu0 %1344
      %1346 = vrot.lane.b32.xlu0 %v1269, 16
      %v1347 = vpop.permute.xlu0 %1346
      %1348 = vrot.lane.b32.xlu0 %v1270, 16
      %v1349 = vpop.permute.xlu0 %1348
      %1350 = vrot.lane.b32.xlu0 %v1271, 16
      %v1351 = vpop.permute.xlu0 %1350
      %1352 = vrot.lane.b32.xlu0 %v1272, 16
      %v1353 = vpop.permute.xlu0 %1352
      %1354 = vrot.lane.b32.xlu0 %v1273, 16
      %v1355 = vpop.permute.xlu0 %1354
      %1356 = vrot.lane.b32.xlu0 %v1274, 16
      %v1357 = vpop.permute.xlu0 %1356
      %1358 = vrot.lane.b32.xlu0 %v1275, 16
      %v1359 = vpop.permute.xlu0 %1358
      %1360 = vrot.lane.b32.xlu0 %v1276, 16
      %v1361 = vpop.permute.xlu0 %1360
      %1362 = vrot.lane.b32.xlu0 %v1277, 16
      %v1363 = vpop.permute.xlu0 %1362
      %1364 = vrot.lane.b32.xlu0 %v1278, 16
      %v1365 = vpop.permute.xlu0 %1364
      %1366 = vrot.lane.b32.xlu0 %v1279, 16
      %v1367 = vpop.permute.xlu0 %1366
      %1368 = vrot.lane.b32.xlu0 %v1280, 16
      %v1369 = vpop.permute.xlu0 %1368
      %1370 = vrot.lane.b32.xlu0 %v1281, 16
      %v1371 = vpop.permute.xlu0 %1370
      %1372 = vrot.lane.b32.xlu0 %v1282, 16
      %v1373 = vpop.permute.xlu0 %1372
      %1374 = vrot.lane.b32.xlu0 %v1283, 16
      %v1375 = vpop.permute.xlu0 %1374
      %1376 = vrot.lane.b32.xlu0 %v1284, 16
      %v1377 = vpop.permute.xlu0 %1376
      %1378 = vrot.lane.b32.xlu0 %v1285, 16
      %v1379 = vpop.permute.xlu0 %1378
      %1380 = vrot.lane.b32.xlu0 %v1286, 16
      %v1381 = vpop.permute.xlu0 %1380
      %1382 = vrot.lane.b32.xlu0 %v1287, 16
      %v1383 = vpop.permute.xlu0 %1382
      %vm1416 = vcmask 158848
      %1417 = vst.msk [vmem:[#allocation3] sm:$0xf] %vm1416, %v1321
      %1418 = vst.msk [vmem:[#allocation3 + $0x4] sm:$0xf] %vm1416, %v1323
      %1419 = vst.msk [vmem:[#allocation3 + $0x8] sm:$0xf] %vm1416, %v1325
      %1420 = vst.msk [vmem:[#allocation3 + $0xc] sm:$0xf] %vm1416, %v1327
      %1421 = vst.msk [vmem:[#allocation3 + $0x10] sm:$0xf] %vm1416, %v1329
      %1422 = vst.msk [vmem:[#allocation3 + $0x14] sm:$0xf] %vm1416, %v1331
      %1423 = vst.msk [vmem:[#allocation3 + $0x18] sm:$0xf] %vm1416, %v1333
      %1424 = vst.msk [vmem:[#allocation3 + $0x1c] sm:$0xf] %vm1416, %v1335
      %1425 = vst.msk [vmem:[#allocation3 + $0x20] sm:$0xf] %vm1416, %v1337
      %1426 = vst.msk [vmem:[#allocation3 + $0x24] sm:$0xf] %vm1416, %v1339
      %1427 = vst.msk [vmem:[#allocation3 + $0x28] sm:$0xf] %vm1416, %v1341
      %1428 = vst.msk [vmem:[#allocation3 + $0x2c] sm:$0xf] %vm1416, %v1343
      %1429 = vst.msk [vmem:[#allocation3 + $0x30] sm:$0xf] %vm1416, %v1345
      %1430 = vst.msk [vmem:[#allocation3 + $0x34] sm:$0xf] %vm1416, %v1347
      %1431 = vst.msk [vmem:[#allocation3 + $0x38] sm:$0xf] %vm1416, %v1349
      %1432 = vst.msk [vmem:[#allocation3 + $0x3c] sm:$0xf] %vm1416, %v1351
      %1433 = vst.msk [vmem:[#allocation3 + $0x40] sm:$0xf] %vm1416, %v1353
      %1434 = vst.msk [vmem:[#allocation3 + $0x44] sm:$0xf] %vm1416, %v1355
      %1435 = vst.msk [vmem:[#allocation3 + $0x48] sm:$0xf] %vm1416, %v1357
      %1436 = vst.msk [vmem:[#allocation3 + $0x4c] sm:$0xf] %vm1416, %v1359
      %1437 = vst.msk [vmem:[#allocation3 + $0x50] sm:$0xf] %vm1416, %v1361
      %1438 = vst.msk [vmem:[#allocation3 + $0x54] sm:$0xf] %vm1416, %v1363
      %1439 = vst.msk [vmem:[#allocation3 + $0x58] sm:$0xf] %vm1416, %v1365
      %1440 = vst.msk [vmem:[#allocation3 + $0x5c] sm:$0xf] %vm1416, %v1367
      %1441 = vst.msk [vmem:[#allocation3 + $0x60] sm:$0xf] %vm1416, %v1369
      %1442 = vst.msk [vmem:[#allocation3 + $0x64] sm:$0xf] %vm1416, %v1371
      %1443 = vst.msk [vmem:[#allocation3 + $0x68] sm:$0xf] %vm1416, %v1373
      %1444 = vst.msk [vmem:[#allocation3 + $0x6c] sm:$0xf] %vm1416, %v1375
      %1445 = vst.msk [vmem:[#allocation3 + $0x70] sm:$0xf] %vm1416, %v1377
      %1446 = vst.msk [vmem:[#allocation3 + $0x74] sm:$0xf] %vm1416, %v1379
      %1447 = vst.msk [vmem:[#allocation3 + $0x78] sm:$0xf] %vm1416, %v1381
      %1448 = vst.msk [vmem:[#allocation3 + $0x7c] sm:$0xf] %vm1416, %v1383
      %v1449 = vld [vmem:[%s419 + $0x2] sm:$0xff]
      %v1450 = vld [vmem:[%s419 + $0xa] sm:$0xff]
      %v1451 = vld [vmem:[%s419 + $0x1a] sm:$0xff]
      %v1452 = vld [vmem:[%s419 + $0x22] sm:$0xff]
      %v1453 = vld [vmem:[%s419 + $0x32] sm:$0xff]
      %v1454 = vld [vmem:[%s419 + $0x3a] sm:$0xff]
      %v1455 = vld [vmem:[%s419 + $0x4a] sm:$0xff]
      %v1456 = vld [vmem:[%s419 + $0x52] sm:$0xff]
      %v1457 = vld [vmem:[%s419 + $0x62] sm:$0xff]
      %v1458 = vld [vmem:[%s419 + $0x6a] sm:$0xff]
      %v1459 = vld [vmem:[%s419 + $0x7a] sm:$0xff]
      %v1460 = vld [vmem:[%s419 + $0x82] sm:$0xff]
      %v1461 = vld [vmem:[%s419 + $0x92] sm:$0xff]
      %v1462 = vld [vmem:[%s419 + $0x9a] sm:$0xff]
      %v1463 = vld [vmem:[%s419 + $0xaa] sm:$0xff]
      %v1464 = vld [vmem:[%s419 + $0xb2] sm:$0xff]
      %v1465 = vld [vmem:[%s419 + $0xc2] sm:$0xff]
      %v1466 = vld [vmem:[%s419 + $0xca] sm:$0xff]
      %v1467 = vld [vmem:[%s419 + $0xda] sm:$0xff]
      %v1468 = vld [vmem:[%s419 + $0xe2] sm:$0xff]
      %v1469 = vld [vmem:[%s419 + $0xf2] sm:$0xff]
      %v1470 = vld [vmem:[%s419 + $0xfa] sm:$0xff]
      %v1471 = vld [vmem:[%s419 + $0x10a] sm:$0xff]
      %v1472 = vld [vmem:[%s419 + $0x112] sm:$0xff]
      %v1473 = vld [vmem:[%s419 + $0x122] sm:$0xff]
      %v1474 = vld [vmem:[%s419 + $0x12a] sm:$0xff]
      %v1475 = vld [vmem:[%s419 + $0x13a] sm:$0xff]
      %v1476 = vld [vmem:[%s419 + $0x142] sm:$0xff]
      %v1477 = vld [vmem:[%s419 + $0x152] sm:$0xff]
      %v1478 = vld [vmem:[%s419 + $0x15a] sm:$0xff]
      %v1479 = vld [vmem:[%s419 + $0x16a] sm:$0xff]
      %v1480 = vld [vmem:[%s419 + $0x172] sm:$0xff]
      %v1481 = vpack.c.bf16 %v1449, %v1449
      %v1482 = vpack.c.bf16 %v1450, %v1450
      %v1483 = vpack.c.bf16 %v1451, %v1451
      %v1484 = vpack.c.bf16 %v1452, %v1452
      %v1485 = vpack.c.bf16 %v1453, %v1453
      %v1486 = vpack.c.bf16 %v1454, %v1454
      %v1487 = vpack.c.bf16 %v1455, %v1455
      %v1488 = vpack.c.bf16 %v1456, %v1456
      %v1489 = vpack.c.bf16 %v1457, %v1457
      %v1490 = vpack.c.bf16 %v1458, %v1458
      %v1491 = vpack.c.bf16 %v1459, %v1459
      %v1492 = vpack.c.bf16 %v1460, %v1460
      %v1493 = vpack.c.bf16 %v1461, %v1461
      %v1494 = vpack.c.bf16 %v1462, %v1462
      %v1495 = vpack.c.bf16 %v1463, %v1463
      %v1496 = vpack.c.bf16 %v1464, %v1464
      %v1497 = vpack.c.bf16 %v1465, %v1465
      %v1498 = vpack.c.bf16 %v1466, %v1466
      %v1499 = vpack.c.bf16 %v1467, %v1467
      %v1500 = vpack.c.bf16 %v1468, %v1468
      %v1501 = vpack.c.bf16 %v1469, %v1469
      %v1502 = vpack.c.bf16 %v1470, %v1470
      %v1503 = vpack.c.bf16 %v1471, %v1471
      %v1504 = vpack.c.bf16 %v1472, %v1472
      %v1505 = vpack.c.bf16 %v1473, %v1473
      %v1506 = vpack.c.bf16 %v1474, %v1474
      %v1507 = vpack.c.bf16 %v1475, %v1475
      %v1508 = vpack.c.bf16 %v1476, %v1476
      %v1509 = vpack.c.bf16 %v1477, %v1477
      %v1510 = vpack.c.bf16 %v1478, %v1478
      %v1511 = vpack.c.bf16 %v1479, %v1479
      %v1512 = vpack.c.bf16 %v1480, %v1480
      %1545 = vrot.lane.b32.xlu0 %v1481, 20
      %v1546 = vpop.permute.xlu0 %1545
      %1547 = vrot.lane.b32.xlu0 %v1482, 20
      %v1548 = vpop.permute.xlu0 %1547
      %1549 = vrot.lane.b32.xlu0 %v1483, 20
      %v1550 = vpop.permute.xlu0 %1549
      %1551 = vrot.lane.b32.xlu0 %v1484, 20
      %v1552 = vpop.permute.xlu0 %1551
      %1553 = vrot.lane.b32.xlu0 %v1485, 20
      %v1554 = vpop.permute.xlu0 %1553
      %1555 = vrot.lane.b32.xlu0 %v1486, 20
      %v1556 = vpop.permute.xlu0 %1555
      %1557 = vrot.lane.b32.xlu0 %v1487, 20
      %v1558 = vpop.permute.xlu0 %1557
      %1559 = vrot.lane.b32.xlu0 %v1488, 20
      %v1560 = vpop.permute.xlu0 %1559
      %1561 = vrot.lane.b32.xlu0 %v1489, 20
      %v1562 = vpop.permute.xlu0 %1561
      %1563 = vrot.lane.b32.xlu0 %v1490, 20
      %v1564 = vpop.permute.xlu0 %1563
      %1565 = vrot.lane.b32.xlu0 %v1491, 20
      %v1566 = vpop.permute.xlu0 %1565
      %1567 = vrot.lane.b32.xlu0 %v1492, 20
      %v1568 = vpop.permute.xlu0 %1567
      %1569 = vrot.lane.b32.xlu0 %v1493, 20
      %v1570 = vpop.permute.xlu0 %1569
      %1571 = vrot.lane.b32.xlu0 %v1494, 20
      %v1572 = vpop.permute.xlu0 %1571
      %1573 = vrot.lane.b32.xlu0 %v1495, 20
      %v1574 = vpop.permute.xlu0 %1573
      %1575 = vrot.lane.b32.xlu0 %v1496, 20
      %v1576 = vpop.permute.xlu0 %1575
      %1577 = vrot.lane.b32.xlu0 %v1497, 20
      %v1578 = vpop.permute.xlu0 %1577
      %1579 = vrot.lane.b32.xlu0 %v1498, 20
      %v1580 = vpop.permute.xlu0 %1579
      %1581 = vrot.lane.b32.xlu0 %v1499, 20
      %v1582 = vpop.permute.xlu0 %1581
      %1583 = vrot.lane.b32.xlu0 %v1500, 20
      %v1584 = vpop.permute.xlu0 %1583
      %1585 = vrot.lane.b32.xlu0 %v1501, 20
      %v1586 = vpop.permute.xlu0 %1585
      %1587 = vrot.lane.b32.xlu0 %v1502, 20
      %v1588 = vpop.permute.xlu0 %1587
      %1589 = vrot.lane.b32.xlu0 %v1503, 20
      %v1590 = vpop.permute.xlu0 %1589
      %1591 = vrot.lane.b32.xlu0 %v1504, 20
      %v1592 = vpop.permute.xlu0 %1591
      %1593 = vrot.lane.b32.xlu0 %v1505, 20
      %v1594 = vpop.permute.xlu0 %1593
      %1595 = vrot.lane.b32.xlu0 %v1506, 20
      %v1596 = vpop.permute.xlu0 %1595
      %1597 = vrot.lane.b32.xlu0 %v1507, 20
      %v1598 = vpop.permute.xlu0 %1597
      %1599 = vrot.lane.b32.xlu0 %v1508, 20
      %v1600 = vpop.permute.xlu0 %1599
      %1601 = vrot.lane.b32.xlu0 %v1509, 20
      %v1602 = vpop.permute.xlu0 %1601
      %1603 = vrot.lane.b32.xlu0 %v1510, 20
      %v1604 = vpop.permute.xlu0 %1603
      %1605 = vrot.lane.b32.xlu0 %v1511, 20
      %v1606 = vpop.permute.xlu0 %1605
      %1607 = vrot.lane.b32.xlu0 %v1512, 20
      %v1608 = vpop.permute.xlu0 %1607
      %vm1641 = vcmask 191648
      %1642 = vst.msk [vmem:[#allocation3] sm:$0xf] %vm1641, %v1546
      %1643 = vst.msk [vmem:[#allocation3 + $0x4] sm:$0xf] %vm1641, %v1548
      %1644 = vst.msk [vmem:[#allocation3 + $0x8] sm:$0xf] %vm1641, %v1550
      %1645 = vst.msk [vmem:[#allocation3 + $0xc] sm:$0xf] %vm1641, %v1552
      %1646 = vst.msk [vmem:[#allocation3 + $0x10] sm:$0xf] %vm1641, %v1554
      %1647 = vst.msk [vmem:[#allocation3 + $0x14] sm:$0xf] %vm1641, %v1556
      %1648 = vst.msk [vmem:[#allocation3 + $0x18] sm:$0xf] %vm1641, %v1558
      %1649 = vst.msk [vmem:[#allocation3 + $0x1c] sm:$0xf] %vm1641, %v1560
      %1650 = vst.msk [vmem:[#allocation3 + $0x20] sm:$0xf] %vm1641, %v1562
      %1651 = vst.msk [vmem:[#allocation3 + $0x24] sm:$0xf] %vm1641, %v1564
      %1652 = vst.msk [vmem:[#allocation3 + $0x28] sm:$0xf] %vm1641, %v1566
      %1653 = vst.msk [vmem:[#allocation3 + $0x2c] sm:$0xf] %vm1641, %v1568
      %1654 = vst.msk [vmem:[#allocation3 + $0x30] sm:$0xf] %vm1641, %v1570
      %1655 = vst.msk [vmem:[#allocation3 + $0x34] sm:$0xf] %vm1641, %v1572
      %1656 = vst.msk [vmem:[#allocation3 + $0x38] sm:$0xf] %vm1641, %v1574
      %1657 = vst.msk [vmem:[#allocation3 + $0x3c] sm:$0xf] %vm1641, %v1576
      %1658 = vst.msk [vmem:[#allocation3 + $0x40] sm:$0xf] %vm1641, %v1578
      %1659 = vst.msk [vmem:[#allocation3 + $0x44] sm:$0xf] %vm1641, %v1580
      %1660 = vst.msk [vmem:[#allocation3 + $0x48] sm:$0xf] %vm1641, %v1582
      %1661 = vst.msk [vmem:[#allocation3 + $0x4c] sm:$0xf] %vm1641, %v1584
      %1662 = vst.msk [vmem:[#allocation3 + $0x50] sm:$0xf] %vm1641, %v1586
      %1663 = vst.msk [vmem:[#allocation3 + $0x54] sm:$0xf] %vm1641, %v1588
      %1664 = vst.msk [vmem:[#allocation3 + $0x58] sm:$0xf] %vm1641, %v1590
      %1665 = vst.msk [vmem:[#allocation3 + $0x5c] sm:$0xf] %vm1641, %v1592
      %1666 = vst.msk [vmem:[#allocation3 + $0x60] sm:$0xf] %vm1641, %v1594
      %1667 = vst.msk [vmem:[#allocation3 + $0x64] sm:$0xf] %vm1641, %v1596
      %1668 = vst.msk [vmem:[#allocation3 + $0x68] sm:$0xf] %vm1641, %v1598
      %1669 = vst.msk [vmem:[#allocation3 + $0x6c] sm:$0xf] %vm1641, %v1600
      %1670 = vst.msk [vmem:[#allocation3 + $0x70] sm:$0xf] %vm1641, %v1602
      %1671 = vst.msk [vmem:[#allocation3 + $0x74] sm:$0xf] %vm1641, %v1604
      %1672 = vst.msk [vmem:[#allocation3 + $0x78] sm:$0xf] %vm1641, %v1606
      %1673 = vst.msk [vmem:[#allocation3 + $0x7c] sm:$0xf] %vm1641, %v1608
      %s1674 = scalar_lea.vmem [#allocation2], 48
      %v1675 = vld [vmem:[%s1674] sm:$0xff]
      %v1676 = vld [vmem:[%s1674 + $0x8] sm:$0xff]
      %v1677 = vld [vmem:[%s1674 + $0x18] sm:$0xff]
      %v1678 = vld [vmem:[%s1674 + $0x20] sm:$0xff]
      %v1679 = vld [vmem:[%s1674 + $0x30] sm:$0xff]
      %v1680 = vld [vmem:[%s1674 + $0x38] sm:$0xff]
      %v1681 = vld [vmem:[%s1674 + $0x48] sm:$0xff]
      %v1682 = vld [vmem:[%s1674 + $0x50] sm:$0xff]
      %v1683 = vld [vmem:[%s1674 + $0x60] sm:$0xff]
      %v1684 = vld [vmem:[%s1674 + $0x68] sm:$0xff]
      %v1685 = vld [vmem:[%s1674 + $0x78] sm:$0xff]
      %v1686 = vld [vmem:[%s1674 + $0x80] sm:$0xff]
      %v1687 = vld [vmem:[%s1674 + $0x90] sm:$0xff]
      %v1688 = vld [vmem:[%s1674 + $0x98] sm:$0xff]
      %v1689 = vld [vmem:[%s1674 + $0xa8] sm:$0xff]
      %v1690 = vld [vmem:[%s1674 + $0xb0] sm:$0xff]
      %v1691 = vld [vmem:[%s1674 + $0xc0] sm:$0xff]
      %v1692 = vld [vmem:[%s1674 + $0xc8] sm:$0xff]
      %v1693 = vld [vmem:[%s1674 + $0xd8] sm:$0xff]
      %v1694 = vld [vmem:[%s1674 + $0xe0] sm:$0xff]
      %v1695 = vld [vmem:[%s1674 + $0xf0] sm:$0xff]
      %v1696 = vld [vmem:[%s1674 + $0xf8] sm:$0xff]
      %v1697 = vld [vmem:[%s1674 + $0x108] sm:$0xff]
      %v1698 = vld [vmem:[%s1674 + $0x110] sm:$0xff]
      %v1699 = vld [vmem:[%s1674 + $0x120] sm:$0xff]
      %v1700 = vld [vmem:[%s1674 + $0x128] sm:$0xff]
      %v1701 = vld [vmem:[%s1674 + $0x138] sm:$0xff]
      %v1702 = vld [vmem:[%s1674 + $0x140] sm:$0xff]
      %v1703 = vld [vmem:[%s1674 + $0x150] sm:$0xff]
      %v1704 = vld [vmem:[%s1674 + $0x158] sm:$0xff]
      %v1705 = vld [vmem:[%s1674 + $0x168] sm:$0xff]
      %v1706 = vld [vmem:[%s1674 + $0x170] sm:$0xff]
      %v1707 = vpack.c.bf16 %v1675, %v1675
      %v1708 = vpack.c.bf16 %v1676, %v1676
      %v1709 = vpack.c.bf16 %v1677, %v1677
      %v1710 = vpack.c.bf16 %v1678, %v1678
      %v1711 = vpack.c.bf16 %v1679, %v1679
      %v1712 = vpack.c.bf16 %v1680, %v1680
      %v1713 = vpack.c.bf16 %v1681, %v1681
      %v1714 = vpack.c.bf16 %v1682, %v1682
      %v1715 = vpack.c.bf16 %v1683, %v1683
      %v1716 = vpack.c.bf16 %v1684, %v1684
      %v1717 = vpack.c.bf16 %v1685, %v1685
      %v1718 = vpack.c.bf16 %v1686, %v1686
      %v1719 = vpack.c.bf16 %v1687, %v1687
      %v1720 = vpack.c.bf16 %v1688, %v1688
      %v1721 = vpack.c.bf16 %v1689, %v1689
      %v1722 = vpack.c.bf16 %v1690, %v1690
      %v1723 = vpack.c.bf16 %v1691, %v1691
      %v1724 = vpack.c.bf16 %v1692, %v1692
      %v1725 = vpack.c.bf16 %v1693, %v1693
      %v1726 = vpack.c.bf16 %v1694, %v1694
      %v1727 = vpack.c.bf16 %v1695, %v1695
      %v1728 = vpack.c.bf16 %v1696, %v1696
      %v1729 = vpack.c.bf16 %v1697, %v1697
      %v1730 = vpack.c.bf16 %v1698, %v1698
      %v1731 = vpack.c.bf16 %v1699, %v1699
      %v1732 = vpack.c.bf16 %v1700, %v1700
      %v1733 = vpack.c.bf16 %v1701, %v1701
      %v1734 = vpack.c.bf16 %v1702, %v1702
      %v1735 = vpack.c.bf16 %v1703, %v1703
      %v1736 = vpack.c.bf16 %v1704, %v1704
      %v1737 = vpack.c.bf16 %v1705, %v1705
      %v1738 = vpack.c.bf16 %v1706, %v1706
      %1771 = vrot.lane.b32.xlu0 %v1707, 24
      %v1772 = vpop.permute.xlu0 %1771
      %1773 = vrot.lane.b32.xlu0 %v1708, 24
      %v1774 = vpop.permute.xlu0 %1773
      %1775 = vrot.lane.b32.xlu0 %v1709, 24
      %v1776 = vpop.permute.xlu0 %1775
      %1777 = vrot.lane.b32.xlu0 %v1710, 24
      %v1778 = vpop.permute.xlu0 %1777
      %1779 = vrot.lane.b32.xlu0 %v1711, 24
      %v1780 = vpop.permute.xlu0 %1779
      %1781 = vrot.lane.b32.xlu0 %v1712, 24
      %v1782 = vpop.permute.xlu0 %1781
      %1783 = vrot.lane.b32.xlu0 %v1713, 24
      %v1784 = vpop.permute.xlu0 %1783
      %1785 = vrot.lane.b32.xlu0 %v1714, 24
      %v1786 = vpop.permute.xlu0 %1785
      %1787 = vrot.lane.b32.xlu0 %v1715, 24
      %v1788 = vpop.permute.xlu0 %1787
      %1789 = vrot.lane.b32.xlu0 %v1716, 24
      %v1790 = vpop.permute.xlu0 %1789
      %1791 = vrot.lane.b32.xlu0 %v1717, 24
      %v1792 = vpop.permute.xlu0 %1791
      %1793 = vrot.lane.b32.xlu0 %v1718, 24
      %v1794 = vpop.permute.xlu0 %1793
      %1795 = vrot.lane.b32.xlu0 %v1719, 24
      %v1796 = vpop.permute.xlu0 %1795
      %1797 = vrot.lane.b32.xlu0 %v1720, 24
      %v1798 = vpop.permute.xlu0 %1797
      %1799 = vrot.lane.b32.xlu0 %v1721, 24
      %v1800 = vpop.permute.xlu0 %1799
      %1801 = vrot.lane.b32.xlu0 %v1722, 24
      %v1802 = vpop.permute.xlu0 %1801
      %1803 = vrot.lane.b32.xlu0 %v1723, 24
      %v1804 = vpop.permute.xlu0 %1803
      %1805 = vrot.lane.b32.xlu0 %v1724, 24
      %v1806 = vpop.permute.xlu0 %1805
      %1807 = vrot.lane.b32.xlu0 %v1725, 24
      %v1808 = vpop.permute.xlu0 %1807
      %1809 = vrot.lane.b32.xlu0 %v1726, 24
      %v1810 = vpop.permute.xlu0 %1809
      %1811 = vrot.lane.b32.xlu0 %v1727, 24
      %v1812 = vpop.permute.xlu0 %1811
      %1813 = vrot.lane.b32.xlu0 %v1728, 24
      %v1814 = vpop.permute.xlu0 %1813
      %1815 = vrot.lane.b32.xlu0 %v1729, 24
      %v1816 = vpop.permute.xlu0 %1815
      %1817 = vrot.lane.b32.xlu0 %v1730, 24
      %v1818 = vpop.permute.xlu0 %1817
      %1819 = vrot.lane.b32.xlu0 %v1731, 24
      %v1820 = vpop.permute.xlu0 %1819
      %1821 = vrot.lane.b32.xlu0 %v1732, 24
      %v1822 = vpop.permute.xlu0 %1821
      %1823 = vrot.lane.b32.xlu0 %v1733, 24
      %v1824 = vpop.permute.xlu0 %1823
      %1825 = vrot.lane.b32.xlu0 %v1734, 24
      %v1826 = vpop.permute.xlu0 %1825
      %1827 = vrot.lane.b32.xlu0 %v1735, 24
      %v1828 = vpop.permute.xlu0 %1827
      %1829 = vrot.lane.b32.xlu0 %v1736, 24
      %v1830 = vpop.permute.xlu0 %1829
      %1831 = vrot.lane.b32.xlu0 %v1737, 24
      %v1832 = vpop.permute.xlu0 %1831
      %1833 = vrot.lane.b32.xlu0 %v1738, 24
      %v1834 = vpop.permute.xlu0 %1833
      %vm1867 = vcmask 224448
      %1868 = vst.msk [vmem:[#allocation3] sm:$0xf] %vm1867, %v1772
      %1869 = vst.msk [vmem:[#allocation3 + $0x4] sm:$0xf] %vm1867, %v1774
      %1870 = vst.msk [vmem:[#allocation3 + $0x8] sm:$0xf] %vm1867, %v1776
      %1871 = vst.msk [vmem:[#allocation3 + $0xc] sm:$0xf] %vm1867, %v1778
      %1872 = vst.msk [vmem:[#allocation3 + $0x10] sm:$0xf] %vm1867, %v1780
      %1873 = vst.msk [vmem:[#allocation3 + $0x14] sm:$0xf] %vm1867, %v1782
      %1874 = vst.msk [vmem:[#allocation3 + $0x18] sm:$0xf] %vm1867, %v1784
      %1875 = vst.msk [vmem:[#allocation3 + $0x1c] sm:$0xf] %vm1867, %v1786
      %1876 = vst.msk [vmem:[#allocation3 + $0x20] sm:$0xf] %vm1867, %v1788
      %1877 = vst.msk [vmem:[#allocation3 + $0x24] sm:$0xf] %vm1867, %v1790
      %1878 = vst.msk [vmem:[#allocation3 + $0x28] sm:$0xf] %vm1867, %v1792
      %1879 = vst.msk [vmem:[#allocation3 + $0x2c] sm:$0xf] %vm1867, %v1794
      %1880 = vst.msk [vmem:[#allocation3 + $0x30] sm:$0xf] %vm1867, %v1796
      %1881 = vst.msk [vmem:[#allocation3 + $0x34] sm:$0xf] %vm1867, %v1798
      %1882 = vst.msk [vmem:[#allocation3 + $0x38] sm:$0xf] %vm1867, %v1800
      %1883 = vst.msk [vmem:[#allocation3 + $0x3c] sm:$0xf] %vm1867, %v1802
      %1884 = vst.msk [vmem:[#allocation3 + $0x40] sm:$0xf] %vm1867, %v1804
      %1885 = vst.msk [vmem:[#allocation3 + $0x44] sm:$0xf] %vm1867, %v1806
      %1886 = vst.msk [vmem:[#allocation3 + $0x48] sm:$0xf] %vm1867, %v1808
      %1887 = vst.msk [vmem:[#allocation3 + $0x4c] sm:$0xf] %vm1867, %v1810
      %1888 = vst.msk [vmem:[#allocation3 + $0x50] sm:$0xf] %vm1867, %v1812
      %1889 = vst.msk [vmem:[#allocation3 + $0x54] sm:$0xf] %vm1867, %v1814
      %1890 = vst.msk [vmem:[#allocation3 + $0x58] sm:$0xf] %vm1867, %v1816
      %1891 = vst.msk [vmem:[#allocation3 + $0x5c] sm:$0xf] %vm1867, %v1818
      %1892 = vst.msk [vmem:[#allocation3 + $0x60] sm:$0xf] %vm1867, %v1820
      %1893 = vst.msk [vmem:[#allocation3 + $0x64] sm:$0xf] %vm1867, %v1822
      %1894 = vst.msk [vmem:[#allocation3 + $0x68] sm:$0xf] %vm1867, %v1824
      %1895 = vst.msk [vmem:[#allocation3 + $0x6c] sm:$0xf] %vm1867, %v1826
      %1896 = vst.msk [vmem:[#allocation3 + $0x70] sm:$0xf] %vm1867, %v1828
      %1897 = vst.msk [vmem:[#allocation3 + $0x74] sm:$0xf] %vm1867, %v1830
      %1898 = vst.msk [vmem:[#allocation3 + $0x78] sm:$0xf] %vm1867, %v1832
      %1899 = vst.msk [vmem:[#allocation3 + $0x7c] sm:$0xf] %vm1867, %v1834
      %v1900 = vld [vmem:[%s1674 + $0x1] sm:$0xff]
      %v1901 = vld [vmem:[%s1674 + $0x9] sm:$0xff]
      %v1902 = vld [vmem:[%s1674 + $0x19] sm:$0xff]
      %v1903 = vld [vmem:[%s1674 + $0x21] sm:$0xff]
      %v1904 = vld [vmem:[%s1674 + $0x31] sm:$0xff]
      %v1905 = vld [vmem:[%s1674 + $0x39] sm:$0xff]
      %v1906 = vld [vmem:[%s1674 + $0x49] sm:$0xff]
      %v1907 = vld [vmem:[%s1674 + $0x51] sm:$0xff]
      %v1908 = vld [vmem:[%s1674 + $0x61] sm:$0xff]
      %v1909 = vld [vmem:[%s1674 + $0x69] sm:$0xff]
      %v1910 = vld [vmem:[%s1674 + $0x79] sm:$0xff]
      %v1911 = vld [vmem:[%s1674 + $0x81] sm:$0xff]
      %v1912 = vld [vmem:[%s1674 + $0x91] sm:$0xff]
      %v1913 = vld [vmem:[%s1674 + $0x99] sm:$0xff]
      %v1914 = vld [vmem:[%s1674 + $0xa9] sm:$0xff]
      %v1915 = vld [vmem:[%s1674 + $0xb1] sm:$0xff]
      %v1916 = vld [vmem:[%s1674 + $0xc1] sm:$0xff]
      %v1917 = vld [vmem:[%s1674 + $0xc9] sm:$0xff]
      %v1918 = vld [vmem:[%s1674 + $0xd9] sm:$0xff]
      %v1919 = vld [vmem:[%s1674 + $0xe1] sm:$0xff]
      %v1920 = vld [vmem:[%s1674 + $0xf1] sm:$0xff]
      %v1921 = vld [vmem:[%s1674 + $0xf9] sm:$0xff]
      %v1922 = vld [vmem:[%s1674 + $0x109] sm:$0xff]
      %v1923 = vld [vmem:[%s1674 + $0x111] sm:$0xff]
      %v1924 = vld [vmem:[%s1674 + $0x121] sm:$0xff]
      %v1925 = vld [vmem:[%s1674 + $0x129] sm:$0xff]
      %v1926 = vld [vmem:[%s1674 + $0x139] sm:$0xff]
      %v1927 = vld [vmem:[%s1674 + $0x141] sm:$0xff]
      %v1928 = vld [vmem:[%s1674 + $0x151] sm:$0xff]
      %v1929 = vld [vmem:[%s1674 + $0x159] sm:$0xff]
      %v1930 = vld [vmem:[%s1674 + $0x169] sm:$0xff]
      %v1931 = vld [vmem:[%s1674 + $0x171] sm:$0xff]
      %v1932 = vpack.c.bf16 %v1900, %v1900
      %v1933 = vpack.c.bf16 %v1901, %v1901
      %v1934 = vpack.c.bf16 %v1902, %v1902
      %v1935 = vpack.c.bf16 %v1903, %v1903
      %v1936 = vpack.c.bf16 %v1904, %v1904
      %v1937 = vpack.c.bf16 %v1905, %v1905
      %v1938 = vpack.c.bf16 %v1906, %v1906
      %v1939 = vpack.c.bf16 %v1907, %v1907
      %v1940 = vpack.c.bf16 %v1908, %v1908
      %v1941 = vpack.c.bf16 %v1909, %v1909
      %v1942 = vpack.c.bf16 %v1910, %v1910
      %v1943 = vpack.c.bf16 %v1911, %v1911
      %v1944 = vpack.c.bf16 %v1912, %v1912
      %v1945 = vpack.c.bf16 %v1913, %v1913
      %v1946 = vpack.c.bf16 %v1914, %v1914
      %v1947 = vpack.c.bf16 %v1915, %v1915
      %v1948 = vpack.c.bf16 %v1916, %v1916
      %v1949 = vpack.c.bf16 %v1917, %v1917
      %v1950 = vpack.c.bf16 %v1918, %v1918
      %v1951 = vpack.c.bf16 %v1919, %v1919
      %v1952 = vpack.c.bf16 %v1920, %v1920
      %v1953 = vpack.c.bf16 %v1921, %v1921
      %v1954 = vpack.c.bf16 %v1922, %v1922
      %v1955 = vpack.c.bf16 %v1923, %v1923
      %v1956 = vpack.c.bf16 %v1924, %v1924
      %v1957 = vpack.c.bf16 %v1925, %v1925
      %v1958 = vpack.c.bf16 %v1926, %v1926
      %v1959 = vpack.c.bf16 %v1927, %v1927
      %v1960 = vpack.c.bf16 %v1928, %v1928
      %v1961 = vpack.c.bf16 %v1929, %v1929
      %v1962 = vpack.c.bf16 %v1930, %v1930
      %v1963 = vpack.c.bf16 %v1931, %v1931
      %1996 = vrot.lane.b32.xlu0 %v1932, 28
      %v1997 = vpop.permute.xlu0 %1996
      %1998 = vrot.lane.b32.xlu0 %v1933, 28
      %v1999 = vpop.permute.xlu0 %1998
      %2000 = vrot.lane.b32.xlu0 %v1934, 28
      %v2001 = vpop.permute.xlu0 %2000
      %2002 = vrot.lane.b32.xlu0 %v1935, 28
      %v2003 = vpop.permute.xlu0 %2002
      %2004 = vrot.lane.b32.xlu0 %v1936, 28
      %v2005 = vpop.permute.xlu0 %2004
      %2006 = vrot.lane.b32.xlu0 %v1937, 28
      %v2007 = vpop.permute.xlu0 %2006
      %2008 = vrot.lane.b32.xlu0 %v1938, 28
      %v2009 = vpop.permute.xlu0 %2008
      %2010 = vrot.lane.b32.xlu0 %v1939, 28
      %v2011 = vpop.permute.xlu0 %2010
      %2012 = vrot.lane.b32.xlu0 %v1940, 28
      %v2013 = vpop.permute.xlu0 %2012
      %2014 = vrot.lane.b32.xlu0 %v1941, 28
      %v2015 = vpop.permute.xlu0 %2014
      %2016 = vrot.lane.b32.xlu0 %v1942, 28
      %v2017 = vpop.permute.xlu0 %2016
      %2018 = vrot.lane.b32.xlu0 %v1943, 28
      %v2019 = vpop.permute.xlu0 %2018
      %2020 = vrot.lane.b32.xlu0 %v1944, 28
      %v2021 = vpop.permute.xlu0 %2020
      %2022 = vrot.lane.b32.xlu0 %v1945, 28
      %v2023 = vpop.permute.xlu0 %2022
      %2024 = vrot.lane.b32.xlu0 %v1946, 28
      %v2025 = vpop.permute.xlu0 %2024
      %2026 = vrot.lane.b32.xlu0 %v1947, 28
      %v2027 = vpop.permute.xlu0 %2026
      %2028 = vrot.lane.b32.xlu0 %v1948, 28
      %v2029 = vpop.permute.xlu0 %2028
      %2030 = vrot.lane.b32.xlu0 %v1949, 28
      %v2031 = vpop.permute.xlu0 %2030
      %2032 = vrot.lane.b32.xlu0 %v1950, 28
      %v2033 = vpop.permute.xlu0 %2032
      %2034 = vrot.lane.b32.xlu0 %v1951, 28
      %v2035 = vpop.permute.xlu0 %2034
      %2036 = vrot.lane.b32.xlu0 %v1952, 28
      %v2037 = vpop.permute.xlu0 %2036
      %2038 = vrot.lane.b32.xlu0 %v1953, 28
      %v2039 = vpop.permute.xlu0 %2038
      %2040 = vrot.lane.b32.xlu0 %v1954, 28
      %v2041 = vpop.permute.xlu0 %2040
      %2042 = vrot.lane.b32.xlu0 %v1955, 28
      %v2043 = vpop.permute.xlu0 %2042
      %2044 = vrot.lane.b32.xlu0 %v1956, 28
      %v2045 = vpop.permute.xlu0 %2044
      %2046 = vrot.lane.b32.xlu0 %v1957, 28
      %v2047 = vpop.permute.xlu0 %2046
      %2048 = vrot.lane.b32.xlu0 %v1958, 28
      %v2049 = vpop.permute.xlu0 %2048
      %2050 = vrot.lane.b32.xlu0 %v1959, 28
      %v2051 = vpop.permute.xlu0 %2050
      %2052 = vrot.lane.b32.xlu0 %v1960, 28
      %v2053 = vpop.permute.xlu0 %2052
      %2054 = vrot.lane.b32.xlu0 %v1961, 28
      %v2055 = vpop.permute.xlu0 %2054
      %2056 = vrot.lane.b32.xlu0 %v1962, 28
      %v2057 = vpop.permute.xlu0 %2056
      %2058 = vrot.lane.b32.xlu0 %v1963, 28
      %v2059 = vpop.permute.xlu0 %2058
      %vm2092 = vcmask 257248
      %2093 = vst.msk [vmem:[#allocation3] sm:$0xf] %vm2092, %v1997
      %2094 = vst.msk [vmem:[#allocation3 + $0x4] sm:$0xf] %vm2092, %v1999
      %2095 = vst.msk [vmem:[#allocation3 + $0x8] sm:$0xf] %vm2092, %v2001
      %2096 = vst.msk [vmem:[#allocation3 + $0xc] sm:$0xf] %vm2092, %v2003
      %2097 = vst.msk [vmem:[#allocation3 + $0x10] sm:$0xf] %vm2092, %v2005
      %2098 = vst.msk [vmem:[#allocation3 + $0x14] sm:$0xf] %vm2092, %v2007
      %2099 = vst.msk [vmem:[#allocation3 + $0x18] sm:$0xf] %vm2092, %v2009
      %2100 = vst.msk [vmem:[#allocation3 + $0x1c] sm:$0xf] %vm2092, %v2011
      %2101 = vst.msk [vmem:[#allocation3 + $0x20] sm:$0xf] %vm2092, %v2013
      %2102 = vst.msk [vmem:[#allocation3 + $0x24] sm:$0xf] %vm2092, %v2015
      %2103 = vst.msk [vmem:[#allocation3 + $0x28] sm:$0xf] %vm2092, %v2017
      %2104 = vst.msk [vmem:[#allocation3 + $0x2c] sm:$0xf] %vm2092, %v2019
      %2105 = vst.msk [vmem:[#allocation3 + $0x30] sm:$0xf] %vm2092, %v2021
      %2106 = vst.msk [vmem:[#allocation3 + $0x34] sm:$0xf] %vm2092, %v2023
      %2107 = vst.msk [vmem:[#allocation3 + $0x38] sm:$0xf] %vm2092, %v2025
      %2108 = vst.msk [vmem:[#allocation3 + $0x3c] sm:$0xf] %vm2092, %v2027
      %2109 = vst.msk [vmem:[#allocation3 + $0x40] sm:$0xf] %vm2092, %v2029
      %2110 = vst.msk [vmem:[#allocation3 + $0x44] sm:$0xf] %vm2092, %v2031
      %2111 = vst.msk [vmem:[#allocation3 + $0x48] sm:$0xf] %vm2092, %v2033
      %2112 = vst.msk [vmem:[#allocation3 + $0x4c] sm:$0xf] %vm2092, %v2035
      %2113 = vst.msk [vmem:[#allocation3 + $0x50] sm:$0xf] %vm2092, %v2037
      %2114 = vst.msk [vmem:[#allocation3 + $0x54] sm:$0xf] %vm2092, %v2039
      %2115 = vst.msk [vmem:[#allocation3 + $0x58] sm:$0xf] %vm2092, %v2041
      %2116 = vst.msk [vmem:[#allocation3 + $0x5c] sm:$0xf] %vm2092, %v2043
      %2117 = vst.msk [vmem:[#allocation3 + $0x60] sm:$0xf] %vm2092, %v2045
      %2118 = vst.msk [vmem:[#allocation3 + $0x64] sm:$0xf] %vm2092, %v2047
      %2119 = vst.msk [vmem:[#allocation3 + $0x68] sm:$0xf] %vm2092, %v2049
      %2120 = vst.msk [vmem:[#allocation3 + $0x6c] sm:$0xf] %vm2092, %v2051
      %2121 = vst.msk [vmem:[#allocation3 + $0x70] sm:$0xf] %vm2092, %v2053
      %2122 = vst.msk [vmem:[#allocation3 + $0x74] sm:$0xf] %vm2092, %v2055
      %2123 = vst.msk [vmem:[#allocation3 + $0x78] sm:$0xf] %vm2092, %v2057
      %2124 = vst.msk [vmem:[#allocation3 + $0x7c] sm:$0xf] %vm2092, %v2059
      %v2125 = vld [vmem:[%s1674 + $0x2] sm:$0xff]
      %v2126 = vld [vmem:[%s1674 + $0xa] sm:$0xff]
      %v2127 = vld [vmem:[%s1674 + $0x1a] sm:$0xff]
      %v2128 = vld [vmem:[%s1674 + $0x22] sm:$0xff]
      %v2129 = vld [vmem:[%s1674 + $0x32] sm:$0xff]
      %v2130 = vld [vmem:[%s1674 + $0x3a] sm:$0xff]
      %v2131 = vld [vmem:[%s1674 + $0x4a] sm:$0xff]
      %v2132 = vld [vmem:[%s1674 + $0x52] sm:$0xff]
      %v2133 = vld [vmem:[%s1674 + $0x62] sm:$0xff]
      %v2134 = vld [vmem:[%s1674 + $0x6a] sm:$0xff]
      %v2135 = vld [vmem:[%s1674 + $0x7a] sm:$0xff]
      %v2136 = vld [vmem:[%s1674 + $0x82] sm:$0xff]
      %v2137 = vld [vmem:[%s1674 + $0x92] sm:$0xff]
      %v2138 = vld [vmem:[%s1674 + $0x9a] sm:$0xff]
      %v2139 = vld [vmem:[%s1674 + $0xaa] sm:$0xff]
      %v2140 = vld [vmem:[%s1674 + $0xb2] sm:$0xff]
      %v2141 = vld [vmem:[%s1674 + $0xc2] sm:$0xff]
      %v2142 = vld [vmem:[%s1674 + $0xca] sm:$0xff]
      %v2143 = vld [vmem:[%s1674 + $0xda] sm:$0xff]
      %v2144 = vld [vmem:[%s1674 + $0xe2] sm:$0xff]
      %v2145 = vld [vmem:[%s1674 + $0xf2] sm:$0xff]
      %v2146 = vld [vmem:[%s1674 + $0xfa] sm:$0xff]
      %v2147 = vld [vmem:[%s1674 + $0x10a] sm:$0xff]
      %v2148 = vld [vmem:[%s1674 + $0x112] sm:$0xff]
      %v2149 = vld [vmem:[%s1674 + $0x122] sm:$0xff]
      %v2150 = vld [vmem:[%s1674 + $0x12a] sm:$0xff]
      %v2151 = vld [vmem:[%s1674 + $0x13a] sm:$0xff]
      %v2152 = vld [vmem:[%s1674 + $0x142] sm:$0xff]
      %v2153 = vld [vmem:[%s1674 + $0x152] sm:$0xff]
      %v2154 = vld [vmem:[%s1674 + $0x15a] sm:$0xff]
      %v2155 = vld [vmem:[%s1674 + $0x16a] sm:$0xff]
      %v2156 = vld [vmem:[%s1674 + $0x172] sm:$0xff]
      %v2157 = vpack.c.bf16 %v2125, %v2125
      %v2158 = vpack.c.bf16 %v2126, %v2126
      %v2159 = vpack.c.bf16 %v2127, %v2127
      %v2160 = vpack.c.bf16 %v2128, %v2128
      %v2161 = vpack.c.bf16 %v2129, %v2129
      %v2162 = vpack.c.bf16 %v2130, %v2130
      %v2163 = vpack.c.bf16 %v2131, %v2131
      %v2164 = vpack.c.bf16 %v2132, %v2132
      %v2165 = vpack.c.bf16 %v2133, %v2133
      %v2166 = vpack.c.bf16 %v2134, %v2134
      %v2167 = vpack.c.bf16 %v2135, %v2135
      %v2168 = vpack.c.bf16 %v2136, %v2136
      %v2169 = vpack.c.bf16 %v2137, %v2137
      %v2170 = vpack.c.bf16 %v2138, %v2138
      %v2171 = vpack.c.bf16 %v2139, %v2139
      %v2172 = vpack.c.bf16 %v2140, %v2140
      %v2173 = vpack.c.bf16 %v2141, %v2141
      %v2174 = vpack.c.bf16 %v2142, %v2142
      %v2175 = vpack.c.bf16 %v2143, %v2143
      %v2176 = vpack.c.bf16 %v2144, %v2144
      %v2177 = vpack.c.bf16 %v2145, %v2145
      %v2178 = vpack.c.bf16 %v2146, %v2146
      %v2179 = vpack.c.bf16 %v2147, %v2147
      %v2180 = vpack.c.bf16 %v2148, %v2148
      %v2181 = vpack.c.bf16 %v2149, %v2149
      %v2182 = vpack.c.bf16 %v2150, %v2150
      %v2183 = vpack.c.bf16 %v2151, %v2151
      %v2184 = vpack.c.bf16 %v2152, %v2152
      %v2185 = vpack.c.bf16 %v2153, %v2153
      %v2186 = vpack.c.bf16 %v2154, %v2154
      %v2187 = vpack.c.bf16 %v2155, %v2155
      %v2188 = vpack.c.bf16 %v2156, %v2156
      %2221 = vrot.lane.b32.xlu0 %v2157, 32
      %v2222 = vpop.permute.xlu0 %2221
      %2223 = vrot.lane.b32.xlu0 %v2158, 32
      %v2224 = vpop.permute.xlu0 %2223
      %2225 = vrot.lane.b32.xlu0 %v2159, 32
      %v2226 = vpop.permute.xlu0 %2225
      %2227 = vrot.lane.b32.xlu0 %v2160, 32
      %v2228 = vpop.permute.xlu0 %2227
      %2229 = vrot.lane.b32.xlu0 %v2161, 32
      %v2230 = vpop.permute.xlu0 %2229
      %2231 = vrot.lane.b32.xlu0 %v2162, 32
      %v2232 = vpop.permute.xlu0 %2231
      %2233 = vrot.lane.b32.xlu0 %v2163, 32
      %v2234 = vpop.permute.xlu0 %2233
      %2235 = vrot.lane.b32.xlu0 %v2164, 32
      %v2236 = vpop.permute.xlu0 %2235
      %2237 = vrot.lane.b32.xlu0 %v2165, 32
      %v2238 = vpop.permute.xlu0 %2237
      %2239 = vrot.lane.b32.xlu0 %v2166, 32
      %v2240 = vpop.permute.xlu0 %2239
      %2241 = vrot.lane.b32.xlu0 %v2167, 32
      %v2242 = vpop.permute.xlu0 %2241
      %2243 = vrot.lane.b32.xlu0 %v2168, 32
      %v2244 = vpop.permute.xlu0 %2243
      %2245 = vrot.lane.b32.xlu0 %v2169, 32
      %v2246 = vpop.permute.xlu0 %2245
      %2247 = vrot.lane.b32.xlu0 %v2170, 32
      %v2248 = vpop.permute.xlu0 %2247
      %2249 = vrot.lane.b32.xlu0 %v2171, 32
      %v2250 = vpop.permute.xlu0 %2249
      %2251 = vrot.lane.b32.xlu0 %v2172, 32
      %v2252 = vpop.permute.xlu0 %2251
      %2253 = vrot.lane.b32.xlu0 %v2173, 32
      %v2254 = vpop.permute.xlu0 %2253
      %2255 = vrot.lane.b32.xlu0 %v2174, 32
      %v2256 = vpop.permute.xlu0 %2255
      %2257 = vrot.lane.b32.xlu0 %v2175, 32
      %v2258 = vpop.permute.xlu0 %2257
      %2259 = vrot.lane.b32.xlu0 %v2176, 32
      %v2260 = vpop.permute.xlu0 %2259
      %2261 = vrot.lane.b32.xlu0 %v2177, 32
      %v2262 = vpop.permute.xlu0 %2261
      %2263 = vrot.lane.b32.xlu0 %v2178, 32
      %v2264 = vpop.permute.xlu0 %2263
      %2265 = vrot.lane.b32.xlu0 %v2179, 32
      %v2266 = vpop.permute.xlu0 %2265
      %2267 = vrot.lane.b32.xlu0 %v2180, 32
      %v2268 = vpop.permute.xlu0 %2267
      %2269 = vrot.lane.b32.xlu0 %v2181, 32
      %v2270 = vpop.permute.xlu0 %2269
      %2271 = vrot.lane.b32.xlu0 %v2182, 32
      %v2272 = vpop.permute.xlu0 %2271
      %2273 = vrot.lane.b32.xlu0 %v2183, 32
      %v2274 = vpop.permute.xlu0 %2273
      %2275 = vrot.lane.b32.xlu0 %v2184, 32
      %v2276 = vpop.permute.xlu0 %2275
      %2277 = vrot.lane.b32.xlu0 %v2185, 32
      %v2278 = vpop.permute.xlu0 %2277
      %2279 = vrot.lane.b32.xlu0 %v2186, 32
      %v2280 = vpop.permute.xlu0 %2279
      %2281 = vrot.lane.b32.xlu0 %v2187, 32
      %v2282 = vpop.permute.xlu0 %2281
      %2283 = vrot.lane.b32.xlu0 %v2188, 32
      %v2284 = vpop.permute.xlu0 %2283
      %vm2317 = vcmask 290048
      %2318 = vst.msk [vmem:[#allocation3] sm:$0xf] %vm2317, %v2222
      %2319 = vst.msk [vmem:[#allocation3 + $0x4] sm:$0xf] %vm2317, %v2224
      %2320 = vst.msk [vmem:[#allocation3 + $0x8] sm:$0xf] %vm2317, %v2226
      %2321 = vst.msk [vmem:[#allocation3 + $0xc] sm:$0xf] %vm2317, %v2228
      %2322 = vst.msk [vmem:[#allocation3 + $0x10] sm:$0xf] %vm2317, %v2230
      %2323 = vst.msk [vmem:[#allocation3 + $0x14] sm:$0xf] %vm2317, %v2232
      %2324 = vst.msk [vmem:[#allocation3 + $0x18] sm:$0xf] %vm2317, %v2234
      %2325 = vst.msk [vmem:[#allocation3 + $0x1c] sm:$0xf] %vm2317, %v2236
      %2326 = vst.msk [vmem:[#allocation3 + $0x20] sm:$0xf] %vm2317, %v2238
      %2327 = vst.msk [vmem:[#allocation3 + $0x24] sm:$0xf] %vm2317, %v2240
      %2328 = vst.msk [vmem:[#allocation3 + $0x28] sm:$0xf] %vm2317, %v2242
      %2329 = vst.msk [vmem:[#allocation3 + $0x2c] sm:$0xf] %vm2317, %v2244
      %2330 = vst.msk [vmem:[#allocation3 + $0x30] sm:$0xf] %vm2317, %v2246
      %2331 = vst.msk [vmem:[#allocation3 + $0x34] sm:$0xf] %vm2317, %v2248
      %2332 = vst.msk [vmem:[#allocation3 + $0x38] sm:$0xf] %vm2317, %v2250
      %2333 = vst.msk [vmem:[#allocation3 + $0x3c] sm:$0xf] %vm2317, %v2252
      %2334 = vst.msk [vmem:[#allocation3 + $0x40] sm:$0xf] %vm2317, %v2254
      %2335 = vst.msk [vmem:[#allocation3 + $0x44] sm:$0xf] %vm2317, %v2256
      %2336 = vst.msk [vmem:[#allocation3 + $0x48] sm:$0xf] %vm2317, %v2258
      %2337 = vst.msk [vmem:[#allocation3 + $0x4c] sm:$0xf] %vm2317, %v2260
      %2338 = vst.msk [vmem:[#allocation3 + $0x50] sm:$0xf] %vm2317, %v2262
      %2339 = vst.msk [vmem:[#allocation3 + $0x54] sm:$0xf] %vm2317, %v2264
      %2340 = vst.msk [vmem:[#allocation3 + $0x58] sm:$0xf] %vm2317, %v2266
      %2341 = vst.msk [vmem:[#allocation3 + $0x5c] sm:$0xf] %vm2317, %v2268
      %2342 = vst.msk [vmem:[#allocation3 + $0x60] sm:$0xf] %vm2317, %v2270
      %2343 = vst.msk [vmem:[#allocation3 + $0x64] sm:$0xf] %vm2317, %v2272
      %2344 = vst.msk [vmem:[#allocation3 + $0x68] sm:$0xf] %vm2317, %v2274
      %2345 = vst.msk [vmem:[#allocation3 + $0x6c] sm:$0xf] %vm2317, %v2276
      %2346 = vst.msk [vmem:[#allocation3 + $0x70] sm:$0xf] %vm2317, %v2278
      %2347 = vst.msk [vmem:[#allocation3 + $0x74] sm:$0xf] %vm2317, %v2280
      %2348 = vst.msk [vmem:[#allocation3 + $0x78] sm:$0xf] %vm2317, %v2282
      %2349 = vst.msk [vmem:[#allocation3 + $0x7c] sm:$0xf] %vm2317, %v2284
      %v2350 = vld [vmem:[#allocation3] sm:$0xf]
      %v2351 = vld [vmem:[#allocation3 + $0x4] sm:$0xf]
      %v2352 = vld [vmem:[#allocation3 + $0x8] sm:$0xf]
      %v2353 = vld [vmem:[#allocation3 + $0xc] sm:$0xf]
      %v2354 = vld [vmem:[#allocation3 + $0x10] sm:$0xf]
      %v2355 = vld [vmem:[#allocation3 + $0x14] sm:$0xf]
      %v2356 = vld [vmem:[#allocation3 + $0x18] sm:$0xf]
      %v2357 = vld [vmem:[#allocation3 + $0x1c] sm:$0xf]
      %v2358 = vld [vmem:[#allocation3 + $0x20] sm:$0xf]
      %v2359 = vld [vmem:[#allocation3 + $0x24] sm:$0xf]
      %v2360 = vld [vmem:[#allocation3 + $0x28] sm:$0xf]
      %v2361 = vld [vmem:[#allocation3 + $0x2c] sm:$0xf]
      %v2362 = vld [vmem:[#allocation3 + $0x30] sm:$0xf]
      %v2363 = vld [vmem:[#allocation3 + $0x34] sm:$0xf]
      %v2364 = vld [vmem:[#allocation3 + $0x38] sm:$0xf]
      %v2365 = vld [vmem:[#allocation3 + $0x3c] sm:$0xf]
      %v2366 = vld [vmem:[#allocation3 + $0x40] sm:$0xf]
      %v2367 = vld [vmem:[#allocation3 + $0x44] sm:$0xf]
      %v2368 = vld [vmem:[#allocation3 + $0x48] sm:$0xf]
      %v2369 = vld [vmem:[#allocation3 + $0x4c] sm:$0xf]
      %v2370 = vld [vmem:[#allocation3 + $0x50] sm:$0xf]
      %v2371 = vld [vmem:[#allocation3 + $0x54] sm:$0xf]
      %v2372 = vld [vmem:[#allocation3 + $0x58] sm:$0xf]
      %v2373 = vld [vmem:[#allocation3 + $0x5c] sm:$0xf]
      %v2374 = vld [vmem:[#allocation3 + $0x60] sm:$0xf]
      %v2375 = vld [vmem:[#allocation3 + $0x64] sm:$0xf]
      %v2376 = vld [vmem:[#allocation3 + $0x68] sm:$0xf]
      %v2377 = vld [vmem:[#allocation3 + $0x6c] sm:$0xf]
      %v2378 = vld [vmem:[#allocation3 + $0x70] sm:$0xf]
      %v2379 = vld [vmem:[#allocation3 + $0x74] sm:$0xf]
      %v2380 = vld [vmem:[#allocation3 + $0x78] sm:$0xf]
      %v2381 = vld [vmem:[#allocation3 + $0x7c] sm:$0xf]
      %v2382 = vld [vmem:[%s3] sm:$0xf]
      %v2383 = vld [vmem:[%s3 + $0x4] sm:$0xf]
      %v2384 = vld [vmem:[%s3 + $0x8] sm:$0xf]
      %v2385 = vld [vmem:[%s3 + $0xc] sm:$0xf]
      %v2386 = vld [vmem:[%s3 + $0x10] sm:$0x3]
      %v2419 = vunpack.c.l.b16 %v2350
      %v2420 = vunpack.c.l.b16 %v2351
      %v2421 = vunpack.c.l.b16 %v2352
      %v2422 = vunpack.c.l.b16 %v2353
      %v2423 = vunpack.c.l.b16 %v2354
      %v2424 = vunpack.c.l.b16 %v2355
      %v2425 = vunpack.c.l.b16 %v2356
      %v2426 = vunpack.c.l.b16 %v2357
      %v2427 = vunpack.c.l.b16 %v2358
      %v2428 = vunpack.c.l.b16 %v2359
      %v2429 = vunpack.c.l.b16 %v2360
      %v2430 = vunpack.c.l.b16 %v2361
      %v2431 = vunpack.c.l.b16 %v2362
      %v2432 = vunpack.c.l.b16 %v2363
      %v2433 = vunpack.c.l.b16 %v2364
      %v2434 = vunpack.c.l.b16 %v2365
      %v2435 = vunpack.c.l.b16 %v2366
      %v2436 = vunpack.c.l.b16 %v2367
      %v2437 = vunpack.c.l.b16 %v2368
      %v2438 = vunpack.c.l.b16 %v2369
      %v2439 = vunpack.c.l.b16 %v2370
      %v2440 = vunpack.c.l.b16 %v2371
      %v2441 = vunpack.c.l.b16 %v2372
      %v2442 = vunpack.c.l.b16 %v2373
      %v2443 = vunpack.c.l.b16 %v2374
      %v2444 = vunpack.c.l.b16 %v2375
      %v2445 = vunpack.c.l.b16 %v2376
      %v2446 = vunpack.c.l.b16 %v2377
      %v2447 = vunpack.c.l.b16 %v2378
      %v2448 = vunpack.c.l.b16 %v2379
      %v2449 = vunpack.c.l.b16 %v2380
      %v2450 = vunpack.c.l.b16 %v2381
      %v2451 = vpack.c.b16 %v2420, %v2419
      %v2452 = vpack.c.b16 %v2422, %v2421
      %v2453 = vpack.c.b16 %v2424, %v2423
      %v2454 = vpack.c.b16 %v2426, %v2425
      %v2455 = vpack.c.b16 %v2428, %v2427
      %v2456 = vpack.c.b16 %v2430, %v2429
      %v2457 = vpack.c.b16 %v2432, %v2431
      %v2458 = vpack.c.b16 %v2434, %v2433
      %v2459 = vpack.c.b16 %v2436, %v2435
      %v2460 = vpack.c.b16 %v2438, %v2437
      %v2461 = vpack.c.b16 %v2440, %v2439
      %v2462 = vpack.c.b16 %v2442, %v2441
      %v2463 = vpack.c.b16 %v2444, %v2443
      %v2464 = vpack.c.b16 %v2446, %v2445
      %v2465 = vpack.c.b16 %v2448, %v2447
      %v2466 = vpack.c.b16 %v2450, %v2449
      %v2472 = vunpack.c.l.b16 %v2382
      %v2473 = vunpack.c.l.b16 %v2383
      %v2474 = vunpack.c.l.b16 %v2384
      %v2475 = vunpack.c.l.b16 %v2385
      %v2476 = vunpack.c.l.b16 %v2386
      %v2477 = vpack.c.b16 %v2473, %v2472
      %v2478 = vpack.c.b16 %v2475, %v2474
      %v2479 = vpack.c.b16 %v2476, %v2476
      %vm2482 = vcmask 293888
      %v2484 = vsel %vm2482, %v2451, 0
      %v2487 = vsel %vm2482, %v2452, 0
      %v2490 = vsel %vm2482, %v2453, 0
      %v2493 = vsel %vm2482, %v2454, 0
      %v2496 = vsel %vm2482, %v2455, 0
      %v2499 = vsel %vm2482, %v2456, 0
      %v2502 = vsel %vm2482, %v2457, 0
      %v2505 = vsel %vm2482, %v2458, 0
      %v2508 = vsel %vm2482, %v2459, 0
      %v2511 = vsel %vm2482, %v2460, 0
      %v2514 = vsel %vm2482, %v2461, 0
      %v2517 = vsel %vm2482, %v2462, 0
      %v2520 = vsel %vm2482, %v2463, 0
      %v2523 = vsel %vm2482, %v2464, 0
      %v2526 = vsel %vm2482, %v2465, 0
      %v2529 = vsel %vm2482, %v2466, 0
      %vm2531 = vcmask 1041408
      %v2533 = vsel %vm2531, %v2479, 0
      %2535 = vmatpush.bf16.msra.mxu0 0
      %2536 = vmatpush.bf16.msra.mxu0 0
      %2537 = vmatpush.bf16.msra.mxu0 0
      %2538 = vmatpush.bf16.msra.mxu0 0
      %2539 = vmatpush.bf16.msra.mxu0 0
      %2540 = vmatpush.bf16.msra.mxu0 %v2533
      %2541 = vmatpush.bf16.msra.mxu0 %v2478
      %2542 = vmatpush.bf16.msra.mxu0 %v2477
      %2543 = vmatmul.bf16.gmra.mxu0 %v2484
      %v2544 = vpop.f32.mrf.mxu0
      %v2545 = vadd.f32 0.0, %v2544
      %v2546 = vpop.f32.mrf.mxu0
      %v2547 = vadd.f32 0.0, %v2546
      %2548 = vmatmul.bf16.gmra.mxu0 %v2487
      %v2549 = vpop.f32.mrf.mxu0
      %v2550 = vadd.f32 0.0, %v2549
      %v2551 = vpop.f32.mrf.mxu0
      %v2552 = vadd.f32 0.0, %v2551
      %2553 = vmatmul.bf16.gmra.mxu0 %v2490
      %v2554 = vpop.f32.mrf.mxu0
      %v2555 = vadd.f32 0.0, %v2554
      %v2556 = vpop.f32.mrf.mxu0
      %v2557 = vadd.f32 0.0, %v2556
      %2558 = vmatmul.bf16.gmra.mxu0 %v2493
      %v2559 = vpop.f32.mrf.mxu0
      %v2560 = vadd.f32 0.0, %v2559
      %v2561 = vpop.f32.mrf.mxu0
      %v2562 = vadd.f32 0.0, %v2561
      %2563 = vmatmul.bf16.gmra.mxu0 %v2496
      %v2564 = vpop.f32.mrf.mxu0
      %v2565 = vadd.f32 0.0, %v2564
      %v2566 = vpop.f32.mrf.mxu0
      %v2567 = vadd.f32 0.0, %v2566
      %2568 = vmatmul.bf16.gmra.mxu0 %v2499
      %v2569 = vpop.f32.mrf.mxu0
      %v2570 = vadd.f32 0.0, %v2569
      %v2571 = vpop.f32.mrf.mxu0
      %v2572 = vadd.f32 0.0, %v2571
      %2573 = vmatmul.bf16.gmra.mxu0 %v2502
      %v2574 = vpop.f32.mrf.mxu0
      %v2575 = vadd.f32 0.0, %v2574
      %v2576 = vpop.f32.mrf.mxu0
      %v2577 = vadd.f32 0.0, %v2576
      %2578 = vmatmul.bf16.gmra.mxu0 %v2505
      %v2579 = vpop.f32.mrf.mxu0
      %v2580 = vadd.f32 0.0, %v2579
      %v2581 = vpop.f32.mrf.mxu0
      %v2582 = vadd.f32 0.0, %v2581
      %2583 = vmatmul.bf16.gmra.mxu0 %v2508
      %v2584 = vpop.f32.mrf.mxu0
      %v2585 = vadd.f32 0.0, %v2584
      %v2586 = vpop.f32.mrf.mxu0
      %v2587 = vadd.f32 0.0, %v2586
      %2588 = vmatmul.bf16.gmra.mxu0 %v2511
      %v2589 = vpop.f32.mrf.mxu0
      %v2590 = vadd.f32 0.0, %v2589
      %v2591 = vpop.f32.mrf.mxu0
      %v2592 = vadd.f32 0.0, %v2591
      %2593 = vmatmul.bf16.gmra.mxu0 %v2514
      %v2594 = vpop.f32.mrf.mxu0
      %v2595 = vadd.f32 0.0, %v2594
      %v2596 = vpop.f32.mrf.mxu0
      %v2597 = vadd.f32 0.0, %v2596
      %2598 = vmatmul.bf16.gmra.mxu0 %v2517
      %v2599 = vpop.f32.mrf.mxu0
      %v2600 = vadd.f32 0.0, %v2599
      %v2601 = vpop.f32.mrf.mxu0
      %v2602 = vadd.f32 0.0, %v2601
      %2603 = vmatmul.bf16.gmra.mxu0 %v2520
      %v2604 = vpop.f32.mrf.mxu0
      %v2605 = vadd.f32 0.0, %v2604
      %v2606 = vpop.f32.mrf.mxu0
      %v2607 = vadd.f32 0.0, %v2606
      %2608 = vmatmul.bf16.gmra.mxu0 %v2523
      %v2609 = vpop.f32.mrf.mxu0
      %v2610 = vadd.f32 0.0, %v2609
      %v2611 = vpop.f32.mrf.mxu0
      %v2612 = vadd.f32 0.0, %v2611
      %2613 = vmatmul.bf16.gmra.mxu0 %v2526
      %v2614 = vpop.f32.mrf.mxu0
      %v2615 = vadd.f32 0.0, %v2614
      %v2616 = vpop.f32.mrf.mxu0
      %v2617 = vadd.f32 0.0, %v2616
      %2618 = vmatmul.bf16.gmra.mxu0 %v2529
      %v2619 = vpop.f32.mrf.mxu0
      %v2620 = vadd.f32 0.0, %v2619
      %v2621 = vpop.f32.mrf.mxu0
      %v2622 = vadd.f32 0.0, %v2621
      %2623 = vdwg.mxu0
      %v2624 = vsel %vm237, %v2545, 0.0
      %v2625 = vsel %vm237, %v2547, 0.0
      %v2626 = vadd.f32 %v2624, %v2625
      %v2627 = vsel %vm237, %v2550, 0.0
      %v2628 = vadd.f32 %v2626, %v2627
      %v2629 = vsel %vm237, %v2552, 0.0
      %v2630 = vadd.f32 %v2628, %v2629
      %v2631 = vsel %vm237, %v2555, 0.0
      %v2632 = vadd.f32 %v2630, %v2631
      %v2633 = vsel %vm237, %v2557, 0.0
      %v2634 = vadd.f32 %v2632, %v2633
      %v2635 = vsel %vm237, %v2560, 0.0
      %v2636 = vadd.f32 %v2634, %v2635
      %v2637 = vsel %vm237, %v2562, 0.0
      %v2638 = vadd.f32 %v2636, %v2637
      %v2639 = vsel %vm237, %v2565, 0.0
      %v2640 = vadd.f32 %v2638, %v2639
      %v2641 = vsel %vm237, %v2567, 0.0
      %v2642 = vadd.f32 %v2640, %v2641
      %v2643 = vsel %vm237, %v2570, 0.0
      %v2644 = vadd.f32 %v2642, %v2643
      %v2645 = vsel %vm237, %v2572, 0.0
      %v2646 = vadd.f32 %v2644, %v2645
      %v2647 = vsel %vm237, %v2575, 0.0
      %v2648 = vadd.f32 %v2646, %v2647
      %v2649 = vsel %vm237, %v2577, 0.0
      %v2650 = vadd.f32 %v2648, %v2649
      %v2651 = vsel %vm237, %v2580, 0.0
      %v2652 = vadd.f32 %v2650, %v2651
      %v2653 = vsel %vm237, %v2582, 0.0
      %v2654 = vadd.f32 %v2652, %v2653
      %v2655 = vsel %vm237, %v2585, 0.0
      %v2656 = vadd.f32 %v2654, %v2655
      %v2657 = vsel %vm237, %v2587, 0.0
      %v2658 = vadd.f32 %v2656, %v2657
      %v2659 = vsel %vm237, %v2590, 0.0
      %v2660 = vadd.f32 %v2658, %v2659
      %v2661 = vsel %vm237, %v2592, 0.0
      %v2662 = vadd.f32 %v2660, %v2661
      %v2663 = vsel %vm237, %v2595, 0.0
      %v2664 = vadd.f32 %v2662, %v2663
      %v2665 = vsel %vm237, %v2597, 0.0
      %v2666 = vadd.f32 %v2664, %v2665
      %v2667 = vsel %vm237, %v2600, 0.0
      %v2668 = vadd.f32 %v2666, %v2667
      %v2669 = vsel %vm237, %v2602, 0.0
      %v2670 = vadd.f32 %v2668, %v2669
      %v2671 = vsel %vm237, %v2605, 0.0
      %v2672 = vadd.f32 %v2670, %v2671
      %v2673 = vsel %vm237, %v2607, 0.0
      %v2674 = vadd.f32 %v2672, %v2673
      %v2675 = vsel %vm237, %v2610, 0.0
      %v2676 = vadd.f32 %v2674, %v2675
      %v2677 = vsel %vm237, %v2612, 0.0
      %v2678 = vadd.f32 %v2676, %v2677
      %v2679 = vsel %vm237, %v2615, 0.0
      %v2680 = vadd.f32 %v2678, %v2679
      %v2681 = vsel %vm237, %v2617, 0.0
      %v2682 = vadd.f32 %v2680, %v2681
      %v2683 = vsel %vm237, %v2620, 0.0
      %v2684 = vadd.f32 %v2682, %v2683
      %v2685 = vsel %vm237, %v2622, 0.0
      %v2686 = vadd.f32 %v2684, %v2685
      %v2687 = vrot.slane %v2686, 4
      %v2688 = vadd.f32 %v2686, %v2687
      %v2689 = vrot.slane %v2688, 2
      %v2690 = vadd.f32 %v2688, %v2689
      %v2691 = vrot.slane %v2690, 1
      %v2692 = vadd.f32 %v2690, %v2691
      %v2693 = vmul.f32 %v2545, %v2545
      %v2694 = vmul.f32 %v2547, %v2547
      %v2695 = vmul.f32 %v2550, %v2550
      %v2696 = vmul.f32 %v2552, %v2552
      %v2697 = vmul.f32 %v2555, %v2555
      %v2698 = vmul.f32 %v2557, %v2557
      %v2699 = vmul.f32 %v2560, %v2560
      %v2700 = vmul.f32 %v2562, %v2562
      %v2701 = vmul.f32 %v2565, %v2565
      %v2702 = vmul.f32 %v2567, %v2567
      %v2703 = vmul.f32 %v2570, %v2570
      %v2704 = vmul.f32 %v2572, %v2572
      %v2705 = vmul.f32 %v2575, %v2575
      %v2706 = vmul.f32 %v2577, %v2577
      %v2707 = vmul.f32 %v2580, %v2580
      %v2708 = vmul.f32 %v2582, %v2582
      %v2709 = vmul.f32 %v2585, %v2585
      %v2710 = vmul.f32 %v2587, %v2587
      %v2711 = vmul.f32 %v2590, %v2590
      %v2712 = vmul.f32 %v2592, %v2592
      %v2713 = vmul.f32 %v2595, %v2595
      %v2714 = vmul.f32 %v2597, %v2597
      %v2715 = vmul.f32 %v2600, %v2600
      %v2716 = vmul.f32 %v2602, %v2602
      %v2717 = vmul.f32 %v2605, %v2605
      %v2718 = vmul.f32 %v2607, %v2607
      %v2719 = vmul.f32 %v2610, %v2610
      %v2720 = vmul.f32 %v2612, %v2612
      %v2721 = vmul.f32 %v2615, %v2615
      %v2722 = vmul.f32 %v2617, %v2617
      %v2723 = vmul.f32 %v2620, %v2620
      %v2724 = vmul.f32 %v2622, %v2622
      %v2725 = vsel %vm237, %v2693, 0.0
      %v2726 = vsel %vm237, %v2694, 0.0
      %v2727 = vadd.f32 %v2725, %v2726
      %v2728 = vsel %vm237, %v2695, 0.0
      %v2729 = vadd.f32 %v2727, %v2728
      %v2730 = vsel %vm237, %v2696, 0.0
      %v2731 = vadd.f32 %v2729, %v2730
      %v2732 = vsel %vm237, %v2697, 0.0
      %v2733 = vadd.f32 %v2731, %v2732
      %v2734 = vsel %vm237, %v2698, 0.0
      %v2735 = vadd.f32 %v2733, %v2734
      %v2736 = vsel %vm237, %v2699, 0.0
      %v2737 = vadd.f32 %v2735, %v2736
      %v2738 = vsel %vm237, %v2700, 0.0
      %v2739 = vadd.f32 %v2737, %v2738
      %v2740 = vsel %vm237, %v2701, 0.0
      %v2741 = vadd.f32 %v2739, %v2740
      %v2742 = vsel %vm237, %v2702, 0.0
      %v2743 = vadd.f32 %v2741, %v2742
      %v2744 = vsel %vm237, %v2703, 0.0
      %v2745 = vadd.f32 %v2743, %v2744
      %v2746 = vsel %vm237, %v2704, 0.0
      %v2747 = vadd.f32 %v2745, %v2746
      %v2748 = vsel %vm237, %v2705, 0.0
      %v2749 = vadd.f32 %v2747, %v2748
      %v2750 = vsel %vm237, %v2706, 0.0
      %v2751 = vadd.f32 %v2749, %v2750
      %v2752 = vsel %vm237, %v2707, 0.0
      %v2753 = vadd.f32 %v2751, %v2752
      %v2754 = vsel %vm237, %v2708, 0.0
      %v2755 = vadd.f32 %v2753, %v2754
      %v2756 = vsel %vm237, %v2709, 0.0
      %v2757 = vadd.f32 %v2755, %v2756
      %v2758 = vsel %vm237, %v2710, 0.0
      %v2759 = vadd.f32 %v2757, %v2758
      %v2760 = vsel %vm237, %v2711, 0.0
      %v2761 = vadd.f32 %v2759, %v2760
      %v2762 = vsel %vm237, %v2712, 0.0
      %v2763 = vadd.f32 %v2761, %v2762
      %v2764 = vsel %vm237, %v2713, 0.0
      %v2765 = vadd.f32 %v2763, %v2764
      %v2766 = vsel %vm237, %v2714, 0.0
      %v2767 = vadd.f32 %v2765, %v2766
      %v2768 = vsel %vm237, %v2715, 0.0
      %v2769 = vadd.f32 %v2767, %v2768
      %v2770 = vsel %vm237, %v2716, 0.0
      %v2771 = vadd.f32 %v2769, %v2770
      %v2772 = vsel %vm237, %v2717, 0.0
      %v2773 = vadd.f32 %v2771, %v2772
      %v2774 = vsel %vm237, %v2718, 0.0
      %v2775 = vadd.f32 %v2773, %v2774
      %v2776 = vsel %vm237, %v2719, 0.0
      %v2777 = vadd.f32 %v2775, %v2776
      %v2778 = vsel %vm237, %v2720, 0.0
      %v2779 = vadd.f32 %v2777, %v2778
      %v2780 = vsel %vm237, %v2721, 0.0
      %v2781 = vadd.f32 %v2779, %v2780
      %v2782 = vsel %vm237, %v2722, 0.0
      %v2783 = vadd.f32 %v2781, %v2782
      %v2784 = vsel %vm237, %v2723, 0.0
      %v2785 = vadd.f32 %v2783, %v2784
      %v2786 = vsel %vm237, %v2724, 0.0
      %v2787 = vadd.f32 %v2785, %v2786
      %v2788 = vrot.slane %v2787, 4
      %v2789 = vadd.f32 %v2787, %v2788
      %v2790 = vrot.slane %v2789, 2
      %v2791 = vadd.f32 %v2789, %v2790
      %v2792 = vrot.slane %v2791, 1
      %v2793 = vadd.f32 %v2791, %v2792
      %2794 = vst.msk [vmem:[%s235] sm:$0x1] %vm246, %v2692
      %2795 = vst.msk [vmem:[%s235 + $0x1] sm:$0x1] %vm246, %v2793
      %2796 = vst.msk [vmem:[%s231] sm:$0xff] %vm237, %v2545
      %2797 = vst.msk [vmem:[%s231 + $0x8] sm:$0xff] %vm237, %v2547
      %2798 = vst.msk [vmem:[%s231 + $0x10] sm:$0xff] %vm237, %v2550
      %2799 = vst.msk [vmem:[%s231 + $0x18] sm:$0xff] %vm237, %v2552
      %2800 = vst.msk [vmem:[%s231 + $0x20] sm:$0xff] %vm237, %v2555
      %2801 = vst.msk [vmem:[%s231 + $0x28] sm:$0xff] %vm237, %v2557
      %2802 = vst.msk [vmem:[%s231 + $0x30] sm:$0xff] %vm237, %v2560
      %2803 = vst.msk [vmem:[%s231 + $0x38] sm:$0xff] %vm237, %v2562
      %2804 = vst.msk [vmem:[%s231 + $0x40] sm:$0xff] %vm237, %v2565
      %2805 = vst.msk [vmem:[%s231 + $0x48] sm:$0xff] %vm237, %v2567
      %2806 = vst.msk [vmem:[%s231 + $0x50] sm:$0xff] %vm237, %v2570
      %2807 = vst.msk [vmem:[%s231 + $0x58] sm:$0xff] %vm237, %v2572
      %2808 = vst.msk [vmem:[%s231 + $0x60] sm:$0xff] %vm237, %v2575
      %2809 = vst.msk [vmem:[%s231 + $0x68] sm:$0xff] %vm237, %v2577
      %2810 = vst.msk [vmem:[%s231 + $0x70] sm:$0xff] %vm237, %v2580
      %2811 = vst.msk [vmem:[%s231 + $0x78] sm:$0xff] %vm237, %v2582
      %2812 = vst.msk [vmem:[%s231 + $0x80] sm:$0xff] %vm237, %v2585
      %2813 = vst.msk [vmem:[%s231 + $0x88] sm:$0xff] %vm237, %v2587
      %2814 = vst.msk [vmem:[%s231 + $0x90] sm:$0xff] %vm237, %v2590
      %2815 = vst.msk [vmem:[%s231 + $0x98] sm:$0xff] %vm237, %v2592
      %2816 = vst.msk [vmem:[%s231 + $0xa0] sm:$0xff] %vm237, %v2595
      %2817 = vst.msk [vmem:[%s231 + $0xa8] sm:$0xff] %vm237, %v2597
      %2818 = vst.msk [vmem:[%s231 + $0xb0] sm:$0xff] %vm237, %v2600
      %2819 = vst.msk [vmem:[%s231 + $0xb8] sm:$0xff] %vm237, %v2602
      %2820 = vst.msk [vmem:[%s231 + $0xc0] sm:$0xff] %vm237, %v2605
      %2821 = vst.msk [vmem:[%s231 + $0xc8] sm:$0xff] %vm237, %v2607
      %2822 = vst.msk [vmem:[%s231 + $0xd0] sm:$0xff] %vm237, %v2610
      %2823 = vst.msk [vmem:[%s231 + $0xd8] sm:$0xff] %vm237, %v2612
      %2824 = vst.msk [vmem:[%s231 + $0xe0] sm:$0xff] %vm237, %v2615
      %2825 = vst.msk [vmem:[%s231 + $0xe8] sm:$0xff] %vm237, %v2617
      %2826 = vst.msk [vmem:[%s231 + $0xf0] sm:$0xff] %vm237, %v2620
      %2827 = vst.msk [vmem:[%s231 + $0xf8] sm:$0xff] %vm237, %v2622
      %p2828 = scmp.lt.s32.totalorder %s17, 1
      %s2829 = scalar_select %p2828, %s17, 1
      %s2830 = smul.addr %s2829, 32
      %s2831 = smul.addr %s2830, 8
      %s2832 = scalar_lea.vmem %s4, %s2831
      %p2833 = scmp.lt.s32.totalorder %s17, 1
      %s2834 = scalar_select %p2833, %s17, 1
      %s2835 = smul.addr %s2834, 2
      %s2836 = scalar_lea.vmem %s5, %s2835
      // Predicated region
      $region37: #{resnet_block.5} parent=35 // pred_check
        %p2837 = pneg %p124
      $region38: #{resnet_block.5} parent=35 // pred_check_branch
        %2839 = sbr.rel (%p2837) target = $region40
      $region39: #{resnet_block.5} parent=35 // pred_region
        _
      $region40: #{resnet_block.5} parent=35 // pred_fallthru
        _
      // Predicated region
      $region41: #{resnet_block.5} parent=35 // pred_check
        %p2840 = pneg %p150
      $region42: #{resnet_block.5} parent=35 // pred_check_branch
        %2842 = sbr.rel (%p2840) target = $region44
      $region43: #{resnet_block.5} parent=35 // pred_region
        _
      $region44: #{resnet_block.5} parent=35 // pred_fallthru
        _
    $region36: #{resnet_block.5} parent=5 // pred_fallthru
      _
    %p2843 = scmp.le.s32.totalorder 2, %s12
    // Predicated region
    $region45: #{resnet_block.5} parent=5 // pred_check
      %p2844 = pneg %p2843
    $region46: #{resnet_block.5} parent=5 // pred_check_branch
      %2846 = sbr.rel (%p2844) target = $region48
    $region47: #{resnet_block.5} parent=5 // pred_region
      %s2847 = ssub.s32 %s12, 2
      // Predicated region
      $region49: #{resnet_block.5} parent=47 // pred_check
        %p2848 = pneg %p130
      $region50: #{resnet_block.5} parent=47 // pred_check_branch
        %2850 = sbr.rel (%p2848) target = $region52
      $region51: #{resnet_block.5} parent=47 // pred_region
        %p2851 = scmp.lt.s32.totalorder %s18, 1
        %s2852 = scalar_select %p2851, %s18, 1
        %s2853 = smul.addr %s2852, 32
        %s2854 = smul.addr %s2853, 8
        %s2855 = scalar_lea.vmem %s4, %s2854
      $region52: #{resnet_block.5} parent=47 // pred_fallthru
        _
      // Predicated region
      $region53: #{resnet_block.5} parent=47 // pred_check
        %p2856 = pneg %p156
      $region54: #{resnet_block.5} parent=47 // pred_check_branch
        %2858 = sbr.rel (%p2856) target = $region56
      $region55: #{resnet_block.5} parent=47 // pred_region
        %p2859 = scmp.lt.s32.totalorder %s18, 1
        %s2860 = scalar_select %p2859, %s18, 1
        %s2861 = smul.addr %s2860, 2
        %s2862 = scalar_lea.vmem %s5, %s2861
      $region56: #{resnet_block.5} parent=47 // pred_fallthru
        _
    $region48: #{resnet_block.5} parent=5 // pred_fallthru
      _
  $region6: #{resnet_block.5} parent=0 // loop_footer
    %s16 = sadd.s32 1, %s12
  $region7: #{resnet_block.5} parent=0 // loop_footer_branch
    %11 = sbr.rel target = $region3
  $region8: #{resnet_block.5} parent=0 // loop_exit
    _

</llo_original>
